<compile_context>
chip_gen: v7x
topology: tpu7x:2x2x1
jax: 0.10.0
libtpu: 0.0.40
codegen_flags: <defaults>
</compile_context>

<pallas_src>
import functools
import math

import jax
import jax.numpy as jnp
from jax.experimental import pallas as pl
from jax.experimental.pallas import tpu as pltpu


def _gelu_tanh(x):
    # TODO(synk): PyTorch nn.GELU defaults to exact erf GELU; tanh approximation used in-kernel.
    c = math.sqrt(2.0 / math.pi)
    return 0.5 * x * (1.0 + jnp.tanh(c * (x + 0.044715 * x * x * x)))


# ------------------------- Kernel 1: fused conv tokenizer -------------------------

def _zero_pad_hw(x, p):
    """Zero-pad H/W of an (H, W, C) value via concatenation (no scratch writes)."""
    if p == 0:
        return x
    h, w, c = x.shape
    zr = jnp.zeros((p, w, c), x.dtype)
    x = jnp.concatenate([zr, x, zr], axis=0)
    zc = jnp.zeros((h + 2 * p, p, c), x.dtype)
    return jnp.concatenate([zc, x, zc], axis=1)


def _conv2d_relu(xp, w, b, k, ho, wo):
    """In-VMEM im2col -> single MXU matmul -> bias -> ReLU.  xp: (Hp, Wp, Cin)."""
    cin = xp.shape[-1]
    cols = [xp[di:di + ho, dj:dj + wo, :].reshape(ho * wo, cin)
            for di in range(k) for dj in range(k)]
    patches = jnp.concatenate(cols, axis=-1)                     # (Ho*Wo, k*k*Cin)
    y = jnp.dot(patches, w, preferred_element_type=jnp.float32) + b
    return jnp.maximum(y, 0.0).reshape(ho, wo, w.shape[-1])      # (Ho, Wo, Cout)


def _maxpool2d(y, pk, ps, pp, po, qo):
    """Separable strided max-pool; windows clamped to valid range (== -inf padding)."""
    hc, wc, _ = y.shape
    rows = []
    for i in range(po):
        lo = max(i * ps - pp, 0)
        hi = min(i * ps - pp + pk, hc)
        rows.append(jnp.max(y[lo:hi], axis=0, keepdims=True))
    yh = jnp.concatenate(rows, axis=0)                           # (Po, Wc, C)
    cols = []
    for j in range(qo):
        lo = max(j * ps - pp, 0)
        hi = min(j * ps - pp + pk, wc)
        cols.append(jnp.max(yh[:, lo:hi, :], axis=1, keepdims=True))
    return jnp.concatenate(cols, axis=1)                         # (Po, Qo, C)


def _make_tokenizer_kernel(block_dims, k, conv_p, pool_k, pool_s, pool_p):
    nb = len(block_dims)

    def kernel(*refs):
        x_ref = refs[0]
        tok_ref = refs[1 + 2 * nb]
        x = x_ref[0]                                             # (H, W, Cin_p)
        for bi, (ho, wo, po, qo, _cout) in enumerate(block_dims):
            w = refs[1 + 2 * bi][...]                            # (k*k*Cin, Cout)
            b = refs[2 + 2 * bi][...]                            # (1, Cout)
            xp = _zero_pad_hw(x, conv_p)
            y = _conv2d_relu(xp, w, b, k, ho, wo)
            x = _maxpool2d(y, pool_k, pool_s, pool_p, po, qo)    # (Po, Qo, Cout)
        ph = block_dims[-1][2]
        # (Ph, Pw, D) -> (S, D) token matrix (matches Flatten(start_dim=2).swapaxes(1, 2)).
        tok_ref[0] = jnp.concatenate([x[h] for h in range(ph)], axis=0)

    return kernel


def tokenizer_pallas(x_nhwc, conv_params, cfg):
    """x_nhwc: (B, H, W, Cin_p) f32; conv_params: per-block {'wm': (k*k*Cin, Cout), 'b': (1, Cout)}."""
    b, h, w, c0 = x_nhwc.shape
    k = cfg["kernel_size"]
    conv_p = cfg["conv_padding"]
    pool_k, pool_s, pool_p = cfg["kernel_size"], cfg["pool_stride"], cfg["pool_padding"]

    block_dims = []
    hi, wi = h, w
    for bp in conv_params:
        cout = bp["wm"].shape[1]
        ho = hi + 2 * conv_p - k + 1
        wo = wi + 2 * conv_p - k + 1
        po = (ho + 2 * pool_p - pool_k) // pool_s + 1
        qo = (wo + 2 * pool_p - pool_k) // pool_s + 1
        block_dims.append((ho, wo, po, qo, cout))
        hi, wi = po, qo
    s, d = hi * wi, block_dims[-1][4]

    in_specs = [pl.BlockSpec((1, h, w, c0), lambda i: (i, 0, 0, 0))]
    args = [x_nhwc]
    for bp in conv_params:
        kw, cout = bp["wm"].shape
        in_specs.append(pl.BlockSpec((kw, cout), lambda i: (0, 0)))
        in_specs.append(pl.BlockSpec((1, cout), lambda i: (0, 0)))
        args.extend([bp["wm"], bp["b"]])

    return pl.pallas_call(
        _make_tokenizer_kernel(tuple(block_dims), k, conv_p, pool_k, pool_s, pool_p),
        out_shape=jax.ShapeDtypeStruct((b, s, d), jnp.float32),
        grid=(b,),
        in_specs=in_specs,
        out_specs=pl.BlockSpec((1, s, d), lambda i: (i, 0, 0)),
        compiler_params=pltpu.CompilerParams(dimension_semantics=("parallel",)),
    )(*args)


# ----------- Kernel 2: all encoder layers + sequence pooling + classifier -----------

def _transformer_kernel(tok_ref, ln_ref, wqkv_ref, bqkv_ref, wo_ref, bo_ref,
                        w1_ref, b1_ref, w2_ref, b2_ref,
                        pw_ref, pb_ref, cw_ref, cb_ref, out_ref, *,
                        num_layers, num_heads, eps):
    x = tok_ref[0]                                               # (S, D)
    d = x.shape[-1]
    hd = d // num_heads
    scale = 1.0 / math.sqrt(hd)

    def layer_norm(v, g, bb):
        mu = jnp.mean(v, axis=-1, keepdims=True)
        var = jnp.mean((v - mu) * (v - mu), axis=-1, keepdims=True)
        return (v - mu) * jax.lax.rsqrt(var + eps) * g + bb

    for l in range(num_layers):
        ln = ln_ref[l]                                           # (4, D): ln1_g, ln1_b, ln2_g, ln2_b
        # ---- pre-norm multi-head self-attention (head-batched) ----
        h = layer_norm(x, ln[0:1, :], ln[1:2, :])
        qkv = jnp.dot(h, wqkv_ref[l], preferred_element_type=jnp.float32) + bqkv_ref[l]
        q = jnp.stack([qkv[:, n * hd:(n + 1) * hd] for n in range(num_heads)], axis=0)
        kk = jnp.stack([qkv[:, d + n * hd:d + (n + 1) * hd] for n in range(num_heads)], axis=0)
        v = jnp.stack([qkv[:, 2 * d + n * hd:2 * d + (n + 1) * hd] for n in range(num_heads)], axis=0)
        s = jnp.einsum('hqd,hkd->hqk', q, kk, preferred_element_type=jnp.float32) * scale
        s = s - jnp.max(s, axis=-1, keepdims=True)
        e = jnp.exp(s)
        p = e * pl.reciprocal(jnp.sum(e, axis=-1, keepdims=True), approx=True)
        o = jnp.einsum('hqk,hkd->hqd', p, v, preferred_element_type=jnp.float32)      # (H, S, hd)
        proj = jnp.einsum('hsd,hdo->hso', o, wo_ref[l],
                          preferred_element_type=jnp.float32).sum(axis=0)              # (S, D)
        x = x + proj + bo_ref[l]                                 # dropout = identity (eval mode)
        # ---- pre-norm MLP ----
        h = layer_norm(x, ln[2:3, :], ln[3:4, :])
        h = jnp.dot(h, w1_ref[l], preferred_element_type=jnp.float32) + b1_ref[l]
        h = _gelu_tanh(h)
        x = x + jnp.dot(h, w2_ref[l], preferred_element_type=jnp.float32) + b2_ref[l]
    # TODO(synk): custom transformer.TransformerEncoder source unavailable; standard pre-norm
    # stack without an extra final LayerNorm is implemented.

    # ---- sequence pooling + classifier ----
    logit = jnp.sum(x * pw_ref[...], axis=-1, keepdims=True) + pb_ref[...]             # (S, 1)
    logit = logit - jnp.max(logit, axis=0, keepdims=True)
    e = jnp.exp(logit)
    a = e * pl.reciprocal(jnp.sum(e, axis=0, keepdims=True), approx=True)
    pooled = jnp.sum(a * x, axis=0, keepdims=True)                                      # (1, D)
    out = jnp.dot(pooled, cw_ref[...], preferred_element_type=jnp.float32) + cb_ref[...]
    out_ref[0] = out                                                                    # (1, NC)


def transformer_pallas(tokens, kp, cfg):
    b, s, d = tokens.shape
    nl = cfg["num_enc_layers"]
    nh = cfg["num_heads"]
    dm = cfg["h_dim_mlp"]
    nc = cfg["num_classes"]
    hd = d // nh

    out = pl.pallas_call(
        functools.partial(_transformer_kernel, num_layers=nl, num_heads=nh, eps=1e-5),
        out_shape=jax.ShapeDtypeStruct((b, 1, nc), jnp.float32),
        grid=(b,),
        in_specs=[
            pl.BlockSpec((1, s, d), lambda i: (i, 0, 0)),
            pl.BlockSpec((nl, 4, d), lambda i: (0, 0, 0)),
            pl.BlockSpec((nl, d, 3 * d), lambda i: (0, 0, 0)),
            pl.BlockSpec((nl, 1, 3 * d), lambda i: (0, 0, 0)),
            pl.BlockSpec((nl, nh, hd, d), lambda i: (0, 0, 0, 0)),
            pl.BlockSpec((nl, 1, d), lambda i: (0, 0, 0)),
            pl.BlockSpec((nl, d, dm), lambda i: (0, 0, 0)),
            pl.BlockSpec((nl, 1, dm), lambda i: (0, 0, 0)),
            pl.BlockSpec((nl, dm, d), lambda i: (0, 0, 0)),
            pl.BlockSpec((nl, 1, d), lambda i: (0, 0, 0)),
            pl.BlockSpec((1, d), lambda i: (0, 0)),
            pl.BlockSpec((1, 1), lambda i: (0, 0)),
            pl.BlockSpec((d, nc), lambda i: (0, 0)),
            pl.BlockSpec((1, nc), lambda i: (0, 0)),
        ],
        out_specs=pl.BlockSpec((1, 1, nc), lambda i: (i, 0, 0)),
        compiler_params=pltpu.CompilerParams(dimension_semantics=("parallel",)),
    )(tokens, kp["ln"], kp["wqkv"], kp["bqkv"], kp["wo"], kp["bo"],
      kp["w1"], kp["b1"], kp["w2"], kp["b2"],
      kp["pool_w"], kp["pool_b"], kp["cls_w"], kp["cls_b"])
    return out.reshape(b, nc)


# ------------------------------------ CCT forward ------------------------------------

def cct_forward(x, kparams, cfg):
    # NCHW -> NHWC + pad input channels to a sublane-friendly multiple of 8 (cheap XLA prologue).
    x = jnp.transpose(x, (0, 2, 3, 1)).astype(jnp.float32)
    cin = x.shape[-1]
    cin_p = ((cin + 7) // 8) * 8
    if cin_p != cin:
        x = jnp.pad(x, ((0, 0), (0, 0), (0, 0), (0, cin_p - cin)))
    tokens = tokenizer_pallas(x, kparams["conv"], cfg)           # (B, S, D), stays in HBM once
    # use_pos_enc defaults to False in CCT -> positional encoding skipped.
    return transformer_pallas(tokens, kparams, cfg)              # (B, num_classes)


# ------------------------------------ parameters ------------------------------------

def init_params(key, cfg):
    d = cfg["d_model"]
    k = cfg["kernel_size"]
    dm = cfg["h_dim_mlp"]
    nc = cfg["num_classes"]
    chans = [3] + [64] * (cfg["num_conv_blocks"] - 1) + [d]
    keys = iter(jax.random.split(key, 64))

    def nrm(shape, scale=0.02):
        return (scale * jax.random.normal(next(keys), shape)).astype(jnp.float32)

    p = {"conv_blocks": [], "layers": []}
    for cin, cout in zip(chans[:-1], chans[1:]):
        p["conv_blocks"].append({"w": nrm((cout, cin, k, k), 0.1),   # PyTorch Conv2d layout
                                 "b": nrm((cout,), 0.02)})
    for _ in range(cfg["num_enc_layers"]):
        p["layers"].append({
            "ln1_g": jnp.ones((d,), jnp.float32), "ln1_b": jnp.zeros((d,), jnp.float32),
            "ln2_g": jnp.ones((d,), jnp.float32), "ln2_b": jnp.zeros((d,), jnp.float32),
            "wqkv": nrm((d, 3 * d)), "bqkv": jnp.zeros((3 * d,), jnp.float32),
            "wo": nrm((d, d)), "bo": jnp.zeros((d,), jnp.float32),
            "w1": nrm((d, dm)), "b1": jnp.zeros((dm,), jnp.float32),
            "w2": nrm((dm, d)), "b2": jnp.zeros((d,), jnp.float32),
        })
    p["pool_w"] = nrm((d,))
    p["pool_b"] = jnp.zeros((), jnp.float32)
    p["cls_w"] = nrm((d, nc))
    p["cls_b"] = jnp.zeros((nc,), jnp.float32)
    return p


def prepare_params(p, cfg):
    """One-time repack: torch conv taps -> im2col matrices, per-layer weights stacked on axis 0."""
    k = cfg["kernel_size"]
    d = cfg["d_model"]
    nh = cfg["num_heads"]
    hd = d // nh
    conv = []
    for i, cb in enumerate(p["conv_blocks"]):
        w = cb["w"]                                              # (Cout, Cin, k, k)
        cout, cin = w.shape[0], w.shape[1]
        wt = jnp.transpose(w, (2, 3, 1, 0))                      # (k, k, Cin, Cout)
        if i == 0:
            cin_p = ((cin + 7) // 8) * 8
            if cin_p != cin:
                wt = jnp.pad(wt, ((0, 0), (0, 0), (0, cin_p - cin), (0, 0)))
            cin = cin_p
        conv.append({"wm": wt.reshape(k * k * cin, cout),        # rows ordered (di, dj, cin)
                     "b": cb["b"].reshape(1, cout)})
    nl = len(p["layers"])
    stk = lambda name: jnp.stack([lp[name] for lp in p["layers"]], axis=0)
    return {
        "conv": conv,
        "ln": jnp.stack([jnp.stack([lp["ln1_g"], lp["ln1_b"], lp["ln2_g"], lp["ln2_b"]], 0)
                         for lp in p["layers"]], 0),             # (L, 4, D)
        "wqkv": stk("wqkv"), "bqkv": stk("bqkv")[:, None, :],
        "wo": stk("wo").reshape(nl, nh, hd, d), "bo": stk("bo")[:, None, :],
        "w1": stk("w1"), "b1": stk("b1")[:, None, :],
        "w2": stk("w2"), "b2": stk("b2")[:, None, :],
        "pool_w": p["pool_w"].reshape(1, d),
        "pool_b": p["pool_b"].reshape(1, 1),
        "cls_w": p["cls_w"],
        "cls_b": p["cls_b"].reshape(1, cfg["num_classes"]),
    }


if __name__ == "__main__":
    cfg = dict(
        kernel_size=3,
        d_model=32,
        h_dim_mlp=64,
        num_heads=4,
        num_enc_layers=2,
        num_classes=10,
        num_conv_blocks=2,
        conv_padding=1,
        pool_stride=2,
        pool_padding=1,
    )
    key = jax.random.PRNGKey(0)
    kx, kp_key = jax.random.split(key)
    x = jax.random.normal(kx, (2, 3, 16, 16), dtype=jnp.float32)   # NCHW like PyTorch
    kparams = prepare_params(init_params(kp_key, cfg), cfg)

    fwd = jax.jit(functools.partial(cct_forward, cfg=cfg))
    logits = jax.block_until_ready(fwd(x, kparams))
    assert logits.shape == (2, cfg["num_classes"])
    assert bool(jnp.all(jnp.isfinite(logits)))
    print("KERNEL_OK")
</pallas_src>

<mosaic_0001>
module attributes {stable_mosaic.version = 11 : i64} {
  func.func @_transformer_kernel(%arg0: i32, %arg1: memref<1x16x32xf32, #tpu.memory_space<vmem>>, %arg2: memref<2x4x32xf32, #tpu.memory_space<vmem>>, %arg3: memref<2x32x96xf32, #tpu.memory_space<vmem>>, %arg4: memref<2x1x96xf32, #tpu.memory_space<vmem>>, %arg5: memref<2x4x8x32xf32, #tpu.memory_space<vmem>>, %arg6: memref<2x1x32xf32, #tpu.memory_space<vmem>>, %arg7: memref<2x32x64xf32, #tpu.memory_space<vmem>>, %arg8: memref<2x1x64xf32, #tpu.memory_space<vmem>>, %arg9: memref<2x64x32xf32, #tpu.memory_space<vmem>>, %arg10: memref<2x1x32xf32, #tpu.memory_space<vmem>>, %arg11: memref<1x32xf32, #tpu.memory_space<vmem>>, %arg12: memref<1x1xf32, #tpu.memory_space<vmem>>, %arg13: memref<32x10xf32, #tpu.memory_space<vmem>>, %arg14: memref<1x10xf32, #tpu.memory_space<vmem>>, %arg15: memref<1x1x10xf32, #tpu.memory_space<vmem>>) attributes {dimension_semantics = [#tpu.dimension_semantics<parallel>], iteration_bounds = array<i64: 2>, scalar_prefetch = 0 : i64, scratch_operands = 0 : i64, tpu.core_type = #tpu.core_type<tc>, window_params = [{transform_indices = @transform_0, window_bounds = array<i64: 1, 16, 32>}, {pipeline_mode = #tpu.pipeline_mode<synchronous>, transform_indices = @transform_1, window_bounds = array<i64: 2, 4, 32>}, {pipeline_mode = #tpu.pipeline_mode<synchronous>, transform_indices = @transform_2, window_bounds = array<i64: 2, 32, 96>}, {pipeline_mode = #tpu.pipeline_mode<synchronous>, transform_indices = @transform_3, window_bounds = array<i64: 2, 1, 96>}, {pipeline_mode = #tpu.pipeline_mode<synchronous>, transform_indices = @transform_4, window_bounds = array<i64: 2, 4, 8, 32>}, {pipeline_mode = #tpu.pipeline_mode<synchronous>, transform_indices = @transform_5, window_bounds = array<i64: 2, 1, 32>}, {pipeline_mode = #tpu.pipeline_mode<synchronous>, transform_indices = @transform_6, window_bounds = array<i64: 2, 32, 64>}, {pipeline_mode = #tpu.pipeline_mode<synchronous>, transform_indices = @transform_7, window_bounds = array<i64: 2, 1, 64>}, {pipeline_mode = #tpu.pipeline_mode<synchronous>, transform_indices = @transform_8, window_bounds = array<i64: 2, 64, 32>}, {pipeline_mode = #tpu.pipeline_mode<synchronous>, transform_indices = @transform_9, window_bounds = array<i64: 2, 1, 32>}, {pipeline_mode = #tpu.pipeline_mode<synchronous>, transform_indices = @transform_10, window_bounds = array<i64: 1, 32>}, {pipeline_mode = #tpu.pipeline_mode<synchronous>, transform_indices = @transform_11, window_bounds = array<i64: 1, 1>}, {pipeline_mode = #tpu.pipeline_mode<synchronous>, transform_indices = @transform_12, window_bounds = array<i64: 32, 10>}, {pipeline_mode = #tpu.pipeline_mode<synchronous>, transform_indices = @transform_13, window_bounds = array<i64: 1, 10>}, {transform_indices = @transform_14, window_bounds = array<i64: 1, 1, 10>}]} {
    %c0 = arith.constant 0 : index
    %c0_0 = arith.constant 0 : index
    %c0_1 = arith.constant 0 : index
    %0 = vector.load %arg1[%c0, %c0_0, %c0_1] : memref<1x16x32xf32, #tpu.memory_space<vmem>>, vector<1x16x32xf32>
    %1 = vector.shape_cast %0 : vector<1x16x32xf32> to vector<16x32xf32>
    %c0_2 = arith.constant 0 : index
    %c0_3 = arith.constant 0 : index
    %c0_4 = arith.constant 0 : index
    %2 = vector.load %arg2[%c0_2, %c0_3, %c0_4] : memref<2x4x32xf32, #tpu.memory_space<vmem>>, vector<1x4x32xf32>
    %3 = vector.shape_cast %2 : vector<1x4x32xf32> to vector<4x32xf32>
    %4 = vector.extract_strided_slice %3 {offsets = [0, 0], sizes = [1, 32], strides = [1, 1]} : vector<4x32xf32> to vector<1x32xf32>
    %5 = vector.extract_strided_slice %3 {offsets = [1, 0], sizes = [1, 32], strides = [1, 1]} : vector<4x32xf32> to vector<1x32xf32>
    %cst = arith.constant dense<0.000000e+00> : vector<16xf32>
    %6 = vector.multi_reduction <add>, %1, %cst [1] : vector<16x32xf32> to vector<16xf32>
    %7 = vector.shape_cast %6 : vector<16xf32> to vector<16x1xf32>
    %cst_5 = arith.constant 3.200000e+01 : f32
    %8 = vector.broadcast %cst_5 : f32 to vector<16x1xf32>
    %9 = arith.divf %7, %8 : vector<16x1xf32>
    %10 = vector.broadcast %9 : vector<16x1xf32> to vector<16x32xf32>
    %11 = arith.subf %1, %10 : vector<16x32xf32>
    %12 = vector.broadcast %9 : vector<16x1xf32> to vector<16x32xf32>
    %13 = arith.subf %1, %12 : vector<16x32xf32>
    %14 = arith.mulf %11, %13 : vector<16x32xf32>
    %cst_6 = arith.constant dense<0.000000e+00> : vector<16xf32>
    %15 = vector.multi_reduction <add>, %14, %cst_6 [1] : vector<16x32xf32> to vector<16xf32>
    %16 = vector.shape_cast %15 : vector<16xf32> to vector<16x1xf32>
    %cst_7 = arith.constant 3.200000e+01 : f32
    %17 = vector.broadcast %cst_7 : f32 to vector<16x1xf32>
    %18 = arith.divf %16, %17 : vector<16x1xf32>
    %19 = vector.broadcast %9 : vector<16x1xf32> to vector<16x32xf32>
    %20 = arith.subf %1, %19 : vector<16x32xf32>
    %cst_8 = arith.constant 9.99999974E-6 : f32
    %21 = vector.broadcast %cst_8 : f32 to vector<16x1xf32>
    %22 = arith.addf %18, %21 : vector<16x1xf32>
    %23 = math.rsqrt %22 : vector<16x1xf32>
    %24 = vector.broadcast %23 : vector<16x1xf32> to vector<16x32xf32>
    %25 = arith.mulf %20, %24 : vector<16x32xf32>
    %26 = vector.broadcast %4 : vector<1x32xf32> to vector<16x32xf32>
    %27 = arith.mulf %25, %26 : vector<16x32xf32>
    %28 = vector.broadcast %5 : vector<1x32xf32> to vector<16x32xf32>
    %29 = arith.addf %27, %28 : vector<16x32xf32>
    %c0_9 = arith.constant 0 : index
    %c0_10 = arith.constant 0 : index
    %c0_11 = arith.constant 0 : index
    %30 = vector.load %arg3[%c0_9, %c0_10, %c0_11] : memref<2x32x96xf32, #tpu.memory_space<vmem>>, vector<1x32x96xf32>
    %31 = vector.shape_cast %30 : vector<1x32x96xf32> to vector<32x96xf32>
    %cst_12 = arith.constant dense<0.000000e+00> : vector<16x96xf32>
    %32 = tpu.matmul %29, %31, %cst_12 {dimension_numbers = #tpu.dot_dimension_numbers<[1], [0], [0], [1], [0, 0, 1, 1], [], []>} : vector<16x32xf32>, vector<32x96xf32>, vector<16x96xf32> -> vector<16x96xf32>
    %c0_13 = arith.constant 0 : index
    %c0_14 = arith.constant 0 : index
    %c0_15 = arith.constant 0 : index
    %33 = vector.load %arg4[%c0_13, %c0_14, %c0_15] : memref<2x1x96xf32, #tpu.memory_space<vmem>>, vector<1x1x96xf32>
    %34 = vector.shape_cast %33 : vector<1x1x96xf32> to vector<1x96xf32>
    %35 = vector.broadcast %34 : vector<1x96xf32> to vector<16x96xf32>
    %36 = arith.addf %32, %35 : vector<16x96xf32>
    %37 = vector.extract_strided_slice %36 {offsets = [0, 0], sizes = [16, 8], strides = [1, 1]} : vector<16x96xf32> to vector<16x8xf32>
    %38 = vector.extract_strided_slice %36 {offsets = [0, 8], sizes = [16, 8], strides = [1, 1]} : vector<16x96xf32> to vector<16x8xf32>
    %39 = vector.extract_strided_slice %36 {offsets = [0, 16], sizes = [16, 8], strides = [1, 1]} : vector<16x96xf32> to vector<16x8xf32>
    %40 = vector.extract_strided_slice %36 {offsets = [0, 24], sizes = [16, 8], strides = [1, 1]} : vector<16x96xf32> to vector<16x8xf32>
    %41 = vector.shape_cast %37 : vector<16x8xf32> to vector<1x16x8xf32>
    %42 = vector.shape_cast %38 : vector<16x8xf32> to vector<1x16x8xf32>
    %43 = vector.shape_cast %39 : vector<16x8xf32> to vector<1x16x8xf32>
    %44 = vector.shape_cast %40 : vector<16x8xf32> to vector<1x16x8xf32>
    %45 = tpu.concatenate %41, %42, %43, %44 in 0 : vector<1x16x8xf32>, vector<1x16x8xf32>, vector<1x16x8xf32>, vector<1x16x8xf32> -> vector<4x16x8xf32>
    %46 = vector.extract_strided_slice %36 {offsets = [0, 32], sizes = [16, 8], strides = [1, 1]} : vector<16x96xf32> to vector<16x8xf32>
    %47 = vector.extract_strided_slice %36 {offsets = [0, 40], sizes = [16, 8], strides = [1, 1]} : vector<16x96xf32> to vector<16x8xf32>
    %48 = vector.extract_strided_slice %36 {offsets = [0, 48], sizes = [16, 8], strides = [1, 1]} : vector<16x96xf32> to vector<16x8xf32>
    %49 = vector.extract_strided_slice %36 {offsets = [0, 56], sizes = [16, 8], strides = [1, 1]} : vector<16x96xf32> to vector<16x8xf32>
    %50 = vector.shape_cast %46 : vector<16x8xf32> to vector<1x16x8xf32>
    %51 = vector.shape_cast %47 : vector<16x8xf32> to vector<1x16x8xf32>
    %52 = vector.shape_cast %48 : vector<16x8xf32> to vector<1x16x8xf32>
    %53 = vector.shape_cast %49 : vector<16x8xf32> to vector<1x16x8xf32>
    %54 = tpu.concatenate %50, %51, %52, %53 in 0 : vector<1x16x8xf32>, vector<1x16x8xf32>, vector<1x16x8xf32>, vector<1x16x8xf32> -> vector<4x16x8xf32>
    %55 = vector.extract_strided_slice %36 {offsets = [0, 64], sizes = [16, 8], strides = [1, 1]} : vector<16x96xf32> to vector<16x8xf32>
    %56 = vector.extract_strided_slice %36 {offsets = [0, 72], sizes = [16, 8], strides = [1, 1]} : vector<16x96xf32> to vector<16x8xf32>
    %57 = vector.extract_strided_slice %36 {offsets = [0, 80], sizes = [16, 8], strides = [1, 1]} : vector<16x96xf32> to vector<16x8xf32>
    %58 = vector.extract_strided_slice %36 {offsets = [0, 88], sizes = [16, 8], strides = [1, 1]} : vector<16x96xf32> to vector<16x8xf32>
    %59 = vector.shape_cast %55 : vector<16x8xf32> to vector<1x16x8xf32>
    %60 = vector.shape_cast %56 : vector<16x8xf32> to vector<1x16x8xf32>
    %61 = vector.shape_cast %57 : vector<16x8xf32> to vector<1x16x8xf32>
    %62 = vector.shape_cast %58 : vector<16x8xf32> to vector<1x16x8xf32>
    %63 = tpu.concatenate %59, %60, %61, %62 in 0 : vector<1x16x8xf32>, vector<1x16x8xf32>, vector<1x16x8xf32>, vector<1x16x8xf32> -> vector<4x16x8xf32>
    "tpu.trace_start"() <{level = 10 : i32, message = "hqd,hkd->hqk"}> : () -> ()
    %cst_16 = arith.constant dense<0.000000e+00> : vector<4x16x16xf32>
    %64 = tpu.matmul %45, %54, %cst_16 {dimension_numbers = #tpu.dot_dimension_numbers<[2], [2], [1], [1], [0, 0, 0, 1, 1, 1], [0], [0]>} : vector<4x16x8xf32>, vector<4x16x8xf32>, vector<4x16x16xf32> -> vector<4x16x16xf32>
    "tpu.trace_stop"() : () -> ()
    %cst_17 = arith.constant 0.353553385 : f32
    %65 = vector.broadcast %cst_17 : f32 to vector<4x16x16xf32>
    %66 = arith.mulf %64, %65 : vector<4x16x16xf32>
    %cst_18 = arith.constant dense<0xFF800000> : vector<4x16xf32>
    %67 = vector.multi_reduction <maximumf>, %66, %cst_18 [2] : vector<4x16x16xf32> to vector<4x16xf32>
    %68 = vector.shape_cast %67 : vector<4x16xf32> to vector<4x16x1xf32>
    %69 = vector.broadcast %68 : vector<4x16x1xf32> to vector<4x16x16xf32>
    %70 = arith.subf %66, %69 : vector<4x16x16xf32>
    %71 = math.exp %70 : vector<4x16x16xf32>
    %cst_19 = arith.constant dense<0.000000e+00> : vector<4x16xf32>
    %72 = vector.multi_reduction <add>, %71, %cst_19 [2] : vector<4x16x16xf32> to vector<4x16xf32>
    %73 = vector.shape_cast %72 : vector<4x16xf32> to vector<4x16x1xf32>
    %74 = tpu.reciprocal %73 {approx = true} : vector<4x16x1xf32> -> vector<4x16x1xf32>
    %75 = vector.broadcast %74 : vector<4x16x1xf32> to vector<4x16x16xf32>
    %76 = arith.mulf %71, %75 : vector<4x16x16xf32>
    "tpu.trace_start"() <{level = 10 : i32, message = "hqk,hkd->hqd"}> : () -> ()
    %cst_20 = arith.constant dense<0.000000e+00> : vector<4x16x8xf32>
    %77 = tpu.matmul %76, %63, %cst_20 {dimension_numbers = #tpu.dot_dimension_numbers<[2], [1], [1], [2], [0, 0, 0, 1, 1, 2], [0], [0]>} : vector<4x16x16xf32>, vector<4x16x8xf32>, vector<4x16x8xf32> -> vector<4x16x8xf32>
    "tpu.trace_stop"() : () -> ()
    %c0_21 = arith.constant 0 : index
    %c0_22 = arith.constant 0 : index
    %c0_23 = arith.constant 0 : index
    %c0_24 = arith.constant 0 : index
    %78 = vector.load %arg5[%c0_21, %c0_22, %c0_23, %c0_24] : memref<2x4x8x32xf32, #tpu.memory_space<vmem>>, vector<1x4x8x32xf32>
    %79 = vector.shape_cast %78 : vector<1x4x8x32xf32> to vector<4x8x32xf32>
    "tpu.trace_start"() <{level = 10 : i32, message = "hsd,hdo->hso"}> : () -> ()
    %cst_25 = arith.constant dense<0.000000e+00> : vector<4x16x32xf32>
    %80 = tpu.matmul %77, %79, %cst_25 {dimension_numbers = #tpu.dot_dimension_numbers<[2], [1], [1], [2], [0, 0, 0, 1, 1, 2], [0], [0]>} : vector<4x16x8xf32>, vector<4x8x32xf32>, vector<4x16x32xf32> -> vector<4x16x32xf32>
    "tpu.trace_stop"() : () -> ()
    %cst_26 = arith.constant dense<0.000000e+00> : vector<16x32xf32>
    %81 = vector.multi_reduction <add>, %80, %cst_26 [0] : vector<4x16x32xf32> to vector<16x32xf32>
    %82 = arith.addf %1, %81 : vector<16x32xf32>
    %c0_27 = arith.constant 0 : index
    %c0_28 = arith.constant 0 : index
    %c0_29 = arith.constant 0 : index
    %83 = vector.load %arg6[%c0_27, %c0_28, %c0_29] : memref<2x1x32xf32, #tpu.memory_space<vmem>>, vector<1x1x32xf32>
    %84 = vector.shape_cast %83 : vector<1x1x32xf32> to vector<1x32xf32>
    %85 = vector.broadcast %84 : vector<1x32xf32> to vector<16x32xf32>
    %86 = arith.addf %82, %85 : vector<16x32xf32>
    %87 = vector.extract_strided_slice %3 {offsets = [2, 0], sizes = [1, 32], strides = [1, 1]} : vector<4x32xf32> to vector<1x32xf32>
    %88 = vector.extract_strided_slice %3 {offsets = [3, 0], sizes = [1, 32], strides = [1, 1]} : vector<4x32xf32> to vector<1x32xf32>
    %cst_30 = arith.constant dense<0.000000e+00> : vector<16xf32>
    %89 = vector.multi_reduction <add>, %86, %cst_30 [1] : vector<16x32xf32> to vector<16xf32>
    %90 = vector.shape_cast %89 : vector<16xf32> to vector<16x1xf32>
    %cst_31 = arith.constant 3.200000e+01 : f32
    %91 = vector.broadcast %cst_31 : f32 to vector<16x1xf32>
    %92 = arith.divf %90, %91 : vector<16x1xf32>
    %93 = vector.broadcast %92 : vector<16x1xf32> to vector<16x32xf32>
    %94 = arith.subf %86, %93 : vector<16x32xf32>
    %95 = vector.broadcast %92 : vector<16x1xf32> to vector<16x32xf32>
    %96 = arith.subf %86, %95 : vector<16x32xf32>
    %97 = arith.mulf %94, %96 : vector<16x32xf32>
    %cst_32 = arith.constant dense<0.000000e+00> : vector<16xf32>
    %98 = vector.multi_reduction <add>, %97, %cst_32 [1] : vector<16x32xf32> to vector<16xf32>
    %99 = vector.shape_cast %98 : vector<16xf32> to vector<16x1xf32>
    %cst_33 = arith.constant 3.200000e+01 : f32
    %100 = vector.broadcast %cst_33 : f32 to vector<16x1xf32>
    %101 = arith.divf %99, %100 : vector<16x1xf32>
    %102 = vector.broadcast %92 : vector<16x1xf32> to vector<16x32xf32>
    %103 = arith.subf %86, %102 : vector<16x32xf32>
    %cst_34 = arith.constant 9.99999974E-6 : f32
    %104 = vector.broadcast %cst_34 : f32 to vector<16x1xf32>
    %105 = arith.addf %101, %104 : vector<16x1xf32>
    %106 = math.rsqrt %105 : vector<16x1xf32>
    %107 = vector.broadcast %106 : vector<16x1xf32> to vector<16x32xf32>
    %108 = arith.mulf %103, %107 : vector<16x32xf32>
    %109 = vector.broadcast %87 : vector<1x32xf32> to vector<16x32xf32>
    %110 = arith.mulf %108, %109 : vector<16x32xf32>
    %111 = vector.broadcast %88 : vector<1x32xf32> to vector<16x32xf32>
    %112 = arith.addf %110, %111 : vector<16x32xf32>
    %c0_35 = arith.constant 0 : index
    %c0_36 = arith.constant 0 : index
    %c0_37 = arith.constant 0 : index
    %113 = vector.load %arg7[%c0_35, %c0_36, %c0_37] : memref<2x32x64xf32, #tpu.memory_space<vmem>>, vector<1x32x64xf32>
    %114 = vector.shape_cast %113 : vector<1x32x64xf32> to vector<32x64xf32>
    %cst_38 = arith.constant dense<0.000000e+00> : vector<16x64xf32>
    %115 = tpu.matmul %112, %114, %cst_38 {dimension_numbers = #tpu.dot_dimension_numbers<[1], [0], [0], [1], [0, 0, 1, 1], [], []>} : vector<16x32xf32>, vector<32x64xf32>, vector<16x64xf32> -> vector<16x64xf32>
    %c0_39 = arith.constant 0 : index
    %c0_40 = arith.constant 0 : index
    %c0_41 = arith.constant 0 : index
    %116 = vector.load %arg8[%c0_39, %c0_40, %c0_41] : memref<2x1x64xf32, #tpu.memory_space<vmem>>, vector<1x1x64xf32>
    %117 = vector.shape_cast %116 : vector<1x1x64xf32> to vector<1x64xf32>
    %118 = vector.broadcast %117 : vector<1x64xf32> to vector<16x64xf32>
    %119 = arith.addf %115, %118 : vector<16x64xf32>
    %cst_42 = arith.constant 5.000000e-01 : f32
    %120 = vector.broadcast %cst_42 : f32 to vector<16x64xf32>
    %121 = arith.mulf %120, %119 : vector<16x64xf32>
    %cst_43 = arith.constant 4.471500e-02 : f32
    %122 = vector.broadcast %cst_43 : f32 to vector<16x64xf32>
    %123 = arith.mulf %122, %119 : vector<16x64xf32>
    %124 = arith.mulf %123, %119 : vector<16x64xf32>
    %125 = arith.mulf %124, %119 : vector<16x64xf32>
    %126 = arith.addf %119, %125 : vector<16x64xf32>
    %cst_44 = arith.constant 0.797884583 : f32
    %127 = vector.broadcast %cst_44 : f32 to vector<16x64xf32>
    %128 = arith.mulf %127, %126 : vector<16x64xf32>
    %129 = math.tanh %128 : vector<16x64xf32>
    %cst_45 = arith.constant 1.000000e+00 : f32
    %130 = vector.broadcast %cst_45 : f32 to vector<16x64xf32>
    %131 = arith.addf %130, %129 : vector<16x64xf32>
    %132 = arith.mulf %121, %131 : vector<16x64xf32>
    %c0_46 = arith.constant 0 : index
    %c0_47 = arith.constant 0 : index
    %c0_48 = arith.constant 0 : index
    %133 = vector.load %arg9[%c0_46, %c0_47, %c0_48] : memref<2x64x32xf32, #tpu.memory_space<vmem>>, vector<1x64x32xf32>
    %134 = vector.shape_cast %133 : vector<1x64x32xf32> to vector<64x32xf32>
    %cst_49 = arith.constant dense<0.000000e+00> : vector<16x32xf32>
    %135 = tpu.matmul %132, %134, %cst_49 {dimension_numbers = #tpu.dot_dimension_numbers<[1], [0], [0], [1], [0, 0, 1, 1], [], []>} : vector<16x64xf32>, vector<64x32xf32>, vector<16x32xf32> -> vector<16x32xf32>
    %136 = arith.addf %86, %135 : vector<16x32xf32>
    %c0_50 = arith.constant 0 : index
    %c0_51 = arith.constant 0 : index
    %c0_52 = arith.constant 0 : index
    %137 = vector.load %arg10[%c0_50, %c0_51, %c0_52] : memref<2x1x32xf32, #tpu.memory_space<vmem>>, vector<1x1x32xf32>
    %138 = vector.shape_cast %137 : vector<1x1x32xf32> to vector<1x32xf32>
    %139 = vector.broadcast %138 : vector<1x32xf32> to vector<16x32xf32>
    %140 = arith.addf %136, %139 : vector<16x32xf32>
    %c1 = arith.constant 1 : index
    %c0_53 = arith.constant 0 : index
    %c0_54 = arith.constant 0 : index
    %141 = vector.load %arg2[%c1, %c0_53, %c0_54] : memref<2x4x32xf32, #tpu.memory_space<vmem>>, vector<1x4x32xf32>
    %142 = vector.shape_cast %141 : vector<1x4x32xf32> to vector<4x32xf32>
    %143 = vector.extract_strided_slice %142 {offsets = [0, 0], sizes = [1, 32], strides = [1, 1]} : vector<4x32xf32> to vector<1x32xf32>
    %144 = vector.extract_strided_slice %142 {offsets = [1, 0], sizes = [1, 32], strides = [1, 1]} : vector<4x32xf32> to vector<1x32xf32>
    %cst_55 = arith.constant dense<0.000000e+00> : vector<16xf32>
    %145 = vector.multi_reduction <add>, %140, %cst_55 [1] : vector<16x32xf32> to vector<16xf32>
    %146 = vector.shape_cast %145 : vector<16xf32> to vector<16x1xf32>
    %cst_56 = arith.constant 3.200000e+01 : f32
    %147 = vector.broadcast %cst_56 : f32 to vector<16x1xf32>
    %148 = arith.divf %146, %147 : vector<16x1xf32>
    %149 = vector.broadcast %148 : vector<16x1xf32> to vector<16x32xf32>
    %150 = arith.subf %140, %149 : vector<16x32xf32>
    %151 = vector.broadcast %148 : vector<16x1xf32> to vector<16x32xf32>
    %152 = arith.subf %140, %151 : vector<16x32xf32>
    %153 = arith.mulf %150, %152 : vector<16x32xf32>
    %cst_57 = arith.constant dense<0.000000e+00> : vector<16xf32>
    %154 = vector.multi_reduction <add>, %153, %cst_57 [1] : vector<16x32xf32> to vector<16xf32>
    %155 = vector.shape_cast %154 : vector<16xf32> to vector<16x1xf32>
    %cst_58 = arith.constant 3.200000e+01 : f32
    %156 = vector.broadcast %cst_58 : f32 to vector<16x1xf32>
    %157 = arith.divf %155, %156 : vector<16x1xf32>
    %158 = vector.broadcast %148 : vector<16x1xf32> to vector<16x32xf32>
    %159 = arith.subf %140, %158 : vector<16x32xf32>
    %cst_59 = arith.constant 9.99999974E-6 : f32
    %160 = vector.broadcast %cst_59 : f32 to vector<16x1xf32>
    %161 = arith.addf %157, %160 : vector<16x1xf32>
    %162 = math.rsqrt %161 : vector<16x1xf32>
    %163 = vector.broadcast %162 : vector<16x1xf32> to vector<16x32xf32>
    %164 = arith.mulf %159, %163 : vector<16x32xf32>
    %165 = vector.broadcast %143 : vector<1x32xf32> to vector<16x32xf32>
    %166 = arith.mulf %164, %165 : vector<16x32xf32>
    %167 = vector.broadcast %144 : vector<1x32xf32> to vector<16x32xf32>
    %168 = arith.addf %166, %167 : vector<16x32xf32>
    %c1_60 = arith.constant 1 : index
    %c0_61 = arith.constant 0 : index
    %c0_62 = arith.constant 0 : index
    %169 = vector.load %arg3[%c1_60, %c0_61, %c0_62] : memref<2x32x96xf32, #tpu.memory_space<vmem>>, vector<1x32x96xf32>
    %170 = vector.shape_cast %169 : vector<1x32x96xf32> to vector<32x96xf32>
    %cst_63 = arith.constant dense<0.000000e+00> : vector<16x96xf32>
    %171 = tpu.matmul %168, %170, %cst_63 {dimension_numbers = #tpu.dot_dimension_numbers<[1], [0], [0], [1], [0, 0, 1, 1], [], []>} : vector<16x32xf32>, vector<32x96xf32>, vector<16x96xf32> -> vector<16x96xf32>
    %c1_64 = arith.constant 1 : index
    %c0_65 = arith.constant 0 : index
    %c0_66 = arith.constant 0 : index
    %172 = vector.load %arg4[%c1_64, %c0_65, %c0_66] : memref<2x1x96xf32, #tpu.memory_space<vmem>>, vector<1x1x96xf32>
    %173 = vector.shape_cast %172 : vector<1x1x96xf32> to vector<1x96xf32>
    %174 = vector.broadcast %173 : vector<1x96xf32> to vector<16x96xf32>
    %175 = arith.addf %171, %174 : vector<16x96xf32>
    %176 = vector.extract_strided_slice %175 {offsets = [0, 0], sizes = [16, 8], strides = [1, 1]} : vector<16x96xf32> to vector<16x8xf32>
    %177 = vector.extract_strided_slice %175 {offsets = [0, 8], sizes = [16, 8], strides = [1, 1]} : vector<16x96xf32> to vector<16x8xf32>
    %178 = vector.extract_strided_slice %175 {offsets = [0, 16], sizes = [16, 8], strides = [1, 1]} : vector<16x96xf32> to vector<16x8xf32>
    %179 = vector.extract_strided_slice %175 {offsets = [0, 24], sizes = [16, 8], strides = [1, 1]} : vector<16x96xf32> to vector<16x8xf32>
    %180 = vector.shape_cast %176 : vector<16x8xf32> to vector<1x16x8xf32>
    %181 = vector.shape_cast %177 : vector<16x8xf32> to vector<1x16x8xf32>
    %182 = vector.shape_cast %178 : vector<16x8xf32> to vector<1x16x8xf32>
    %183 = vector.shape_cast %179 : vector<16x8xf32> to vector<1x16x8xf32>
    %184 = tpu.concatenate %180, %181, %182, %183 in 0 : vector<1x16x8xf32>, vector<1x16x8xf32>, vector<1x16x8xf32>, vector<1x16x8xf32> -> vector<4x16x8xf32>
    %185 = vector.extract_strided_slice %175 {offsets = [0, 32], sizes = [16, 8], strides = [1, 1]} : vector<16x96xf32> to vector<16x8xf32>
    %186 = vector.extract_strided_slice %175 {offsets = [0, 40], sizes = [16, 8], strides = [1, 1]} : vector<16x96xf32> to vector<16x8xf32>
    %187 = vector.extract_strided_slice %175 {offsets = [0, 48], sizes = [16, 8], strides = [1, 1]} : vector<16x96xf32> to vector<16x8xf32>
    %188 = vector.extract_strided_slice %175 {offsets = [0, 56], sizes = [16, 8], strides = [1, 1]} : vector<16x96xf32> to vector<16x8xf32>
    %189 = vector.shape_cast %185 : vector<16x8xf32> to vector<1x16x8xf32>
    %190 = vector.shape_cast %186 : vector<16x8xf32> to vector<1x16x8xf32>
    %191 = vector.shape_cast %187 : vector<16x8xf32> to vector<1x16x8xf32>
    %192 = vector.shape_cast %188 : vector<16x8xf32> to vector<1x16x8xf32>
    %193 = tpu.concatenate %189, %190, %191, %192 in 0 : vector<1x16x8xf32>, vector<1x16x8xf32>, vector<1x16x8xf32>, vector<1x16x8xf32> -> vector<4x16x8xf32>
    %194 = vector.extract_strided_slice %175 {offsets = [0, 64], sizes = [16, 8], strides = [1, 1]} : vector<16x96xf32> to vector<16x8xf32>
    %195 = vector.extract_strided_slice %175 {offsets = [0, 72], sizes = [16, 8], strides = [1, 1]} : vector<16x96xf32> to vector<16x8xf32>
    %196 = vector.extract_strided_slice %175 {offsets = [0, 80], sizes = [16, 8], strides = [1, 1]} : vector<16x96xf32> to vector<16x8xf32>
    %197 = vector.extract_strided_slice %175 {offsets = [0, 88], sizes = [16, 8], strides = [1, 1]} : vector<16x96xf32> to vector<16x8xf32>
    %198 = vector.shape_cast %194 : vector<16x8xf32> to vector<1x16x8xf32>
    %199 = vector.shape_cast %195 : vector<16x8xf32> to vector<1x16x8xf32>
    %200 = vector.shape_cast %196 : vector<16x8xf32> to vector<1x16x8xf32>
    %201 = vector.shape_cast %197 : vector<16x8xf32> to vector<1x16x8xf32>
    %202 = tpu.concatenate %198, %199, %200, %201 in 0 : vector<1x16x8xf32>, vector<1x16x8xf32>, vector<1x16x8xf32>, vector<1x16x8xf32> -> vector<4x16x8xf32>
    "tpu.trace_start"() <{level = 10 : i32, message = "hqd,hkd->hqk"}> : () -> ()
    %cst_67 = arith.constant dense<0.000000e+00> : vector<4x16x16xf32>
    %203 = tpu.matmul %184, %193, %cst_67 {dimension_numbers = #tpu.dot_dimension_numbers<[2], [2], [1], [1], [0, 0, 0, 1, 1, 1], [0], [0]>} : vector<4x16x8xf32>, vector<4x16x8xf32>, vector<4x16x16xf32> -> vector<4x16x16xf32>
    "tpu.trace_stop"() : () -> ()
    %cst_68 = arith.constant 0.353553385 : f32
    %204 = vector.broadcast %cst_68 : f32 to vector<4x16x16xf32>
    %205 = arith.mulf %203, %204 : vector<4x16x16xf32>
    %cst_69 = arith.constant dense<0xFF800000> : vector<4x16xf32>
    %206 = vector.multi_reduction <maximumf>, %205, %cst_69 [2] : vector<4x16x16xf32> to vector<4x16xf32>
    %207 = vector.shape_cast %206 : vector<4x16xf32> to vector<4x16x1xf32>
    %208 = vector.broadcast %207 : vector<4x16x1xf32> to vector<4x16x16xf32>
    %209 = arith.subf %205, %208 : vector<4x16x16xf32>
    %210 = math.exp %209 : vector<4x16x16xf32>
    %cst_70 = arith.constant dense<0.000000e+00> : vector<4x16xf32>
    %211 = vector.multi_reduction <add>, %210, %cst_70 [2] : vector<4x16x16xf32> to vector<4x16xf32>
    %212 = vector.shape_cast %211 : vector<4x16xf32> to vector<4x16x1xf32>
    %213 = tpu.reciprocal %212 {approx = true} : vector<4x16x1xf32> -> vector<4x16x1xf32>
    %214 = vector.broadcast %213 : vector<4x16x1xf32> to vector<4x16x16xf32>
    %215 = arith.mulf %210, %214 : vector<4x16x16xf32>
    "tpu.trace_start"() <{level = 10 : i32, message = "hqk,hkd->hqd"}> : () -> ()
    %cst_71 = arith.constant dense<0.000000e+00> : vector<4x16x8xf32>
    %216 = tpu.matmul %215, %202, %cst_71 {dimension_numbers = #tpu.dot_dimension_numbers<[2], [1], [1], [2], [0, 0, 0, 1, 1, 2], [0], [0]>} : vector<4x16x16xf32>, vector<4x16x8xf32>, vector<4x16x8xf32> -> vector<4x16x8xf32>
    "tpu.trace_stop"() : () -> ()
    %c1_72 = arith.constant 1 : index
    %c0_73 = arith.constant 0 : index
    %c0_74 = arith.constant 0 : index
    %c0_75 = arith.constant 0 : index
    %217 = vector.load %arg5[%c1_72, %c0_73, %c0_74, %c0_75] : memref<2x4x8x32xf32, #tpu.memory_space<vmem>>, vector<1x4x8x32xf32>
    %218 = vector.shape_cast %217 : vector<1x4x8x32xf32> to vector<4x8x32xf32>
    "tpu.trace_start"() <{level = 10 : i32, message = "hsd,hdo->hso"}> : () -> ()
    %cst_76 = arith.constant dense<0.000000e+00> : vector<4x16x32xf32>
    %219 = tpu.matmul %216, %218, %cst_76 {dimension_numbers = #tpu.dot_dimension_numbers<[2], [1], [1], [2], [0, 0, 0, 1, 1, 2], [0], [0]>} : vector<4x16x8xf32>, vector<4x8x32xf32>, vector<4x16x32xf32> -> vector<4x16x32xf32>
    "tpu.trace_stop"() : () -> ()
    %cst_77 = arith.constant dense<0.000000e+00> : vector<16x32xf32>
    %220 = vector.multi_reduction <add>, %219, %cst_77 [0] : vector<4x16x32xf32> to vector<16x32xf32>
    %221 = arith.addf %140, %220 : vector<16x32xf32>
    %c1_78 = arith.constant 1 : index
    %c0_79 = arith.constant 0 : index
    %c0_80 = arith.constant 0 : index
    %222 = vector.load %arg6[%c1_78, %c0_79, %c0_80] : memref<2x1x32xf32, #tpu.memory_space<vmem>>, vector<1x1x32xf32>
    %223 = vector.shape_cast %222 : vector<1x1x32xf32> to vector<1x32xf32>
    %224 = vector.broadcast %223 : vector<1x32xf32> to vector<16x32xf32>
    %225 = arith.addf %221, %224 : vector<16x32xf32>
    %226 = vector.extract_strided_slice %142 {offsets = [2, 0], sizes = [1, 32], strides = [1, 1]} : vector<4x32xf32> to vector<1x32xf32>
    %227 = vector.extract_strided_slice %142 {offsets = [3, 0], sizes = [1, 32], strides = [1, 1]} : vector<4x32xf32> to vector<1x32xf32>
    %cst_81 = arith.constant dense<0.000000e+00> : vector<16xf32>
    %228 = vector.multi_reduction <add>, %225, %cst_81 [1] : vector<16x32xf32> to vector<16xf32>
    %229 = vector.shape_cast %228 : vector<16xf32> to vector<16x1xf32>
    %cst_82 = arith.constant 3.200000e+01 : f32
    %230 = vector.broadcast %cst_82 : f32 to vector<16x1xf32>
    %231 = arith.divf %229, %230 : vector<16x1xf32>
    %232 = vector.broadcast %231 : vector<16x1xf32> to vector<16x32xf32>
    %233 = arith.subf %225, %232 : vector<16x32xf32>
    %234 = vector.broadcast %231 : vector<16x1xf32> to vector<16x32xf32>
    %235 = arith.subf %225, %234 : vector<16x32xf32>
    %236 = arith.mulf %233, %235 : vector<16x32xf32>
    %cst_83 = arith.constant dense<0.000000e+00> : vector<16xf32>
    %237 = vector.multi_reduction <add>, %236, %cst_83 [1] : vector<16x32xf32> to vector<16xf32>
    %238 = vector.shape_cast %237 : vector<16xf32> to vector<16x1xf32>
    %cst_84 = arith.constant 3.200000e+01 : f32
    %239 = vector.broadcast %cst_84 : f32 to vector<16x1xf32>
    %240 = arith.divf %238, %239 : vector<16x1xf32>
    %241 = vector.broadcast %231 : vector<16x1xf32> to vector<16x32xf32>
    %242 = arith.subf %225, %241 : vector<16x32xf32>
    %cst_85 = arith.constant 9.99999974E-6 : f32
    %243 = vector.broadcast %cst_85 : f32 to vector<16x1xf32>
    %244 = arith.addf %240, %243 : vector<16x1xf32>
    %245 = math.rsqrt %244 : vector<16x1xf32>
    %246 = vector.broadcast %245 : vector<16x1xf32> to vector<16x32xf32>
    %247 = arith.mulf %242, %246 : vector<16x32xf32>
    %248 = vector.broadcast %226 : vector<1x32xf32> to vector<16x32xf32>
    %249 = arith.mulf %247, %248 : vector<16x32xf32>
    %250 = vector.broadcast %227 : vector<1x32xf32> to vector<16x32xf32>
    %251 = arith.addf %249, %250 : vector<16x32xf32>
    %c1_86 = arith.constant 1 : index
    %c0_87 = arith.constant 0 : index
    %c0_88 = arith.constant 0 : index
    %252 = vector.load %arg7[%c1_86, %c0_87, %c0_88] : memref<2x32x64xf32, #tpu.memory_space<vmem>>, vector<1x32x64xf32>
    %253 = vector.shape_cast %252 : vector<1x32x64xf32> to vector<32x64xf32>
    %cst_89 = arith.constant dense<0.000000e+00> : vector<16x64xf32>
    %254 = tpu.matmul %251, %253, %cst_89 {dimension_numbers = #tpu.dot_dimension_numbers<[1], [0], [0], [1], [0, 0, 1, 1], [], []>} : vector<16x32xf32>, vector<32x64xf32>, vector<16x64xf32> -> vector<16x64xf32>
    %c1_90 = arith.constant 1 : index
    %c0_91 = arith.constant 0 : index
    %c0_92 = arith.constant 0 : index
    %255 = vector.load %arg8[%c1_90, %c0_91, %c0_92] : memref<2x1x64xf32, #tpu.memory_space<vmem>>, vector<1x1x64xf32>
    %256 = vector.shape_cast %255 : vector<1x1x64xf32> to vector<1x64xf32>
    %257 = vector.broadcast %256 : vector<1x64xf32> to vector<16x64xf32>
    %258 = arith.addf %254, %257 : vector<16x64xf32>
    %cst_93 = arith.constant 5.000000e-01 : f32
    %259 = vector.broadcast %cst_93 : f32 to vector<16x64xf32>
    %260 = arith.mulf %259, %258 : vector<16x64xf32>
    %cst_94 = arith.constant 4.471500e-02 : f32
    %261 = vector.broadcast %cst_94 : f32 to vector<16x64xf32>
    %262 = arith.mulf %261, %258 : vector<16x64xf32>
    %263 = arith.mulf %262, %258 : vector<16x64xf32>
    %264 = arith.mulf %263, %258 : vector<16x64xf32>
    %265 = arith.addf %258, %264 : vector<16x64xf32>
    %cst_95 = arith.constant 0.797884583 : f32
    %266 = vector.broadcast %cst_95 : f32 to vector<16x64xf32>
    %267 = arith.mulf %266, %265 : vector<16x64xf32>
    %268 = math.tanh %267 : vector<16x64xf32>
    %cst_96 = arith.constant 1.000000e+00 : f32
    %269 = vector.broadcast %cst_96 : f32 to vector<16x64xf32>
    %270 = arith.addf %269, %268 : vector<16x64xf32>
    %271 = arith.mulf %260, %270 : vector<16x64xf32>
    %c1_97 = arith.constant 1 : index
    %c0_98 = arith.constant 0 : index
    %c0_99 = arith.constant 0 : index
    %272 = vector.load %arg9[%c1_97, %c0_98, %c0_99] : memref<2x64x32xf32, #tpu.memory_space<vmem>>, vector<1x64x32xf32>
    %273 = vector.shape_cast %272 : vector<1x64x32xf32> to vector<64x32xf32>
    %cst_100 = arith.constant dense<0.000000e+00> : vector<16x32xf32>
    %274 = tpu.matmul %271, %273, %cst_100 {dimension_numbers = #tpu.dot_dimension_numbers<[1], [0], [0], [1], [0, 0, 1, 1], [], []>} : vector<16x64xf32>, vector<64x32xf32>, vector<16x32xf32> -> vector<16x32xf32>
    %275 = arith.addf %225, %274 : vector<16x32xf32>
    %c1_101 = arith.constant 1 : index
    %c0_102 = arith.constant 0 : index
    %c0_103 = arith.constant 0 : index
    %276 = vector.load %arg10[%c1_101, %c0_102, %c0_103] : memref<2x1x32xf32, #tpu.memory_space<vmem>>, vector<1x1x32xf32>
    %277 = vector.shape_cast %276 : vector<1x1x32xf32> to vector<1x32xf32>
    %278 = vector.broadcast %277 : vector<1x32xf32> to vector<16x32xf32>
    %279 = arith.addf %275, %278 : vector<16x32xf32>
    %c0_104 = arith.constant 0 : index
    %c0_105 = arith.constant 0 : index
    %280 = vector.load %arg11[%c0_104, %c0_105] : memref<1x32xf32, #tpu.memory_space<vmem>>, vector<1x32xf32>
    %281 = vector.broadcast %280 : vector<1x32xf32> to vector<16x32xf32>
    %282 = arith.mulf %279, %281 : vector<16x32xf32>
    %cst_106 = arith.constant dense<0.000000e+00> : vector<16xf32>
    %283 = vector.multi_reduction <add>, %282, %cst_106 [1] : vector<16x32xf32> to vector<16xf32>
    %284 = vector.shape_cast %283 : vector<16xf32> to vector<16x1xf32>
    %c0_107 = arith.constant 0 : index
    %c0_108 = arith.constant 0 : index
    %285 = vector.load %arg12[%c0_107, %c0_108] : memref<1x1xf32, #tpu.memory_space<vmem>>, vector<1x1xf32>
    %286 = vector.broadcast %285 : vector<1x1xf32> to vector<16x1xf32>
    %287 = arith.addf %284, %286 : vector<16x1xf32>
    %cst_109 = arith.constant dense<0xFF800000> : vector<1xf32>
    %288 = vector.multi_reduction <maximumf>, %287, %cst_109 [0] : vector<16x1xf32> to vector<1xf32>
    %289 = vector.shape_cast %288 : vector<1xf32> to vector<1x1xf32>
    %290 = vector.broadcast %289 : vector<1x1xf32> to vector<16x1xf32>
    %291 = arith.subf %287, %290 : vector<16x1xf32>
    %292 = math.exp %291 : vector<16x1xf32>
    %cst_110 = arith.constant dense<0.000000e+00> : vector<1xf32>
    %293 = vector.multi_reduction <add>, %292, %cst_110 [0] : vector<16x1xf32> to vector<1xf32>
    %294 = vector.shape_cast %293 : vector<1xf32> to vector<1x1xf32>
    %295 = tpu.reciprocal %294 {approx = true} : vector<1x1xf32> -> vector<1x1xf32>
    %296 = vector.broadcast %295 : vector<1x1xf32> to vector<16x1xf32>
    %297 = arith.mulf %292, %296 : vector<16x1xf32>
    %298 = vector.broadcast %297 : vector<16x1xf32> to vector<16x32xf32>
    %299 = arith.mulf %298, %279 : vector<16x32xf32>
    %cst_111 = arith.constant dense<0.000000e+00> : vector<32xf32>
    %300 = vector.multi_reduction <add>, %299, %cst_111 [0] : vector<16x32xf32> to vector<32xf32>
    %301 = vector.shape_cast %300 : vector<32xf32> to vector<1x32xf32>
    %c0_112 = arith.constant 0 : index
    %c0_113 = arith.constant 0 : index
    %302 = vector.load %arg13[%c0_112, %c0_113] : memref<32x10xf32, #tpu.memory_space<vmem>>, vector<32x10xf32>
    %cst_114 = arith.constant dense<0.000000e+00> : vector<1x10xf32>
    %303 = tpu.matmul %301, %302, %cst_114 {dimension_numbers = #tpu.dot_dimension_numbers<[1], [0], [0], [1], [0, 0, 1, 1], [], []>} : vector<1x32xf32>, vector<32x10xf32>, vector<1x10xf32> -> vector<1x10xf32>
    %c0_115 = arith.constant 0 : index
    %c0_116 = arith.constant 0 : index
    %304 = vector.load %arg14[%c0_115, %c0_116] : memref<1x10xf32, #tpu.memory_space<vmem>>, vector<1x10xf32>
    %305 = arith.addf %303, %304 : vector<1x10xf32>
    %c0_117 = arith.constant 0 : index
    %c0_118 = arith.constant 0 : index
    %c0_119 = arith.constant 0 : index
    %306 = vector.load %arg15[%c0_117, %c0_118, %c0_119] : memref<1x1x10xf32, #tpu.memory_space<vmem>>, vector<1x1x10xf32>
    %307 = vector.shape_cast %306 : vector<1x1x10xf32> to vector<1x10xf32>
    %308 = vector.shape_cast %305 : vector<1x10xf32> to vector<1x1x10xf32>
    tpu.vector_store %arg15[%c0_117, %c0_118, %c0_119], %308 {strides = array<i32>} : memref<1x1x10xf32, #tpu.memory_space<vmem>>, vector<1x1x10xf32>,
    return
  }
  func.func @transform_0(%arg0: i32) -> (i32, i32, i32) {
    %c0_i32 = arith.constant 0 : i32
    %c0_i32_0 = arith.constant 0 : i32
    %c0_i32_1 = arith.constant 0 : i32
    return %arg0, %c0_i32, %c0_i32_0 : i32, i32, i32
  }
  func.func @transform_1(%arg0: i32) -> (i32, i32, i32) {
    %c0_i32 = arith.constant 0 : i32
    %c0_i32_0 = arith.constant 0 : i32
    %c0_i32_1 = arith.constant 0 : i32
    %c0_i32_2 = arith.constant 0 : i32
    return %c0_i32, %c0_i32_0, %c0_i32_1 : i32, i32, i32
  }
  func.func @transform_2(%arg0: i32) -> (i32, i32, i32) {
    %c0_i32 = arith.constant 0 : i32
    %c0_i32_0 = arith.constant 0 : i32
    %c0_i32_1 = arith.constant 0 : i32
    %c0_i32_2 = arith.constant 0 : i32
    return %c0_i32, %c0_i32_0, %c0_i32_1 : i32, i32, i32
  }
  func.func @transform_3(%arg0: i32) -> (i32, i32, i32) {
    %c0_i32 = arith.constant 0 : i32
    %c0_i32_0 = arith.constant 0 : i32
    %c0_i32_1 = arith.constant 0 : i32
    %c0_i32_2 = arith.constant 0 : i32
    return %c0_i32, %c0_i32_0, %c0_i32_1 : i32, i32, i32
  }
  func.func @transform_4(%arg0: i32) -> (i32, i32, i32, i32) {
    %c0_i32 = arith.constant 0 : i32
    %c0_i32_0 = arith.constant 0 : i32
    %c0_i32_1 = arith.constant 0 : i32
    %c0_i32_2 = arith.constant 0 : i32
    %c0_i32_3 = arith.constant 0 : i32
    return %c0_i32, %c0_i32_0, %c0_i32_1, %c0_i32_2 : i32, i32, i32, i32
  }
  func.func @transform_5(%arg0: i32) -> (i32, i32, i32) {
    %c0_i32 = arith.constant 0 : i32
    %c0_i32_0 = arith.constant 0 : i32
    %c0_i32_1 = arith.constant 0 : i32
    %c0_i32_2 = arith.constant 0 : i32
    return %c0_i32, %c0_i32_0, %c0_i32_1 : i32, i32, i32
  }
  func.func @transform_6(%arg0: i32) -> (i32, i32, i32) {
    %c0_i32 = arith.constant 0 : i32
    %c0_i32_0 = arith.constant 0 : i32
    %c0_i32_1 = arith.constant 0 : i32
    %c0_i32_2 = arith.constant 0 : i32
    return %c0_i32, %c0_i32_0, %c0_i32_1 : i32, i32, i32
  }
  func.func @transform_7(%arg0: i32) -> (i32, i32, i32) {
    %c0_i32 = arith.constant 0 : i32
    %c0_i32_0 = arith.constant 0 : i32
    %c0_i32_1 = arith.constant 0 : i32
    %c0_i32_2 = arith.constant 0 : i32
    return %c0_i32, %c0_i32_0, %c0_i32_1 : i32, i32, i32
  }
  func.func @transform_8(%arg0: i32) -> (i32, i32, i32) {
    %c0_i32 = arith.constant 0 : i32
    %c0_i32_0 = arith.constant 0 : i32
    %c0_i32_1 = arith.constant 0 : i32
    %c0_i32_2 = arith.constant 0 : i32
    return %c0_i32, %c0_i32_0, %c0_i32_1 : i32, i32, i32
  }
  func.func @transform_9(%arg0: i32) -> (i32, i32, i32) {
    %c0_i32 = arith.constant 0 : i32
    %c0_i32_0 = arith.constant 0 : i32
    %c0_i32_1 = arith.constant 0 : i32
    %c0_i32_2 = arith.constant 0 : i32
    return %c0_i32, %c0_i32_0, %c0_i32_1 : i32, i32, i32
  }
  func.func @transform_10(%arg0: i32) -> (i32, i32) {
    %c0_i32 = arith.constant 0 : i32
    %c0_i32_0 = arith.constant 0 : i32
    %c0_i32_1 = arith.constant 0 : i32
    return %c0_i32, %c0_i32_0 : i32, i32
  }
  func.func @transform_11(%arg0: i32) -> (i32, i32) {
    %c0_i32 = arith.constant 0 : i32
    %c0_i32_0 = arith.constant 0 : i32
    %c0_i32_1 = arith.constant 0 : i32
    return %c0_i32, %c0_i32_0 : i32, i32
  }
  func.func @transform_12(%arg0: i32) -> (i32, i32) {
    %c0_i32 = arith.constant 0 : i32
    %c0_i32_0 = arith.constant 0 : i32
    %c0_i32_1 = arith.constant 0 : i32
    return %c0_i32, %c0_i32_0 : i32, i32
  }
  func.func @transform_13(%arg0: i32) -> (i32, i32) {
    %c0_i32 = arith.constant 0 : i32
    %c0_i32_0 = arith.constant 0 : i32
    %c0_i32_1 = arith.constant 0 : i32
    return %c0_i32, %c0_i32_0 : i32, i32
  }
  func.func @transform_14(%arg0: i32) -> (i32, i32, i32) {
    %c0_i32 = arith.constant 0 : i32
    %c0_i32_0 = arith.constant 0 : i32
    %c0_i32_1 = arith.constant 0 : i32
    return %arg0, %c0_i32, %c0_i32_0 : i32, i32, i32
  }
}

module attributes {stable_mosaic.version = 11 : i64} {
  func.func @kernel(%arg0: i32, %arg1: memref<1x16x16x8xf32, #tpu.memory_space<vmem>>, %arg2: memref<72x64xf32, #tpu.memory_space<vmem>>, %arg3: memref<1x64xf32, #tpu.memory_space<vmem>>, %arg4: memref<576x32xf32, #tpu.memory_space<vmem>>, %arg5: memref<1x32xf32, #tpu.memory_space<vmem>>, %arg6: memref<1x16x32xf32, #tpu.memory_space<vmem>>) attributes {dimension_semantics = [#tpu.dimension_semantics<parallel>], iteration_bounds = array<i64: 2>, scalar_prefetch = 0 : i64, scratch_operands = 0 : i64, tpu.core_type = #tpu.core_type<tc>, window_params = [{transform_indices = @transform_0, window_bounds = array<i64: 1, 16, 16, 8>}, {pipeline_mode = #tpu.pipeline_mode<synchronous>, transform_indices = @transform_1, window_bounds = array<i64: 72, 64>}, {pipeline_mode = #tpu.pipeline_mode<synchronous>, transform_indices = @transform_2, window_bounds = array<i64: 1, 64>}, {pipeline_mode = #tpu.pipeline_mode<synchronous>, transform_indices = @transform_3, window_bounds = array<i64: 576, 32>}, {pipeline_mode = #tpu.pipeline_mode<synchronous>, transform_indices = @transform_4, window_bounds = array<i64: 1, 32>}, {transform_indices = @transform_5, window_bounds = array<i64: 1, 16, 32>}]} {
    %c0 = arith.constant 0 : index
    %c0_0 = arith.constant 0 : index
    %c0_1 = arith.constant 0 : index
    %c0_2 = arith.constant 0 : index
    %0 = vector.load %arg1[%c0, %c0_0, %c0_1, %c0_2] : memref<1x16x16x8xf32, #tpu.memory_space<vmem>>, vector<1x16x16x8xf32>
    %1 = vector.shape_cast %0 : vector<1x16x16x8xf32> to vector<16x16x8xf32>
    %c0_3 = arith.constant 0 : index
    %c0_4 = arith.constant 0 : index
    %2 = vector.load %arg2[%c0_3, %c0_4] : memref<72x64xf32, #tpu.memory_space<vmem>>, vector<72x64xf32>
    %c0_5 = arith.constant 0 : index
    %c0_6 = arith.constant 0 : index
    %3 = vector.load %arg3[%c0_5, %c0_6] : memref<1x64xf32, #tpu.memory_space<vmem>>, vector<1x64xf32>
    %cst = arith.constant 0.000000e+00 : f32
    %4 = vector.broadcast %cst : f32 to vector<1x16x8xf32>
    %5 = tpu.concatenate %4, %1, %4 in 0 : vector<1x16x8xf32>, vector<16x16x8xf32>, vector<1x16x8xf32> -> vector<18x16x8xf32>
    %cst_7 = arith.constant 0.000000e+00 : f32
    %6 = vector.broadcast %cst_7 : f32 to vector<18x1x8xf32>
    %7 = tpu.concatenate %6, %5, %6 in 1 : vector<18x1x8xf32>, vector<18x16x8xf32>, vector<18x1x8xf32> -> vector<18x18x8xf32>
    %8 = vector.extract_strided_slice %7 {offsets = [0, 0, 0], sizes = [16, 16, 8], strides = [1, 1, 1]} : vector<18x18x8xf32> to vector<16x16x8xf32>
    %9 = vector.shape_cast %8 : vector<16x16x8xf32> to vector<256x8xf32>
    %10 = vector.extract_strided_slice %7 {offsets = [0, 1, 0], sizes = [16, 16, 8], strides = [1, 1, 1]} : vector<18x18x8xf32> to vector<16x16x8xf32>
    %11 = vector.shape_cast %10 : vector<16x16x8xf32> to vector<256x8xf32>
    %12 = vector.extract_strided_slice %7 {offsets = [0, 2, 0], sizes = [16, 16, 8], strides = [1, 1, 1]} : vector<18x18x8xf32> to vector<16x16x8xf32>
    %13 = vector.shape_cast %12 : vector<16x16x8xf32> to vector<256x8xf32>
    %14 = vector.extract_strided_slice %7 {offsets = [1, 0, 0], sizes = [16, 16, 8], strides = [1, 1, 1]} : vector<18x18x8xf32> to vector<16x16x8xf32>
    %15 = vector.shape_cast %14 : vector<16x16x8xf32> to vector<256x8xf32>
    %16 = vector.extract_strided_slice %7 {offsets = [1, 1, 0], sizes = [16, 16, 8], strides = [1, 1, 1]} : vector<18x18x8xf32> to vector<16x16x8xf32>
    %17 = vector.shape_cast %16 : vector<16x16x8xf32> to vector<256x8xf32>
    %18 = vector.extract_strided_slice %7 {offsets = [1, 2, 0], sizes = [16, 16, 8], strides = [1, 1, 1]} : vector<18x18x8xf32> to vector<16x16x8xf32>
    %19 = vector.shape_cast %18 : vector<16x16x8xf32> to vector<256x8xf32>
    %20 = vector.extract_strided_slice %7 {offsets = [2, 0, 0], sizes = [16, 16, 8], strides = [1, 1, 1]} : vector<18x18x8xf32> to vector<16x16x8xf32>
    %21 = vector.shape_cast %20 : vector<16x16x8xf32> to vector<256x8xf32>
    %22 = vector.extract_strided_slice %7 {offsets = [2, 1, 0], sizes = [16, 16, 8], strides = [1, 1, 1]} : vector<18x18x8xf32> to vector<16x16x8xf32>
    %23 = vector.shape_cast %22 : vector<16x16x8xf32> to vector<256x8xf32>
    %24 = vector.extract_strided_slice %7 {offsets = [2, 2, 0], sizes = [16, 16, 8], strides = [1, 1, 1]} : vector<18x18x8xf32> to vector<16x16x8xf32>
    %25 = vector.shape_cast %24 : vector<16x16x8xf32> to vector<256x8xf32>
    %26 = tpu.concatenate %9, %11, %13, %15, %17, %19, %21, %23, %25 in 1 : vector<256x8xf32>, vector<256x8xf32>, vector<256x8xf32>, vector<256x8xf32>, vector<256x8xf32>, vector<256x8xf32>, vector<256x8xf32>, vector<256x8xf32>, vector<256x8xf32> -> vector<256x72xf32>
    %cst_8 = arith.constant dense<0.000000e+00> : vector<256x64xf32>
    %27 = tpu.matmul %26, %2, %cst_8 {dimension_numbers = #tpu.dot_dimension_numbers<[1], [0], [0], [1], [0, 0, 1, 1], [], []>} : vector<256x72xf32>, vector<72x64xf32>, vector<256x64xf32> -> vector<256x64xf32>
    %28 = vector.broadcast %3 : vector<1x64xf32> to vector<256x64xf32>
    %29 = arith.addf %27, %28 : vector<256x64xf32>
    %cst_9 = arith.constant 0.000000e+00 : f32
    %30 = vector.broadcast %cst_9 : f32 to vector<256x64xf32>
    %31 = arith.maximumf %29, %30 : vector<256x64xf32>
    %32 = vector.shape_cast %31 : vector<256x64xf32> to vector<16x16x64xf32>
    %33 = vector.extract_strided_slice %32 {offsets = [0, 0, 0], sizes = [2, 16, 64], strides = [1, 1, 1]} : vector<16x16x64xf32> to vector<2x16x64xf32>
    %cst_10 = arith.constant dense<0xFF800000> : vector<16x64xf32>
    %34 = vector.multi_reduction <maximumf>, %33, %cst_10 [0] : vector<2x16x64xf32> to vector<16x64xf32>
    %35 = vector.shape_cast %34 : vector<16x64xf32> to vector<1x16x64xf32>
    %36 = vector.extract_strided_slice %32 {offsets = [1, 0, 0], sizes = [3, 16, 64], strides = [1, 1, 1]} : vector<16x16x64xf32> to vector<3x16x64xf32>
    %cst_11 = arith.constant dense<0xFF800000> : vector<16x64xf32>
    %37 = vector.multi_reduction <maximumf>, %36, %cst_11 [0] : vector<3x16x64xf32> to vector<16x64xf32>
    %38 = vector.shape_cast %37 : vector<16x64xf32> to vector<1x16x64xf32>
    %39 = vector.extract_strided_slice %32 {offsets = [3, 0, 0], sizes = [3, 16, 64], strides = [1, 1, 1]} : vector<16x16x64xf32> to vector<3x16x64xf32>
    %cst_12 = arith.constant dense<0xFF800000> : vector<16x64xf32>
    %40 = vector.multi_reduction <maximumf>, %39, %cst_12 [0] : vector<3x16x64xf32> to vector<16x64xf32>
    %41 = vector.shape_cast %40 : vector<16x64xf32> to vector<1x16x64xf32>
    %42 = vector.extract_strided_slice %32 {offsets = [5, 0, 0], sizes = [3, 16, 64], strides = [1, 1, 1]} : vector<16x16x64xf32> to vector<3x16x64xf32>
    %cst_13 = arith.constant dense<0xFF800000> : vector<16x64xf32>
    %43 = vector.multi_reduction <maximumf>, %42, %cst_13 [0] : vector<3x16x64xf32> to vector<16x64xf32>
    %44 = vector.shape_cast %43 : vector<16x64xf32> to vector<1x16x64xf32>
    %45 = vector.extract_strided_slice %32 {offsets = [7, 0, 0], sizes = [3, 16, 64], strides = [1, 1, 1]} : vector<16x16x64xf32> to vector<3x16x64xf32>
    %cst_14 = arith.constant dense<0xFF800000> : vector<16x64xf32>
    %46 = vector.multi_reduction <maximumf>, %45, %cst_14 [0] : vector<3x16x64xf32> to vector<16x64xf32>
    %47 = vector.shape_cast %46 : vector<16x64xf32> to vector<1x16x64xf32>
    %48 = vector.extract_strided_slice %32 {offsets = [9, 0, 0], sizes = [3, 16, 64], strides = [1, 1, 1]} : vector<16x16x64xf32> to vector<3x16x64xf32>
    %cst_15 = arith.constant dense<0xFF800000> : vector<16x64xf32>
    %49 = vector.multi_reduction <maximumf>, %48, %cst_15 [0] : vector<3x16x64xf32> to vector<16x64xf32>
    %50 = vector.shape_cast %49 : vector<16x64xf32> to vector<1x16x64xf32>
    %51 = vector.extract_strided_slice %32 {offsets = [11, 0, 0], sizes = [3, 16, 64], strides = [1, 1, 1]} : vector<16x16x64xf32> to vector<3x16x64xf32>
    %cst_16 = arith.constant dense<0xFF800000> : vector<16x64xf32>
    %52 = vector.multi_reduction <maximumf>, %51, %cst_16 [0] : vector<3x16x64xf32> to vector<16x64xf32>
    %53 = vector.shape_cast %52 : vector<16x64xf32> to vector<1x16x64xf32>
    %54 = vector.extract_strided_slice %32 {offsets = [13, 0, 0], sizes = [3, 16, 64], strides = [1, 1, 1]} : vector<16x16x64xf32> to vector<3x16x64xf32>
    %cst_17 = arith.constant dense<0xFF800000> : vector<16x64xf32>
    %55 = vector.multi_reduction <maximumf>, %54, %cst_17 [0] : vector<3x16x64xf32> to vector<16x64xf32>
    %56 = vector.shape_cast %55 : vector<16x64xf32> to vector<1x16x64xf32>
    %57 = tpu.concatenate %35, %38, %41, %44, %47, %50, %53, %56 in 0 : vector<1x16x64xf32>, vector<1x16x64xf32>, vector<1x16x64xf32>, vector<1x16x64xf32>, vector<1x16x64xf32>, vector<1x16x64xf32>, vector<1x16x64xf32>, vector<1x16x64xf32> -> vector<8x16x64xf32>
    %58 = vector.extract_strided_slice %57 {offsets = [0, 0, 0], sizes = [8, 2, 64], strides = [1, 1, 1]} : vector<8x16x64xf32> to vector<8x2x64xf32>
    %cst_18 = arith.constant dense<0xFF800000> : vector<8x64xf32>
    %59 = vector.multi_reduction <maximumf>, %58, %cst_18 [1] : vector<8x2x64xf32> to vector<8x64xf32>
    %60 = vector.shape_cast %59 : vector<8x64xf32> to vector<8x1x64xf32>
    %61 = vector.extract_strided_slice %57 {offsets = [0, 1, 0], sizes = [8, 3, 64], strides = [1, 1, 1]} : vector<8x16x64xf32> to vector<8x3x64xf32>
    %cst_19 = arith.constant dense<0xFF800000> : vector<8x64xf32>
    %62 = vector.multi_reduction <maximumf>, %61, %cst_19 [1] : vector<8x3x64xf32> to vector<8x64xf32>
    %63 = vector.shape_cast %62 : vector<8x64xf32> to vector<8x1x64xf32>
    %64 = vector.extract_strided_slice %57 {offsets = [0, 3, 0], sizes = [8, 3, 64], strides = [1, 1, 1]} : vector<8x16x64xf32> to vector<8x3x64xf32>
    %cst_20 = arith.constant dense<0xFF800000> : vector<8x64xf32>
    %65 = vector.multi_reduction <maximumf>, %64, %cst_20 [1] : vector<8x3x64xf32> to vector<8x64xf32>
    %66 = vector.shape_cast %65 : vector<8x64xf32> to vector<8x1x64xf32>
    %67 = vector.extract_strided_slice %57 {offsets = [0, 5, 0], sizes = [8, 3, 64], strides = [1, 1, 1]} : vector<8x16x64xf32> to vector<8x3x64xf32>
    %cst_21 = arith.constant dense<0xFF800000> : vector<8x64xf32>
    %68 = vector.multi_reduction <maximumf>, %67, %cst_21 [1] : vector<8x3x64xf32> to vector<8x64xf32>
    %69 = vector.shape_cast %68 : vector<8x64xf32> to vector<8x1x64xf32>
    %70 = vector.extract_strided_slice %57 {offsets = [0, 7, 0], sizes = [8, 3, 64], strides = [1, 1, 1]} : vector<8x16x64xf32> to vector<8x3x64xf32>
    %cst_22 = arith.constant dense<0xFF800000> : vector<8x64xf32>
    %71 = vector.multi_reduction <maximumf>, %70, %cst_22 [1] : vector<8x3x64xf32> to vector<8x64xf32>
    %72 = vector.shape_cast %71 : vector<8x64xf32> to vector<8x1x64xf32>
    %73 = vector.extract_strided_slice %57 {offsets = [0, 9, 0], sizes = [8, 3, 64], strides = [1, 1, 1]} : vector<8x16x64xf32> to vector<8x3x64xf32>
    %cst_23 = arith.constant dense<0xFF800000> : vector<8x64xf32>
    %74 = vector.multi_reduction <maximumf>, %73, %cst_23 [1] : vector<8x3x64xf32> to vector<8x64xf32>
    %75 = vector.shape_cast %74 : vector<8x64xf32> to vector<8x1x64xf32>
    %76 = vector.extract_strided_slice %57 {offsets = [0, 11, 0], sizes = [8, 3, 64], strides = [1, 1, 1]} : vector<8x16x64xf32> to vector<8x3x64xf32>
    %cst_24 = arith.constant dense<0xFF800000> : vector<8x64xf32>
    %77 = vector.multi_reduction <maximumf>, %76, %cst_24 [1] : vector<8x3x64xf32> to vector<8x64xf32>
    %78 = vector.shape_cast %77 : vector<8x64xf32> to vector<8x1x64xf32>
    %79 = vector.extract_strided_slice %57 {offsets = [0, 13, 0], sizes = [8, 3, 64], strides = [1, 1, 1]} : vector<8x16x64xf32> to vector<8x3x64xf32>
    %cst_25 = arith.constant dense<0xFF800000> : vector<8x64xf32>
    %80 = vector.multi_reduction <maximumf>, %79, %cst_25 [1] : vector<8x3x64xf32> to vector<8x64xf32>
    %81 = vector.shape_cast %80 : vector<8x64xf32> to vector<8x1x64xf32>
    %82 = tpu.concatenate %60, %63, %66, %69, %72, %75, %78, %81 in 1 : vector<8x1x64xf32>, vector<8x1x64xf32>, vector<8x1x64xf32>, vector<8x1x64xf32>, vector<8x1x64xf32>, vector<8x1x64xf32>, vector<8x1x64xf32>, vector<8x1x64xf32> -> vector<8x8x64xf32>
    %c0_26 = arith.constant 0 : index
    %c0_27 = arith.constant 0 : index
    %83 = vector.load %arg4[%c0_26, %c0_27] : memref<576x32xf32, #tpu.memory_space<vmem>>, vector<576x32xf32>
    %c0_28 = arith.constant 0 : index
    %c0_29 = arith.constant 0 : index
    %84 = vector.load %arg5[%c0_28, %c0_29] : memref<1x32xf32, #tpu.memory_space<vmem>>, vector<1x32xf32>
    %cst_30 = arith.constant 0.000000e+00 : f32
    %85 = vector.broadcast %cst_30 : f32 to vector<1x8x64xf32>
    %86 = tpu.concatenate %85, %82, %85 in 0 : vector<1x8x64xf32>, vector<8x8x64xf32>, vector<1x8x64xf32> -> vector<10x8x64xf32>
    %cst_31 = arith.constant 0.000000e+00 : f32
    %87 = vector.broadcast %cst_31 : f32 to vector<10x1x64xf32>
    %88 = tpu.concatenate %87, %86, %87 in 1 : vector<10x1x64xf32>, vector<10x8x64xf32>, vector<10x1x64xf32> -> vector<10x10x64xf32>
    %89 = vector.extract_strided_slice %88 {offsets = [0, 0, 0], sizes = [8, 8, 64], strides = [1, 1, 1]} : vector<10x10x64xf32> to vector<8x8x64xf32>
    %90 = vector.shape_cast %89 : vector<8x8x64xf32> to vector<64x64xf32>
    %91 = vector.extract_strided_slice %88 {offsets = [0, 1, 0], sizes = [8, 8, 64], strides = [1, 1, 1]} : vector<10x10x64xf32> to vector<8x8x64xf32>
    %92 = vector.shape_cast %91 : vector<8x8x64xf32> to vector<64x64xf32>
    %93 = vector.extract_strided_slice %88 {offsets = [0, 2, 0], sizes = [8, 8, 64], strides = [1, 1, 1]} : vector<10x10x64xf32> to vector<8x8x64xf32>
    %94 = vector.shape_cast %93 : vector<8x8x64xf32> to vector<64x64xf32>
    %95 = vector.extract_strided_slice %88 {offsets = [1, 0, 0], sizes = [8, 8, 64], strides = [1, 1, 1]} : vector<10x10x64xf32> to vector<8x8x64xf32>
    %96 = vector.shape_cast %95 : vector<8x8x64xf32> to vector<64x64xf32>
    %97 = vector.extract_strided_slice %88 {offsets = [1, 1, 0], sizes = [8, 8, 64], strides = [1, 1, 1]} : vector<10x10x64xf32> to vector<8x8x64xf32>
    %98 = vector.shape_cast %97 : vector<8x8x64xf32> to vector<64x64xf32>
    %99 = vector.extract_strided_slice %88 {offsets = [1, 2, 0], sizes = [8, 8, 64], strides = [1, 1, 1]} : vector<10x10x64xf32> to vector<8x8x64xf32>
    %100 = vector.shape_cast %99 : vector<8x8x64xf32> to vector<64x64xf32>
    %101 = vector.extract_strided_slice %88 {offsets = [2, 0, 0], sizes = [8, 8, 64], strides = [1, 1, 1]} : vector<10x10x64xf32> to vector<8x8x64xf32>
    %102 = vector.shape_cast %101 : vector<8x8x64xf32> to vector<64x64xf32>
    %103 = vector.extract_strided_slice %88 {offsets = [2, 1, 0], sizes = [8, 8, 64], strides = [1, 1, 1]} : vector<10x10x64xf32> to vector<8x8x64xf32>
    %104 = vector.shape_cast %103 : vector<8x8x64xf32> to vector<64x64xf32>
    %105 = vector.extract_strided_slice %88 {offsets = [2, 2, 0], sizes = [8, 8, 64], strides = [1, 1, 1]} : vector<10x10x64xf32> to vector<8x8x64xf32>
    %106 = vector.shape_cast %105 : vector<8x8x64xf32> to vector<64x64xf32>
    %107 = tpu.concatenate %90, %92, %94, %96, %98, %100, %102, %104, %106 in 1 : vector<64x64xf32>, vector<64x64xf32>, vector<64x64xf32>, vector<64x64xf32>, vector<64x64xf32>, vector<64x64xf32>, vector<64x64xf32>, vector<64x64xf32>, vector<64x64xf32> -> vector<64x576xf32>
    %cst_32 = arith.constant dense<0.000000e+00> : vector<64x32xf32>
    %108 = tpu.matmul %107, %83, %cst_32 {dimension_numbers = #tpu.dot_dimension_numbers<[1], [0], [0], [1], [0, 0, 1, 1], [], []>} : vector<64x576xf32>, vector<576x32xf32>, vector<64x32xf32> -> vector<64x32xf32>
    %109 = vector.broadcast %84 : vector<1x32xf32> to vector<64x32xf32>
    %110 = arith.addf %108, %109 : vector<64x32xf32>
    %cst_33 = arith.constant 0.000000e+00 : f32
    %111 = vector.broadcast %cst_33 : f32 to vector<64x32xf32>
    %112 = arith.maximumf %110, %111 : vector<64x32xf32>
    %113 = vector.shape_cast %112 : vector<64x32xf32> to vector<8x8x32xf32>
    %114 = vector.extract_strided_slice %113 {offsets = [0, 0, 0], sizes = [2, 8, 32], strides = [1, 1, 1]} : vector<8x8x32xf32> to vector<2x8x32xf32>
    %cst_34 = arith.constant dense<0xFF800000> : vector<8x32xf32>
    %115 = vector.multi_reduction <maximumf>, %114, %cst_34 [0] : vector<2x8x32xf32> to vector<8x32xf32>
    %116 = vector.shape_cast %115 : vector<8x32xf32> to vector<1x8x32xf32>
    %117 = vector.extract_strided_slice %113 {offsets = [1, 0, 0], sizes = [3, 8, 32], strides = [1, 1, 1]} : vector<8x8x32xf32> to vector<3x8x32xf32>
    %cst_35 = arith.constant dense<0xFF800000> : vector<8x32xf32>
    %118 = vector.multi_reduction <maximumf>, %117, %cst_35 [0] : vector<3x8x32xf32> to vector<8x32xf32>
    %119 = vector.shape_cast %118 : vector<8x32xf32> to vector<1x8x32xf32>
    %120 = vector.extract_strided_slice %113 {offsets = [3, 0, 0], sizes = [3, 8, 32], strides = [1, 1, 1]} : vector<8x8x32xf32> to vector<3x8x32xf32>
    %cst_36 = arith.constant dense<0xFF800000> : vector<8x32xf32>
    %121 = vector.multi_reduction <maximumf>, %120, %cst_36 [0] : vector<3x8x32xf32> to vector<8x32xf32>
    %122 = vector.shape_cast %121 : vector<8x32xf32> to vector<1x8x32xf32>
    %123 = vector.extract_strided_slice %113 {offsets = [5, 0, 0], sizes = [3, 8, 32], strides = [1, 1, 1]} : vector<8x8x32xf32> to vector<3x8x32xf32>
    %cst_37 = arith.constant dense<0xFF800000> : vector<8x32xf32>
    %124 = vector.multi_reduction <maximumf>, %123, %cst_37 [0] : vector<3x8x32xf32> to vector<8x32xf32>
    %125 = vector.shape_cast %124 : vector<8x32xf32> to vector<1x8x32xf32>
    %126 = tpu.concatenate %116, %119, %122, %125 in 0 : vector<1x8x32xf32>, vector<1x8x32xf32>, vector<1x8x32xf32>, vector<1x8x32xf32> -> vector<4x8x32xf32>
    %127 = vector.extract_strided_slice %126 {offsets = [0, 0, 0], sizes = [4, 2, 32], strides = [1, 1, 1]} : vector<4x8x32xf32> to vector<4x2x32xf32>
    %cst_38 = arith.constant dense<0xFF800000> : vector<4x32xf32>
    %128 = vector.multi_reduction <maximumf>, %127, %cst_38 [1] : vector<4x2x32xf32> to vector<4x32xf32>
    %129 = vector.shape_cast %128 : vector<4x32xf32> to vector<4x1x32xf32>
    %130 = vector.extract_strided_slice %126 {offsets = [0, 1, 0], sizes = [4, 3, 32], strides = [1, 1, 1]} : vector<4x8x32xf32> to vector<4x3x32xf32>
    %cst_39 = arith.constant dense<0xFF800000> : vector<4x32xf32>
    %131 = vector.multi_reduction <maximumf>, %130, %cst_39 [1] : vector<4x3x32xf32> to vector<4x32xf32>
    %132 = vector.shape_cast %131 : vector<4x32xf32> to vector<4x1x32xf32>
    %133 = vector.extract_strided_slice %126 {offsets = [0, 3, 0], sizes = [4, 3, 32], strides = [1, 1, 1]} : vector<4x8x32xf32> to vector<4x3x32xf32>
    %cst_40 = arith.constant dense<0xFF800000> : vector<4x32xf32>
    %134 = vector.multi_reduction <maximumf>, %133, %cst_40 [1] : vector<4x3x32xf32> to vector<4x32xf32>
    %135 = vector.shape_cast %134 : vector<4x32xf32> to vector<4x1x32xf32>
    %136 = vector.extract_strided_slice %126 {offsets = [0, 5, 0], sizes = [4, 3, 32], strides = [1, 1, 1]} : vector<4x8x32xf32> to vector<4x3x32xf32>
    %cst_41 = arith.constant dense<0xFF800000> : vector<4x32xf32>
    %137 = vector.multi_reduction <maximumf>, %136, %cst_41 [1] : vector<4x3x32xf32> to vector<4x32xf32>
    %138 = vector.shape_cast %137 : vector<4x32xf32> to vector<4x1x32xf32>
    %139 = tpu.concatenate %129, %132, %135, %138 in 1 : vector<4x1x32xf32>, vector<4x1x32xf32>, vector<4x1x32xf32>, vector<4x1x32xf32> -> vector<4x4x32xf32>
    %140 = vector.extract_strided_slice %139 {offsets = [0, 0, 0], sizes = [1, 4, 32], strides = [1, 1, 1]} : vector<4x4x32xf32> to vector<1x4x32xf32>
    %141 = vector.shape_cast %140 : vector<1x4x32xf32> to vector<4x32xf32>
    %142 = vector.extract_strided_slice %139 {offsets = [1, 0, 0], sizes = [1, 4, 32], strides = [1, 1, 1]} : vector<4x4x32xf32> to vector<1x4x32xf32>
    %143 = vector.shape_cast %142 : vector<1x4x32xf32> to vector<4x32xf32>
    %144 = vector.extract_strided_slice %139 {offsets = [2, 0, 0], sizes = [1, 4, 32], strides = [1, 1, 1]} : vector<4x4x32xf32> to vector<1x4x32xf32>
    %145 = vector.shape_cast %144 : vector<1x4x32xf32> to vector<4x32xf32>
    %146 = vector.extract_strided_slice %139 {offsets = [3, 0, 0], sizes = [1, 4, 32], strides = [1, 1, 1]} : vector<4x4x32xf32> to vector<1x4x32xf32>
    %147 = vector.shape_cast %146 : vector<1x4x32xf32> to vector<4x32xf32>
    %148 = tpu.concatenate %141, %143, %145, %147 in 0 : vector<4x32xf32>, vector<4x32xf32>, vector<4x32xf32>, vector<4x32xf32> -> vector<16x32xf32>
    %c0_42 = arith.constant 0 : index
    %c0_43 = arith.constant 0 : index
    %c0_44 = arith.constant 0 : index
    %149 = vector.load %arg6[%c0_42, %c0_43, %c0_44] : memref<1x16x32xf32, #tpu.memory_space<vmem>>, vector<1x16x32xf32>
    %150 = vector.shape_cast %149 : vector<1x16x32xf32> to vector<16x32xf32>
    %151 = vector.shape_cast %148 : vector<16x32xf32> to vector<1x16x32xf32>
    tpu.vector_store %arg6[%c0_42, %c0_43, %c0_44], %151 {strides = array<i32>} : memref<1x16x32xf32, #tpu.memory_space<vmem>>, vector<1x16x32xf32>,
    return
  }
  func.func @transform_0(%arg0: i32) -> (i32, i32, i32, i32) {
    %c0_i32 = arith.constant 0 : i32
    %c0_i32_0 = arith.constant 0 : i32
    %c0_i32_1 = arith.constant 0 : i32
    %c0_i32_2 = arith.constant 0 : i32
    return %arg0, %c0_i32, %c0_i32_0, %c0_i32_1 : i32, i32, i32, i32
  }
  func.func @transform_1(%arg0: i32) -> (i32, i32) {
    %c0_i32 = arith.constant 0 : i32
    %c0_i32_0 = arith.constant 0 : i32
    %c0_i32_1 = arith.constant 0 : i32
    return %c0_i32, %c0_i32_0 : i32, i32
  }
  func.func @transform_2(%arg0: i32) -> (i32, i32) {
    %c0_i32 = arith.constant 0 : i32
    %c0_i32_0 = arith.constant 0 : i32
    %c0_i32_1 = arith.constant 0 : i32
    return %c0_i32, %c0_i32_0 : i32, i32
  }
  func.func @transform_3(%arg0: i32) -> (i32, i32) {
    %c0_i32 = arith.constant 0 : i32
    %c0_i32_0 = arith.constant 0 : i32
    %c0_i32_1 = arith.constant 0 : i32
    return %c0_i32, %c0_i32_0 : i32, i32
  }
  func.func @transform_4(%arg0: i32) -> (i32, i32) {
    %c0_i32 = arith.constant 0 : i32
    %c0_i32_0 = arith.constant 0 : i32
    %c0_i32_1 = arith.constant 0 : i32
    return %c0_i32, %c0_i32_0 : i32, i32
  }
  func.func @transform_5(%arg0: i32) -> (i32, i32, i32) {
    %c0_i32 = arith.constant 0 : i32
    %c0_i32_0 = arith.constant 0 : i32
    %c0_i32_1 = arith.constant 0 : i32
    return %arg0, %c0_i32, %c0_i32_0 : i32, i32, i32
  }
}

</mosaic_0001>

<llo_original>
// kernel: cct_forward.3
$region0: #{cct_forward.3}
  #allocation0 [shape = 'u32[]', space=smem, size = 0x4, offset = 0x4, fixed_abs, tag = 'smem constant byte address 0x4 - core index']
  #allocation1 [shape = 'u32[144,128]{1,0:T(1,128)}', space=vmem, size = 0x12000, scoped, tag = 'internal scratch']
  #allocation2 [shape = 'f32[1,1]{1,0:T(1,128)S(1)}', space=vmem, size = 0x200, scoped, tag = 'scoped memory for cct_forward.3']
  %s0 = inlined_call_operand.vmem [shape: f32[2,16,32], index: 0, kind: input, shape index: {}]
  %s1 = inlined_call_operand.vmem [shape: f32[2,4,32], index: 1, kind: input, shape index: {}]
  %s2 = inlined_call_operand.vmem [shape: f32[2,32,96], index: 2, kind: input, shape index: {}]
  %s3 = inlined_call_operand.vmem [shape: f32[2,1,96], index: 3, kind: input, shape index: {}]
  %s4 = inlined_call_operand.vmem [shape: f32[2,4,8,32], index: 4, kind: input, shape index: {}]
  %s5 = inlined_call_operand.vmem [shape: f32[2,1,32], index: 5, kind: input, shape index: {}]
  %s6 = inlined_call_operand.vmem [shape: f32[2,32,64], index: 6, kind: input, shape index: {}]
  %s7 = inlined_call_operand.vmem [shape: f32[2,1,64], index: 7, kind: input, shape index: {}]
  %s8 = inlined_call_operand.vmem [shape: f32[2,64,32], index: 8, kind: input, shape index: {}]
  %s9 = inlined_call_operand.vmem [shape: f32[2,1,32], index: 9, kind: input, shape index: {}]
  %s10 = inlined_call_operand.vmem [shape: f32[1,32], index: 10, kind: input, shape index: {}]
  %s11 = inlined_call_operand.<no memory space> [shape: f32[1,1], index: 11, kind: input, shape index: {}]
  %s12 = inlined_call_operand.vmem [shape: f32[32,10], index: 12, kind: input, shape index: {}]
  %s13 = inlined_call_operand.vmem [shape: f32[1,10], index: 13, kind: input, shape index: {}]
  %s14 = inlined_call_operand.hbm [shape: f32[2,1,10], index: 14, kind: output, shape index: {}]
  %s15 = sld [smem:[#allocation0]]
  $region89: #{cct_forward.3} parent=0
    _
  %s17 = ssub.s32 1, %s15
  %s18 = scalar_select 0, %s17, %s15
  %v19 = vstv %s11
  %20 = vst [vmem:[#allocation2] sm:$0x1] %v19
  $region1: #{cct_forward.3} parent=0
    #allocation3 [shape = 'u8[1024]{0}', space=vmem, size = 0x400, scoped, tag = 'output window, operand 0']
    #allocation4 [shape = 's32[2]{0}', space=sflag, size = 0x8, scoped, tag = 'scoped memory for cct_forward.3']
    %21 = vsyncpa [#allocation4], 0
    %s22 = scalar_lea.sflag [#allocation4], 1
    %23 = vsyncpa %s22, 0
    loop: start=0, step=1, limit=4
    $region2: #{cct_forward.3} parent=1 // loop_pre_header
      _
    $region3: #{cct_forward.3} parent=1 // loop_header
      %s25 = sphi 0, %s29
      %p26 = scmp.ge.s32.totalorder %s25, 4
      %s35 = sphi 0, %s37
      %s38 = sphi 0, %s35
      %s39 = sphi 0, %s38
      %s55 = sphi 0, %s39
      %s59 = sphi 0, %s59
      %s61 = sphi 0, %s59
      %s62 = sphi 0, %s61
      %s76 = sphi 0, %s62
      %s80 = sphi 0, %s80
      %s82 = sphi 0, %s80
      %s83 = sphi 0, %s82
      %s97 = sphi 0, %s83
      %s101 = sphi 0, %s101
      %s103 = sphi 0, %s101
      %s104 = sphi 0, %s103
      %s118 = sphi 0, %s104
      %s122 = sphi 0, %s122
      %s124 = sphi 0, %s122
      %s125 = sphi 0, %s124
      %s139 = sphi 0, %s125
      %s143 = sphi 0, %s143
      %s145 = sphi 0, %s143
      %s146 = sphi 0, %s145
      %s160 = sphi 0, %s146
      %s164 = sphi 0, %s164
      %s166 = sphi 0, %s164
      %s167 = sphi 0, %s166
      %s181 = sphi 0, %s167
      %s185 = sphi 0, %s185
      %s187 = sphi 0, %s185
      %s188 = sphi 0, %s187
      %s202 = sphi 0, %s188
      %s206 = sphi 0, %s206
      %s208 = sphi 0, %s206
      %s209 = sphi 0, %s208
      %s223 = sphi 0, %s209
      %s227 = sphi 0, %s227
      %s229 = sphi 0, %s227
      %s230 = sphi 0, %s229
      %s244 = sphi 0, %s230
      %s248 = sphi 0, %s248
      %s250 = sphi 0, %s248
      %s251 = sphi 0, %s250
      %s265 = sphi 0, %s251
      %s269 = sphi 0, %s269
      %s271 = sphi 0, %s269
      %s272 = sphi 0, %s271
      %s286 = sphi 0, %s272
      %s290 = sphi 0, %s290
      %s292 = sphi 0, %s290
      %s293 = sphi 0, %s292
      %s307 = sphi 0, %s293
      %s311 = sphi 0, %s311
      %s313 = sphi 0, %s311
      %s314 = sphi 0, %s313
      %s328 = sphi 0, %s314
      %s334 = sphi 0, %s336
      %s337 = sphi 0, %s334
      %s338 = sphi 0, %s337
      %s354 = sphi 0, %s338
    $region4: #{cct_forward.3} parent=1 // loop_header_branch
      %28 = sbr.rel (%p26) target = $region8
    $region5: #{cct_forward.3} parent=1 // loop_body
      %s30 = ssub.s32 %s25, 1
      %s31 = ssub.s32 %s25, 2
      %s32 = sadd.s32 %s25, 1
      %s33 = ssub.s32 %s25, %s32
      %p34 = scmp.eq.s32.totalorder %s33, 0
      %s36 = sadd.s32 %s35, 1
      %s37 = scalar_select %p34, %s35, %s36
      %p40 = pneg %p34
      %p41 = scmp.eq.s32.totalorder %s25, 1
      %p42 = por %p40, %p41
      %p43 = scmp.ne.s32.totalorder %s35, %s38
      %p44 = scmp.eq.s32.totalorder %s25, 0
      %p45 = por %p43, %p44
      %p46 = scmp.ne.s32.totalorder %s35, %s38
      %p47 = scmp.eq.s32.totalorder %s30, 1
      %p48 = por %p46, %p47
      %p49 = scmp.ne.s32.totalorder %s38, %s39
      %p50 = scmp.eq.s32.totalorder %s30, 0
      %p51 = por %p49, %p50
      %p52 = scmp.ne.s32.totalorder %s38, %s39
      %p53 = scmp.eq.s32.totalorder %s31, 1
      %p54 = por %p52, %p53
      %p56 = scmp.ne.s32.totalorder %s39, %s55
      %p57 = scmp.eq.s32.totalorder %s31, 0
      %p58 = por %p56, %p57
      %s60 = sadd.s32 %s59, 1
      %p63 = scmp.eq.s32.totalorder %s25, 1
      %p64 = scmp.ne.s32.totalorder %s59, %s61
      %p65 = scmp.eq.s32.totalorder %s25, 0
      %p66 = por %p64, %p65
      %p67 = scmp.ne.s32.totalorder %s59, %s61
      %p68 = scmp.eq.s32.totalorder %s30, 1
      %p69 = por %p67, %p68
      %p70 = scmp.ne.s32.totalorder %s61, %s62
      %p71 = scmp.eq.s32.totalorder %s30, 0
      %p72 = por %p70, %p71
      %p73 = scmp.ne.s32.totalorder %s61, %s62
      %p74 = scmp.eq.s32.totalorder %s31, 1
      %p75 = por %p73, %p74
      %p77 = scmp.ne.s32.totalorder %s62, %s76
      %p78 = scmp.eq.s32.totalorder %s31, 0
      %p79 = por %p77, %p78
      %s81 = sadd.s32 %s80, 1
      %p84 = scmp.eq.s32.totalorder %s25, 1
      %p85 = scmp.ne.s32.totalorder %s80, %s82
      %p86 = scmp.eq.s32.totalorder %s25, 0
      %p87 = por %p85, %p86
      %p88 = scmp.ne.s32.totalorder %s80, %s82
      %p89 = scmp.eq.s32.totalorder %s30, 1
      %p90 = por %p88, %p89
      %p91 = scmp.ne.s32.totalorder %s82, %s83
      %p92 = scmp.eq.s32.totalorder %s30, 0
      %p93 = por %p91, %p92
      %p94 = scmp.ne.s32.totalorder %s82, %s83
      %p95 = scmp.eq.s32.totalorder %s31, 1
      %p96 = por %p94, %p95
      %p98 = scmp.ne.s32.totalorder %s83, %s97
      %p99 = scmp.eq.s32.totalorder %s31, 0
      %p100 = por %p98, %p99
      %s102 = sadd.s32 %s101, 1
      %p105 = scmp.eq.s32.totalorder %s25, 1
      %p106 = scmp.ne.s32.totalorder %s101, %s103
      %p107 = scmp.eq.s32.totalorder %s25, 0
      %p108 = por %p106, %p107
      %p109 = scmp.ne.s32.totalorder %s101, %s103
      %p110 = scmp.eq.s32.totalorder %s30, 1
      %p111 = por %p109, %p110
      %p112 = scmp.ne.s32.totalorder %s103, %s104
      %p113 = scmp.eq.s32.totalorder %s30, 0
      %p114 = por %p112, %p113
      %p115 = scmp.ne.s32.totalorder %s103, %s104
      %p116 = scmp.eq.s32.totalorder %s31, 1
      %p117 = por %p115, %p116
      %p119 = scmp.ne.s32.totalorder %s104, %s118
      %p120 = scmp.eq.s32.totalorder %s31, 0
      %p121 = por %p119, %p120
      %s123 = sadd.s32 %s122, 1
      %p126 = scmp.eq.s32.totalorder %s25, 1
      %p127 = scmp.ne.s32.totalorder %s122, %s124
      %p128 = scmp.eq.s32.totalorder %s25, 0
      %p129 = por %p127, %p128
      %p130 = scmp.ne.s32.totalorder %s122, %s124
      %p131 = scmp.eq.s32.totalorder %s30, 1
      %p132 = por %p130, %p131
      %p133 = scmp.ne.s32.totalorder %s124, %s125
      %p134 = scmp.eq.s32.totalorder %s30, 0
      %p135 = por %p133, %p134
      %p136 = scmp.ne.s32.totalorder %s124, %s125
      %p137 = scmp.eq.s32.totalorder %s31, 1
      %p138 = por %p136, %p137
      %p140 = scmp.ne.s32.totalorder %s125, %s139
      %p141 = scmp.eq.s32.totalorder %s31, 0
      %p142 = por %p140, %p141
      %s144 = sadd.s32 %s143, 1
      %p147 = scmp.eq.s32.totalorder %s25, 1
      %p148 = scmp.ne.s32.totalorder %s143, %s145
      %p149 = scmp.eq.s32.totalorder %s25, 0
      %p150 = por %p148, %p149
      %p151 = scmp.ne.s32.totalorder %s143, %s145
      %p152 = scmp.eq.s32.totalorder %s30, 1
      %p153 = por %p151, %p152
      %p154 = scmp.ne.s32.totalorder %s145, %s146
      %p155 = scmp.eq.s32.totalorder %s30, 0
      %p156 = por %p154, %p155
      %p157 = scmp.ne.s32.totalorder %s145, %s146
      %p158 = scmp.eq.s32.totalorder %s31, 1
      %p159 = por %p157, %p158
      %p161 = scmp.ne.s32.totalorder %s146, %s160
      %p162 = scmp.eq.s32.totalorder %s31, 0
      %p163 = por %p161, %p162
      %s165 = sadd.s32 %s164, 1
      %p168 = scmp.eq.s32.totalorder %s25, 1
      %p169 = scmp.ne.s32.totalorder %s164, %s166
      %p170 = scmp.eq.s32.totalorder %s25, 0
      %p171 = por %p169, %p170
      %p172 = scmp.ne.s32.totalorder %s164, %s166
      %p173 = scmp.eq.s32.totalorder %s30, 1
      %p174 = por %p172, %p173
      %p175 = scmp.ne.s32.totalorder %s166, %s167
      %p176 = scmp.eq.s32.totalorder %s30, 0
      %p177 = por %p175, %p176
      %p178 = scmp.ne.s32.totalorder %s166, %s167
      %p179 = scmp.eq.s32.totalorder %s31, 1
      %p180 = por %p178, %p179
      %p182 = scmp.ne.s32.totalorder %s167, %s181
      %p183 = scmp.eq.s32.totalorder %s31, 0
      %p184 = por %p182, %p183
      %s186 = sadd.s32 %s185, 1
      %p189 = scmp.eq.s32.totalorder %s25, 1
      %p190 = scmp.ne.s32.totalorder %s185, %s187
      %p191 = scmp.eq.s32.totalorder %s25, 0
      %p192 = por %p190, %p191
      %p193 = scmp.ne.s32.totalorder %s185, %s187
      %p194 = scmp.eq.s32.totalorder %s30, 1
      %p195 = por %p193, %p194
      %p196 = scmp.ne.s32.totalorder %s187, %s188
      %p197 = scmp.eq.s32.totalorder %s30, 0
      %p198 = por %p196, %p197
      %p199 = scmp.ne.s32.totalorder %s187, %s188
      %p200 = scmp.eq.s32.totalorder %s31, 1
      %p201 = por %p199, %p200
      %p203 = scmp.ne.s32.totalorder %s188, %s202
      %p204 = scmp.eq.s32.totalorder %s31, 0
      %p205 = por %p203, %p204
      %s207 = sadd.s32 %s206, 1
      %p210 = scmp.eq.s32.totalorder %s25, 1
      %p211 = scmp.ne.s32.totalorder %s206, %s208
      %p212 = scmp.eq.s32.totalorder %s25, 0
      %p213 = por %p211, %p212
      %p214 = scmp.ne.s32.totalorder %s206, %s208
      %p215 = scmp.eq.s32.totalorder %s30, 1
      %p216 = por %p214, %p215
      %p217 = scmp.ne.s32.totalorder %s208, %s209
      %p218 = scmp.eq.s32.totalorder %s30, 0
      %p219 = por %p217, %p218
      %p220 = scmp.ne.s32.totalorder %s208, %s209
      %p221 = scmp.eq.s32.totalorder %s31, 1
      %p222 = por %p220, %p221
      %p224 = scmp.ne.s32.totalorder %s209, %s223
      %p225 = scmp.eq.s32.totalorder %s31, 0
      %p226 = por %p224, %p225
      %s228 = sadd.s32 %s227, 1
      %p231 = scmp.eq.s32.totalorder %s25, 1
      %p232 = scmp.ne.s32.totalorder %s227, %s229
      %p233 = scmp.eq.s32.totalorder %s25, 0
      %p234 = por %p232, %p233
      %p235 = scmp.ne.s32.totalorder %s227, %s229
      %p236 = scmp.eq.s32.totalorder %s30, 1
      %p237 = por %p235, %p236
      %p238 = scmp.ne.s32.totalorder %s229, %s230
      %p239 = scmp.eq.s32.totalorder %s30, 0
      %p240 = por %p238, %p239
      %p241 = scmp.ne.s32.totalorder %s229, %s230
      %p242 = scmp.eq.s32.totalorder %s31, 1
      %p243 = por %p241, %p242
      %p245 = scmp.ne.s32.totalorder %s230, %s244
      %p246 = scmp.eq.s32.totalorder %s31, 0
      %p247 = por %p245, %p246
      %s249 = sadd.s32 %s248, 1
      %p252 = scmp.eq.s32.totalorder %s25, 1
      %p253 = scmp.ne.s32.totalorder %s248, %s250
      %p254 = scmp.eq.s32.totalorder %s25, 0
      %p255 = por %p253, %p254
      %p256 = scmp.ne.s32.totalorder %s248, %s250
      %p257 = scmp.eq.s32.totalorder %s30, 1
      %p258 = por %p256, %p257
      %p259 = scmp.ne.s32.totalorder %s250, %s251
      %p260 = scmp.eq.s32.totalorder %s30, 0
      %p261 = por %p259, %p260
      %p262 = scmp.ne.s32.totalorder %s250, %s251
      %p263 = scmp.eq.s32.totalorder %s31, 1
      %p264 = por %p262, %p263
      %p266 = scmp.ne.s32.totalorder %s251, %s265
      %p267 = scmp.eq.s32.totalorder %s31, 0
      %p268 = por %p266, %p267
      %s270 = sadd.s32 %s269, 1
      %p273 = scmp.eq.s32.totalorder %s25, 1
      %p274 = scmp.ne.s32.totalorder %s269, %s271
      %p275 = scmp.eq.s32.totalorder %s25, 0
      %p276 = por %p274, %p275
      %p277 = scmp.ne.s32.totalorder %s269, %s271
      %p278 = scmp.eq.s32.totalorder %s30, 1
      %p279 = por %p277, %p278
      %p280 = scmp.ne.s32.totalorder %s271, %s272
      %p281 = scmp.eq.s32.totalorder %s30, 0
      %p282 = por %p280, %p281
      %p283 = scmp.ne.s32.totalorder %s271, %s272
      %p284 = scmp.eq.s32.totalorder %s31, 1
      %p285 = por %p283, %p284
      %p287 = scmp.ne.s32.totalorder %s272, %s286
      %p288 = scmp.eq.s32.totalorder %s31, 0
      %p289 = por %p287, %p288
      %s291 = sadd.s32 %s290, 1
      %p294 = scmp.eq.s32.totalorder %s25, 1
      %p295 = scmp.ne.s32.totalorder %s290, %s292
      %p296 = scmp.eq.s32.totalorder %s25, 0
      %p297 = por %p295, %p296
      %p298 = scmp.ne.s32.totalorder %s290, %s292
      %p299 = scmp.eq.s32.totalorder %s30, 1
      %p300 = por %p298, %p299
      %p301 = scmp.ne.s32.totalorder %s292, %s293
      %p302 = scmp.eq.s32.totalorder %s30, 0
      %p303 = por %p301, %p302
      %p304 = scmp.ne.s32.totalorder %s292, %s293
      %p305 = scmp.eq.s32.totalorder %s31, 1
      %p306 = por %p304, %p305
      %p308 = scmp.ne.s32.totalorder %s293, %s307
      %p309 = scmp.eq.s32.totalorder %s31, 0
      %p310 = por %p308, %p309
      %s312 = sadd.s32 %s311, 1
      %p315 = scmp.eq.s32.totalorder %s25, 1
      %p316 = scmp.ne.s32.totalorder %s311, %s313
      %p317 = scmp.eq.s32.totalorder %s25, 0
      %p318 = por %p316, %p317
      %p319 = scmp.ne.s32.totalorder %s311, %s313
      %p320 = scmp.eq.s32.totalorder %s30, 1
      %p321 = por %p319, %p320
      %p322 = scmp.ne.s32.totalorder %s313, %s314
      %p323 = scmp.eq.s32.totalorder %s30, 0
      %p324 = por %p322, %p323
      %p325 = scmp.ne.s32.totalorder %s313, %s314
      %p326 = scmp.eq.s32.totalorder %s31, 1
      %p327 = por %p325, %p326
      %p329 = scmp.ne.s32.totalorder %s314, %s328
      %p330 = scmp.eq.s32.totalorder %s31, 0
      %p331 = por %p329, %p330
      %s332 = ssub.s32 %s25, %s32
      %p333 = scmp.eq.s32.totalorder %s332, 0
      %s335 = sadd.s32 %s334, 1
      %s336 = scalar_select %p333, %s334, %s335
      %p339 = pneg %p333
      %p340 = scmp.eq.s32.totalorder %s25, 1
      %p341 = por %p339, %p340
      %p342 = scmp.ne.s32.totalorder %s334, %s337
      %p343 = scmp.eq.s32.totalorder %s25, 0
      %p344 = por %p342, %p343
      %p345 = scmp.ne.s32.totalorder %s334, %s337
      %p346 = scmp.eq.s32.totalorder %s30, 1
      %p347 = por %p345, %p346
      %p348 = scmp.ne.s32.totalorder %s337, %s338
      %p349 = scmp.eq.s32.totalorder %s30, 0
      %p350 = por %p348, %p349
      %p351 = scmp.ne.s32.totalorder %s337, %s338
      %p352 = scmp.eq.s32.totalorder %s31, 1
      %p353 = por %p351, %p352
      %p355 = scmp.ne.s32.totalorder %s338, %s354
      %p356 = scmp.eq.s32.totalorder %s31, 0
      %p357 = por %p355, %p356
      %p358 = scmp.le.s32.totalorder 1, %s25
      %p359 = scmp.lt.s32.totalorder %s25, 3
      %p360 = pnand %p358, %p359
      %p361 = pneg %p360
      // Predicated region
      $region9: #{cct_forward.3} parent=5 // pred_check
        _
      $region10: #{cct_forward.3} parent=5 // pred_check_branch
        %363 = sbr.rel (%p360) target = $region12
      $region11: #{cct_forward.3} parent=5 // pred_region
        %s364 = ssub.s32 %s25, 1
        // Predicated region
        $region13: #{cct_forward.3} parent=11 // pred_check
          %p365 = pneg %p72
        $region14: #{cct_forward.3} parent=11 // pred_check_branch
          %367 = sbr.rel (%p365) target = $region16
        $region15: #{cct_forward.3} parent=11 // pred_region
          _
        $region16: #{cct_forward.3} parent=11 // pred_fallthru
          _
        // Predicated region
        $region17: #{cct_forward.3} parent=11 // pred_check
          %p368 = pneg %p93
        $region18: #{cct_forward.3} parent=11 // pred_check_branch
          %370 = sbr.rel (%p368) target = $region20
        $region19: #{cct_forward.3} parent=11 // pred_region
          _
        $region20: #{cct_forward.3} parent=11 // pred_fallthru
          _
        // Predicated region
        $region21: #{cct_forward.3} parent=11 // pred_check
          %p371 = pneg %p114
        $region22: #{cct_forward.3} parent=11 // pred_check_branch
          %373 = sbr.rel (%p371) target = $region24
        $region23: #{cct_forward.3} parent=11 // pred_region
          _
        $region24: #{cct_forward.3} parent=11 // pred_fallthru
          _
        // Predicated region
        $region25: #{cct_forward.3} parent=11 // pred_check
          %p374 = pneg %p135
        $region26: #{cct_forward.3} parent=11 // pred_check_branch
          %376 = sbr.rel (%p374) target = $region28
        $region27: #{cct_forward.3} parent=11 // pred_region
          _
        $region28: #{cct_forward.3} parent=11 // pred_fallthru
          _
        // Predicated region
        $region29: #{cct_forward.3} parent=11 // pred_check
          %p377 = pneg %p156
        $region30: #{cct_forward.3} parent=11 // pred_check_branch
          %379 = sbr.rel (%p377) target = $region32
        $region31: #{cct_forward.3} parent=11 // pred_region
          _
        $region32: #{cct_forward.3} parent=11 // pred_fallthru
          _
        // Predicated region
        $region33: #{cct_forward.3} parent=11 // pred_check
          %p380 = pneg %p177
        $region34: #{cct_forward.3} parent=11 // pred_check_branch
          %382 = sbr.rel (%p380) target = $region36
        $region35: #{cct_forward.3} parent=11 // pred_region
          _
        $region36: #{cct_forward.3} parent=11 // pred_fallthru
          _
        // Predicated region
        $region37: #{cct_forward.3} parent=11 // pred_check
          %p383 = pneg %p198
        $region38: #{cct_forward.3} parent=11 // pred_check_branch
          %385 = sbr.rel (%p383) target = $region40
        $region39: #{cct_forward.3} parent=11 // pred_region
          _
        $region40: #{cct_forward.3} parent=11 // pred_fallthru
          _
        // Predicated region
        $region41: #{cct_forward.3} parent=11 // pred_check
          %p386 = pneg %p219
        $region42: #{cct_forward.3} parent=11 // pred_check_branch
          %388 = sbr.rel (%p386) target = $region44
        $region43: #{cct_forward.3} parent=11 // pred_region
          _
        $region44: #{cct_forward.3} parent=11 // pred_fallthru
          _
        // Predicated region
        $region45: #{cct_forward.3} parent=11 // pred_check
          %p389 = pneg %p240
        $region46: #{cct_forward.3} parent=11 // pred_check_branch
          %391 = sbr.rel (%p389) target = $region48
        $region47: #{cct_forward.3} parent=11 // pred_region
          _
        $region48: #{cct_forward.3} parent=11 // pred_fallthru
          _
        // Predicated region
        $region49: #{cct_forward.3} parent=11 // pred_check
          %p392 = pneg %p261
        $region50: #{cct_forward.3} parent=11 // pred_check_branch
          %394 = sbr.rel (%p392) target = $region52
        $region51: #{cct_forward.3} parent=11 // pred_region
          _
        $region52: #{cct_forward.3} parent=11 // pred_fallthru
          _
        // Predicated region
        $region53: #{cct_forward.3} parent=11 // pred_check
          %p395 = pneg %p282
        $region54: #{cct_forward.3} parent=11 // pred_check_branch
          %397 = sbr.rel (%p395) target = $region56
        $region55: #{cct_forward.3} parent=11 // pred_region
          _
        $region56: #{cct_forward.3} parent=11 // pred_fallthru
          _
        // Predicated region
        $region57: #{cct_forward.3} parent=11 // pred_check
          %p398 = pneg %p303
        $region58: #{cct_forward.3} parent=11 // pred_check_branch
          %400 = sbr.rel (%p398) target = $region60
        $region59: #{cct_forward.3} parent=11 // pred_region
          _
        $region60: #{cct_forward.3} parent=11 // pred_fallthru
          _
        // Predicated region
        $region61: #{cct_forward.3} parent=11 // pred_check
          %p401 = pneg %p324
        $region62: #{cct_forward.3} parent=11 // pred_check_branch
          %403 = sbr.rel (%p401) target = $region64
        $region63: #{cct_forward.3} parent=11 // pred_region
          _
        $region64: #{cct_forward.3} parent=11 // pred_fallthru
          _
      $region12: #{cct_forward.3} parent=5 // pred_fallthru
        _
      %p404 = scmp.lt.s32.totalorder %s25, 2
      // Predicated region
      $region65: #{cct_forward.3} parent=5 // pred_check
        %p405 = pneg %p404
      $region66: #{cct_forward.3} parent=5 // pred_check_branch
        %407 = sbr.rel (%p405) target = $region68
      $region67: #{cct_forward.3} parent=5 // pred_region
        // Predicated region
        $region69: #{cct_forward.3} parent=67 // pred_check
          %p408 = pneg %p45
        $region70: #{cct_forward.3} parent=67 // pred_check_branch
          %410 = sbr.rel (%p408) target = $region72
        $region71: #{cct_forward.3} parent=67 // pred_region
          %p411 = scmp.lt.s32.totalorder %s25, 1
          %s412 = scalar_select %p411, %s25, 1
          %s413 = smul.addr %s412, 2
          %s414 = smul.addr %s413, 8
          %s415 = scalar_lea.vmem %s0, %s414
        $region72: #{cct_forward.3} parent=67 // pred_fallthru
          _
      $region68: #{cct_forward.3} parent=5 // pred_fallthru
        _
      %p416 = scmp.le.s32.totalorder 1, %s25
      %p417 = scmp.lt.s32.totalorder %s25, 3
      %p418 = pnand %p416, %p417
      %p419 = pneg %p418
      // Predicated region
      $region73: #{cct_forward.3} parent=5 // pred_check
        _
      $region74: #{cct_forward.3} parent=5 // pred_check_branch
        %421 = sbr.rel (%p418) target = $region76
      $region75: #{cct_forward.3} parent=5 // pred_region
        %s422 = ssub.s32 %s25, 1
        %p423 = scmp.lt.s32.totalorder %s30, 1
        %s424 = scalar_select %p423, %s30, 1
        %s425 = smul.addr %s424, 2
        %s426 = smul.addr %s425, 8
        %s427 = scalar_lea.vmem %s0, %s426
        %p428 = pneg %p51
        %p429 = pneg %p48
        %p430 = pneg %p72
        %p431 = pneg %p69
        %p432 = pneg %p93
        %p433 = pneg %p90
        %p434 = pneg %p114
        %p435 = pneg %p111
        %p436 = pneg %p135
        %p437 = pneg %p132
        %p438 = pneg %p156
        %p439 = pneg %p153
        %p440 = pneg %p177
        %p441 = pneg %p174
        %p442 = pneg %p198
        %p443 = pneg %p195
        %p444 = pneg %p219
        %p445 = pneg %p216
        %p446 = pneg %p240
        %p447 = pneg %p237
        %p448 = pneg %p261
        %p449 = pneg %p258
        %p450 = pneg %p282
        %p451 = pneg %p279
        %p452 = pneg %p303
        %p453 = pneg %p300
        %p454 = pneg %p324
        %p455 = pneg %p321
        %p456 = pneg %p350
        %p457 = pneg %p347
        %s458 = sand.u32 %s337, 1
        %s459 = scalar_lea.sflag [#allocation4], %s458
        %s460 = sand.u32 %s337, 1
        %s461 = scalar_lea.vmem [#allocation3], %s460
        %p462 = scmp.lt.s32.totalorder %s30, 1
        %s463 = scalar_select %p462, %s30, 1
        %s464 = smul.addr %s463, 2
        %s465 = smul.addr %s464, 8
        %s466 = scalar_lea.vmem %s0, %s465
        %v467 = vld [vmem:[%s466] sm:$0xff]
        %v468 = vld [vmem:[%s466 + $0x8] sm:$0xff]
        %v469 = vld [vmem:[%s1] sm:$0xf]
        %vm470 = vcmask 261120
        %v471 = vsel %vm470, %v467, 0.0
        %472 = vadd.xlane.f32.xlu0 %v471
        %v473 = vpop.xlane.xlu0 %472
        %v474 = vsel %vm470, %v468, 0.0
        %475 = vadd.xlane.f32.xlu0 %v474
        %v476 = vpop.xlane.xlu0 %475
        %v477 = vrcp.pop 32.0
        %v478 = vmul.f32 %v473, %v477
        %v479 = vmul.f32 %v476, %v477
        %v480 = vsub.f32 %v467, %v478
        %v481 = vsub.f32 %v468, %v479
        %v482 = vmul.f32 %v480, %v480
        %v483 = vmul.f32 %v481, %v481
        %v484 = vsel %vm470, %v482, 0.0
        %485 = vadd.xlane.f32.xlu0 %v484
        %v486 = vpop.xlane.xlu0 %485
        %v487 = vsel %vm470, %v483, 0.0
        %488 = vadd.xlane.f32.xlu0 %v487
        %v489 = vpop.xlane.xlu0 %488
        %v490 = vmul.f32 %v486, %v477
        %v491 = vmul.f32 %v489, %v477
        %v492 = vadd.f32 %v490, 1e-05
        %v493 = vadd.f32 %v491, 1e-05
        %v494 = vrsqrt.pop %v492
        %v495 = vrsqrt.pop %v493
        %v496 = vmul.f32 %v480, %v494
        %v497 = vmul.f32 %v481, %v495
        %v498 = vlaneseq
        %v499 = vshrl.u32 %v498, 7
        %v500 = vsub.s32 0, %v499
        %v501 = vrot.slane %v469, %v500
        %v502 = vmul.f32 %v496, %v501
        %v503 = vmul.f32 %v497, %v501
        %v504 = vlaneseq
        %v505 = vshrl.u32 %v504, 7
        %v506 = vsub.s32 1, %v505
        %v507 = vrot.slane %v469, %v506
        %v508 = vadd.f32 %v502, %v507
        %v509 = vadd.f32 %v503, %v507
        %v510 = vld [vmem:[%s2] sm:$0xff]
        %v511 = vld [vmem:[%s2 + $0x8] sm:$0xff]
        %v512 = vld [vmem:[%s2 + $0x10] sm:$0xff]
        %v513 = vld [vmem:[%s2 + $0x18] sm:$0xff]
        %v514 = vld [vmem:[%s3] sm:$0x1]
        %v516 = vlaneseq
        %v517 = vshrl.u32 %v516, 7
        %v518 = vsub.s32 0, %v517
        %v519 = vrot.slane %v514, %v518
        %v522 = vsel %vm470, %v508, 0
        %v525 = vsel %vm470, %v509, 0
        %527 = vmatprep.subr.mxu0 0.0
        %528 = vmatpush1.msra.mxu0 %v510
        %529 = vmatprep.subr.mxu0 0.0
        %530 = vmatpush1.msra.mxu0 %v511
        %531 = vmatprep.subr.mxu0 0.0
        %532 = vmatpush1.msra.mxu0 %v512
        %533 = vmatprep.subr.mxu0 0.0
        %534 = vmatpush1.msra.mxu0 %v513
        %535 = vmatprep.subr.mxu0 0.0
        %536 = vmatpush1.msra.mxu0 0.0
        %537 = vmatprep.subr.mxu0 0.0
        %538 = vmatpush1.msra.mxu0 0.0
        %539 = vmatprep.subr.mxu0 0.0
        %540 = vmatpush1.msra.mxu0 0.0
        %541 = vmatprep.subr.mxu0 0.0
        %542 = vmatpush1.msra.mxu0 0.0
        %543 = vmatprep.subr.mxu0 0.0
        %544 = vmatpush1.msra.mxu0 0.0
        %545 = vmatprep.subr.mxu0 0.0
        %546 = vmatpush1.msra.mxu0 0.0
        %547 = vmatprep.subr.mxu0 0.0
        %548 = vmatpush1.msra.mxu0 0.0
        %549 = vmatprep.subr.mxu0 0.0
        %550 = vmatpush1.msra.mxu0 0.0
        %551 = vmatprep.subr.mxu0 0.0
        %552 = vmatpush1.msra.mxu0 0.0
        %553 = vmatprep.subr.mxu0 0.0
        %554 = vmatpush1.msra.mxu0 0.0
        %555 = vmatprep.subr.mxu0 0.0
        %556 = vmatpush1.msra.mxu0 0.0
        %557 = vmatprep.subr.mxu0 0.0
        %558 = vmatpush1.msra.mxu0 0.0
        %559 = vmatprep.subr.mxu0 0.0
        %560 = vmatpush1.msra.mxu0 0.0
        %561 = vmatprep.subr.mxu0 0.0
        %562 = vmatpush1.msra.mxu0 0.0
        %563 = vmatprep.subr.mxu0 0.0
        %564 = vmatpush1.msra.mxu0 0.0
        %565 = vmatprep.subr.mxu0 0.0
        %566 = vmatpush1.msra.mxu0 0.0
        %567 = vmatprep.subr.mxu0 0.0
        %568 = vmatpush1.msra.mxu0 0.0
        %569 = vmatprep.subr.mxu0 0.0
        %570 = vmatpush1.msra.mxu0 0.0
        %571 = vmatprep.subr.mxu0 0.0
        %572 = vmatpush1.msra.mxu0 0.0
        %573 = vmatprep.subr.mxu0 0.0
        %574 = vmatpush1.msra.mxu0 0.0
        %575 = vmatprep.subr.mxu0 0.0
        %576 = vmatpush1.msra.mxu0 0.0
        %577 = vmatprep.subr.mxu0 0.0
        %578 = vmatpush1.msra.mxu0 0.0
        %579 = vmatprep.subr.mxu0 0.0
        %580 = vmatpush1.msra.mxu0 0.0
        %581 = vmatprep.subr.mxu0 0.0
        %582 = vmatpush1.msra.mxu0 0.0
        %583 = vmatprep.subr.mxu0 0.0
        %584 = vmatpush1.msra.mxu0 0.0
        %585 = vmatprep.subr.mxu0 0.0
        %586 = vmatpush1.msra.mxu0 0.0
        %587 = vmatprep.subr.mxu0 0.0
        %588 = vmatpush1.msra.mxu0 0.0
        %589 = vmatprep.subr.mxu0 0.0
        %590 = vmatpush1.msra.mxu0 0.0
        %591 = vmatprep.mubr.f32.mxu0 0.0
        %592 = vmatmul.mubr.f32.gmra.mrb[0].mxu0 %v522
        %v593 = vpop.f32.mrb[0].mxu0
        %v594 = vadd.f32 %v519, %v593
        %v595 = vpop.f32.mrb[0].mxu0
        %596 = vmatprep.mubr.f32.mxu0 0.0
        %597 = vmatmul.mubr.f32.gmra.mrb[0].mxu0 %v525
        %v598 = vpop.f32.mrb[0].mxu0
        %v599 = vadd.f32 %v519, %v598
        %v600 = vpop.f32.mrb[0].mxu0
        %601 = vdwg.mxu0
        %604 = vrot.lane.b32.xlu0 %v594, 120
        %v605 = vpop.permute.xlu0 %604
        %606 = vrot.lane.b32.xlu0 %v599, 120
        %v607 = vpop.permute.xlu0 %606
        %608 = vrot.lane.b32.xlu0 %v594, 112
        %v609 = vpop.permute.xlu0 %608
        %610 = vrot.lane.b32.xlu0 %v599, 112
        %v611 = vpop.permute.xlu0 %610
        %612 = vrot.lane.b32.xlu0 %v594, 104
        %v613 = vpop.permute.xlu0 %612
        %614 = vrot.lane.b32.xlu0 %v599, 104
        %v615 = vpop.permute.xlu0 %614
        %616 = vrot.lane.b32.xlu0 %v594, 96
        %v617 = vpop.permute.xlu0 %616
        %618 = vrot.lane.b32.xlu0 %v599, 96
        %v619 = vpop.permute.xlu0 %618
        %vm620 = vcmask 64512
        %v621 = vsel %vm620, %v594, 0
        %v623 = vsel %vm620, %v599, 0
        %v625 = vsel %vm620, %v617, 0
        %v627 = vsel %vm620, %v619, 0
        %629 = vmatprep.subr.mxu0 0.0
        %630 = vmatpush1.xpose.msra.mxu0 %v625
        %631 = vmatprep.subr.mxu0 0.0
        %632 = vmatpush1.xpose.msra.mxu0 %v627
        %633 = vmatprep.subr.mxu0 0.0
        %634 = vmatpush1.xpose.msra.mxu0 0.0
        %635 = vmatprep.subr.mxu0 0.0
        %636 = vmatpush1.xpose.msra.mxu0 0.0
        %637 = vmatprep.subr.mxu0 0.0
        %638 = vmatpush1.xpose.msra.mxu0 0.0
        %639 = vmatprep.subr.mxu0 0.0
        %640 = vmatpush1.xpose.msra.mxu0 0.0
        %641 = vmatprep.subr.mxu0 0.0
        %642 = vmatpush1.xpose.msra.mxu0 0.0
        %643 = vmatprep.subr.mxu0 0.0
        %644 = vmatpush1.xpose.msra.mxu0 0.0
        %645 = vmatprep.subr.mxu0 0.0
        %646 = vmatpush1.xpose.msra.mxu0 0.0
        %647 = vmatprep.subr.mxu0 0.0
        %648 = vmatpush1.xpose.msra.mxu0 0.0
        %649 = vmatprep.subr.mxu0 0.0
        %650 = vmatpush1.xpose.msra.mxu0 0.0
        %651 = vmatprep.subr.mxu0 0.0
        %652 = vmatpush1.xpose.msra.mxu0 0.0
        %653 = vmatprep.subr.mxu0 0.0
        %654 = vmatpush1.xpose.msra.mxu0 0.0
        %655 = vmatprep.subr.mxu0 0.0
        %656 = vmatpush1.xpose.msra.mxu0 0.0
        %657 = vmatprep.subr.mxu0 0.0
        %658 = vmatpush1.xpose.msra.mxu0 0.0
        %659 = vmatprep.subr.mxu0 0.0
        %660 = vmatpush1.xpose.msra.mxu0 0.0
        %661 = vmatprep.subr.mxu0 0.0
        %662 = vmatpush1.xpose.msra.mxu0 0.0
        %663 = vmatprep.subr.mxu0 0.0
        %664 = vmatpush1.xpose.msra.mxu0 0.0
        %665 = vmatprep.subr.mxu0 0.0
        %666 = vmatpush1.xpose.msra.mxu0 0.0
        %667 = vmatprep.subr.mxu0 0.0
        %668 = vmatpush1.xpose.msra.mxu0 0.0
        %669 = vmatprep.subr.mxu0 0.0
        %670 = vmatpush1.xpose.msra.mxu0 0.0
        %671 = vmatprep.subr.mxu0 0.0
        %672 = vmatpush1.xpose.msra.mxu0 0.0
        %673 = vmatprep.subr.mxu0 0.0
        %674 = vmatpush1.xpose.msra.mxu0 0.0
        %675 = vmatprep.subr.mxu0 0.0
        %676 = vmatpush1.xpose.msra.mxu0 0.0
        %677 = vmatprep.subr.mxu0 0.0
        %678 = vmatpush1.xpose.msra.mxu0 0.0
        %679 = vmatprep.subr.mxu0 0.0
        %680 = vmatpush1.xpose.msra.mxu0 0.0
        %681 = vmatprep.subr.mxu0 0.0
        %682 = vmatpush1.xpose.msra.mxu0 0.0
        %683 = vmatprep.subr.mxu0 0.0
        %684 = vmatpush1.xpose.msra.mxu0 0.0
        %685 = vmatprep.subr.mxu0 0.0
        %686 = vmatpush1.xpose.msra.mxu0 0.0
        %687 = vmatprep.subr.mxu0 0.0
        %688 = vmatpush1.xpose.msra.mxu0 0.0
        %689 = vmatprep.subr.mxu0 0.0
        %690 = vmatpush1.xpose.msra.mxu0 0.0
        %691 = vmatprep.subr.mxu0 0.0
        %692 = vmatpush1.xpose.msra.mxu0 0.0
        %693 = vmatprep.mubr.f32.mxu0 0.0
        %694 = vmatmul.mubr.f32.gmra.mrb[0].mxu0 %v621
        %v695 = vpop.f32.mrb[0].mxu0
        %v696 = vadd.f32 0.0, %v695
        %v697 = vpop.f32.mrb[0].mxu0
        %698 = vmatprep.mubr.f32.mxu0 0.0
        %699 = vmatmul.mubr.f32.gmra.mrb[0].mxu0 %v623
        %v700 = vpop.f32.mrb[0].mxu0
        %v701 = vadd.f32 0.0, %v700
        %v702 = vpop.f32.mrb[0].mxu0
        %703 = vdwg.mxu0
        %704 = vrot.lane.b32.xlu0 %v605, 96
        %v705 = vpop.permute.xlu0 %704
        %706 = vrot.lane.b32.xlu0 %v607, 96
        %v707 = vpop.permute.xlu0 %706
        %v708 = vsel %vm620, %v605, 0
        %v710 = vsel %vm620, %v607, 0
        %v712 = vsel %vm620, %v705, 0
        %v714 = vsel %vm620, %v707, 0
        %716 = vmatprep.subr.mxu0 0.0
        %717 = vmatpush1.xpose.msra.mxu0 %v712
        %718 = vmatprep.subr.mxu0 0.0
        %719 = vmatpush1.xpose.msra.mxu0 %v714
        %720 = vmatprep.subr.mxu0 0.0
        %721 = vmatpush1.xpose.msra.mxu0 0.0
        %722 = vmatprep.subr.mxu0 0.0
        %723 = vmatpush1.xpose.msra.mxu0 0.0
        %724 = vmatprep.subr.mxu0 0.0
        %725 = vmatpush1.xpose.msra.mxu0 0.0
        %726 = vmatprep.subr.mxu0 0.0
        %727 = vmatpush1.xpose.msra.mxu0 0.0
        %728 = vmatprep.subr.mxu0 0.0
        %729 = vmatpush1.xpose.msra.mxu0 0.0
        %730 = vmatprep.subr.mxu0 0.0
        %731 = vmatpush1.xpose.msra.mxu0 0.0
        %732 = vmatprep.subr.mxu0 0.0
        %733 = vmatpush1.xpose.msra.mxu0 0.0
        %734 = vmatprep.subr.mxu0 0.0
        %735 = vmatpush1.xpose.msra.mxu0 0.0
        %736 = vmatprep.subr.mxu0 0.0
        %737 = vmatpush1.xpose.msra.mxu0 0.0
        %738 = vmatprep.subr.mxu0 0.0
        %739 = vmatpush1.xpose.msra.mxu0 0.0
        %740 = vmatprep.subr.mxu0 0.0
        %741 = vmatpush1.xpose.msra.mxu0 0.0
        %742 = vmatprep.subr.mxu0 0.0
        %743 = vmatpush1.xpose.msra.mxu0 0.0
        %744 = vmatprep.subr.mxu0 0.0
        %745 = vmatpush1.xpose.msra.mxu0 0.0
        %746 = vmatprep.subr.mxu0 0.0
        %747 = vmatpush1.xpose.msra.mxu0 0.0
        %748 = vmatprep.subr.mxu0 0.0
        %749 = vmatpush1.xpose.msra.mxu0 0.0
        %750 = vmatprep.subr.mxu0 0.0
        %751 = vmatpush1.xpose.msra.mxu0 0.0
        %752 = vmatprep.subr.mxu0 0.0
        %753 = vmatpush1.xpose.msra.mxu0 0.0
        %754 = vmatprep.subr.mxu0 0.0
        %755 = vmatpush1.xpose.msra.mxu0 0.0
        %756 = vmatprep.subr.mxu0 0.0
        %757 = vmatpush1.xpose.msra.mxu0 0.0
        %758 = vmatprep.subr.mxu0 0.0
        %759 = vmatpush1.xpose.msra.mxu0 0.0
        %760 = vmatprep.subr.mxu0 0.0
        %761 = vmatpush1.xpose.msra.mxu0 0.0
        %762 = vmatprep.subr.mxu0 0.0
        %763 = vmatpush1.xpose.msra.mxu0 0.0
        %764 = vmatprep.subr.mxu0 0.0
        %765 = vmatpush1.xpose.msra.mxu0 0.0
        %766 = vmatprep.subr.mxu0 0.0
        %767 = vmatpush1.xpose.msra.mxu0 0.0
        %768 = vmatprep.subr.mxu0 0.0
        %769 = vmatpush1.xpose.msra.mxu0 0.0
        %770 = vmatprep.subr.mxu0 0.0
        %771 = vmatpush1.xpose.msra.mxu0 0.0
        %772 = vmatprep.subr.mxu0 0.0
        %773 = vmatpush1.xpose.msra.mxu0 0.0
        %774 = vmatprep.subr.mxu0 0.0
        %775 = vmatpush1.xpose.msra.mxu0 0.0
        %776 = vmatprep.subr.mxu0 0.0
        %777 = vmatpush1.xpose.msra.mxu0 0.0
        %778 = vmatprep.subr.mxu0 0.0
        %779 = vmatpush1.xpose.msra.mxu0 0.0
        %780 = vmatprep.mubr.f32.mxu0 0.0
        %781 = vmatmul.mubr.f32.gmra.mrb[0].mxu0 %v708
        %v782 = vpop.f32.mrb[0].mxu0
        %v783 = vadd.f32 0.0, %v782
        %v784 = vpop.f32.mrb[0].mxu0
        %785 = vmatprep.mubr.f32.mxu0 0.0
        %786 = vmatmul.mubr.f32.gmra.mrb[0].mxu0 %v710
        %v787 = vpop.f32.mrb[0].mxu0
        %v788 = vadd.f32 0.0, %v787
        %v789 = vpop.f32.mrb[0].mxu0
        %790 = vdwg.mxu0
        %791 = vrot.lane.b32.xlu0 %v609, 96
        %v792 = vpop.permute.xlu0 %791
        %793 = vrot.lane.b32.xlu0 %v611, 96
        %v794 = vpop.permute.xlu0 %793
        %v795 = vsel %vm620, %v609, 0
        %v797 = vsel %vm620, %v611, 0
        %v799 = vsel %vm620, %v792, 0
        %v801 = vsel %vm620, %v794, 0
        %803 = vmatprep.subr.mxu0 0.0
        %804 = vmatpush1.xpose.msra.mxu0 %v799
        %805 = vmatprep.subr.mxu0 0.0
        %806 = vmatpush1.xpose.msra.mxu0 %v801
        %807 = vmatprep.subr.mxu0 0.0
        %808 = vmatpush1.xpose.msra.mxu0 0.0
        %809 = vmatprep.subr.mxu0 0.0
        %810 = vmatpush1.xpose.msra.mxu0 0.0
        %811 = vmatprep.subr.mxu0 0.0
        %812 = vmatpush1.xpose.msra.mxu0 0.0
        %813 = vmatprep.subr.mxu0 0.0
        %814 = vmatpush1.xpose.msra.mxu0 0.0
        %815 = vmatprep.subr.mxu0 0.0
        %816 = vmatpush1.xpose.msra.mxu0 0.0
        %817 = vmatprep.subr.mxu0 0.0
        %818 = vmatpush1.xpose.msra.mxu0 0.0
        %819 = vmatprep.subr.mxu0 0.0
        %820 = vmatpush1.xpose.msra.mxu0 0.0
        %821 = vmatprep.subr.mxu0 0.0
        %822 = vmatpush1.xpose.msra.mxu0 0.0
        %823 = vmatprep.subr.mxu0 0.0
        %824 = vmatpush1.xpose.msra.mxu0 0.0
        %825 = vmatprep.subr.mxu0 0.0
        %826 = vmatpush1.xpose.msra.mxu0 0.0
        %827 = vmatprep.subr.mxu0 0.0
        %828 = vmatpush1.xpose.msra.mxu0 0.0
        %829 = vmatprep.subr.mxu0 0.0
        %830 = vmatpush1.xpose.msra.mxu0 0.0
        %831 = vmatprep.subr.mxu0 0.0
        %832 = vmatpush1.xpose.msra.mxu0 0.0
        %833 = vmatprep.subr.mxu0 0.0
        %834 = vmatpush1.xpose.msra.mxu0 0.0
        %835 = vmatprep.subr.mxu0 0.0
        %836 = vmatpush1.xpose.msra.mxu0 0.0
        %837 = vmatprep.subr.mxu0 0.0
        %838 = vmatpush1.xpose.msra.mxu0 0.0
        %839 = vmatprep.subr.mxu0 0.0
        %840 = vmatpush1.xpose.msra.mxu0 0.0
        %841 = vmatprep.subr.mxu0 0.0
        %842 = vmatpush1.xpose.msra.mxu0 0.0
        %843 = vmatprep.subr.mxu0 0.0
        %844 = vmatpush1.xpose.msra.mxu0 0.0
        %845 = vmatprep.subr.mxu0 0.0
        %846 = vmatpush1.xpose.msra.mxu0 0.0
        %847 = vmatprep.subr.mxu0 0.0
        %848 = vmatpush1.xpose.msra.mxu0 0.0
        %849 = vmatprep.subr.mxu0 0.0
        %850 = vmatpush1.xpose.msra.mxu0 0.0
        %851 = vmatprep.subr.mxu0 0.0
        %852 = vmatpush1.xpose.msra.mxu0 0.0
        %853 = vmatprep.subr.mxu0 0.0
        %854 = vmatpush1.xpose.msra.mxu0 0.0
        %855 = vmatprep.subr.mxu0 0.0
        %856 = vmatpush1.xpose.msra.mxu0 0.0
        %857 = vmatprep.subr.mxu0 0.0
        %858 = vmatpush1.xpose.msra.mxu0 0.0
        %859 = vmatprep.subr.mxu0 0.0
        %860 = vmatpush1.xpose.msra.mxu0 0.0
        %861 = vmatprep.subr.mxu0 0.0
        %862 = vmatpush1.xpose.msra.mxu0 0.0
        %863 = vmatprep.subr.mxu0 0.0
        %864 = vmatpush1.xpose.msra.mxu0 0.0
        %865 = vmatprep.subr.mxu0 0.0
        %866 = vmatpush1.xpose.msra.mxu0 0.0
        %867 = vmatprep.mubr.f32.mxu0 0.0
        %868 = vmatmul.mubr.f32.gmra.mrb[0].mxu0 %v795
        %v869 = vpop.f32.mrb[0].mxu0
        %v870 = vadd.f32 0.0, %v869
        %v871 = vpop.f32.mrb[0].mxu0
        %872 = vmatprep.mubr.f32.mxu0 0.0
        %873 = vmatmul.mubr.f32.gmra.mrb[0].mxu0 %v797
        %v874 = vpop.f32.mrb[0].mxu0
        %v875 = vadd.f32 0.0, %v874
        %v876 = vpop.f32.mrb[0].mxu0
        %877 = vdwg.mxu0
        %878 = vrot.lane.b32.xlu0 %v613, 96
        %v879 = vpop.permute.xlu0 %878
        %880 = vrot.lane.b32.xlu0 %v615, 96
        %v881 = vpop.permute.xlu0 %880
        %v882 = vsel %vm620, %v613, 0
        %v884 = vsel %vm620, %v615, 0
        %v886 = vsel %vm620, %v879, 0
        %v888 = vsel %vm620, %v881, 0
        %890 = vmatprep.subr.mxu0 0.0
        %891 = vmatpush1.xpose.msra.mxu0 %v886
        %892 = vmatprep.subr.mxu0 0.0
        %893 = vmatpush1.xpose.msra.mxu0 %v888
        %894 = vmatprep.subr.mxu0 0.0
        %895 = vmatpush1.xpose.msra.mxu0 0.0
        %896 = vmatprep.subr.mxu0 0.0
        %897 = vmatpush1.xpose.msra.mxu0 0.0
        %898 = vmatprep.subr.mxu0 0.0
        %899 = vmatpush1.xpose.msra.mxu0 0.0
        %900 = vmatprep.subr.mxu0 0.0
        %901 = vmatpush1.xpose.msra.mxu0 0.0
        %902 = vmatprep.subr.mxu0 0.0
        %903 = vmatpush1.xpose.msra.mxu0 0.0
        %904 = vmatprep.subr.mxu0 0.0
        %905 = vmatpush1.xpose.msra.mxu0 0.0
        %906 = vmatprep.subr.mxu0 0.0
        %907 = vmatpush1.xpose.msra.mxu0 0.0
        %908 = vmatprep.subr.mxu0 0.0
        %909 = vmatpush1.xpose.msra.mxu0 0.0
        %910 = vmatprep.subr.mxu0 0.0
        %911 = vmatpush1.xpose.msra.mxu0 0.0
        %912 = vmatprep.subr.mxu0 0.0
        %913 = vmatpush1.xpose.msra.mxu0 0.0
        %914 = vmatprep.subr.mxu0 0.0
        %915 = vmatpush1.xpose.msra.mxu0 0.0
        %916 = vmatprep.subr.mxu0 0.0
        %917 = vmatpush1.xpose.msra.mxu0 0.0
        %918 = vmatprep.subr.mxu0 0.0
        %919 = vmatpush1.xpose.msra.mxu0 0.0
        %920 = vmatprep.subr.mxu0 0.0
        %921 = vmatpush1.xpose.msra.mxu0 0.0
        %922 = vmatprep.subr.mxu0 0.0
        %923 = vmatpush1.xpose.msra.mxu0 0.0
        %924 = vmatprep.subr.mxu0 0.0
        %925 = vmatpush1.xpose.msra.mxu0 0.0
        %926 = vmatprep.subr.mxu0 0.0
        %927 = vmatpush1.xpose.msra.mxu0 0.0
        %928 = vmatprep.subr.mxu0 0.0
        %929 = vmatpush1.xpose.msra.mxu0 0.0
        %930 = vmatprep.subr.mxu0 0.0
        %931 = vmatpush1.xpose.msra.mxu0 0.0
        %932 = vmatprep.subr.mxu0 0.0
        %933 = vmatpush1.xpose.msra.mxu0 0.0
        %934 = vmatprep.subr.mxu0 0.0
        %935 = vmatpush1.xpose.msra.mxu0 0.0
        %936 = vmatprep.subr.mxu0 0.0
        %937 = vmatpush1.xpose.msra.mxu0 0.0
        %938 = vmatprep.subr.mxu0 0.0
        %939 = vmatpush1.xpose.msra.mxu0 0.0
        %940 = vmatprep.subr.mxu0 0.0
        %941 = vmatpush1.xpose.msra.mxu0 0.0
        %942 = vmatprep.subr.mxu0 0.0
        %943 = vmatpush1.xpose.msra.mxu0 0.0
        %944 = vmatprep.subr.mxu0 0.0
        %945 = vmatpush1.xpose.msra.mxu0 0.0
        %946 = vmatprep.subr.mxu0 0.0
        %947 = vmatpush1.xpose.msra.mxu0 0.0
        %948 = vmatprep.subr.mxu0 0.0
        %949 = vmatpush1.xpose.msra.mxu0 0.0
        %950 = vmatprep.subr.mxu0 0.0
        %951 = vmatpush1.xpose.msra.mxu0 0.0
        %952 = vmatprep.subr.mxu0 0.0
        %953 = vmatpush1.xpose.msra.mxu0 0.0
        %954 = vmatprep.mubr.f32.mxu0 0.0
        %955 = vmatmul.mubr.f32.gmra.mrb[0].mxu0 %v882
        %v956 = vpop.f32.mrb[0].mxu0
        %v957 = vadd.f32 0.0, %v956
        %v958 = vpop.f32.mrb[0].mxu0
        %959 = vmatprep.mubr.f32.mxu0 0.0
        %960 = vmatmul.mubr.f32.gmra.mrb[0].mxu0 %v884
        %v961 = vpop.f32.mrb[0].mxu0
        %v962 = vadd.f32 0.0, %v961
        %v963 = vpop.f32.mrb[0].mxu0
        %964 = vdwg.mxu0
        %v965 = vmul.f32 %v696, 0.35355338
        %v966 = vmul.f32 %v701, 0.35355338
        %v967 = vmul.f32 %v783, 0.35355338
        %v968 = vmul.f32 %v788, 0.35355338
        %v969 = vmul.f32 %v870, 0.35355338
        %v970 = vmul.f32 %v875, 0.35355338
        %v971 = vmul.f32 %v957, 0.35355338
        %v972 = vmul.f32 %v962, 0.35355338
        %vm973 = vcmask 130048
        %v974 = vsel %vm973, %v965, -inf
        %975 = vmax.xlane.f32.xlu0 %v974
        %v976 = vpop.xlane.xlu0 %975
        %v977 = vsel %vm973, %v966, -inf
        %978 = vmax.xlane.f32.xlu0 %v977
        %v979 = vpop.xlane.xlu0 %978
        %v980 = vsel %vm973, %v967, -inf
        %981 = vmax.xlane.f32.xlu0 %v980
        %v982 = vpop.xlane.xlu0 %981
        %v983 = vsel %vm973, %v968, -inf
        %984 = vmax.xlane.f32.xlu0 %v983
        %v985 = vpop.xlane.xlu0 %984
        %v986 = vsel %vm973, %v969, -inf
        %987 = vmax.xlane.f32.xlu0 %v986
        %v988 = vpop.xlane.xlu0 %987
        %v989 = vsel %vm973, %v970, -inf
        %990 = vmax.xlane.f32.xlu0 %v989
        %v991 = vpop.xlane.xlu0 %990
        %v992 = vsel %vm973, %v971, -inf
        %993 = vmax.xlane.f32.xlu0 %v992
        %v994 = vpop.xlane.xlu0 %993
        %v995 = vsel %vm973, %v972, -inf
        %996 = vmax.xlane.f32.xlu0 %v995
        %v997 = vpop.xlane.xlu0 %996
        %v998 = vsub.f32 %v965, %v976
        %v999 = vsub.f32 %v966, %v979
        %v1000 = vsub.f32 %v967, %v982
        %v1001 = vsub.f32 %v968, %v985
        %v1002 = vsub.f32 %v969, %v988
        %v1003 = vsub.f32 %v970, %v991
        %v1004 = vsub.f32 %v971, %v994
        %v1005 = vsub.f32 %v972, %v997
        %v1006 = vmul.f32 %v998, 1.442695
        %v1007 = vpow.pop %v1006
        %v1008 = vmul.f32 %v999, 1.442695
        %v1009 = vpow.pop %v1008
        %v1010 = vmul.f32 %v1000, 1.442695
        %v1011 = vpow.pop %v1010
        %v1012 = vmul.f32 %v1001, 1.442695
        %v1013 = vpow.pop %v1012
        %v1014 = vmul.f32 %v1002, 1.442695
        %v1015 = vpow.pop %v1014
        %v1016 = vmul.f32 %v1003, 1.442695
        %v1017 = vpow.pop %v1016
        %v1018 = vmul.f32 %v1004, 1.442695
        %v1019 = vpow.pop %v1018
        %v1020 = vmul.f32 %v1005, 1.442695
        %v1021 = vpow.pop %v1020
        %v1022 = vsel %vm973, %v1007, 0.0
        %1023 = vadd.xlane.f32.xlu0 %v1022
        %v1024 = vpop.xlane.xlu0 %1023
        %v1025 = vsel %vm973, %v1009, 0.0
        %1026 = vadd.xlane.f32.xlu0 %v1025
        %v1027 = vpop.xlane.xlu0 %1026
        %v1028 = vsel %vm973, %v1011, 0.0
        %1029 = vadd.xlane.f32.xlu0 %v1028
        %v1030 = vpop.xlane.xlu0 %1029
        %v1031 = vsel %vm973, %v1013, 0.0
        %1032 = vadd.xlane.f32.xlu0 %v1031
        %v1033 = vpop.xlane.xlu0 %1032
        %v1034 = vsel %vm973, %v1015, 0.0
        %1035 = vadd.xlane.f32.xlu0 %v1034
        %v1036 = vpop.xlane.xlu0 %1035
        %v1037 = vsel %vm973, %v1017, 0.0
        %1038 = vadd.xlane.f32.xlu0 %v1037
        %v1039 = vpop.xlane.xlu0 %1038
        %v1040 = vsel %vm973, %v1019, 0.0
        %1041 = vadd.xlane.f32.xlu0 %v1040
        %v1042 = vpop.xlane.xlu0 %1041
        %v1043 = vsel %vm973, %v1021, 0.0
        %1044 = vadd.xlane.f32.xlu0 %v1043
        %v1045 = vpop.xlane.xlu0 %1044
        %v1046 = vrcp.pop %v1024
        %v1047 = vrcp.pop %v1027
        %v1048 = vrcp.pop %v1030
        %v1049 = vrcp.pop %v1033
        %v1050 = vrcp.pop %v1036
        %v1051 = vrcp.pop %v1039
        %v1052 = vrcp.pop %v1042
        %v1053 = vrcp.pop %v1045
        %v1054 = vmul.f32 %v1007, %v1046
        %v1055 = vmul.f32 %v1009, %v1047
        %v1056 = vmul.f32 %v1011, %v1048
        %v1057 = vmul.f32 %v1013, %v1049
        %v1058 = vmul.f32 %v1015, %v1050
        %v1059 = vmul.f32 %v1017, %v1051
        %v1060 = vmul.f32 %v1019, %v1052
        %v1061 = vmul.f32 %v1021, %v1053
        %1062 = vrot.lane.b32.xlu0 %v594, 64
        %v1063 = vpop.permute.xlu0 %1062
        %1064 = vrot.lane.b32.xlu0 %v599, 64
        %v1065 = vpop.permute.xlu0 %1064
        %v1069 = vsel %vm973, %v1054, 0
        %v1072 = vsel %vm973, %v1055, 0
        %1074 = vmatprep.subr.mxu0 0.0
        %1075 = vmatpush1.msra.mxu0 %v1063
        %1076 = vmatprep.subr.mxu0 0.0
        %1077 = vmatpush1.msra.mxu0 %v1065
        %1078 = vmatprep.subr.mxu0 0.0
        %1079 = vmatpush1.msra.mxu0 0.0
        %1080 = vmatprep.subr.mxu0 0.0
        %1081 = vmatpush1.msra.mxu0 0.0
        %1082 = vmatprep.subr.mxu0 0.0
        %1083 = vmatpush1.msra.mxu0 0.0
        %1084 = vmatprep.subr.mxu0 0.0
        %1085 = vmatpush1.msra.mxu0 0.0
        %1086 = vmatprep.subr.mxu0 0.0
        %1087 = vmatpush1.msra.mxu0 0.0
        %1088 = vmatprep.subr.mxu0 0.0
        %1089 = vmatpush1.msra.mxu0 0.0
        %1090 = vmatprep.subr.mxu0 0.0
        %1091 = vmatpush1.msra.mxu0 0.0
        %1092 = vmatprep.subr.mxu0 0.0
        %1093 = vmatpush1.msra.mxu0 0.0
        %1094 = vmatprep.subr.mxu0 0.0
        %1095 = vmatpush1.msra.mxu0 0.0
        %1096 = vmatprep.subr.mxu0 0.0
        %1097 = vmatpush1.msra.mxu0 0.0
        %1098 = vmatprep.subr.mxu0 0.0
        %1099 = vmatpush1.msra.mxu0 0.0
        %1100 = vmatprep.subr.mxu0 0.0
        %1101 = vmatpush1.msra.mxu0 0.0
        %1102 = vmatprep.subr.mxu0 0.0
        %1103 = vmatpush1.msra.mxu0 0.0
        %1104 = vmatprep.subr.mxu0 0.0
        %1105 = vmatpush1.msra.mxu0 0.0
        %1106 = vmatprep.subr.mxu0 0.0
        %1107 = vmatpush1.msra.mxu0 0.0
        %1108 = vmatprep.subr.mxu0 0.0
        %1109 = vmatpush1.msra.mxu0 0.0
        %1110 = vmatprep.subr.mxu0 0.0
        %1111 = vmatpush1.msra.mxu0 0.0
        %1112 = vmatprep.subr.mxu0 0.0
        %1113 = vmatpush1.msra.mxu0 0.0
        %1114 = vmatprep.subr.mxu0 0.0
        %1115 = vmatpush1.msra.mxu0 0.0
        %1116 = vmatprep.subr.mxu0 0.0
        %1117 = vmatpush1.msra.mxu0 0.0
        %1118 = vmatprep.subr.mxu0 0.0
        %1119 = vmatpush1.msra.mxu0 0.0
        %1120 = vmatprep.subr.mxu0 0.0
        %1121 = vmatpush1.msra.mxu0 0.0
        %1122 = vmatprep.subr.mxu0 0.0
        %1123 = vmatpush1.msra.mxu0 0.0
        %1124 = vmatprep.subr.mxu0 0.0
        %1125 = vmatpush1.msra.mxu0 0.0
        %1126 = vmatprep.subr.mxu0 0.0
        %1127 = vmatpush1.msra.mxu0 0.0
        %1128 = vmatprep.subr.mxu0 0.0
        %1129 = vmatpush1.msra.mxu0 0.0
        %1130 = vmatprep.subr.mxu0 0.0
        %1131 = vmatpush1.msra.mxu0 0.0
        %1132 = vmatprep.subr.mxu0 0.0
        %1133 = vmatpush1.msra.mxu0 0.0
        %1134 = vmatprep.subr.mxu0 0.0
        %1135 = vmatpush1.msra.mxu0 0.0
        %1136 = vmatprep.subr.mxu0 0.0
        %1137 = vmatpush1.msra.mxu0 0.0
        %1138 = vmatprep.mubr.f32.mxu0 0.0
        %1139 = vmatmul.mubr.f32.gmra.mrb[0].mxu0 %v1069
        %v1140 = vpop.f32.mrb[0].mxu0
        %v1141 = vadd.f32 0.0, %v1140
        %v1142 = vpop.f32.mrb[0].mxu0
        %1143 = vmatprep.mubr.f32.mxu0 0.0
        %1144 = vmatmul.mubr.f32.gmra.mrb[0].mxu0 %v1072
        %v1145 = vpop.f32.mrb[0].mxu0
        %v1146 = vadd.f32 0.0, %v1145
        %v1147 = vpop.f32.mrb[0].mxu0
        %1148 = vdwg.mxu0
        %1149 = vrot.lane.b32.xlu0 %v605, 64
        %v1150 = vpop.permute.xlu0 %1149
        %1151 = vrot.lane.b32.xlu0 %v607, 64
        %v1152 = vpop.permute.xlu0 %1151
        %v1156 = vsel %vm973, %v1056, 0
        %v1159 = vsel %vm973, %v1057, 0
        %1161 = vmatprep.subr.mxu0 0.0
        %1162 = vmatpush1.msra.mxu0 %v1150
        %1163 = vmatprep.subr.mxu0 0.0
        %1164 = vmatpush1.msra.mxu0 %v1152
        %1165 = vmatprep.subr.mxu0 0.0
        %1166 = vmatpush1.msra.mxu0 0.0
        %1167 = vmatprep.subr.mxu0 0.0
        %1168 = vmatpush1.msra.mxu0 0.0
        %1169 = vmatprep.subr.mxu0 0.0
        %1170 = vmatpush1.msra.mxu0 0.0
        %1171 = vmatprep.subr.mxu0 0.0
        %1172 = vmatpush1.msra.mxu0 0.0
        %1173 = vmatprep.subr.mxu0 0.0
        %1174 = vmatpush1.msra.mxu0 0.0
        %1175 = vmatprep.subr.mxu0 0.0
        %1176 = vmatpush1.msra.mxu0 0.0
        %1177 = vmatprep.subr.mxu0 0.0
        %1178 = vmatpush1.msra.mxu0 0.0
        %1179 = vmatprep.subr.mxu0 0.0
        %1180 = vmatpush1.msra.mxu0 0.0
        %1181 = vmatprep.subr.mxu0 0.0
        %1182 = vmatpush1.msra.mxu0 0.0
        %1183 = vmatprep.subr.mxu0 0.0
        %1184 = vmatpush1.msra.mxu0 0.0
        %1185 = vmatprep.subr.mxu0 0.0
        %1186 = vmatpush1.msra.mxu0 0.0
        %1187 = vmatprep.subr.mxu0 0.0
        %1188 = vmatpush1.msra.mxu0 0.0
        %1189 = vmatprep.subr.mxu0 0.0
        %1190 = vmatpush1.msra.mxu0 0.0
        %1191 = vmatprep.subr.mxu0 0.0
        %1192 = vmatpush1.msra.mxu0 0.0
        %1193 = vmatprep.subr.mxu0 0.0
        %1194 = vmatpush1.msra.mxu0 0.0
        %1195 = vmatprep.subr.mxu0 0.0
        %1196 = vmatpush1.msra.mxu0 0.0
        %1197 = vmatprep.subr.mxu0 0.0
        %1198 = vmatpush1.msra.mxu0 0.0
        %1199 = vmatprep.subr.mxu0 0.0
        %1200 = vmatpush1.msra.mxu0 0.0
        %1201 = vmatprep.subr.mxu0 0.0
        %1202 = vmatpush1.msra.mxu0 0.0
        %1203 = vmatprep.subr.mxu0 0.0
        %1204 = vmatpush1.msra.mxu0 0.0
        %1205 = vmatprep.subr.mxu0 0.0
        %1206 = vmatpush1.msra.mxu0 0.0
        %1207 = vmatprep.subr.mxu0 0.0
        %1208 = vmatpush1.msra.mxu0 0.0
        %1209 = vmatprep.subr.mxu0 0.0
        %1210 = vmatpush1.msra.mxu0 0.0
        %1211 = vmatprep.subr.mxu0 0.0
        %1212 = vmatpush1.msra.mxu0 0.0
        %1213 = vmatprep.subr.mxu0 0.0
        %1214 = vmatpush1.msra.mxu0 0.0
        %1215 = vmatprep.subr.mxu0 0.0
        %1216 = vmatpush1.msra.mxu0 0.0
        %1217 = vmatprep.subr.mxu0 0.0
        %1218 = vmatpush1.msra.mxu0 0.0
        %1219 = vmatprep.subr.mxu0 0.0
        %1220 = vmatpush1.msra.mxu0 0.0
        %1221 = vmatprep.subr.mxu0 0.0
        %1222 = vmatpush1.msra.mxu0 0.0
        %1223 = vmatprep.subr.mxu0 0.0
        %1224 = vmatpush1.msra.mxu0 0.0
        %1225 = vmatprep.mubr.f32.mxu0 0.0
        %1226 = vmatmul.mubr.f32.gmra.mrb[0].mxu0 %v1156
        %v1227 = vpop.f32.mrb[0].mxu0
        %v1228 = vadd.f32 0.0, %v1227
        %v1229 = vpop.f32.mrb[0].mxu0
        %1230 = vmatprep.mubr.f32.mxu0 0.0
        %1231 = vmatmul.mubr.f32.gmra.mrb[0].mxu0 %v1159
        %v1232 = vpop.f32.mrb[0].mxu0
        %v1233 = vadd.f32 0.0, %v1232
        %v1234 = vpop.f32.mrb[0].mxu0
        %1235 = vdwg.mxu0
        %1236 = vrot.lane.b32.xlu0 %v609, 64
        %v1237 = vpop.permute.xlu0 %1236
        %1238 = vrot.lane.b32.xlu0 %v611, 64
        %v1239 = vpop.permute.xlu0 %1238
        %v1243 = vsel %vm973, %v1058, 0
        %v1246 = vsel %vm973, %v1059, 0
        %1248 = vmatprep.subr.mxu0 0.0
        %1249 = vmatpush1.msra.mxu0 %v1237
        %1250 = vmatprep.subr.mxu0 0.0
        %1251 = vmatpush1.msra.mxu0 %v1239
        %1252 = vmatprep.subr.mxu0 0.0
        %1253 = vmatpush1.msra.mxu0 0.0
        %1254 = vmatprep.subr.mxu0 0.0
        %1255 = vmatpush1.msra.mxu0 0.0
        %1256 = vmatprep.subr.mxu0 0.0
        %1257 = vmatpush1.msra.mxu0 0.0
        %1258 = vmatprep.subr.mxu0 0.0
        %1259 = vmatpush1.msra.mxu0 0.0
        %1260 = vmatprep.subr.mxu0 0.0
        %1261 = vmatpush1.msra.mxu0 0.0
        %1262 = vmatprep.subr.mxu0 0.0
        %1263 = vmatpush1.msra.mxu0 0.0
        %1264 = vmatprep.subr.mxu0 0.0
        %1265 = vmatpush1.msra.mxu0 0.0
        %1266 = vmatprep.subr.mxu0 0.0
        %1267 = vmatpush1.msra.mxu0 0.0
        %1268 = vmatprep.subr.mxu0 0.0
        %1269 = vmatpush1.msra.mxu0 0.0
        %1270 = vmatprep.subr.mxu0 0.0
        %1271 = vmatpush1.msra.mxu0 0.0
        %1272 = vmatprep.subr.mxu0 0.0
        %1273 = vmatpush1.msra.mxu0 0.0
        %1274 = vmatprep.subr.mxu0 0.0
        %1275 = vmatpush1.msra.mxu0 0.0
        %1276 = vmatprep.subr.mxu0 0.0
        %1277 = vmatpush1.msra.mxu0 0.0
        %1278 = vmatprep.subr.mxu0 0.0
        %1279 = vmatpush1.msra.mxu0 0.0
        %1280 = vmatprep.subr.mxu0 0.0
        %1281 = vmatpush1.msra.mxu0 0.0
        %1282 = vmatprep.subr.mxu0 0.0
        %1283 = vmatpush1.msra.mxu0 0.0
        %1284 = vmatprep.subr.mxu0 0.0
        %1285 = vmatpush1.msra.mxu0 0.0
        %1286 = vmatprep.subr.mxu0 0.0
        %1287 = vmatpush1.msra.mxu0 0.0
        %1288 = vmatprep.subr.mxu0 0.0
        %1289 = vmatpush1.msra.mxu0 0.0
        %1290 = vmatprep.subr.mxu0 0.0
        %1291 = vmatpush1.msra.mxu0 0.0
        %1292 = vmatprep.subr.mxu0 0.0
        %1293 = vmatpush1.msra.mxu0 0.0
        %1294 = vmatprep.subr.mxu0 0.0
        %1295 = vmatpush1.msra.mxu0 0.0
        %1296 = vmatprep.subr.mxu0 0.0
        %1297 = vmatpush1.msra.mxu0 0.0
        %1298 = vmatprep.subr.mxu0 0.0
        %1299 = vmatpush1.msra.mxu0 0.0
        %1300 = vmatprep.subr.mxu0 0.0
        %1301 = vmatpush1.msra.mxu0 0.0
        %1302 = vmatprep.subr.mxu0 0.0
        %1303 = vmatpush1.msra.mxu0 0.0
        %1304 = vmatprep.subr.mxu0 0.0
        %1305 = vmatpush1.msra.mxu0 0.0
        %1306 = vmatprep.subr.mxu0 0.0
        %1307 = vmatpush1.msra.mxu0 0.0
        %1308 = vmatprep.subr.mxu0 0.0
        %1309 = vmatpush1.msra.mxu0 0.0
        %1310 = vmatprep.subr.mxu0 0.0
        %1311 = vmatpush1.msra.mxu0 0.0
        %1312 = vmatprep.mubr.f32.mxu0 0.0
        %1313 = vmatmul.mubr.f32.gmra.mrb[0].mxu0 %v1243
        %v1314 = vpop.f32.mrb[0].mxu0
        %v1315 = vadd.f32 0.0, %v1314
        %v1316 = vpop.f32.mrb[0].mxu0
        %1317 = vmatprep.mubr.f32.mxu0 0.0
        %1318 = vmatmul.mubr.f32.gmra.mrb[0].mxu0 %v1246
        %v1319 = vpop.f32.mrb[0].mxu0
        %v1320 = vadd.f32 0.0, %v1319
        %v1321 = vpop.f32.mrb[0].mxu0
        %1322 = vdwg.mxu0
        %1323 = vrot.lane.b32.xlu0 %v613, 64
        %v1324 = vpop.permute.xlu0 %1323
        %1325 = vrot.lane.b32.xlu0 %v615, 64
        %v1326 = vpop.permute.xlu0 %1325
        %v1330 = vsel %vm973, %v1060, 0
        %v1333 = vsel %vm973, %v1061, 0
        %1335 = vmatprep.subr.mxu0 0.0
        %1336 = vmatpush1.msra.mxu0 %v1324
        %1337 = vmatprep.subr.mxu0 0.0
        %1338 = vmatpush1.msra.mxu0 %v1326
        %1339 = vmatprep.subr.mxu0 0.0
        %1340 = vmatpush1.msra.mxu0 0.0
        %1341 = vmatprep.subr.mxu0 0.0
        %1342 = vmatpush1.msra.mxu0 0.0
        %1343 = vmatprep.subr.mxu0 0.0
        %1344 = vmatpush1.msra.mxu0 0.0
        %1345 = vmatprep.subr.mxu0 0.0
        %1346 = vmatpush1.msra.mxu0 0.0
        %1347 = vmatprep.subr.mxu0 0.0
        %1348 = vmatpush1.msra.mxu0 0.0
        %1349 = vmatprep.subr.mxu0 0.0
        %1350 = vmatpush1.msra.mxu0 0.0
        %1351 = vmatprep.subr.mxu0 0.0
        %1352 = vmatpush1.msra.mxu0 0.0
        %1353 = vmatprep.subr.mxu0 0.0
        %1354 = vmatpush1.msra.mxu0 0.0
        %1355 = vmatprep.subr.mxu0 0.0
        %1356 = vmatpush1.msra.mxu0 0.0
        %1357 = vmatprep.subr.mxu0 0.0
        %1358 = vmatpush1.msra.mxu0 0.0
        %1359 = vmatprep.subr.mxu0 0.0
        %1360 = vmatpush1.msra.mxu0 0.0
        %1361 = vmatprep.subr.mxu0 0.0
        %1362 = vmatpush1.msra.mxu0 0.0
        %1363 = vmatprep.subr.mxu0 0.0
        %1364 = vmatpush1.msra.mxu0 0.0
        %1365 = vmatprep.subr.mxu0 0.0
        %1366 = vmatpush1.msra.mxu0 0.0
        %1367 = vmatprep.subr.mxu0 0.0
        %1368 = vmatpush1.msra.mxu0 0.0
        %1369 = vmatprep.subr.mxu0 0.0
        %1370 = vmatpush1.msra.mxu0 0.0
        %1371 = vmatprep.subr.mxu0 0.0
        %1372 = vmatpush1.msra.mxu0 0.0
        %1373 = vmatprep.subr.mxu0 0.0
        %1374 = vmatpush1.msra.mxu0 0.0
        %1375 = vmatprep.subr.mxu0 0.0
        %1376 = vmatpush1.msra.mxu0 0.0
        %1377 = vmatprep.subr.mxu0 0.0
        %1378 = vmatpush1.msra.mxu0 0.0
        %1379 = vmatprep.subr.mxu0 0.0
        %1380 = vmatpush1.msra.mxu0 0.0
        %1381 = vmatprep.subr.mxu0 0.0
        %1382 = vmatpush1.msra.mxu0 0.0
        %1383 = vmatprep.subr.mxu0 0.0
        %1384 = vmatpush1.msra.mxu0 0.0
        %1385 = vmatprep.subr.mxu0 0.0
        %1386 = vmatpush1.msra.mxu0 0.0
        %1387 = vmatprep.subr.mxu0 0.0
        %1388 = vmatpush1.msra.mxu0 0.0
        %1389 = vmatprep.subr.mxu0 0.0
        %1390 = vmatpush1.msra.mxu0 0.0
        %1391 = vmatprep.subr.mxu0 0.0
        %1392 = vmatpush1.msra.mxu0 0.0
        %1393 = vmatprep.subr.mxu0 0.0
        %1394 = vmatpush1.msra.mxu0 0.0
        %1395 = vmatprep.subr.mxu0 0.0
        %1396 = vmatpush1.msra.mxu0 0.0
        %1397 = vmatprep.subr.mxu0 0.0
        %1398 = vmatpush1.msra.mxu0 0.0
        %1399 = vmatprep.mubr.f32.mxu0 0.0
        %1400 = vmatmul.mubr.f32.gmra.mrb[0].mxu0 %v1330
        %v1401 = vpop.f32.mrb[0].mxu0
        %v1402 = vadd.f32 0.0, %v1401
        %v1403 = vpop.f32.mrb[0].mxu0
        %1404 = vmatprep.mubr.f32.mxu0 0.0
        %1405 = vmatmul.mubr.f32.gmra.mrb[0].mxu0 %v1333
        %v1406 = vpop.f32.mrb[0].mxu0
        %v1407 = vadd.f32 0.0, %v1406
        %v1408 = vpop.f32.mrb[0].mxu0
        %1409 = vdwg.mxu0
        %v1410 = vld [vmem:[%s4] sm:$0xff]
        %v1411 = vld [vmem:[%s4 + $0x8] sm:$0xff]
        %v1412 = vld [vmem:[%s4 + $0x10] sm:$0xff]
        %v1413 = vld [vmem:[%s4 + $0x18] sm:$0xff]
        %v1415 = vsel %vm620, %v1141, 0
        %v1418 = vsel %vm620, %v1146, 0
        %1420 = vmatprep.subr.mxu0 0.0
        %1421 = vmatpush1.msra.mxu0 %v1410
        %1422 = vmatprep.subr.mxu0 0.0
        %1423 = vmatpush1.msra.mxu0 0.0
        %1424 = vmatprep.subr.mxu0 0.0
        %1425 = vmatpush1.msra.mxu0 0.0
        %1426 = vmatprep.subr.mxu0 0.0
        %1427 = vmatpush1.msra.mxu0 0.0
        %1428 = vmatprep.subr.mxu0 0.0
        %1429 = vmatpush1.msra.mxu0 0.0
        %1430 = vmatprep.subr.mxu0 0.0
        %1431 = vmatpush1.msra.mxu0 0.0
        %1432 = vmatprep.subr.mxu0 0.0
        %1433 = vmatpush1.msra.mxu0 0.0
        %1434 = vmatprep.subr.mxu0 0.0
        %1435 = vmatpush1.msra.mxu0 0.0
        %1436 = vmatprep.subr.mxu0 0.0
        %1437 = vmatpush1.msra.mxu0 0.0
        %1438 = vmatprep.subr.mxu0 0.0
        %1439 = vmatpush1.msra.mxu0 0.0
        %1440 = vmatprep.subr.mxu0 0.0
        %1441 = vmatpush1.msra.mxu0 0.0
        %1442 = vmatprep.subr.mxu0 0.0
        %1443 = vmatpush1.msra.mxu0 0.0
        %1444 = vmatprep.subr.mxu0 0.0
        %1445 = vmatpush1.msra.mxu0 0.0
        %1446 = vmatprep.subr.mxu0 0.0
        %1447 = vmatpush1.msra.mxu0 0.0
        %1448 = vmatprep.subr.mxu0 0.0
        %1449 = vmatpush1.msra.mxu0 0.0
        %1450 = vmatprep.subr.mxu0 0.0
        %1451 = vmatpush1.msra.mxu0 0.0
        %1452 = vmatprep.subr.mxu0 0.0
        %1453 = vmatpush1.msra.mxu0 0.0
        %1454 = vmatprep.subr.mxu0 0.0
        %1455 = vmatpush1.msra.mxu0 0.0
        %1456 = vmatprep.subr.mxu0 0.0
        %1457 = vmatpush1.msra.mxu0 0.0
        %1458 = vmatprep.subr.mxu0 0.0
        %1459 = vmatpush1.msra.mxu0 0.0
        %1460 = vmatprep.subr.mxu0 0.0
        %1461 = vmatpush1.msra.mxu0 0.0
        %1462 = vmatprep.subr.mxu0 0.0
        %1463 = vmatpush1.msra.mxu0 0.0
        %1464 = vmatprep.subr.mxu0 0.0
        %1465 = vmatpush1.msra.mxu0 0.0
        %1466 = vmatprep.subr.mxu0 0.0
        %1467 = vmatpush1.msra.mxu0 0.0
        %1468 = vmatprep.subr.mxu0 0.0
        %1469 = vmatpush1.msra.mxu0 0.0
        %1470 = vmatprep.subr.mxu0 0.0
        %1471 = vmatpush1.msra.mxu0 0.0
        %1472 = vmatprep.subr.mxu0 0.0
        %1473 = vmatpush1.msra.mxu0 0.0
        %1474 = vmatprep.subr.mxu0 0.0
        %1475 = vmatpush1.msra.mxu0 0.0
        %1476 = vmatprep.subr.mxu0 0.0
        %1477 = vmatpush1.msra.mxu0 0.0
        %1478 = vmatprep.subr.mxu0 0.0
        %1479 = vmatpush1.msra.mxu0 0.0
        %1480 = vmatprep.subr.mxu0 0.0
        %1481 = vmatpush1.msra.mxu0 0.0
        %1482 = vmatprep.subr.mxu0 0.0
        %1483 = vmatpush1.msra.mxu0 0.0
        %1484 = vmatprep.mubr.f32.mxu0 0.0
        %1485 = vmatmul.mubr.f32.gmra.mrb[0].mxu0 %v1415
        %v1486 = vpop.f32.mrb[0].mxu0
        %v1487 = vadd.f32 0.0, %v1486
        %v1488 = vpop.f32.mrb[0].mxu0
        %1489 = vmatprep.mubr.f32.mxu0 0.0
        %1490 = vmatmul.mubr.f32.gmra.mrb[0].mxu0 %v1418
        %v1491 = vpop.f32.mrb[0].mxu0
        %v1492 = vadd.f32 0.0, %v1491
        %v1493 = vpop.f32.mrb[0].mxu0
        %1494 = vdwg.mxu0
        %v1496 = vsel %vm620, %v1228, 0
        %v1499 = vsel %vm620, %v1233, 0
        %1501 = vmatprep.subr.mxu0 0.0
        %1502 = vmatpush1.msra.mxu0 %v1411
        %1503 = vmatprep.subr.mxu0 0.0
        %1504 = vmatpush1.msra.mxu0 0.0
        %1505 = vmatprep.subr.mxu0 0.0
        %1506 = vmatpush1.msra.mxu0 0.0
        %1507 = vmatprep.subr.mxu0 0.0
        %1508 = vmatpush1.msra.mxu0 0.0
        %1509 = vmatprep.subr.mxu0 0.0
        %1510 = vmatpush1.msra.mxu0 0.0
        %1511 = vmatprep.subr.mxu0 0.0
        %1512 = vmatpush1.msra.mxu0 0.0
        %1513 = vmatprep.subr.mxu0 0.0
        %1514 = vmatpush1.msra.mxu0 0.0
        %1515 = vmatprep.subr.mxu0 0.0
        %1516 = vmatpush1.msra.mxu0 0.0
        %1517 = vmatprep.subr.mxu0 0.0
        %1518 = vmatpush1.msra.mxu0 0.0
        %1519 = vmatprep.subr.mxu0 0.0
        %1520 = vmatpush1.msra.mxu0 0.0
        %1521 = vmatprep.subr.mxu0 0.0
        %1522 = vmatpush1.msra.mxu0 0.0
        %1523 = vmatprep.subr.mxu0 0.0
        %1524 = vmatpush1.msra.mxu0 0.0
        %1525 = vmatprep.subr.mxu0 0.0
        %1526 = vmatpush1.msra.mxu0 0.0
        %1527 = vmatprep.subr.mxu0 0.0
        %1528 = vmatpush1.msra.mxu0 0.0
        %1529 = vmatprep.subr.mxu0 0.0
        %1530 = vmatpush1.msra.mxu0 0.0
        %1531 = vmatprep.subr.mxu0 0.0
        %1532 = vmatpush1.msra.mxu0 0.0
        %1533 = vmatprep.subr.mxu0 0.0
        %1534 = vmatpush1.msra.mxu0 0.0
        %1535 = vmatprep.subr.mxu0 0.0
        %1536 = vmatpush1.msra.mxu0 0.0
        %1537 = vmatprep.subr.mxu0 0.0
        %1538 = vmatpush1.msra.mxu0 0.0
        %1539 = vmatprep.subr.mxu0 0.0
        %1540 = vmatpush1.msra.mxu0 0.0
        %1541 = vmatprep.subr.mxu0 0.0
        %1542 = vmatpush1.msra.mxu0 0.0
        %1543 = vmatprep.subr.mxu0 0.0
        %1544 = vmatpush1.msra.mxu0 0.0
        %1545 = vmatprep.subr.mxu0 0.0
        %1546 = vmatpush1.msra.mxu0 0.0
        %1547 = vmatprep.subr.mxu0 0.0
        %1548 = vmatpush1.msra.mxu0 0.0
        %1549 = vmatprep.subr.mxu0 0.0
        %1550 = vmatpush1.msra.mxu0 0.0
        %1551 = vmatprep.subr.mxu0 0.0
        %1552 = vmatpush1.msra.mxu0 0.0
        %1553 = vmatprep.subr.mxu0 0.0
        %1554 = vmatpush1.msra.mxu0 0.0
        %1555 = vmatprep.subr.mxu0 0.0
        %1556 = vmatpush1.msra.mxu0 0.0
        %1557 = vmatprep.subr.mxu0 0.0
        %1558 = vmatpush1.msra.mxu0 0.0
        %1559 = vmatprep.subr.mxu0 0.0
        %1560 = vmatpush1.msra.mxu0 0.0
        %1561 = vmatprep.subr.mxu0 0.0
        %1562 = vmatpush1.msra.mxu0 0.0
        %1563 = vmatprep.subr.mxu0 0.0
        %1564 = vmatpush1.msra.mxu0 0.0
        %1565 = vmatprep.mubr.f32.mxu0 0.0
        %1566 = vmatmul.mubr.f32.gmra.mrb[0].mxu0 %v1496
        %v1567 = vpop.f32.mrb[0].mxu0
        %v1568 = vadd.f32 0.0, %v1567
        %v1569 = vpop.f32.mrb[0].mxu0
        %1570 = vmatprep.mubr.f32.mxu0 0.0
        %1571 = vmatmul.mubr.f32.gmra.mrb[0].mxu0 %v1499
        %v1572 = vpop.f32.mrb[0].mxu0
        %v1573 = vadd.f32 0.0, %v1572
        %v1574 = vpop.f32.mrb[0].mxu0
        %1575 = vdwg.mxu0
        %v1577 = vsel %vm620, %v1315, 0
        %v1580 = vsel %vm620, %v1320, 0
        %1582 = vmatprep.subr.mxu0 0.0
        %1583 = vmatpush1.msra.mxu0 %v1412
        %1584 = vmatprep.subr.mxu0 0.0
        %1585 = vmatpush1.msra.mxu0 0.0
        %1586 = vmatprep.subr.mxu0 0.0
        %1587 = vmatpush1.msra.mxu0 0.0
        %1588 = vmatprep.subr.mxu0 0.0
        %1589 = vmatpush1.msra.mxu0 0.0
        %1590 = vmatprep.subr.mxu0 0.0
        %1591 = vmatpush1.msra.mxu0 0.0
        %1592 = vmatprep.subr.mxu0 0.0
        %1593 = vmatpush1.msra.mxu0 0.0
        %1594 = vmatprep.subr.mxu0 0.0
        %1595 = vmatpush1.msra.mxu0 0.0
        %1596 = vmatprep.subr.mxu0 0.0
        %1597 = vmatpush1.msra.mxu0 0.0
        %1598 = vmatprep.subr.mxu0 0.0
        %1599 = vmatpush1.msra.mxu0 0.0
        %1600 = vmatprep.subr.mxu0 0.0
        %1601 = vmatpush1.msra.mxu0 0.0
        %1602 = vmatprep.subr.mxu0 0.0
        %1603 = vmatpush1.msra.mxu0 0.0
        %1604 = vmatprep.subr.mxu0 0.0
        %1605 = vmatpush1.msra.mxu0 0.0
        %1606 = vmatprep.subr.mxu0 0.0
        %1607 = vmatpush1.msra.mxu0 0.0
        %1608 = vmatprep.subr.mxu0 0.0
        %1609 = vmatpush1.msra.mxu0 0.0
        %1610 = vmatprep.subr.mxu0 0.0
        %1611 = vmatpush1.msra.mxu0 0.0
        %1612 = vmatprep.subr.mxu0 0.0
        %1613 = vmatpush1.msra.mxu0 0.0
        %1614 = vmatprep.subr.mxu0 0.0
        %1615 = vmatpush1.msra.mxu0 0.0
        %1616 = vmatprep.subr.mxu0 0.0
        %1617 = vmatpush1.msra.mxu0 0.0
        %1618 = vmatprep.subr.mxu0 0.0
        %1619 = vmatpush1.msra.mxu0 0.0
        %1620 = vmatprep.subr.mxu0 0.0
        %1621 = vmatpush1.msra.mxu0 0.0
        %1622 = vmatprep.subr.mxu0 0.0
        %1623 = vmatpush1.msra.mxu0 0.0
        %1624 = vmatprep.subr.mxu0 0.0
        %1625 = vmatpush1.msra.mxu0 0.0
        %1626 = vmatprep.subr.mxu0 0.0
        %1627 = vmatpush1.msra.mxu0 0.0
        %1628 = vmatprep.subr.mxu0 0.0
        %1629 = vmatpush1.msra.mxu0 0.0
        %1630 = vmatprep.subr.mxu0 0.0
        %1631 = vmatpush1.msra.mxu0 0.0
        %1632 = vmatprep.subr.mxu0 0.0
        %1633 = vmatpush1.msra.mxu0 0.0
        %1634 = vmatprep.subr.mxu0 0.0
        %1635 = vmatpush1.msra.mxu0 0.0
        %1636 = vmatprep.subr.mxu0 0.0
        %1637 = vmatpush1.msra.mxu0 0.0
        %1638 = vmatprep.subr.mxu0 0.0
        %1639 = vmatpush1.msra.mxu0 0.0
        %1640 = vmatprep.subr.mxu0 0.0
        %1641 = vmatpush1.msra.mxu0 0.0
        %1642 = vmatprep.subr.mxu0 0.0
        %1643 = vmatpush1.msra.mxu0 0.0
        %1644 = vmatprep.subr.mxu0 0.0
        %1645 = vmatpush1.msra.mxu0 0.0
        %1646 = vmatprep.mubr.f32.mxu0 0.0
        %1647 = vmatmul.mubr.f32.gmra.mrb[0].mxu0 %v1577
        %v1648 = vpop.f32.mrb[0].mxu0
        %v1649 = vadd.f32 0.0, %v1648
        %v1650 = vpop.f32.mrb[0].mxu0
        %1651 = vmatprep.mubr.f32.mxu0 0.0
        %1652 = vmatmul.mubr.f32.gmra.mrb[0].mxu0 %v1580
        %v1653 = vpop.f32.mrb[0].mxu0
        %v1654 = vadd.f32 0.0, %v1653
        %v1655 = vpop.f32.mrb[0].mxu0
        %1656 = vdwg.mxu0
        %v1658 = vsel %vm620, %v1402, 0
        %v1661 = vsel %vm620, %v1407, 0
        %1663 = vmatprep.subr.mxu0 0.0
        %1664 = vmatpush1.msra.mxu0 %v1413
        %1665 = vmatprep.subr.mxu0 0.0
        %1666 = vmatpush1.msra.mxu0 0.0
        %1667 = vmatprep.subr.mxu0 0.0
        %1668 = vmatpush1.msra.mxu0 0.0
        %1669 = vmatprep.subr.mxu0 0.0
        %1670 = vmatpush1.msra.mxu0 0.0
        %1671 = vmatprep.subr.mxu0 0.0
        %1672 = vmatpush1.msra.mxu0 0.0
        %1673 = vmatprep.subr.mxu0 0.0
        %1674 = vmatpush1.msra.mxu0 0.0
        %1675 = vmatprep.subr.mxu0 0.0
        %1676 = vmatpush1.msra.mxu0 0.0
        %1677 = vmatprep.subr.mxu0 0.0
        %1678 = vmatpush1.msra.mxu0 0.0
        %1679 = vmatprep.subr.mxu0 0.0
        %1680 = vmatpush1.msra.mxu0 0.0
        %1681 = vmatprep.subr.mxu0 0.0
        %1682 = vmatpush1.msra.mxu0 0.0
        %1683 = vmatprep.subr.mxu0 0.0
        %1684 = vmatpush1.msra.mxu0 0.0
        %1685 = vmatprep.subr.mxu0 0.0
        %1686 = vmatpush1.msra.mxu0 0.0
        %1687 = vmatprep.subr.mxu0 0.0
        %1688 = vmatpush1.msra.mxu0 0.0
        %1689 = vmatprep.subr.mxu0 0.0
        %1690 = vmatpush1.msra.mxu0 0.0
        %1691 = vmatprep.subr.mxu0 0.0
        %1692 = vmatpush1.msra.mxu0 0.0
        %1693 = vmatprep.subr.mxu0 0.0
        %1694 = vmatpush1.msra.mxu0 0.0
        %1695 = vmatprep.subr.mxu0 0.0
        %1696 = vmatpush1.msra.mxu0 0.0
        %1697 = vmatprep.subr.mxu0 0.0
        %1698 = vmatpush1.msra.mxu0 0.0
        %1699 = vmatprep.subr.mxu0 0.0
        %1700 = vmatpush1.msra.mxu0 0.0
        %1701 = vmatprep.subr.mxu0 0.0
        %1702 = vmatpush1.msra.mxu0 0.0
        %1703 = vmatprep.subr.mxu0 0.0
        %1704 = vmatpush1.msra.mxu0 0.0
        %1705 = vmatprep.subr.mxu0 0.0
        %1706 = vmatpush1.msra.mxu0 0.0
        %1707 = vmatprep.subr.mxu0 0.0
        %1708 = vmatpush1.msra.mxu0 0.0
        %1709 = vmatprep.subr.mxu0 0.0
        %1710 = vmatpush1.msra.mxu0 0.0
        %1711 = vmatprep.subr.mxu0 0.0
        %1712 = vmatpush1.msra.mxu0 0.0
        %1713 = vmatprep.subr.mxu0 0.0
        %1714 = vmatpush1.msra.mxu0 0.0
        %1715 = vmatprep.subr.mxu0 0.0
        %1716 = vmatpush1.msra.mxu0 0.0
        %1717 = vmatprep.subr.mxu0 0.0
        %1718 = vmatpush1.msra.mxu0 0.0
        %1719 = vmatprep.subr.mxu0 0.0
        %1720 = vmatpush1.msra.mxu0 0.0
        %1721 = vmatprep.subr.mxu0 0.0
        %1722 = vmatpush1.msra.mxu0 0.0
        %1723 = vmatprep.subr.mxu0 0.0
        %1724 = vmatpush1.msra.mxu0 0.0
        %1725 = vmatprep.subr.mxu0 0.0
        %1726 = vmatpush1.msra.mxu0 0.0
        %1727 = vmatprep.mubr.f32.mxu0 0.0
        %1728 = vmatmul.mubr.f32.gmra.mrb[0].mxu0 %v1658
        %v1729 = vpop.f32.mrb[0].mxu0
        %v1730 = vadd.f32 0.0, %v1729
        %v1731 = vpop.f32.mrb[0].mxu0
        %1732 = vmatprep.mubr.f32.mxu0 0.0
        %1733 = vmatmul.mubr.f32.gmra.mrb[0].mxu0 %v1661
        %v1734 = vpop.f32.mrb[0].mxu0
        %v1735 = vadd.f32 0.0, %v1734
        %v1736 = vpop.f32.mrb[0].mxu0
        %1737 = vdwg.mxu0
        %v1738 = vsel %vm470, %v1487, 0.0
        %v1739 = vsel %vm470, %v1568, 0.0
        %v1740 = vadd.f32 %v1738, %v1739
        %v1741 = vsel %vm470, %v1649, 0.0
        %v1742 = vadd.f32 %v1740, %v1741
        %v1743 = vsel %vm470, %v1730, 0.0
        %v1744 = vadd.f32 %v1742, %v1743
        %v1745 = vsel %vm470, %v1492, 0.0
        %v1746 = vsel %vm470, %v1573, 0.0
        %v1747 = vadd.f32 %v1745, %v1746
        %v1748 = vsel %vm470, %v1654, 0.0
        %v1749 = vadd.f32 %v1747, %v1748
        %v1750 = vsel %vm470, %v1735, 0.0
        %v1751 = vadd.f32 %v1749, %v1750
        %v1752 = vadd.f32 %v467, %v1744
        %v1753 = vadd.f32 %v468, %v1751
        %v1754 = vld [vmem:[%s5] sm:$0x1]
        %v1756 = vlaneseq
        %v1757 = vshrl.u32 %v1756, 7
        %v1758 = vsub.s32 0, %v1757
        %v1759 = vrot.slane %v1754, %v1758
        %v1761 = vadd.f32 %v1752, %v1759
        %v1762 = vadd.f32 %v1753, %v1759
        %v1763 = vsel %vm470, %v1761, 0.0
        %1764 = vadd.xlane.f32.xlu0 %v1763
        %v1765 = vpop.xlane.xlu0 %1764
        %v1766 = vsel %vm470, %v1762, 0.0
        %1767 = vadd.xlane.f32.xlu0 %v1766
        %v1768 = vpop.xlane.xlu0 %1767
        %v1769 = vmul.f32 %v1765, %v477
        %v1770 = vmul.f32 %v1768, %v477
        %v1771 = vsub.f32 %v1761, %v1769
        %v1772 = vsub.f32 %v1762, %v1770
        %v1773 = vmul.f32 %v1771, %v1771
        %v1774 = vmul.f32 %v1772, %v1772
        %v1775 = vsel %vm470, %v1773, 0.0
        %1776 = vadd.xlane.f32.xlu0 %v1775
        %v1777 = vpop.xlane.xlu0 %1776
        %v1778 = vsel %vm470, %v1774, 0.0
        %1779 = vadd.xlane.f32.xlu0 %v1778
        %v1780 = vpop.xlane.xlu0 %1779
        %v1781 = vmul.f32 %v1777, %v477
        %v1782 = vmul.f32 %v1780, %v477
        %v1783 = vadd.f32 %v1781, 1e-05
        %v1784 = vadd.f32 %v1782, 1e-05
        %v1785 = vrsqrt.pop %v1783
        %v1786 = vrsqrt.pop %v1784
        %v1787 = vmul.f32 %v1771, %v1785
        %v1788 = vmul.f32 %v1772, %v1786
        %v1789 = vlaneseq
        %v1790 = vshrl.u32 %v1789, 7
        %v1791 = vsub.s32 2, %v1790
        %v1792 = vrot.slane %v469, %v1791
        %v1793 = vmul.f32 %v1787, %v1792
        %v1794 = vmul.f32 %v1788, %v1792
        %v1795 = vlaneseq
        %v1796 = vshrl.u32 %v1795, 7
        %v1797 = vsub.s32 3, %v1796
        %v1798 = vrot.slane %v469, %v1797
        %v1799 = vadd.f32 %v1793, %v1798
        %v1800 = vadd.f32 %v1794, %v1798
        %v1801 = vld [vmem:[%s6] sm:$0xff]
        %v1802 = vld [vmem:[%s6 + $0x8] sm:$0xff]
        %v1803 = vld [vmem:[%s6 + $0x10] sm:$0xff]
        %v1804 = vld [vmem:[%s6 + $0x18] sm:$0xff]
        %v1805 = vld [vmem:[%s7] sm:$0x1]
        %v1807 = vlaneseq
        %v1808 = vshrl.u32 %v1807, 7
        %v1809 = vsub.s32 0, %v1808
        %v1810 = vrot.slane %v1805, %v1809
        %v1813 = vsel %vm470, %v1799, 0
        %v1816 = vsel %vm470, %v1800, 0
        %1818 = vmatprep.subr.mxu0 0.0
        %1819 = vmatpush1.msra.mxu0 %v1801
        %1820 = vmatprep.subr.mxu0 0.0
        %1821 = vmatpush1.msra.mxu0 %v1802
        %1822 = vmatprep.subr.mxu0 0.0
        %1823 = vmatpush1.msra.mxu0 %v1803
        %1824 = vmatprep.subr.mxu0 0.0
        %1825 = vmatpush1.msra.mxu0 %v1804
        %1826 = vmatprep.subr.mxu0 0.0
        %1827 = vmatpush1.msra.mxu0 0.0
        %1828 = vmatprep.subr.mxu0 0.0
        %1829 = vmatpush1.msra.mxu0 0.0
        %1830 = vmatprep.subr.mxu0 0.0
        %1831 = vmatpush1.msra.mxu0 0.0
        %1832 = vmatprep.subr.mxu0 0.0
        %1833 = vmatpush1.msra.mxu0 0.0
        %1834 = vmatprep.subr.mxu0 0.0
        %1835 = vmatpush1.msra.mxu0 0.0
        %1836 = vmatprep.subr.mxu0 0.0
        %1837 = vmatpush1.msra.mxu0 0.0
        %1838 = vmatprep.subr.mxu0 0.0
        %1839 = vmatpush1.msra.mxu0 0.0
        %1840 = vmatprep.subr.mxu0 0.0
        %1841 = vmatpush1.msra.mxu0 0.0
        %1842 = vmatprep.subr.mxu0 0.0
        %1843 = vmatpush1.msra.mxu0 0.0
        %1844 = vmatprep.subr.mxu0 0.0
        %1845 = vmatpush1.msra.mxu0 0.0
        %1846 = vmatprep.subr.mxu0 0.0
        %1847 = vmatpush1.msra.mxu0 0.0
        %1848 = vmatprep.subr.mxu0 0.0
        %1849 = vmatpush1.msra.mxu0 0.0
        %1850 = vmatprep.subr.mxu0 0.0
        %1851 = vmatpush1.msra.mxu0 0.0
        %1852 = vmatprep.subr.mxu0 0.0
        %1853 = vmatpush1.msra.mxu0 0.0
        %1854 = vmatprep.subr.mxu0 0.0
        %1855 = vmatpush1.msra.mxu0 0.0
        %1856 = vmatprep.subr.mxu0 0.0
        %1857 = vmatpush1.msra.mxu0 0.0
        %1858 = vmatprep.subr.mxu0 0.0
        %1859 = vmatpush1.msra.mxu0 0.0
        %1860 = vmatprep.subr.mxu0 0.0
        %1861 = vmatpush1.msra.mxu0 0.0
        %1862 = vmatprep.subr.mxu0 0.0
        %1863 = vmatpush1.msra.mxu0 0.0
        %1864 = vmatprep.subr.mxu0 0.0
        %1865 = vmatpush1.msra.mxu0 0.0
        %1866 = vmatprep.subr.mxu0 0.0
        %1867 = vmatpush1.msra.mxu0 0.0
        %1868 = vmatprep.subr.mxu0 0.0
        %1869 = vmatpush1.msra.mxu0 0.0
        %1870 = vmatprep.subr.mxu0 0.0
        %1871 = vmatpush1.msra.mxu0 0.0
        %1872 = vmatprep.subr.mxu0 0.0
        %1873 = vmatpush1.msra.mxu0 0.0
        %1874 = vmatprep.subr.mxu0 0.0
        %1875 = vmatpush1.msra.mxu0 0.0
        %1876 = vmatprep.subr.mxu0 0.0
        %1877 = vmatpush1.msra.mxu0 0.0
        %1878 = vmatprep.subr.mxu0 0.0
        %1879 = vmatpush1.msra.mxu0 0.0
        %1880 = vmatprep.subr.mxu0 0.0
        %1881 = vmatpush1.msra.mxu0 0.0
        %1882 = vmatprep.mubr.f32.mxu0 0.0
        %1883 = vmatmul.mubr.f32.gmra.mrb[0].mxu0 %v1813
        %v1884 = vpop.f32.mrb[0].mxu0
        %v1885 = vadd.f32 %v1810, %v1884
        %v1886 = vpop.f32.mrb[0].mxu0
        %1887 = vmatprep.mubr.f32.mxu0 0.0
        %1888 = vmatmul.mubr.f32.gmra.mrb[0].mxu0 %v1816
        %v1889 = vpop.f32.mrb[0].mxu0
        %v1890 = vadd.f32 %v1810, %v1889
        %v1891 = vpop.f32.mrb[0].mxu0
        %1892 = vdwg.mxu0
        %v1893 = vmul.f32 %v1885, 0.5
        %v1894 = vmul.f32 %v1890, 0.5
        %v1895 = vmul.f32 %v1885, 0.044715
        %v1896 = vmul.f32 %v1890, 0.044715
        %v1897 = vmul.f32 %v1895, %v1885
        %v1898 = vmul.f32 %v1896, %v1890
        %v1899 = vmul.f32 %v1897, %v1885
        %v1900 = vmul.f32 %v1898, %v1890
        %v1901 = vadd.f32 %v1885, %v1899
        %v1902 = vadd.f32 %v1890, %v1900
        %v1903 = vmul.f32 %v1901, 0.7978846
        %v1904 = vmul.f32 %v1902, 0.7978846
        %v1905 = vtanh.pop %v1903
        %v1906 = vtanh.pop %v1904
        %v1907 = vadd.f32 %v1905, 1.0
        %v1908 = vadd.f32 %v1906, 1.0
        %v1909 = vmul.f32 %v1893, %v1907
        %v1910 = vmul.f32 %v1894, %v1908
        %v1911 = vld [vmem:[%s8] sm:$0xff]
        %v1912 = vld [vmem:[%s8 + $0x8] sm:$0xff]
        %v1913 = vld [vmem:[%s8 + $0x10] sm:$0xff]
        %v1914 = vld [vmem:[%s8 + $0x18] sm:$0xff]
        %v1915 = vld [vmem:[%s8 + $0x20] sm:$0xff]
        %v1916 = vld [vmem:[%s8 + $0x28] sm:$0xff]
        %v1917 = vld [vmem:[%s8 + $0x30] sm:$0xff]
        %v1918 = vld [vmem:[%s8 + $0x38] sm:$0xff]
        %vm1919 = vcmask 523264
        %v1921 = vsel %vm1919, %v1909, 0
        %v1924 = vsel %vm1919, %v1910, 0
        %1926 = vmatprep.subr.mxu0 0.0
        %1927 = vmatpush1.msra.mxu0 %v1911
        %1928 = vmatprep.subr.mxu0 0.0
        %1929 = vmatpush1.msra.mxu0 %v1912
        %1930 = vmatprep.subr.mxu0 0.0
        %1931 = vmatpush1.msra.mxu0 %v1913
        %1932 = vmatprep.subr.mxu0 0.0
        %1933 = vmatpush1.msra.mxu0 %v1914
        %1934 = vmatprep.subr.mxu0 0.0
        %1935 = vmatpush1.msra.mxu0 %v1915
        %1936 = vmatprep.subr.mxu0 0.0
        %1937 = vmatpush1.msra.mxu0 %v1916
        %1938 = vmatprep.subr.mxu0 0.0
        %1939 = vmatpush1.msra.mxu0 %v1917
        %1940 = vmatprep.subr.mxu0 0.0
        %1941 = vmatpush1.msra.mxu0 %v1918
        %1942 = vmatprep.subr.mxu0 0.0
        %1943 = vmatpush1.msra.mxu0 0.0
        %1944 = vmatprep.subr.mxu0 0.0
        %1945 = vmatpush1.msra.mxu0 0.0
        %1946 = vmatprep.subr.mxu0 0.0
        %1947 = vmatpush1.msra.mxu0 0.0
        %1948 = vmatprep.subr.mxu0 0.0
        %1949 = vmatpush1.msra.mxu0 0.0
        %1950 = vmatprep.subr.mxu0 0.0
        %1951 = vmatpush1.msra.mxu0 0.0
        %1952 = vmatprep.subr.mxu0 0.0
        %1953 = vmatpush1.msra.mxu0 0.0
        %1954 = vmatprep.subr.mxu0 0.0
        %1955 = vmatpush1.msra.mxu0 0.0
        %1956 = vmatprep.subr.mxu0 0.0
        %1957 = vmatpush1.msra.mxu0 0.0
        %1958 = vmatprep.subr.mxu0 0.0
        %1959 = vmatpush1.msra.mxu0 0.0
        %1960 = vmatprep.subr.mxu0 0.0
        %1961 = vmatpush1.msra.mxu0 0.0
        %1962 = vmatprep.subr.mxu0 0.0
        %1963 = vmatpush1.msra.mxu0 0.0
        %1964 = vmatprep.subr.mxu0 0.0
        %1965 = vmatpush1.msra.mxu0 0.0
        %1966 = vmatprep.subr.mxu0 0.0
        %1967 = vmatpush1.msra.mxu0 0.0
        %1968 = vmatprep.subr.mxu0 0.0
        %1969 = vmatpush1.msra.mxu0 0.0
        %1970 = vmatprep.subr.mxu0 0.0
        %1971 = vmatpush1.msra.mxu0 0.0
        %1972 = vmatprep.subr.mxu0 0.0
        %1973 = vmatpush1.msra.mxu0 0.0
        %1974 = vmatprep.subr.mxu0 0.0
        %1975 = vmatpush1.msra.mxu0 0.0
        %1976 = vmatprep.subr.mxu0 0.0
        %1977 = vmatpush1.msra.mxu0 0.0
        %1978 = vmatprep.subr.mxu0 0.0
        %1979 = vmatpush1.msra.mxu0 0.0
        %1980 = vmatprep.subr.mxu0 0.0
        %1981 = vmatpush1.msra.mxu0 0.0
        %1982 = vmatprep.subr.mxu0 0.0
        %1983 = vmatpush1.msra.mxu0 0.0
        %1984 = vmatprep.subr.mxu0 0.0
        %1985 = vmatpush1.msra.mxu0 0.0
        %1986 = vmatprep.subr.mxu0 0.0
        %1987 = vmatpush1.msra.mxu0 0.0
        %1988 = vmatprep.subr.mxu0 0.0
        %1989 = vmatpush1.msra.mxu0 0.0
        %1990 = vmatprep.mubr.f32.mxu0 0.0
        %1991 = vmatmul.mubr.f32.gmra.mrb[0].mxu0 %v1921
        %v1992 = vpop.f32.mrb[0].mxu0
        %v1993 = vadd.f32 0.0, %v1992
        %v1994 = vpop.f32.mrb[0].mxu0
        %1995 = vmatprep.mubr.f32.mxu0 0.0
        %1996 = vmatmul.mubr.f32.gmra.mrb[0].mxu0 %v1924
        %v1997 = vpop.f32.mrb[0].mxu0
        %v1998 = vadd.f32 0.0, %v1997
        %v1999 = vpop.f32.mrb[0].mxu0
        %2000 = vdwg.mxu0
        %v2001 = vadd.f32 %v1761, %v1993
        %v2002 = vadd.f32 %v1762, %v1998
        %v2003 = vld [vmem:[%s9] sm:$0x1]
        %v2005 = vlaneseq
        %v2006 = vshrl.u32 %v2005, 7
        %v2007 = vsub.s32 0, %v2006
        %v2008 = vrot.slane %v2003, %v2007
        %v2010 = vadd.f32 %v2001, %v2008
        %v2011 = vadd.f32 %v2002, %v2008
        %s2012 = scalar_lea.vmem %s1, 4
        %v2013 = vld [vmem:[%s2012] sm:$0xf]
        %v2014 = vsel %vm470, %v2010, 0.0
        %2015 = vadd.xlane.f32.xlu0 %v2014
        %v2016 = vpop.xlane.xlu0 %2015
        %v2017 = vsel %vm470, %v2011, 0.0
        %2018 = vadd.xlane.f32.xlu0 %v2017
        %v2019 = vpop.xlane.xlu0 %2018
        %v2020 = vmul.f32 %v2016, %v477
        %v2021 = vmul.f32 %v2019, %v477
        %v2022 = vsub.f32 %v2010, %v2020
        %v2023 = vsub.f32 %v2011, %v2021
        %v2024 = vmul.f32 %v2022, %v2022
        %v2025 = vmul.f32 %v2023, %v2023
        %v2026 = vsel %vm470, %v2024, 0.0
        %2027 = vadd.xlane.f32.xlu0 %v2026
        %v2028 = vpop.xlane.xlu0 %2027
        %v2029 = vsel %vm470, %v2025, 0.0
        %2030 = vadd.xlane.f32.xlu0 %v2029
        %v2031 = vpop.xlane.xlu0 %2030
        %v2032 = vmul.f32 %v2028, %v477
        %v2033 = vmul.f32 %v2031, %v477
        %v2034 = vadd.f32 %v2032, 1e-05
        %v2035 = vadd.f32 %v2033, 1e-05
        %v2036 = vrsqrt.pop %v2034
        %v2037 = vrsqrt.pop %v2035
        %v2038 = vmul.f32 %v2022, %v2036
        %v2039 = vmul.f32 %v2023, %v2037
        %v2040 = vlaneseq
        %v2041 = vshrl.u32 %v2040, 7
        %v2042 = vsub.s32 0, %v2041
        %v2043 = vrot.slane %v2013, %v2042
        %v2044 = vmul.f32 %v2038, %v2043
        %v2045 = vmul.f32 %v2039, %v2043
        %v2046 = vlaneseq
        %v2047 = vshrl.u32 %v2046, 7
        %v2048 = vsub.s32 1, %v2047
        %v2049 = vrot.slane %v2013, %v2048
        %v2050 = vadd.f32 %v2044, %v2049
        %v2051 = vadd.f32 %v2045, %v2049
        %s2052 = scalar_lea.vmem %s2, 32
        %v2053 = vld [vmem:[%s2052] sm:$0xff]
        %v2054 = vld [vmem:[%s2052 + $0x8] sm:$0xff]
        %v2055 = vld [vmem:[%s2052 + $0x10] sm:$0xff]
        %v2056 = vld [vmem:[%s2052 + $0x18] sm:$0xff]
        %s2057 = scalar_lea.vmem %s3, 1
        %v2058 = vld [vmem:[%s2057] sm:$0x1]
        %v2060 = vlaneseq
        %v2061 = vshrl.u32 %v2060, 7
        %v2062 = vsub.s32 0, %v2061
        %v2063 = vrot.slane %v2058, %v2062
        %v2066 = vsel %vm470, %v2050, 0
        %v2069 = vsel %vm470, %v2051, 0
        %2071 = vmatprep.subr.mxu0 0.0
        %2072 = vmatpush1.msra.mxu0 %v2053
        %2073 = vmatprep.subr.mxu0 0.0
        %2074 = vmatpush1.msra.mxu0 %v2054
        %2075 = vmatprep.subr.mxu0 0.0
        %2076 = vmatpush1.msra.mxu0 %v2055
        %2077 = vmatprep.subr.mxu0 0.0
        %2078 = vmatpush1.msra.mxu0 %v2056
        %2079 = vmatprep.subr.mxu0 0.0
        %2080 = vmatpush1.msra.mxu0 0.0
        %2081 = vmatprep.subr.mxu0 0.0
        %2082 = vmatpush1.msra.mxu0 0.0
        %2083 = vmatprep.subr.mxu0 0.0
        %2084 = vmatpush1.msra.mxu0 0.0
        %2085 = vmatprep.subr.mxu0 0.0
        %2086 = vmatpush1.msra.mxu0 0.0
        %2087 = vmatprep.subr.mxu0 0.0
        %2088 = vmatpush1.msra.mxu0 0.0
        %2089 = vmatprep.subr.mxu0 0.0
        %2090 = vmatpush1.msra.mxu0 0.0
        %2091 = vmatprep.subr.mxu0 0.0
        %2092 = vmatpush1.msra.mxu0 0.0
        %2093 = vmatprep.subr.mxu0 0.0
        %2094 = vmatpush1.msra.mxu0 0.0
        %2095 = vmatprep.subr.mxu0 0.0
        %2096 = vmatpush1.msra.mxu0 0.0
        %2097 = vmatprep.subr.mxu0 0.0
        %2098 = vmatpush1.msra.mxu0 0.0
        %2099 = vmatprep.subr.mxu0 0.0
        %2100 = vmatpush1.msra.mxu0 0.0
        %2101 = vmatprep.subr.mxu0 0.0
        %2102 = vmatpush1.msra.mxu0 0.0
        %2103 = vmatprep.subr.mxu0 0.0
        %2104 = vmatpush1.msra.mxu0 0.0
        %2105 = vmatprep.subr.mxu0 0.0
        %2106 = vmatpush1.msra.mxu0 0.0
        %2107 = vmatprep.subr.mxu0 0.0
        %2108 = vmatpush1.msra.mxu0 0.0
        %2109 = vmatprep.subr.mxu0 0.0
        %2110 = vmatpush1.msra.mxu0 0.0
        %2111 = vmatprep.subr.mxu0 0.0
        %2112 = vmatpush1.msra.mxu0 0.0
        %2113 = vmatprep.subr.mxu0 0.0
        %2114 = vmatpush1.msra.mxu0 0.0
        %2115 = vmatprep.subr.mxu0 0.0
        %2116 = vmatpush1.msra.mxu0 0.0
        %2117 = vmatprep.subr.mxu0 0.0
        %2118 = vmatpush1.msra.mxu0 0.0
        %2119 = vmatprep.subr.mxu0 0.0
        %2120 = vmatpush1.msra.mxu0 0.0
        %2121 = vmatprep.subr.mxu0 0.0
        %2122 = vmatpush1.msra.mxu0 0.0
        %2123 = vmatprep.subr.mxu0 0.0
        %2124 = vmatpush1.msra.mxu0 0.0
        %2125 = vmatprep.subr.mxu0 0.0
        %2126 = vmatpush1.msra.mxu0 0.0
        %2127 = vmatprep.subr.mxu0 0.0
        %2128 = vmatpush1.msra.mxu0 0.0
        %2129 = vmatprep.subr.mxu0 0.0
        %2130 = vmatpush1.msra.mxu0 0.0
        %2131 = vmatprep.subr.mxu0 0.0
        %2132 = vmatpush1.msra.mxu0 0.0
        %2133 = vmatprep.subr.mxu0 0.0
        %2134 = vmatpush1.msra.mxu0 0.0
        %2135 = vmatprep.mubr.f32.mxu0 0.0
        %2136 = vmatmul.mubr.f32.gmra.mrb[0].mxu0 %v2066
        %v2137 = vpop.f32.mrb[0].mxu0
        %v2138 = vadd.f32 %v2063, %v2137
        %v2139 = vpop.f32.mrb[0].mxu0
        %2140 = vmatprep.mubr.f32.mxu0 0.0
        %2141 = vmatmul.mubr.f32.gmra.mrb[0].mxu0 %v2069
        %v2142 = vpop.f32.mrb[0].mxu0
        %v2143 = vadd.f32 %v2063, %v2142
        %v2144 = vpop.f32.mrb[0].mxu0
        %2145 = vdwg.mxu0
        %2148 = vrot.lane.b32.xlu0 %v2138, 120
        %v2149 = vpop.permute.xlu0 %2148
        %2150 = vrot.lane.b32.xlu0 %v2143, 120
        %v2151 = vpop.permute.xlu0 %2150
        %2152 = vrot.lane.b32.xlu0 %v2138, 112
        %v2153 = vpop.permute.xlu0 %2152
        %2154 = vrot.lane.b32.xlu0 %v2143, 112
        %v2155 = vpop.permute.xlu0 %2154
        %2156 = vrot.lane.b32.xlu0 %v2138, 104
        %v2157 = vpop.permute.xlu0 %2156
        %2158 = vrot.lane.b32.xlu0 %v2143, 104
        %v2159 = vpop.permute.xlu0 %2158
        %2160 = vrot.lane.b32.xlu0 %v2138, 96
        %v2161 = vpop.permute.xlu0 %2160
        %2162 = vrot.lane.b32.xlu0 %v2143, 96
        %v2163 = vpop.permute.xlu0 %2162
        %v2164 = vsel %vm620, %v2138, 0
        %v2166 = vsel %vm620, %v2143, 0
        %v2168 = vsel %vm620, %v2161, 0
        %v2170 = vsel %vm620, %v2163, 0
        %2172 = vmatprep.subr.mxu0 0.0
        %2173 = vmatpush1.xpose.msra.mxu0 %v2168
        %2174 = vmatprep.subr.mxu0 0.0
        %2175 = vmatpush1.xpose.msra.mxu0 %v2170
        %2176 = vmatprep.subr.mxu0 0.0
        %2177 = vmatpush1.xpose.msra.mxu0 0.0
        %2178 = vmatprep.subr.mxu0 0.0
        %2179 = vmatpush1.xpose.msra.mxu0 0.0
        %2180 = vmatprep.subr.mxu0 0.0
        %2181 = vmatpush1.xpose.msra.mxu0 0.0
        %2182 = vmatprep.subr.mxu0 0.0
        %2183 = vmatpush1.xpose.msra.mxu0 0.0
        %2184 = vmatprep.subr.mxu0 0.0
        %2185 = vmatpush1.xpose.msra.mxu0 0.0
        %2186 = vmatprep.subr.mxu0 0.0
        %2187 = vmatpush1.xpose.msra.mxu0 0.0
        %2188 = vmatprep.subr.mxu0 0.0
        %2189 = vmatpush1.xpose.msra.mxu0 0.0
        %2190 = vmatprep.subr.mxu0 0.0
        %2191 = vmatpush1.xpose.msra.mxu0 0.0
        %2192 = vmatprep.subr.mxu0 0.0
        %2193 = vmatpush1.xpose.msra.mxu0 0.0
        %2194 = vmatprep.subr.mxu0 0.0
        %2195 = vmatpush1.xpose.msra.mxu0 0.0
        %2196 = vmatprep.subr.mxu0 0.0
        %2197 = vmatpush1.xpose.msra.mxu0 0.0
        %2198 = vmatprep.subr.mxu0 0.0
        %2199 = vmatpush1.xpose.msra.mxu0 0.0
        %2200 = vmatprep.subr.mxu0 0.0
        %2201 = vmatpush1.xpose.msra.mxu0 0.0
        %2202 = vmatprep.subr.mxu0 0.0
        %2203 = vmatpush1.xpose.msra.mxu0 0.0
        %2204 = vmatprep.subr.mxu0 0.0
        %2205 = vmatpush1.xpose.msra.mxu0 0.0
        %2206 = vmatprep.subr.mxu0 0.0
        %2207 = vmatpush1.xpose.msra.mxu0 0.0
        %2208 = vmatprep.subr.mxu0 0.0
        %2209 = vmatpush1.xpose.msra.mxu0 0.0
        %2210 = vmatprep.subr.mxu0 0.0
        %2211 = vmatpush1.xpose.msra.mxu0 0.0
        %2212 = vmatprep.subr.mxu0 0.0
        %2213 = vmatpush1.xpose.msra.mxu0 0.0
        %2214 = vmatprep.subr.mxu0 0.0
        %2215 = vmatpush1.xpose.msra.mxu0 0.0
        %2216 = vmatprep.subr.mxu0 0.0
        %2217 = vmatpush1.xpose.msra.mxu0 0.0
        %2218 = vmatprep.subr.mxu0 0.0
        %2219 = vmatpush1.xpose.msra.mxu0 0.0
        %2220 = vmatprep.subr.mxu0 0.0
        %2221 = vmatpush1.xpose.msra.mxu0 0.0
        %2222 = vmatprep.subr.mxu0 0.0
        %2223 = vmatpush1.xpose.msra.mxu0 0.0
        %2224 = vmatprep.subr.mxu0 0.0
        %2225 = vmatpush1.xpose.msra.mxu0 0.0
        %2226 = vmatprep.subr.mxu0 0.0
        %2227 = vmatpush1.xpose.msra.mxu0 0.0
        %2228 = vmatprep.subr.mxu0 0.0
        %2229 = vmatpush1.xpose.msra.mxu0 0.0
        %2230 = vmatprep.subr.mxu0 0.0
        %2231 = vmatpush1.xpose.msra.mxu0 0.0
        %2232 = vmatprep.subr.mxu0 0.0
        %2233 = vmatpush1.xpose.msra.mxu0 0.0
        %2234 = vmatprep.subr.mxu0 0.0
        %2235 = vmatpush1.xpose.msra.mxu0 0.0
        %2236 = vmatprep.mubr.f32.mxu0 0.0
        %2237 = vmatmul.mubr.f32.gmra.mrb[0].mxu0 %v2164
        %v2238 = vpop.f32.mrb[0].mxu0
        %v2239 = vadd.f32 0.0, %v2238
        %v2240 = vpop.f32.mrb[0].mxu0
        %2241 = vmatprep.mubr.f32.mxu0 0.0
        %2242 = vmatmul.mubr.f32.gmra.mrb[0].mxu0 %v2166
        %v2243 = vpop.f32.mrb[0].mxu0
        %v2244 = vadd.f32 0.0, %v2243
        %v2245 = vpop.f32.mrb[0].mxu0
        %2246 = vdwg.mxu0
        %2247 = vrot.lane.b32.xlu0 %v2149, 96
        %v2248 = vpop.permute.xlu0 %2247
        %2249 = vrot.lane.b32.xlu0 %v2151, 96
        %v2250 = vpop.permute.xlu0 %2249
        %v2251 = vsel %vm620, %v2149, 0
        %v2253 = vsel %vm620, %v2151, 0
        %v2255 = vsel %vm620, %v2248, 0
        %v2257 = vsel %vm620, %v2250, 0
        %2259 = vmatprep.subr.mxu0 0.0
        %2260 = vmatpush1.xpose.msra.mxu0 %v2255
        %2261 = vmatprep.subr.mxu0 0.0
        %2262 = vmatpush1.xpose.msra.mxu0 %v2257
        %2263 = vmatprep.subr.mxu0 0.0
        %2264 = vmatpush1.xpose.msra.mxu0 0.0
        %2265 = vmatprep.subr.mxu0 0.0
        %2266 = vmatpush1.xpose.msra.mxu0 0.0
        %2267 = vmatprep.subr.mxu0 0.0
        %2268 = vmatpush1.xpose.msra.mxu0 0.0
        %2269 = vmatprep.subr.mxu0 0.0
        %2270 = vmatpush1.xpose.msra.mxu0 0.0
        %2271 = vmatprep.subr.mxu0 0.0
        %2272 = vmatpush1.xpose.msra.mxu0 0.0
        %2273 = vmatprep.subr.mxu0 0.0
        %2274 = vmatpush1.xpose.msra.mxu0 0.0
        %2275 = vmatprep.subr.mxu0 0.0
        %2276 = vmatpush1.xpose.msra.mxu0 0.0
        %2277 = vmatprep.subr.mxu0 0.0
        %2278 = vmatpush1.xpose.msra.mxu0 0.0
        %2279 = vmatprep.subr.mxu0 0.0
        %2280 = vmatpush1.xpose.msra.mxu0 0.0
        %2281 = vmatprep.subr.mxu0 0.0
        %2282 = vmatpush1.xpose.msra.mxu0 0.0
        %2283 = vmatprep.subr.mxu0 0.0
        %2284 = vmatpush1.xpose.msra.mxu0 0.0
        %2285 = vmatprep.subr.mxu0 0.0
        %2286 = vmatpush1.xpose.msra.mxu0 0.0
        %2287 = vmatprep.subr.mxu0 0.0
        %2288 = vmatpush1.xpose.msra.mxu0 0.0
        %2289 = vmatprep.subr.mxu0 0.0
        %2290 = vmatpush1.xpose.msra.mxu0 0.0
        %2291 = vmatprep.subr.mxu0 0.0
        %2292 = vmatpush1.xpose.msra.mxu0 0.0
        %2293 = vmatprep.subr.mxu0 0.0
        %2294 = vmatpush1.xpose.msra.mxu0 0.0
        %2295 = vmatprep.subr.mxu0 0.0
        %2296 = vmatpush1.xpose.msra.mxu0 0.0
        %2297 = vmatprep.subr.mxu0 0.0
        %2298 = vmatpush1.xpose.msra.mxu0 0.0
        %2299 = vmatprep.subr.mxu0 0.0
        %2300 = vmatpush1.xpose.msra.mxu0 0.0
        %2301 = vmatprep.subr.mxu0 0.0
        %2302 = vmatpush1.xpose.msra.mxu0 0.0
        %2303 = vmatprep.subr.mxu0 0.0
        %2304 = vmatpush1.xpose.msra.mxu0 0.0
        %2305 = vmatprep.subr.mxu0 0.0
        %2306 = vmatpush1.xpose.msra.mxu0 0.0
        %2307 = vmatprep.subr.mxu0 0.0
        %2308 = vmatpush1.xpose.msra.mxu0 0.0
        %2309 = vmatprep.subr.mxu0 0.0
        %2310 = vmatpush1.xpose.msra.mxu0 0.0
        %2311 = vmatprep.subr.mxu0 0.0
        %2312 = vmatpush1.xpose.msra.mxu0 0.0
        %2313 = vmatprep.subr.mxu0 0.0
        %2314 = vmatpush1.xpose.msra.mxu0 0.0
        %2315 = vmatprep.subr.mxu0 0.0
        %2316 = vmatpush1.xpose.msra.mxu0 0.0
        %2317 = vmatprep.subr.mxu0 0.0
        %2318 = vmatpush1.xpose.msra.mxu0 0.0
        %2319 = vmatprep.subr.mxu0 0.0
        %2320 = vmatpush1.xpose.msra.mxu0 0.0
        %2321 = vmatprep.subr.mxu0 0.0
        %2322 = vmatpush1.xpose.msra.mxu0 0.0
        %2323 = vmatprep.mubr.f32.mxu0 0.0
        %2324 = vmatmul.mubr.f32.gmra.mrb[0].mxu0 %v2251
        %v2325 = vpop.f32.mrb[0].mxu0
        %v2326 = vadd.f32 0.0, %v2325
        %v2327 = vpop.f32.mrb[0].mxu0
        %2328 = vmatprep.mubr.f32.mxu0 0.0
        %2329 = vmatmul.mubr.f32.gmra.mrb[0].mxu0 %v2253
        %v2330 = vpop.f32.mrb[0].mxu0
        %v2331 = vadd.f32 0.0, %v2330
        %v2332 = vpop.f32.mrb[0].mxu0
        %2333 = vdwg.mxu0
        %2334 = vrot.lane.b32.xlu0 %v2153, 96
        %v2335 = vpop.permute.xlu0 %2334
        %2336 = vrot.lane.b32.xlu0 %v2155, 96
        %v2337 = vpop.permute.xlu0 %2336
        %v2338 = vsel %vm620, %v2153, 0
        %v2340 = vsel %vm620, %v2155, 0
        %v2342 = vsel %vm620, %v2335, 0
        %v2344 = vsel %vm620, %v2337, 0
        %2346 = vmatprep.subr.mxu0 0.0
        %2347 = vmatpush1.xpose.msra.mxu0 %v2342
        %2348 = vmatprep.subr.mxu0 0.0
        %2349 = vmatpush1.xpose.msra.mxu0 %v2344
        %2350 = vmatprep.subr.mxu0 0.0
        %2351 = vmatpush1.xpose.msra.mxu0 0.0
        %2352 = vmatprep.subr.mxu0 0.0
        %2353 = vmatpush1.xpose.msra.mxu0 0.0
        %2354 = vmatprep.subr.mxu0 0.0
        %2355 = vmatpush1.xpose.msra.mxu0 0.0
        %2356 = vmatprep.subr.mxu0 0.0
        %2357 = vmatpush1.xpose.msra.mxu0 0.0
        %2358 = vmatprep.subr.mxu0 0.0
        %2359 = vmatpush1.xpose.msra.mxu0 0.0
        %2360 = vmatprep.subr.mxu0 0.0
        %2361 = vmatpush1.xpose.msra.mxu0 0.0
        %2362 = vmatprep.subr.mxu0 0.0
        %2363 = vmatpush1.xpose.msra.mxu0 0.0
        %2364 = vmatprep.subr.mxu0 0.0
        %2365 = vmatpush1.xpose.msra.mxu0 0.0
        %2366 = vmatprep.subr.mxu0 0.0
        %2367 = vmatpush1.xpose.msra.mxu0 0.0
        %2368 = vmatprep.subr.mxu0 0.0
        %2369 = vmatpush1.xpose.msra.mxu0 0.0
        %2370 = vmatprep.subr.mxu0 0.0
        %2371 = vmatpush1.xpose.msra.mxu0 0.0
        %2372 = vmatprep.subr.mxu0 0.0
        %2373 = vmatpush1.xpose.msra.mxu0 0.0
        %2374 = vmatprep.subr.mxu0 0.0
        %2375 = vmatpush1.xpose.msra.mxu0 0.0
        %2376 = vmatprep.subr.mxu0 0.0
        %2377 = vmatpush1.xpose.msra.mxu0 0.0
        %2378 = vmatprep.subr.mxu0 0.0
        %2379 = vmatpush1.xpose.msra.mxu0 0.0
        %2380 = vmatprep.subr.mxu0 0.0
        %2381 = vmatpush1.xpose.msra.mxu0 0.0
        %2382 = vmatprep.subr.mxu0 0.0
        %2383 = vmatpush1.xpose.msra.mxu0 0.0
        %2384 = vmatprep.subr.mxu0 0.0
        %2385 = vmatpush1.xpose.msra.mxu0 0.0
        %2386 = vmatprep.subr.mxu0 0.0
        %2387 = vmatpush1.xpose.msra.mxu0 0.0
        %2388 = vmatprep.subr.mxu0 0.0
        %2389 = vmatpush1.xpose.msra.mxu0 0.0
        %2390 = vmatprep.subr.mxu0 0.0
        %2391 = vmatpush1.xpose.msra.mxu0 0.0
        %2392 = vmatprep.subr.mxu0 0.0
        %2393 = vmatpush1.xpose.msra.mxu0 0.0
        %2394 = vmatprep.subr.mxu0 0.0
        %2395 = vmatpush1.xpose.msra.mxu0 0.0
        %2396 = vmatprep.subr.mxu0 0.0
        %2397 = vmatpush1.xpose.msra.mxu0 0.0
        %2398 = vmatprep.subr.mxu0 0.0
        %2399 = vmatpush1.xpose.msra.mxu0 0.0
        %2400 = vmatprep.subr.mxu0 0.0
        %2401 = vmatpush1.xpose.msra.mxu0 0.0
        %2402 = vmatprep.subr.mxu0 0.0
        %2403 = vmatpush1.xpose.msra.mxu0 0.0
        %2404 = vmatprep.subr.mxu0 0.0
        %2405 = vmatpush1.xpose.msra.mxu0 0.0
        %2406 = vmatprep.subr.mxu0 0.0
        %2407 = vmatpush1.xpose.msra.mxu0 0.0
        %2408 = vmatprep.subr.mxu0 0.0
        %2409 = vmatpush1.xpose.msra.mxu0 0.0
        %2410 = vmatprep.mubr.f32.mxu0 0.0
        %2411 = vmatmul.mubr.f32.gmra.mrb[0].mxu0 %v2338
        %v2412 = vpop.f32.mrb[0].mxu0
        %v2413 = vadd.f32 0.0, %v2412
        %v2414 = vpop.f32.mrb[0].mxu0
        %2415 = vmatprep.mubr.f32.mxu0 0.0
        %2416 = vmatmul.mubr.f32.gmra.mrb[0].mxu0 %v2340
        %v2417 = vpop.f32.mrb[0].mxu0
        %v2418 = vadd.f32 0.0, %v2417
        %v2419 = vpop.f32.mrb[0].mxu0
        %2420 = vdwg.mxu0
        %2421 = vrot.lane.b32.xlu0 %v2157, 96
        %v2422 = vpop.permute.xlu0 %2421
        %2423 = vrot.lane.b32.xlu0 %v2159, 96
        %v2424 = vpop.permute.xlu0 %2423
        %v2425 = vsel %vm620, %v2157, 0
        %v2427 = vsel %vm620, %v2159, 0
        %v2429 = vsel %vm620, %v2422, 0
        %v2431 = vsel %vm620, %v2424, 0
        %2433 = vmatprep.subr.mxu0 0.0
        %2434 = vmatpush1.xpose.msra.mxu0 %v2429
        %2435 = vmatprep.subr.mxu0 0.0
        %2436 = vmatpush1.xpose.msra.mxu0 %v2431
        %2437 = vmatprep.subr.mxu0 0.0
        %2438 = vmatpush1.xpose.msra.mxu0 0.0
        %2439 = vmatprep.subr.mxu0 0.0
        %2440 = vmatpush1.xpose.msra.mxu0 0.0
        %2441 = vmatprep.subr.mxu0 0.0
        %2442 = vmatpush1.xpose.msra.mxu0 0.0
        %2443 = vmatprep.subr.mxu0 0.0
        %2444 = vmatpush1.xpose.msra.mxu0 0.0
        %2445 = vmatprep.subr.mxu0 0.0
        %2446 = vmatpush1.xpose.msra.mxu0 0.0
        %2447 = vmatprep.subr.mxu0 0.0
        %2448 = vmatpush1.xpose.msra.mxu0 0.0
        %2449 = vmatprep.subr.mxu0 0.0
        %2450 = vmatpush1.xpose.msra.mxu0 0.0
        %2451 = vmatprep.subr.mxu0 0.0
        %2452 = vmatpush1.xpose.msra.mxu0 0.0
        %2453 = vmatprep.subr.mxu0 0.0
        %2454 = vmatpush1.xpose.msra.mxu0 0.0
        %2455 = vmatprep.subr.mxu0 0.0
        %2456 = vmatpush1.xpose.msra.mxu0 0.0
        %2457 = vmatprep.subr.mxu0 0.0
        %2458 = vmatpush1.xpose.msra.mxu0 0.0
        %2459 = vmatprep.subr.mxu0 0.0
        %2460 = vmatpush1.xpose.msra.mxu0 0.0
        %2461 = vmatprep.subr.mxu0 0.0
        %2462 = vmatpush1.xpose.msra.mxu0 0.0
        %2463 = vmatprep.subr.mxu0 0.0
        %2464 = vmatpush1.xpose.msra.mxu0 0.0
        %2465 = vmatprep.subr.mxu0 0.0
        %2466 = vmatpush1.xpose.msra.mxu0 0.0
        %2467 = vmatprep.subr.mxu0 0.0
        %2468 = vmatpush1.xpose.msra.mxu0 0.0
        %2469 = vmatprep.subr.mxu0 0.0
        %2470 = vmatpush1.xpose.msra.mxu0 0.0
        %2471 = vmatprep.subr.mxu0 0.0
        %2472 = vmatpush1.xpose.msra.mxu0 0.0
        %2473 = vmatprep.subr.mxu0 0.0
        %2474 = vmatpush1.xpose.msra.mxu0 0.0
        %2475 = vmatprep.subr.mxu0 0.0
        %2476 = vmatpush1.xpose.msra.mxu0 0.0
        %2477 = vmatprep.subr.mxu0 0.0
        %2478 = vmatpush1.xpose.msra.mxu0 0.0
        %2479 = vmatprep.subr.mxu0 0.0
        %2480 = vmatpush1.xpose.msra.mxu0 0.0
        %2481 = vmatprep.subr.mxu0 0.0
        %2482 = vmatpush1.xpose.msra.mxu0 0.0
        %2483 = vmatprep.subr.mxu0 0.0
        %2484 = vmatpush1.xpose.msra.mxu0 0.0
        %2485 = vmatprep.subr.mxu0 0.0
        %2486 = vmatpush1.xpose.msra.mxu0 0.0
        %2487 = vmatprep.subr.mxu0 0.0
        %2488 = vmatpush1.xpose.msra.mxu0 0.0
        %2489 = vmatprep.subr.mxu0 0.0
        %2490 = vmatpush1.xpose.msra.mxu0 0.0
        %2491 = vmatprep.subr.mxu0 0.0
        %2492 = vmatpush1.xpose.msra.mxu0 0.0
        %2493 = vmatprep.subr.mxu0 0.0
        %2494 = vmatpush1.xpose.msra.mxu0 0.0
        %2495 = vmatprep.subr.mxu0 0.0
        %2496 = vmatpush1.xpose.msra.mxu0 0.0
        %2497 = vmatprep.mubr.f32.mxu0 0.0
        %2498 = vmatmul.mubr.f32.gmra.mrb[0].mxu0 %v2425
        %v2499 = vpop.f32.mrb[0].mxu0
        %v2500 = vadd.f32 0.0, %v2499
        %v2501 = vpop.f32.mrb[0].mxu0
        %2502 = vmatprep.mubr.f32.mxu0 0.0
        %2503 = vmatmul.mubr.f32.gmra.mrb[0].mxu0 %v2427
        %v2504 = vpop.f32.mrb[0].mxu0
        %v2505 = vadd.f32 0.0, %v2504
        %v2506 = vpop.f32.mrb[0].mxu0
        %2507 = vdwg.mxu0
        %v2508 = vmul.f32 %v2239, 0.35355338
        %v2509 = vmul.f32 %v2244, 0.35355338
        %v2510 = vmul.f32 %v2326, 0.35355338
        %v2511 = vmul.f32 %v2331, 0.35355338
        %v2512 = vmul.f32 %v2413, 0.35355338
        %v2513 = vmul.f32 %v2418, 0.35355338
        %v2514 = vmul.f32 %v2500, 0.35355338
        %v2515 = vmul.f32 %v2505, 0.35355338
        %v2516 = vsel %vm973, %v2508, -inf
        %2517 = vmax.xlane.f32.xlu0 %v2516
        %v2518 = vpop.xlane.xlu0 %2517
        %v2519 = vsel %vm973, %v2509, -inf
        %2520 = vmax.xlane.f32.xlu0 %v2519
        %v2521 = vpop.xlane.xlu0 %2520
        %v2522 = vsel %vm973, %v2510, -inf
        %2523 = vmax.xlane.f32.xlu0 %v2522
        %v2524 = vpop.xlane.xlu0 %2523
        %v2525 = vsel %vm973, %v2511, -inf
        %2526 = vmax.xlane.f32.xlu0 %v2525
        %v2527 = vpop.xlane.xlu0 %2526
        %v2528 = vsel %vm973, %v2512, -inf
        %2529 = vmax.xlane.f32.xlu0 %v2528
        %v2530 = vpop.xlane.xlu0 %2529
        %v2531 = vsel %vm973, %v2513, -inf
        %2532 = vmax.xlane.f32.xlu0 %v2531
        %v2533 = vpop.xlane.xlu0 %2532
        %v2534 = vsel %vm973, %v2514, -inf
        %2535 = vmax.xlane.f32.xlu0 %v2534
        %v2536 = vpop.xlane.xlu0 %2535
        %v2537 = vsel %vm973, %v2515, -inf
        %2538 = vmax.xlane.f32.xlu0 %v2537
        %v2539 = vpop.xlane.xlu0 %2538
        %v2540 = vsub.f32 %v2508, %v2518
        %v2541 = vsub.f32 %v2509, %v2521
        %v2542 = vsub.f32 %v2510, %v2524
        %v2543 = vsub.f32 %v2511, %v2527
        %v2544 = vsub.f32 %v2512, %v2530
        %v2545 = vsub.f32 %v2513, %v2533
        %v2546 = vsub.f32 %v2514, %v2536
        %v2547 = vsub.f32 %v2515, %v2539
        %v2548 = vmul.f32 %v2540, 1.442695
        %v2549 = vpow.pop %v2548
        %v2550 = vmul.f32 %v2541, 1.442695
        %v2551 = vpow.pop %v2550
        %v2552 = vmul.f32 %v2542, 1.442695
        %v2553 = vpow.pop %v2552
        %v2554 = vmul.f32 %v2543, 1.442695
        %v2555 = vpow.pop %v2554
        %v2556 = vmul.f32 %v2544, 1.442695
        %v2557 = vpow.pop %v2556
        %v2558 = vmul.f32 %v2545, 1.442695
        %v2559 = vpow.pop %v2558
        %v2560 = vmul.f32 %v2546, 1.442695
        %v2561 = vpow.pop %v2560
        %v2562 = vmul.f32 %v2547, 1.442695
        %v2563 = vpow.pop %v2562
        %v2564 = vsel %vm973, %v2549, 0.0
        %2565 = vadd.xlane.f32.xlu0 %v2564
        %v2566 = vpop.xlane.xlu0 %2565
        %v2567 = vsel %vm973, %v2551, 0.0
        %2568 = vadd.xlane.f32.xlu0 %v2567
        %v2569 = vpop.xlane.xlu0 %2568
        %v2570 = vsel %vm973, %v2553, 0.0
        %2571 = vadd.xlane.f32.xlu0 %v2570
        %v2572 = vpop.xlane.xlu0 %2571
        %v2573 = vsel %vm973, %v2555, 0.0
        %2574 = vadd.xlane.f32.xlu0 %v2573
        %v2575 = vpop.xlane.xlu0 %2574
        %v2576 = vsel %vm973, %v2557, 0.0
        %2577 = vadd.xlane.f32.xlu0 %v2576
        %v2578 = vpop.xlane.xlu0 %2577
        %v2579 = vsel %vm973, %v2559, 0.0
        %2580 = vadd.xlane.f32.xlu0 %v2579
        %v2581 = vpop.xlane.xlu0 %2580
        %v2582 = vsel %vm973, %v2561, 0.0
        %2583 = vadd.xlane.f32.xlu0 %v2582
        %v2584 = vpop.xlane.xlu0 %2583
        %v2585 = vsel %vm973, %v2563, 0.0
        %2586 = vadd.xlane.f32.xlu0 %v2585
        %v2587 = vpop.xlane.xlu0 %2586
        %v2588 = vrcp.pop %v2566
        %v2589 = vrcp.pop %v2569
        %v2590 = vrcp.pop %v2572
        %v2591 = vrcp.pop %v2575
        %v2592 = vrcp.pop %v2578
        %v2593 = vrcp.pop %v2581
        %v2594 = vrcp.pop %v2584
        %v2595 = vrcp.pop %v2587
        %v2596 = vmul.f32 %v2549, %v2588
        %v2597 = vmul.f32 %v2551, %v2589
        %v2598 = vmul.f32 %v2553, %v2590
        %v2599 = vmul.f32 %v2555, %v2591
        %v2600 = vmul.f32 %v2557, %v2592
        %v2601 = vmul.f32 %v2559, %v2593
        %v2602 = vmul.f32 %v2561, %v2594
        %v2603 = vmul.f32 %v2563, %v2595
        %2604 = vrot.lane.b32.xlu0 %v2138, 64
        %v2605 = vpop.permute.xlu0 %2604
        %2606 = vrot.lane.b32.xlu0 %v2143, 64
        %v2607 = vpop.permute.xlu0 %2606
        %v2611 = vsel %vm973, %v2596, 0
        %v2614 = vsel %vm973, %v2597, 0
        %2616 = vmatprep.subr.mxu0 0.0
        %2617 = vmatpush1.msra.mxu0 %v2605
        %2618 = vmatprep.subr.mxu0 0.0
        %2619 = vmatpush1.msra.mxu0 %v2607
        %2620 = vmatprep.subr.mxu0 0.0
        %2621 = vmatpush1.msra.mxu0 0.0
        %2622 = vmatprep.subr.mxu0 0.0
        %2623 = vmatpush1.msra.mxu0 0.0
        %2624 = vmatprep.subr.mxu0 0.0
        %2625 = vmatpush1.msra.mxu0 0.0
        %2626 = vmatprep.subr.mxu0 0.0
        %2627 = vmatpush1.msra.mxu0 0.0
        %2628 = vmatprep.subr.mxu0 0.0
        %2629 = vmatpush1.msra.mxu0 0.0
        %2630 = vmatprep.subr.mxu0 0.0
        %2631 = vmatpush1.msra.mxu0 0.0
        %2632 = vmatprep.subr.mxu0 0.0
        %2633 = vmatpush1.msra.mxu0 0.0
        %2634 = vmatprep.subr.mxu0 0.0
        %2635 = vmatpush1.msra.mxu0 0.0
        %2636 = vmatprep.subr.mxu0 0.0
        %2637 = vmatpush1.msra.mxu0 0.0
        %2638 = vmatprep.subr.mxu0 0.0
        %2639 = vmatpush1.msra.mxu0 0.0
        %2640 = vmatprep.subr.mxu0 0.0
        %2641 = vmatpush1.msra.mxu0 0.0
        %2642 = vmatprep.subr.mxu0 0.0
        %2643 = vmatpush1.msra.mxu0 0.0
        %2644 = vmatprep.subr.mxu0 0.0
        %2645 = vmatpush1.msra.mxu0 0.0
        %2646 = vmatprep.subr.mxu0 0.0
        %2647 = vmatpush1.msra.mxu0 0.0
        %2648 = vmatprep.subr.mxu0 0.0
        %2649 = vmatpush1.msra.mxu0 0.0
        %2650 = vmatprep.subr.mxu0 0.0
        %2651 = vmatpush1.msra.mxu0 0.0
        %2652 = vmatprep.subr.mxu0 0.0
        %2653 = vmatpush1.msra.mxu0 0.0
        %2654 = vmatprep.subr.mxu0 0.0
        %2655 = vmatpush1.msra.mxu0 0.0
        %2656 = vmatprep.subr.mxu0 0.0
        %2657 = vmatpush1.msra.mxu0 0.0
        %2658 = vmatprep.subr.mxu0 0.0
        %2659 = vmatpush1.msra.mxu0 0.0
        %2660 = vmatprep.subr.mxu0 0.0
        %2661 = vmatpush1.msra.mxu0 0.0
        %2662 = vmatprep.subr.mxu0 0.0
        %2663 = vmatpush1.msra.mxu0 0.0
        %2664 = vmatprep.subr.mxu0 0.0
        %2665 = vmatpush1.msra.mxu0 0.0
        %2666 = vmatprep.subr.mxu0 0.0
        %2667 = vmatpush1.msra.mxu0 0.0
        %2668 = vmatprep.subr.mxu0 0.0
        %2669 = vmatpush1.msra.mxu0 0.0
        %2670 = vmatprep.subr.mxu0 0.0
        %2671 = vmatpush1.msra.mxu0 0.0
        %2672 = vmatprep.subr.mxu0 0.0
        %2673 = vmatpush1.msra.mxu0 0.0
        %2674 = vmatprep.subr.mxu0 0.0
        %2675 = vmatpush1.msra.mxu0 0.0
        %2676 = vmatprep.subr.mxu0 0.0
        %2677 = vmatpush1.msra.mxu0 0.0
        %2678 = vmatprep.subr.mxu0 0.0
        %2679 = vmatpush1.msra.mxu0 0.0
        %2680 = vmatprep.mubr.f32.mxu0 0.0
        %2681 = vmatmul.mubr.f32.gmra.mrb[0].mxu0 %v2611
        %v2682 = vpop.f32.mrb[0].mxu0
        %v2683 = vadd.f32 0.0, %v2682
        %v2684 = vpop.f32.mrb[0].mxu0
        %2685 = vmatprep.mubr.f32.mxu0 0.0
        %2686 = vmatmul.mubr.f32.gmra.mrb[0].mxu0 %v2614
        %v2687 = vpop.f32.mrb[0].mxu0
        %v2688 = vadd.f32 0.0, %v2687
        %v2689 = vpop.f32.mrb[0].mxu0
        %2690 = vdwg.mxu0
        %2691 = vrot.lane.b32.xlu0 %v2149, 64
        %v2692 = vpop.permute.xlu0 %2691
        %2693 = vrot.lane.b32.xlu0 %v2151, 64
        %v2694 = vpop.permute.xlu0 %2693
        %v2698 = vsel %vm973, %v2598, 0
        %v2701 = vsel %vm973, %v2599, 0
        %2703 = vmatprep.subr.mxu0 0.0
        %2704 = vmatpush1.msra.mxu0 %v2692
        %2705 = vmatprep.subr.mxu0 0.0
        %2706 = vmatpush1.msra.mxu0 %v2694
        %2707 = vmatprep.subr.mxu0 0.0
        %2708 = vmatpush1.msra.mxu0 0.0
        %2709 = vmatprep.subr.mxu0 0.0
        %2710 = vmatpush1.msra.mxu0 0.0
        %2711 = vmatprep.subr.mxu0 0.0
        %2712 = vmatpush1.msra.mxu0 0.0
        %2713 = vmatprep.subr.mxu0 0.0
        %2714 = vmatpush1.msra.mxu0 0.0
        %2715 = vmatprep.subr.mxu0 0.0
        %2716 = vmatpush1.msra.mxu0 0.0
        %2717 = vmatprep.subr.mxu0 0.0
        %2718 = vmatpush1.msra.mxu0 0.0
        %2719 = vmatprep.subr.mxu0 0.0
        %2720 = vmatpush1.msra.mxu0 0.0
        %2721 = vmatprep.subr.mxu0 0.0
        %2722 = vmatpush1.msra.mxu0 0.0
        %2723 = vmatprep.subr.mxu0 0.0
        %2724 = vmatpush1.msra.mxu0 0.0
        %2725 = vmatprep.subr.mxu0 0.0
        %2726 = vmatpush1.msra.mxu0 0.0
        %2727 = vmatprep.subr.mxu0 0.0
        %2728 = vmatpush1.msra.mxu0 0.0
        %2729 = vmatprep.subr.mxu0 0.0
        %2730 = vmatpush1.msra.mxu0 0.0
        %2731 = vmatprep.subr.mxu0 0.0
        %2732 = vmatpush1.msra.mxu0 0.0
        %2733 = vmatprep.subr.mxu0 0.0
        %2734 = vmatpush1.msra.mxu0 0.0
        %2735 = vmatprep.subr.mxu0 0.0
        %2736 = vmatpush1.msra.mxu0 0.0
        %2737 = vmatprep.subr.mxu0 0.0
        %2738 = vmatpush1.msra.mxu0 0.0
        %2739 = vmatprep.subr.mxu0 0.0
        %2740 = vmatpush1.msra.mxu0 0.0
        %2741 = vmatprep.subr.mxu0 0.0
        %2742 = vmatpush1.msra.mxu0 0.0
        %2743 = vmatprep.subr.mxu0 0.0
        %2744 = vmatpush1.msra.mxu0 0.0
        %2745 = vmatprep.subr.mxu0 0.0
        %2746 = vmatpush1.msra.mxu0 0.0
        %2747 = vmatprep.subr.mxu0 0.0
        %2748 = vmatpush1.msra.mxu0 0.0
        %2749 = vmatprep.subr.mxu0 0.0
        %2750 = vmatpush1.msra.mxu0 0.0
        %2751 = vmatprep.subr.mxu0 0.0
        %2752 = vmatpush1.msra.mxu0 0.0
        %2753 = vmatprep.subr.mxu0 0.0
        %2754 = vmatpush1.msra.mxu0 0.0
        %2755 = vmatprep.subr.mxu0 0.0
        %2756 = vmatpush1.msra.mxu0 0.0
        %2757 = vmatprep.subr.mxu0 0.0
        %2758 = vmatpush1.msra.mxu0 0.0
        %2759 = vmatprep.subr.mxu0 0.0
        %2760 = vmatpush1.msra.mxu0 0.0
        %2761 = vmatprep.subr.mxu0 0.0
        %2762 = vmatpush1.msra.mxu0 0.0
        %2763 = vmatprep.subr.mxu0 0.0
        %2764 = vmatpush1.msra.mxu0 0.0
        %2765 = vmatprep.subr.mxu0 0.0
        %2766 = vmatpush1.msra.mxu0 0.0
        %2767 = vmatprep.mubr.f32.mxu0 0.0
        %2768 = vmatmul.mubr.f32.gmra.mrb[0].mxu0 %v2698
        %v2769 = vpop.f32.mrb[0].mxu0
        %v2770 = vadd.f32 0.0, %v2769
        %v2771 = vpop.f32.mrb[0].mxu0
        %2772 = vmatprep.mubr.f32.mxu0 0.0
        %2773 = vmatmul.mubr.f32.gmra.mrb[0].mxu0 %v2701
        %v2774 = vpop.f32.mrb[0].mxu0
        %v2775 = vadd.f32 0.0, %v2774
        %v2776 = vpop.f32.mrb[0].mxu0
        %2777 = vdwg.mxu0
        %2778 = vrot.lane.b32.xlu0 %v2153, 64
        %v2779 = vpop.permute.xlu0 %2778
        %2780 = vrot.lane.b32.xlu0 %v2155, 64
        %v2781 = vpop.permute.xlu0 %2780
        %v2785 = vsel %vm973, %v2600, 0
        %v2788 = vsel %vm973, %v2601, 0
        %2790 = vmatprep.subr.mxu0 0.0
        %2791 = vmatpush1.msra.mxu0 %v2779
        %2792 = vmatprep.subr.mxu0 0.0
        %2793 = vmatpush1.msra.mxu0 %v2781
        %2794 = vmatprep.subr.mxu0 0.0
        %2795 = vmatpush1.msra.mxu0 0.0
        %2796 = vmatprep.subr.mxu0 0.0
        %2797 = vmatpush1.msra.mxu0 0.0
        %2798 = vmatprep.subr.mxu0 0.0
        %2799 = vmatpush1.msra.mxu0 0.0
        %2800 = vmatprep.subr.mxu0 0.0
        %2801 = vmatpush1.msra.mxu0 0.0
        %2802 = vmatprep.subr.mxu0 0.0
        %2803 = vmatpush1.msra.mxu0 0.0
        %2804 = vmatprep.subr.mxu0 0.0
        %2805 = vmatpush1.msra.mxu0 0.0
        %2806 = vmatprep.subr.mxu0 0.0
        %2807 = vmatpush1.msra.mxu0 0.0
        %2808 = vmatprep.subr.mxu0 0.0
        %2809 = vmatpush1.msra.mxu0 0.0
        %2810 = vmatprep.subr.mxu0 0.0
        %2811 = vmatpush1.msra.mxu0 0.0
        %2812 = vmatprep.subr.mxu0 0.0
        %2813 = vmatpush1.msra.mxu0 0.0
        %2814 = vmatprep.subr.mxu0 0.0
        %2815 = vmatpush1.msra.mxu0 0.0
        %2816 = vmatprep.subr.mxu0 0.0
        %2817 = vmatpush1.msra.mxu0 0.0
        %2818 = vmatprep.subr.mxu0 0.0
        %2819 = vmatpush1.msra.mxu0 0.0
        %2820 = vmatprep.subr.mxu0 0.0
        %2821 = vmatpush1.msra.mxu0 0.0
        %2822 = vmatprep.subr.mxu0 0.0
        %2823 = vmatpush1.msra.mxu0 0.0
        %2824 = vmatprep.subr.mxu0 0.0
        %2825 = vmatpush1.msra.mxu0 0.0
        %2826 = vmatprep.subr.mxu0 0.0
        %2827 = vmatpush1.msra.mxu0 0.0
        %2828 = vmatprep.subr.mxu0 0.0
        %2829 = vmatpush1.msra.mxu0 0.0
        %2830 = vmatprep.subr.mxu0 0.0
        %2831 = vmatpush1.msra.mxu0 0.0
        %2832 = vmatprep.subr.mxu0 0.0
        %2833 = vmatpush1.msra.mxu0 0.0
        %2834 = vmatprep.subr.mxu0 0.0
        %2835 = vmatpush1.msra.mxu0 0.0
        %2836 = vmatprep.subr.mxu0 0.0
        %2837 = vmatpush1.msra.mxu0 0.0
        %2838 = vmatprep.subr.mxu0 0.0
        %2839 = vmatpush1.msra.mxu0 0.0
        %2840 = vmatprep.subr.mxu0 0.0
        %2841 = vmatpush1.msra.mxu0 0.0
        %2842 = vmatprep.subr.mxu0 0.0
        %2843 = vmatpush1.msra.mxu0 0.0
        %2844 = vmatprep.subr.mxu0 0.0
        %2845 = vmatpush1.msra.mxu0 0.0
        %2846 = vmatprep.subr.mxu0 0.0
        %2847 = vmatpush1.msra.mxu0 0.0
        %2848 = vmatprep.subr.mxu0 0.0
        %2849 = vmatpush1.msra.mxu0 0.0
        %2850 = vmatprep.subr.mxu0 0.0
        %2851 = vmatpush1.msra.mxu0 0.0
        %2852 = vmatprep.subr.mxu0 0.0
        %2853 = vmatpush1.msra.mxu0 0.0
        %2854 = vmatprep.mubr.f32.mxu0 0.0
        %2855 = vmatmul.mubr.f32.gmra.mrb[0].mxu0 %v2785
        %v2856 = vpop.f32.mrb[0].mxu0
        %v2857 = vadd.f32 0.0, %v2856
        %v2858 = vpop.f32.mrb[0].mxu0
        %2859 = vmatprep.mubr.f32.mxu0 0.0
        %2860 = vmatmul.mubr.f32.gmra.mrb[0].mxu0 %v2788
        %v2861 = vpop.f32.mrb[0].mxu0
        %v2862 = vadd.f32 0.0, %v2861
        %v2863 = vpop.f32.mrb[0].mxu0
        %2864 = vdwg.mxu0
        %2865 = vrot.lane.b32.xlu0 %v2157, 64
        %v2866 = vpop.permute.xlu0 %2865
        %2867 = vrot.lane.b32.xlu0 %v2159, 64
        %v2868 = vpop.permute.xlu0 %2867
        %v2872 = vsel %vm973, %v2602, 0
        %v2875 = vsel %vm973, %v2603, 0
        %2877 = vmatprep.subr.mxu0 0.0
        %2878 = vmatpush1.msra.mxu0 %v2866
        %2879 = vmatprep.subr.mxu0 0.0
        %2880 = vmatpush1.msra.mxu0 %v2868
        %2881 = vmatprep.subr.mxu0 0.0
        %2882 = vmatpush1.msra.mxu0 0.0
        %2883 = vmatprep.subr.mxu0 0.0
        %2884 = vmatpush1.msra.mxu0 0.0
        %2885 = vmatprep.subr.mxu0 0.0
        %2886 = vmatpush1.msra.mxu0 0.0
        %2887 = vmatprep.subr.mxu0 0.0
        %2888 = vmatpush1.msra.mxu0 0.0
        %2889 = vmatprep.subr.mxu0 0.0
        %2890 = vmatpush1.msra.mxu0 0.0
        %2891 = vmatprep.subr.mxu0 0.0
        %2892 = vmatpush1.msra.mxu0 0.0
        %2893 = vmatprep.subr.mxu0 0.0
        %2894 = vmatpush1.msra.mxu0 0.0
        %2895 = vmatprep.subr.mxu0 0.0
        %2896 = vmatpush1.msra.mxu0 0.0
        %2897 = vmatprep.subr.mxu0 0.0
        %2898 = vmatpush1.msra.mxu0 0.0
        %2899 = vmatprep.subr.mxu0 0.0
        %2900 = vmatpush1.msra.mxu0 0.0
        %2901 = vmatprep.subr.mxu0 0.0
        %2902 = vmatpush1.msra.mxu0 0.0
        %2903 = vmatprep.subr.mxu0 0.0
        %2904 = vmatpush1.msra.mxu0 0.0
        %2905 = vmatprep.subr.mxu0 0.0
        %2906 = vmatpush1.msra.mxu0 0.0
        %2907 = vmatprep.subr.mxu0 0.0
        %2908 = vmatpush1.msra.mxu0 0.0
        %2909 = vmatprep.subr.mxu0 0.0
        %2910 = vmatpush1.msra.mxu0 0.0
        %2911 = vmatprep.subr.mxu0 0.0
        %2912 = vmatpush1.msra.mxu0 0.0
        %2913 = vmatprep.subr.mxu0 0.0
        %2914 = vmatpush1.msra.mxu0 0.0
        %2915 = vmatprep.subr.mxu0 0.0
        %2916 = vmatpush1.msra.mxu0 0.0
        %2917 = vmatprep.subr.mxu0 0.0
        %2918 = vmatpush1.msra.mxu0 0.0
        %2919 = vmatprep.subr.mxu0 0.0
        %2920 = vmatpush1.msra.mxu0 0.0
        %2921 = vmatprep.subr.mxu0 0.0
        %2922 = vmatpush1.msra.mxu0 0.0
        %2923 = vmatprep.subr.mxu0 0.0
        %2924 = vmatpush1.msra.mxu0 0.0
        %2925 = vmatprep.subr.mxu0 0.0
        %2926 = vmatpush1.msra.mxu0 0.0
        %2927 = vmatprep.subr.mxu0 0.0
        %2928 = vmatpush1.msra.mxu0 0.0
        %2929 = vmatprep.subr.mxu0 0.0
        %2930 = vmatpush1.msra.mxu0 0.0
        %2931 = vmatprep.subr.mxu0 0.0
        %2932 = vmatpush1.msra.mxu0 0.0
        %2933 = vmatprep.subr.mxu0 0.0
        %2934 = vmatpush1.msra.mxu0 0.0
        %2935 = vmatprep.subr.mxu0 0.0
        %2936 = vmatpush1.msra.mxu0 0.0
        %2937 = vmatprep.subr.mxu0 0.0
        %2938 = vmatpush1.msra.mxu0 0.0
        %2939 = vmatprep.subr.mxu0 0.0
        %2940 = vmatpush1.msra.mxu0 0.0
        %2941 = vmatprep.mubr.f32.mxu0 0.0
        %2942 = vmatmul.mubr.f32.gmra.mrb[0].mxu0 %v2872
        %v2943 = vpop.f32.mrb[0].mxu0
        %v2944 = vadd.f32 0.0, %v2943
        %v2945 = vpop.f32.mrb[0].mxu0
        %2946 = vmatprep.mubr.f32.mxu0 0.0
        %2947 = vmatmul.mubr.f32.gmra.mrb[0].mxu0 %v2875
        %v2948 = vpop.f32.mrb[0].mxu0
        %v2949 = vadd.f32 0.0, %v2948
        %v2950 = vpop.f32.mrb[0].mxu0
        %2951 = vdwg.mxu0
        %s2952 = scalar_lea.vmem %s4, 32
        %v2953 = vld [vmem:[%s2952] sm:$0xff]
        %v2954 = vld [vmem:[%s2952 + $0x8] sm:$0xff]
        %v2955 = vld [vmem:[%s2952 + $0x10] sm:$0xff]
        %v2956 = vld [vmem:[%s2952 + $0x18] sm:$0xff]
        %v2958 = vsel %vm620, %v2683, 0
        %v2961 = vsel %vm620, %v2688, 0
        %2963 = vmatprep.subr.mxu0 0.0
        %2964 = vmatpush1.msra.mxu0 %v2953
        %2965 = vmatprep.subr.mxu0 0.0
        %2966 = vmatpush1.msra.mxu0 0.0
        %2967 = vmatprep.subr.mxu0 0.0
        %2968 = vmatpush1.msra.mxu0 0.0
        %2969 = vmatprep.subr.mxu0 0.0
        %2970 = vmatpush1.msra.mxu0 0.0
        %2971 = vmatprep.subr.mxu0 0.0
        %2972 = vmatpush1.msra.mxu0 0.0
        %2973 = vmatprep.subr.mxu0 0.0
        %2974 = vmatpush1.msra.mxu0 0.0
        %2975 = vmatprep.subr.mxu0 0.0
        %2976 = vmatpush1.msra.mxu0 0.0
        %2977 = vmatprep.subr.mxu0 0.0
        %2978 = vmatpush1.msra.mxu0 0.0
        %2979 = vmatprep.subr.mxu0 0.0
        %2980 = vmatpush1.msra.mxu0 0.0
        %2981 = vmatprep.subr.mxu0 0.0
        %2982 = vmatpush1.msra.mxu0 0.0
        %2983 = vmatprep.subr.mxu0 0.0
        %2984 = vmatpush1.msra.mxu0 0.0
        %2985 = vmatprep.subr.mxu0 0.0
        %2986 = vmatpush1.msra.mxu0 0.0
        %2987 = vmatprep.subr.mxu0 0.0
        %2988 = vmatpush1.msra.mxu0 0.0
        %2989 = vmatprep.subr.mxu0 0.0
        %2990 = vmatpush1.msra.mxu0 0.0
        %2991 = vmatprep.subr.mxu0 0.0
        %2992 = vmatpush1.msra.mxu0 0.0
        %2993 = vmatprep.subr.mxu0 0.0
        %2994 = vmatpush1.msra.mxu0 0.0
        %2995 = vmatprep.subr.mxu0 0.0
        %2996 = vmatpush1.msra.mxu0 0.0
        %2997 = vmatprep.subr.mxu0 0.0
        %2998 = vmatpush1.msra.mxu0 0.0
        %2999 = vmatprep.subr.mxu0 0.0
        %3000 = vmatpush1.msra.mxu0 0.0
        %3001 = vmatprep.subr.mxu0 0.0
        %3002 = vmatpush1.msra.mxu0 0.0
        %3003 = vmatprep.subr.mxu0 0.0
        %3004 = vmatpush1.msra.mxu0 0.0
        %3005 = vmatprep.subr.mxu0 0.0
        %3006 = vmatpush1.msra.mxu0 0.0
        %3007 = vmatprep.subr.mxu0 0.0
        %3008 = vmatpush1.msra.mxu0 0.0
        %3009 = vmatprep.subr.mxu0 0.0
        %3010 = vmatpush1.msra.mxu0 0.0
        %3011 = vmatprep.subr.mxu0 0.0
        %3012 = vmatpush1.msra.mxu0 0.0
        %3013 = vmatprep.subr.mxu0 0.0
        %3014 = vmatpush1.msra.mxu0 0.0
        %3015 = vmatprep.subr.mxu0 0.0
        %3016 = vmatpush1.msra.mxu0 0.0
        %3017 = vmatprep.subr.mxu0 0.0
        %3018 = vmatpush1.msra.mxu0 0.0
        %3019 = vmatprep.subr.mxu0 0.0
        %3020 = vmatpush1.msra.mxu0 0.0
        %3021 = vmatprep.subr.mxu0 0.0
        %3022 = vmatpush1.msra.mxu0 0.0
        %3023 = vmatprep.subr.mxu0 0.0
        %3024 = vmatpush1.msra.mxu0 0.0
        %3025 = vmatprep.subr.mxu0 0.0
        %3026 = vmatpush1.msra.mxu0 0.0
        %3027 = vmatprep.mubr.f32.mxu0 0.0
        %3028 = vmatmul.mubr.f32.gmra.mrb[0].mxu0 %v2958
        %v3029 = vpop.f32.mrb[0].mxu0
        %v3030 = vadd.f32 0.0, %v3029
        %v3031 = vpop.f32.mrb[0].mxu0
        %3032 = vmatprep.mubr.f32.mxu0 0.0
        %3033 = vmatmul.mubr.f32.gmra.mrb[0].mxu0 %v2961
        %v3034 = vpop.f32.mrb[0].mxu0
        %v3035 = vadd.f32 0.0, %v3034
        %v3036 = vpop.f32.mrb[0].mxu0
        %3037 = vdwg.mxu0
        %v3039 = vsel %vm620, %v2770, 0
        %v3042 = vsel %vm620, %v2775, 0
        %3044 = vmatprep.subr.mxu0 0.0
        %3045 = vmatpush1.msra.mxu0 %v2954
        %3046 = vmatprep.subr.mxu0 0.0
        %3047 = vmatpush1.msra.mxu0 0.0
        %3048 = vmatprep.subr.mxu0 0.0
        %3049 = vmatpush1.msra.mxu0 0.0
        %3050 = vmatprep.subr.mxu0 0.0
        %3051 = vmatpush1.msra.mxu0 0.0
        %3052 = vmatprep.subr.mxu0 0.0
        %3053 = vmatpush1.msra.mxu0 0.0
        %3054 = vmatprep.subr.mxu0 0.0
        %3055 = vmatpush1.msra.mxu0 0.0
        %3056 = vmatprep.subr.mxu0 0.0
        %3057 = vmatpush1.msra.mxu0 0.0
        %3058 = vmatprep.subr.mxu0 0.0
        %3059 = vmatpush1.msra.mxu0 0.0
        %3060 = vmatprep.subr.mxu0 0.0
        %3061 = vmatpush1.msra.mxu0 0.0
        %3062 = vmatprep.subr.mxu0 0.0
        %3063 = vmatpush1.msra.mxu0 0.0
        %3064 = vmatprep.subr.mxu0 0.0
        %3065 = vmatpush1.msra.mxu0 0.0
        %3066 = vmatprep.subr.mxu0 0.0
        %3067 = vmatpush1.msra.mxu0 0.0
        %3068 = vmatprep.subr.mxu0 0.0
        %3069 = vmatpush1.msra.mxu0 0.0
        %3070 = vmatprep.subr.mxu0 0.0
        %3071 = vmatpush1.msra.mxu0 0.0
        %3072 = vmatprep.subr.mxu0 0.0
        %3073 = vmatpush1.msra.mxu0 0.0
        %3074 = vmatprep.subr.mxu0 0.0
        %3075 = vmatpush1.msra.mxu0 0.0
        %3076 = vmatprep.subr.mxu0 0.0
        %3077 = vmatpush1.msra.mxu0 0.0
        %3078 = vmatprep.subr.mxu0 0.0
        %3079 = vmatpush1.msra.mxu0 0.0
        %3080 = vmatprep.subr.mxu0 0.0
        %3081 = vmatpush1.msra.mxu0 0.0
        %3082 = vmatprep.subr.mxu0 0.0
        %3083 = vmatpush1.msra.mxu0 0.0
        %3084 = vmatprep.subr.mxu0 0.0
        %3085 = vmatpush1.msra.mxu0 0.0
        %3086 = vmatprep.subr.mxu0 0.0
        %3087 = vmatpush1.msra.mxu0 0.0
        %3088 = vmatprep.subr.mxu0 0.0
        %3089 = vmatpush1.msra.mxu0 0.0
        %3090 = vmatprep.subr.mxu0 0.0
        %3091 = vmatpush1.msra.mxu0 0.0
        %3092 = vmatprep.subr.mxu0 0.0
        %3093 = vmatpush1.msra.mxu0 0.0
        %3094 = vmatprep.subr.mxu0 0.0
        %3095 = vmatpush1.msra.mxu0 0.0
        %3096 = vmatprep.subr.mxu0 0.0
        %3097 = vmatpush1.msra.mxu0 0.0
        %3098 = vmatprep.subr.mxu0 0.0
        %3099 = vmatpush1.msra.mxu0 0.0
        %3100 = vmatprep.subr.mxu0 0.0
        %3101 = vmatpush1.msra.mxu0 0.0
        %3102 = vmatprep.subr.mxu0 0.0
        %3103 = vmatpush1.msra.mxu0 0.0
        %3104 = vmatprep.subr.mxu0 0.0
        %3105 = vmatpush1.msra.mxu0 0.0
        %3106 = vmatprep.subr.mxu0 0.0
        %3107 = vmatpush1.msra.mxu0 0.0
        %3108 = vmatprep.mubr.f32.mxu0 0.0
        %3109 = vmatmul.mubr.f32.gmra.mrb[0].mxu0 %v3039
        %v3110 = vpop.f32.mrb[0].mxu0
        %v3111 = vadd.f32 0.0, %v3110
        %v3112 = vpop.f32.mrb[0].mxu0
        %3113 = vmatprep.mubr.f32.mxu0 0.0
        %3114 = vmatmul.mubr.f32.gmra.mrb[0].mxu0 %v3042
        %v3115 = vpop.f32.mrb[0].mxu0
        %v3116 = vadd.f32 0.0, %v3115
        %v3117 = vpop.f32.mrb[0].mxu0
        %3118 = vdwg.mxu0
        %v3120 = vsel %vm620, %v2857, 0
        %v3123 = vsel %vm620, %v2862, 0
        %3125 = vmatprep.subr.mxu0 0.0
        %3126 = vmatpush1.msra.mxu0 %v2955
        %3127 = vmatprep.subr.mxu0 0.0
        %3128 = vmatpush1.msra.mxu0 0.0
        %3129 = vmatprep.subr.mxu0 0.0
        %3130 = vmatpush1.msra.mxu0 0.0
        %3131 = vmatprep.subr.mxu0 0.0
        %3132 = vmatpush1.msra.mxu0 0.0
        %3133 = vmatprep.subr.mxu0 0.0
        %3134 = vmatpush1.msra.mxu0 0.0
        %3135 = vmatprep.subr.mxu0 0.0
        %3136 = vmatpush1.msra.mxu0 0.0
        %3137 = vmatprep.subr.mxu0 0.0
        %3138 = vmatpush1.msra.mxu0 0.0
        %3139 = vmatprep.subr.mxu0 0.0
        %3140 = vmatpush1.msra.mxu0 0.0
        %3141 = vmatprep.subr.mxu0 0.0
        %3142 = vmatpush1.msra.mxu0 0.0
        %3143 = vmatprep.subr.mxu0 0.0
        %3144 = vmatpush1.msra.mxu0 0.0
        %3145 = vmatprep.subr.mxu0 0.0
        %3146 = vmatpush1.msra.mxu0 0.0
        %3147 = vmatprep.subr.mxu0 0.0
        %3148 = vmatpush1.msra.mxu0 0.0
        %3149 = vmatprep.subr.mxu0 0.0
        %3150 = vmatpush1.msra.mxu0 0.0
        %3151 = vmatprep.subr.mxu0 0.0
        %3152 = vmatpush1.msra.mxu0 0.0
        %3153 = vmatprep.subr.mxu0 0.0
        %3154 = vmatpush1.msra.mxu0 0.0
        %3155 = vmatprep.subr.mxu0 0.0
        %3156 = vmatpush1.msra.mxu0 0.0
        %3157 = vmatprep.subr.mxu0 0.0
        %3158 = vmatpush1.msra.mxu0 0.0
        %3159 = vmatprep.subr.mxu0 0.0
        %3160 = vmatpush1.msra.mxu0 0.0
        %3161 = vmatprep.subr.mxu0 0.0
        %3162 = vmatpush1.msra.mxu0 0.0
        %3163 = vmatprep.subr.mxu0 0.0
        %3164 = vmatpush1.msra.mxu0 0.0
        %3165 = vmatprep.subr.mxu0 0.0
        %3166 = vmatpush1.msra.mxu0 0.0
        %3167 = vmatprep.subr.mxu0 0.0
        %3168 = vmatpush1.msra.mxu0 0.0
        %3169 = vmatprep.subr.mxu0 0.0
        %3170 = vmatpush1.msra.mxu0 0.0
        %3171 = vmatprep.subr.mxu0 0.0
        %3172 = vmatpush1.msra.mxu0 0.0
        %3173 = vmatprep.subr.mxu0 0.0
        %3174 = vmatpush1.msra.mxu0 0.0
        %3175 = vmatprep.subr.mxu0 0.0
        %3176 = vmatpush1.msra.mxu0 0.0
        %3177 = vmatprep.subr.mxu0 0.0
        %3178 = vmatpush1.msra.mxu0 0.0
        %3179 = vmatprep.subr.mxu0 0.0
        %3180 = vmatpush1.msra.mxu0 0.0
        %3181 = vmatprep.subr.mxu0 0.0
        %3182 = vmatpush1.msra.mxu0 0.0
        %3183 = vmatprep.subr.mxu0 0.0
        %3184 = vmatpush1.msra.mxu0 0.0
        %3185 = vmatprep.subr.mxu0 0.0
        %3186 = vmatpush1.msra.mxu0 0.0
        %3187 = vmatprep.subr.mxu0 0.0
        %3188 = vmatpush1.msra.mxu0 0.0
        %3189 = vmatprep.mubr.f32.mxu0 0.0
        %3190 = vmatmul.mubr.f32.gmra.mrb[0].mxu0 %v3120
        %v3191 = vpop.f32.mrb[0].mxu0
        %v3192 = vadd.f32 0.0, %v3191
        %v3193 = vpop.f32.mrb[0].mxu0
        %3194 = vmatprep.mubr.f32.mxu0 0.0
        %3195 = vmatmul.mubr.f32.gmra.mrb[0].mxu0 %v3123
        %v3196 = vpop.f32.mrb[0].mxu0
        %v3197 = vadd.f32 0.0, %v3196
        %v3198 = vpop.f32.mrb[0].mxu0
        %3199 = vdwg.mxu0
        %v3201 = vsel %vm620, %v2944, 0
        %v3204 = vsel %vm620, %v2949, 0
        %3206 = vmatprep.subr.mxu0 0.0
        %3207 = vmatpush1.msra.mxu0 %v2956
        %3208 = vmatprep.subr.mxu0 0.0
        %3209 = vmatpush1.msra.mxu0 0.0
        %3210 = vmatprep.subr.mxu0 0.0
        %3211 = vmatpush1.msra.mxu0 0.0
        %3212 = vmatprep.subr.mxu0 0.0
        %3213 = vmatpush1.msra.mxu0 0.0
        %3214 = vmatprep.subr.mxu0 0.0
        %3215 = vmatpush1.msra.mxu0 0.0
        %3216 = vmatprep.subr.mxu0 0.0
        %3217 = vmatpush1.msra.mxu0 0.0
        %3218 = vmatprep.subr.mxu0 0.0
        %3219 = vmatpush1.msra.mxu0 0.0
        %3220 = vmatprep.subr.mxu0 0.0
        %3221 = vmatpush1.msra.mxu0 0.0
        %3222 = vmatprep.subr.mxu0 0.0
        %3223 = vmatpush1.msra.mxu0 0.0
        %3224 = vmatprep.subr.mxu0 0.0
        %3225 = vmatpush1.msra.mxu0 0.0
        %3226 = vmatprep.subr.mxu0 0.0
        %3227 = vmatpush1.msra.mxu0 0.0
        %3228 = vmatprep.subr.mxu0 0.0
        %3229 = vmatpush1.msra.mxu0 0.0
        %3230 = vmatprep.subr.mxu0 0.0
        %3231 = vmatpush1.msra.mxu0 0.0
        %3232 = vmatprep.subr.mxu0 0.0
        %3233 = vmatpush1.msra.mxu0 0.0
        %3234 = vmatprep.subr.mxu0 0.0
        %3235 = vmatpush1.msra.mxu0 0.0
        %3236 = vmatprep.subr.mxu0 0.0
        %3237 = vmatpush1.msra.mxu0 0.0
        %3238 = vmatprep.subr.mxu0 0.0
        %3239 = vmatpush1.msra.mxu0 0.0
        %3240 = vmatprep.subr.mxu0 0.0
        %3241 = vmatpush1.msra.mxu0 0.0
        %3242 = vmatprep.subr.mxu0 0.0
        %3243 = vmatpush1.msra.mxu0 0.0
        %3244 = vmatprep.subr.mxu0 0.0
        %3245 = vmatpush1.msra.mxu0 0.0
        %3246 = vmatprep.subr.mxu0 0.0
        %3247 = vmatpush1.msra.mxu0 0.0
        %3248 = vmatprep.subr.mxu0 0.0
        %3249 = vmatpush1.msra.mxu0 0.0
        %3250 = vmatprep.subr.mxu0 0.0
        %3251 = vmatpush1.msra.mxu0 0.0
        %3252 = vmatprep.subr.mxu0 0.0
        %3253 = vmatpush1.msra.mxu0 0.0
        %3254 = vmatprep.subr.mxu0 0.0
        %3255 = vmatpush1.msra.mxu0 0.0
        %3256 = vmatprep.subr.mxu0 0.0
        %3257 = vmatpush1.msra.mxu0 0.0
        %3258 = vmatprep.subr.mxu0 0.0
        %3259 = vmatpush1.msra.mxu0 0.0
        %3260 = vmatprep.subr.mxu0 0.0
        %3261 = vmatpush1.msra.mxu0 0.0
        %3262 = vmatprep.subr.mxu0 0.0
        %3263 = vmatpush1.msra.mxu0 0.0
        %3264 = vmatprep.subr.mxu0 0.0
        %3265 = vmatpush1.msra.mxu0 0.0
        %3266 = vmatprep.subr.mxu0 0.0
        %3267 = vmatpush1.msra.mxu0 0.0
        %3268 = vmatprep.subr.mxu0 0.0
        %3269 = vmatpush1.msra.mxu0 0.0
        %3270 = vmatprep.mubr.f32.mxu0 0.0
        %3271 = vmatmul.mubr.f32.gmra.mrb[0].mxu0 %v3201
        %v3272 = vpop.f32.mrb[0].mxu0
        %v3273 = vadd.f32 0.0, %v3272
        %v3274 = vpop.f32.mrb[0].mxu0
        %3275 = vmatprep.mubr.f32.mxu0 0.0
        %3276 = vmatmul.mubr.f32.gmra.mrb[0].mxu0 %v3204
        %v3277 = vpop.f32.mrb[0].mxu0
        %v3278 = vadd.f32 0.0, %v3277
        %v3279 = vpop.f32.mrb[0].mxu0
        %3280 = vdwg.mxu0
        %v3281 = vsel %vm470, %v3030, 0.0
        %v3282 = vsel %vm470, %v3111, 0.0
        %v3283 = vadd.f32 %v3281, %v3282
        %v3284 = vsel %vm470, %v3192, 0.0
        %v3285 = vadd.f32 %v3283, %v3284
        %v3286 = vsel %vm470, %v3273, 0.0
        %v3287 = vadd.f32 %v3285, %v3286
        %v3288 = vsel %vm470, %v3035, 0.0
        %v3289 = vsel %vm470, %v3116, 0.0
        %v3290 = vadd.f32 %v3288, %v3289
        %v3291 = vsel %vm470, %v3197, 0.0
        %v3292 = vadd.f32 %v3290, %v3291
        %v3293 = vsel %vm470, %v3278, 0.0
        %v3294 = vadd.f32 %v3292, %v3293
        %v3295 = vadd.f32 %v2010, %v3287
        %v3296 = vadd.f32 %v2011, %v3294
        %s3297 = scalar_lea.vmem %s5, 1
        %v3298 = vld [vmem:[%s3297] sm:$0x1]
        %v3300 = vlaneseq
        %v3301 = vshrl.u32 %v3300, 7
        %v3302 = vsub.s32 0, %v3301
        %v3303 = vrot.slane %v3298, %v3302
        %v3305 = vadd.f32 %v3295, %v3303
        %v3306 = vadd.f32 %v3296, %v3303
        %v3307 = vsel %vm470, %v3305, 0.0
        %3308 = vadd.xlane.f32.xlu0 %v3307
        %v3309 = vpop.xlane.xlu0 %3308
        %v3310 = vsel %vm470, %v3306, 0.0
        %3311 = vadd.xlane.f32.xlu0 %v3310
        %v3312 = vpop.xlane.xlu0 %3311
        %v3313 = vmul.f32 %v3309, %v477
        %v3314 = vmul.f32 %v3312, %v477
        %v3315 = vsub.f32 %v3305, %v3313
        %v3316 = vsub.f32 %v3306, %v3314
        %v3317 = vmul.f32 %v3315, %v3315
        %v3318 = vmul.f32 %v3316, %v3316
        %v3319 = vsel %vm470, %v3317, 0.0
        %3320 = vadd.xlane.f32.xlu0 %v3319
        %v3321 = vpop.xlane.xlu0 %3320
        %v3322 = vsel %vm470, %v3318, 0.0
        %3323 = vadd.xlane.f32.xlu0 %v3322
        %v3324 = vpop.xlane.xlu0 %3323
        %v3325 = vmul.f32 %v3321, %v477
        %v3326 = vmul.f32 %v3324, %v477
        %v3327 = vadd.f32 %v3325, 1e-05
        %v3328 = vadd.f32 %v3326, 1e-05
        %v3329 = vrsqrt.pop %v3327
        %v3330 = vrsqrt.pop %v3328
        %v3331 = vmul.f32 %v3315, %v3329
        %v3332 = vmul.f32 %v3316, %v3330
        %v3333 = vlaneseq
        %v3334 = vshrl.u32 %v3333, 7
        %v3335 = vsub.s32 2, %v3334
        %v3336 = vrot.slane %v2013, %v3335
        %v3337 = vmul.f32 %v3331, %v3336
        %v3338 = vmul.f32 %v3332, %v3336
        %v3339 = vlaneseq
        %v3340 = vshrl.u32 %v3339, 7
        %v3341 = vsub.s32 3, %v3340
        %v3342 = vrot.slane %v2013, %v3341
        %v3343 = vadd.f32 %v3337, %v3342
        %v3344 = vadd.f32 %v3338, %v3342
        %s3345 = scalar_lea.vmem %s6, 32
        %v3346 = vld [vmem:[%s3345] sm:$0xff]
        %v3347 = vld [vmem:[%s3345 + $0x8] sm:$0xff]
        %v3348 = vld [vmem:[%s3345 + $0x10] sm:$0xff]
        %v3349 = vld [vmem:[%s3345 + $0x18] sm:$0xff]
        %s3350 = scalar_lea.vmem %s7, 1
        %v3351 = vld [vmem:[%s3350] sm:$0x1]
        %v3353 = vlaneseq
        %v3354 = vshrl.u32 %v3353, 7
        %v3355 = vsub.s32 0, %v3354
        %v3356 = vrot.slane %v3351, %v3355
        %v3359 = vsel %vm470, %v3343, 0
        %v3362 = vsel %vm470, %v3344, 0
        %3364 = vmatprep.subr.mxu0 0.0
        %3365 = vmatpush1.msra.mxu0 %v3346
        %3366 = vmatprep.subr.mxu0 0.0
        %3367 = vmatpush1.msra.mxu0 %v3347
        %3368 = vmatprep.subr.mxu0 0.0
        %3369 = vmatpush1.msra.mxu0 %v3348
        %3370 = vmatprep.subr.mxu0 0.0
        %3371 = vmatpush1.msra.mxu0 %v3349
        %3372 = vmatprep.subr.mxu0 0.0
        %3373 = vmatpush1.msra.mxu0 0.0
        %3374 = vmatprep.subr.mxu0 0.0
        %3375 = vmatpush1.msra.mxu0 0.0
        %3376 = vmatprep.subr.mxu0 0.0
        %3377 = vmatpush1.msra.mxu0 0.0
        %3378 = vmatprep.subr.mxu0 0.0
        %3379 = vmatpush1.msra.mxu0 0.0
        %3380 = vmatprep.subr.mxu0 0.0
        %3381 = vmatpush1.msra.mxu0 0.0
        %3382 = vmatprep.subr.mxu0 0.0
        %3383 = vmatpush1.msra.mxu0 0.0
        %3384 = vmatprep.subr.mxu0 0.0
        %3385 = vmatpush1.msra.mxu0 0.0
        %3386 = vmatprep.subr.mxu0 0.0
        %3387 = vmatpush1.msra.mxu0 0.0
        %3388 = vmatprep.subr.mxu0 0.0
        %3389 = vmatpush1.msra.mxu0 0.0
        %3390 = vmatprep.subr.mxu0 0.0
        %3391 = vmatpush1.msra.mxu0 0.0
        %3392 = vmatprep.subr.mxu0 0.0
        %3393 = vmatpush1.msra.mxu0 0.0
        %3394 = vmatprep.subr.mxu0 0.0
        %3395 = vmatpush1.msra.mxu0 0.0
        %3396 = vmatprep.subr.mxu0 0.0
        %3397 = vmatpush1.msra.mxu0 0.0
        %3398 = vmatprep.subr.mxu0 0.0
        %3399 = vmatpush1.msra.mxu0 0.0
        %3400 = vmatprep.subr.mxu0 0.0
        %3401 = vmatpush1.msra.mxu0 0.0
        %3402 = vmatprep.subr.mxu0 0.0
        %3403 = vmatpush1.msra.mxu0 0.0
        %3404 = vmatprep.subr.mxu0 0.0
        %3405 = vmatpush1.msra.mxu0 0.0
        %3406 = vmatprep.subr.mxu0 0.0
        %3407 = vmatpush1.msra.mxu0 0.0
        %3408 = vmatprep.subr.mxu0 0.0
        %3409 = vmatpush1.msra.mxu0 0.0
        %3410 = vmatprep.subr.mxu0 0.0
        %3411 = vmatpush1.msra.mxu0 0.0
        %3412 = vmatprep.subr.mxu0 0.0
        %3413 = vmatpush1.msra.mxu0 0.0
        %3414 = vmatprep.subr.mxu0 0.0
        %3415 = vmatpush1.msra.mxu0 0.0
        %3416 = vmatprep.subr.mxu0 0.0
        %3417 = vmatpush1.msra.mxu0 0.0
        %3418 = vmatprep.subr.mxu0 0.0
        %3419 = vmatpush1.msra.mxu0 0.0
        %3420 = vmatprep.subr.mxu0 0.0
        %3421 = vmatpush1.msra.mxu0 0.0
        %3422 = vmatprep.subr.mxu0 0.0
        %3423 = vmatpush1.msra.mxu0 0.0
        %3424 = vmatprep.subr.mxu0 0.0
        %3425 = vmatpush1.msra.mxu0 0.0
        %3426 = vmatprep.subr.mxu0 0.0
        %3427 = vmatpush1.msra.mxu0 0.0
        %3428 = vmatprep.mubr.f32.mxu0 0.0
        %3429 = vmatmul.mubr.f32.gmra.mrb[0].mxu0 %v3359
        %v3430 = vpop.f32.mrb[0].mxu0
        %v3431 = vadd.f32 %v3356, %v3430
        %v3432 = vpop.f32.mrb[0].mxu0
        %3433 = vmatprep.mubr.f32.mxu0 0.0
        %3434 = vmatmul.mubr.f32.gmra.mrb[0].mxu0 %v3362
        %v3435 = vpop.f32.mrb[0].mxu0
        %v3436 = vadd.f32 %v3356, %v3435
        %v3437 = vpop.f32.mrb[0].mxu0
        %3438 = vdwg.mxu0
        %v3439 = vmul.f32 %v3431, 0.5
        %v3440 = vmul.f32 %v3436, 0.5
        %v3441 = vmul.f32 %v3431, 0.044715
        %v3442 = vmul.f32 %v3436, 0.044715
        %v3443 = vmul.f32 %v3441, %v3431
        %v3444 = vmul.f32 %v3442, %v3436
        %v3445 = vmul.f32 %v3443, %v3431
        %v3446 = vmul.f32 %v3444, %v3436
        %v3447 = vadd.f32 %v3431, %v3445
        %v3448 = vadd.f32 %v3436, %v3446
        %v3449 = vmul.f32 %v3447, 0.7978846
        %v3450 = vmul.f32 %v3448, 0.7978846
        %v3451 = vtanh.pop %v3449
        %v3452 = vtanh.pop %v3450
        %v3453 = vadd.f32 %v3451, 1.0
        %v3454 = vadd.f32 %v3452, 1.0
        %v3455 = vmul.f32 %v3439, %v3453
        %v3456 = vmul.f32 %v3440, %v3454
        %s3457 = scalar_lea.vmem %s8, 64
        %v3458 = vld [vmem:[%s3457] sm:$0xff]
        %v3459 = vld [vmem:[%s3457 + $0x8] sm:$0xff]
        %v3460 = vld [vmem:[%s3457 + $0x10] sm:$0xff]
        %v3461 = vld [vmem:[%s3457 + $0x18] sm:$0xff]
        %v3462 = vld [vmem:[%s3457 + $0x20] sm:$0xff]
        %v3463 = vld [vmem:[%s3457 + $0x28] sm:$0xff]
        %v3464 = vld [vmem:[%s3457 + $0x30] sm:$0xff]
        %v3465 = vld [vmem:[%s3457 + $0x38] sm:$0xff]
        %v3467 = vsel %vm1919, %v3455, 0
        %v3470 = vsel %vm1919, %v3456, 0
        %3472 = vmatprep.subr.mxu0 0.0
        %3473 = vmatpush1.msra.mxu0 %v3458
        %3474 = vmatprep.subr.mxu0 0.0
        %3475 = vmatpush1.msra.mxu0 %v3459
        %3476 = vmatprep.subr.mxu0 0.0
        %3477 = vmatpush1.msra.mxu0 %v3460
        %3478 = vmatprep.subr.mxu0 0.0
        %3479 = vmatpush1.msra.mxu0 %v3461
        %3480 = vmatprep.subr.mxu0 0.0
        %3481 = vmatpush1.msra.mxu0 %v3462
        %3482 = vmatprep.subr.mxu0 0.0
        %3483 = vmatpush1.msra.mxu0 %v3463
        %3484 = vmatprep.subr.mxu0 0.0
        %3485 = vmatpush1.msra.mxu0 %v3464
        %3486 = vmatprep.subr.mxu0 0.0
        %3487 = vmatpush1.msra.mxu0 %v3465
        %3488 = vmatprep.subr.mxu0 0.0
        %3489 = vmatpush1.msra.mxu0 0.0
        %3490 = vmatprep.subr.mxu0 0.0
        %3491 = vmatpush1.msra.mxu0 0.0
        %3492 = vmatprep.subr.mxu0 0.0
        %3493 = vmatpush1.msra.mxu0 0.0
        %3494 = vmatprep.subr.mxu0 0.0
        %3495 = vmatpush1.msra.mxu0 0.0
        %3496 = vmatprep.subr.mxu0 0.0
        %3497 = vmatpush1.msra.mxu0 0.0
        %3498 = vmatprep.subr.mxu0 0.0
        %3499 = vmatpush1.msra.mxu0 0.0
        %3500 = vmatprep.subr.mxu0 0.0
        %3501 = vmatpush1.msra.mxu0 0.0
        %3502 = vmatprep.subr.mxu0 0.0
        %3503 = vmatpush1.msra.mxu0 0.0
        %3504 = vmatprep.subr.mxu0 0.0
        %3505 = vmatpush1.msra.mxu0 0.0
        %3506 = vmatprep.subr.mxu0 0.0
        %3507 = vmatpush1.msra.mxu0 0.0
        %3508 = vmatprep.subr.mxu0 0.0
        %3509 = vmatpush1.msra.mxu0 0.0
        %3510 = vmatprep.subr.mxu0 0.0
        %3511 = vmatpush1.msra.mxu0 0.0
        %3512 = vmatprep.subr.mxu0 0.0
        %3513 = vmatpush1.msra.mxu0 0.0
        %3514 = vmatprep.subr.mxu0 0.0
        %3515 = vmatpush1.msra.mxu0 0.0
        %3516 = vmatprep.subr.mxu0 0.0
        %3517 = vmatpush1.msra.mxu0 0.0
        %3518 = vmatprep.subr.mxu0 0.0
        %3519 = vmatpush1.msra.mxu0 0.0
        %3520 = vmatprep.subr.mxu0 0.0
        %3521 = vmatpush1.msra.mxu0 0.0
        %3522 = vmatprep.subr.mxu0 0.0
        %3523 = vmatpush1.msra.mxu0 0.0
        %3524 = vmatprep.subr.mxu0 0.0
        %3525 = vmatpush1.msra.mxu0 0.0
        %3526 = vmatprep.subr.mxu0 0.0
        %3527 = vmatpush1.msra.mxu0 0.0
        %3528 = vmatprep.subr.mxu0 0.0
        %3529 = vmatpush1.msra.mxu0 0.0
        %3530 = vmatprep.subr.mxu0 0.0
        %3531 = vmatpush1.msra.mxu0 0.0
        %3532 = vmatprep.subr.mxu0 0.0
        %3533 = vmatpush1.msra.mxu0 0.0
        %3534 = vmatprep.subr.mxu0 0.0
        %3535 = vmatpush1.msra.mxu0 0.0
        %3536 = vmatprep.mubr.f32.mxu0 0.0
        %3537 = vmatmul.mubr.f32.gmra.mrb[0].mxu0 %v3467
        %v3538 = vpop.f32.mrb[0].mxu0
        %v3539 = vadd.f32 0.0, %v3538
        %v3540 = vpop.f32.mrb[0].mxu0
        %3541 = vmatprep.mubr.f32.mxu0 0.0
        %3542 = vmatmul.mubr.f32.gmra.mrb[0].mxu0 %v3470
        %v3543 = vpop.f32.mrb[0].mxu0
        %v3544 = vadd.f32 0.0, %v3543
        %v3545 = vpop.f32.mrb[0].mxu0
        %3546 = vdwg.mxu0
        %v3547 = vadd.f32 %v3305, %v3539
        %v3548 = vadd.f32 %v3306, %v3544
        %s3549 = scalar_lea.vmem %s9, 1
        %v3550 = vld [vmem:[%s3549] sm:$0x1]
        %v3552 = vlaneseq
        %v3553 = vshrl.u32 %v3552, 7
        %v3554 = vsub.s32 0, %v3553
        %v3555 = vrot.slane %v3550, %v3554
        %v3557 = vadd.f32 %v3547, %v3555
        %v3558 = vadd.f32 %v3548, %v3555
        %v3559 = vld [vmem:[%s10] sm:$0x1]
        %v3561 = vlaneseq
        %v3562 = vshrl.u32 %v3561, 7
        %v3563 = vsub.s32 0, %v3562
        %v3564 = vrot.slane %v3559, %v3563
        %v3566 = vmul.f32 %v3557, %v3564
        %v3567 = vmul.f32 %v3558, %v3564
        %v3568 = vsel %vm470, %v3566, 0.0
        %3569 = vadd.xlane.f32.xlu0 %v3568
        %v3570 = vpop.xlane.xlu0 %3569
        %v3571 = vsel %vm470, %v3567, 0.0
        %3572 = vadd.xlane.f32.xlu0 %v3571
        %v3573 = vpop.xlane.xlu0 %3572
        %v3574 = vld [vmem:[#allocation2] sm:$0x1]
        %v3576 = vlaneseq
        %v3577 = vshrl.u32 %v3576, 7
        %v3578 = vsub.s32 0, %v3577
        %v3579 = vrot.slane %v3574, %v3578
        %v3581 = vadd.f32 %v3570, %v3579
        %v3582 = vadd.f32 %v3573, %v3579
        %vm3583 = vcmask 7168
        %v3584 = vsel %vm3583, %v3581, -inf
        %v3585 = vsel %vm3583, %v3582, -inf
        %v3586 = vmax.f32 %v3584, %v3585
        %v3587 = vrot.slane %v3586, 4
        %v3588 = vmax.f32 %v3586, %v3587
        %v3589 = vrot.slane %v3588, 2
        %v3590 = vmax.f32 %v3588, %v3589
        %v3591 = vrot.slane %v3590, 1
        %v3592 = vmax.f32 %v3590, %v3591
        %v3593 = vsub.f32 %v3581, %v3592
        %v3594 = vsub.f32 %v3582, %v3592
        %v3595 = vmul.f32 %v3593, 1.442695
        %v3596 = vpow.pop %v3595
        %v3597 = vmul.f32 %v3594, 1.442695
        %v3598 = vpow.pop %v3597
        %v3599 = vsel %vm3583, %v3596, 0.0
        %v3600 = vsel %vm3583, %v3598, 0.0
        %v3601 = vadd.f32 %v3599, %v3600
        %v3602 = vrot.slane %v3601, 4
        %v3603 = vadd.f32 %v3601, %v3602
        %v3604 = vrot.slane %v3603, 2
        %v3605 = vadd.f32 %v3603, %v3604
        %v3606 = vrot.slane %v3605, 1
        %v3607 = vadd.f32 %v3605, %v3606
        %v3608 = vrcp.pop %v3607
        %v3609 = vmul.f32 %v3596, %v3608
        %v3610 = vmul.f32 %v3598, %v3608
        %3612 = vset.pattern.permute.xlu0 0
        %3613 = vperm.xlu0 %3612, %v3609
        %v3614 = vpop.permute.xlu0 %3613
        %3617 = vset.pattern.permute.xlu0 0
        %3618 = vperm.xlu0 %3617, %v3610
        %v3619 = vpop.permute.xlu0 %3618
        %v3621 = vmul.f32 %v3614, %v3557
        %v3622 = vmul.f32 %v3619, %v3558
        %v3623 = vsel %vm470, %v3621, 0.0
        %v3624 = vsel %vm470, %v3622, 0.0
        %v3625 = vadd.f32 %v3623, %v3624
        %v3626 = vrot.slane %v3625, 4
        %v3627 = vadd.f32 %v3625, %v3626
        %v3628 = vrot.slane %v3627, 2
        %v3629 = vadd.f32 %v3627, %v3628
        %v3630 = vrot.slane %v3629, 1
        %v3631 = vadd.f32 %v3629, %v3630
        %v3632 = vld [vmem:[%s12] sm:$0xff]
        %v3633 = vld [vmem:[%s12 + $0x8] sm:$0xff]
        %v3634 = vld [vmem:[%s12 + $0x10] sm:$0xff]
        %v3635 = vld [vmem:[%s12 + $0x18] sm:$0xff]
        %v3636 = vld [vmem:[%s13] sm:$0x1]
        %v3638 = vsel %vm470, %v3631, 0
        %3640 = vmatprep.subr.mxu0 0.0
        %3641 = vmatpush1.msra.mxu0 %v3632
        %3642 = vmatprep.subr.mxu0 0.0
        %3643 = vmatpush1.msra.mxu0 %v3633
        %3644 = vmatprep.subr.mxu0 0.0
        %3645 = vmatpush1.msra.mxu0 %v3634
        %3646 = vmatprep.subr.mxu0 0.0
        %3647 = vmatpush1.msra.mxu0 %v3635
        %3648 = vmatprep.subr.mxu0 0.0
        %3649 = vmatpush1.msra.mxu0 0.0
        %3650 = vmatprep.subr.mxu0 0.0
        %3651 = vmatpush1.msra.mxu0 0.0
        %3652 = vmatprep.subr.mxu0 0.0
        %3653 = vmatpush1.msra.mxu0 0.0
        %3654 = vmatprep.subr.mxu0 0.0
        %3655 = vmatpush1.msra.mxu0 0.0
        %3656 = vmatprep.subr.mxu0 0.0
        %3657 = vmatpush1.msra.mxu0 0.0
        %3658 = vmatprep.subr.mxu0 0.0
        %3659 = vmatpush1.msra.mxu0 0.0
        %3660 = vmatprep.subr.mxu0 0.0
        %3661 = vmatpush1.msra.mxu0 0.0
        %3662 = vmatprep.subr.mxu0 0.0
        %3663 = vmatpush1.msra.mxu0 0.0
        %3664 = vmatprep.subr.mxu0 0.0
        %3665 = vmatpush1.msra.mxu0 0.0
        %3666 = vmatprep.subr.mxu0 0.0
        %3667 = vmatpush1.msra.mxu0 0.0
        %3668 = vmatprep.subr.mxu0 0.0
        %3669 = vmatpush1.msra.mxu0 0.0
        %3670 = vmatprep.subr.mxu0 0.0
        %3671 = vmatpush1.msra.mxu0 0.0
        %3672 = vmatprep.subr.mxu0 0.0
        %3673 = vmatpush1.msra.mxu0 0.0
        %3674 = vmatprep.subr.mxu0 0.0
        %3675 = vmatpush1.msra.mxu0 0.0
        %3676 = vmatprep.subr.mxu0 0.0
        %3677 = vmatpush1.msra.mxu0 0.0
        %3678 = vmatprep.subr.mxu0 0.0
        %3679 = vmatpush1.msra.mxu0 0.0
        %3680 = vmatprep.subr.mxu0 0.0
        %3681 = vmatpush1.msra.mxu0 0.0
        %3682 = vmatprep.subr.mxu0 0.0
        %3683 = vmatpush1.msra.mxu0 0.0
        %3684 = vmatprep.subr.mxu0 0.0
        %3685 = vmatpush1.msra.mxu0 0.0
        %3686 = vmatprep.subr.mxu0 0.0
        %3687 = vmatpush1.msra.mxu0 0.0
        %3688 = vmatprep.subr.mxu0 0.0
        %3689 = vmatpush1.msra.mxu0 0.0
        %3690 = vmatprep.subr.mxu0 0.0
        %3691 = vmatpush1.msra.mxu0 0.0
        %3692 = vmatprep.subr.mxu0 0.0
        %3693 = vmatpush1.msra.mxu0 0.0
        %3694 = vmatprep.subr.mxu0 0.0
        %3695 = vmatpush1.msra.mxu0 0.0
        %3696 = vmatprep.subr.mxu0 0.0
        %3697 = vmatpush1.msra.mxu0 0.0
        %3698 = vmatprep.subr.mxu0 0.0
        %3699 = vmatpush1.msra.mxu0 0.0
        %3700 = vmatprep.subr.mxu0 0.0
        %3701 = vmatpush1.msra.mxu0 0.0
        %3702 = vmatprep.subr.mxu0 0.0
        %3703 = vmatpush1.msra.mxu0 0.0
        %3704 = vmatprep.mubr.f32.mxu0 0.0
        %3705 = vmatmul.mubr.f32.gmra.mrb[0].mxu0 %v3638
        %v3706 = vpop.f32.mrb[0].mxu0
        %v3707 = vadd.f32 %v3636, %v3706
        %v3708 = vpop.f32.mrb[0].mxu0
        %3709 = vdwg.mxu0
        %vm3710 = vcmask 73728
        %3711 = vst.msk [vmem:[%s461] sm:$0x1] %vm3710, %v3707
        %s3712 = sand.u32 %s337, 1
        %s3713 = scalar_lea.sflag [#allocation4], %s3712
        %s3714 = sand.u32 %s337, 1
        %s3715 = scalar_lea.vmem [#allocation3], %s3714
        // Predicated region
        $region77: #{cct_forward.3} parent=75 // pred_check
          %p3716 = pneg %p347
        $region78: #{cct_forward.3} parent=75 // pred_check_branch
          %3718 = sbr.rel (%p3716) target = $region80
        $region79: #{cct_forward.3} parent=75 // pred_region
          %s3720 = ssub.s32 16, 16
          %3721 = vsyncadd %s3713, %s3720
          %s3722 = smul.addr %s30, 16
          %s3723 = scalar_lea.hbm %s14, %s3722
          %s3725 = sshll.u32 %s3715, 4
          %s3726 = int_to_ptr.vmem [resolvable:$true] %s3725
          %3728 = dma.vmem_to_hbm [thread:$0]  %s3726, 16, %s3723, %s3713
        $region80: #{cct_forward.3} parent=75 // pred_fallthru
          _
      $region76: #{cct_forward.3} parent=5 // pred_fallthru
        _
      %p3729 = scmp.le.s32.totalorder 2, %s25
      // Predicated region
      $region81: #{cct_forward.3} parent=5 // pred_check
        %p3730 = pneg %p3729
      $region82: #{cct_forward.3} parent=5 // pred_check_branch
        %3732 = sbr.rel (%p3730) target = $region84
      $region83: #{cct_forward.3} parent=5 // pred_region
        %s3733 = ssub.s32 %s25, 2
        // Predicated region
        $region85: #{cct_forward.3} parent=83 // pred_check
          %p3734 = pneg %p353
        $region86: #{cct_forward.3} parent=83 // pred_check_branch
          %3736 = sbr.rel (%p3734) target = $region88
        $region87: #{cct_forward.3} parent=83 // pred_region
          %s3737 = sand.u32 %s338, 1
          %s3738 = scalar_lea.sflag [#allocation4], %s3737
          %s3739 = sand.u32 %s338, 1
          %s3740 = scalar_lea.vmem [#allocation3], %s3739
          %3741 = dma.done %s3738, 16
        $region88: #{cct_forward.3} parent=83 // pred_fallthru
          _
      $region84: #{cct_forward.3} parent=5 // pred_fallthru
        _
    $region6: #{cct_forward.3} parent=1 // loop_footer
      %s29 = sadd.s32 1, %s25
    $region7: #{cct_forward.3} parent=1 // loop_footer_branch
      %24 = sbr.rel target = $region3
    $region8: #{cct_forward.3} parent=1 // loop_exit
      _
    %3742 = vsyncpa [#allocation4], 1
    %s3743 = scalar_lea.sflag [#allocation4], 1
    %3744 = vsyncpa %s3743, 1

// kernel: cct_forward.2
$region0: #{cct_forward.2}
  #allocation0 [shape = 'u32[]', space=smem, size = 0x4, offset = 0x4, fixed_abs, tag = 'smem constant byte address 0x4 - core index']
  #allocation1 [shape = 'u32[144,128]{1,0:T(1,128)}', space=vmem, size = 0x12000, scoped, tag = 'internal scratch']
  %s0 = inlined_call_operand.vmem [shape: f32[2,16,16,8], index: 0, kind: input, shape index: {}]
  %s1 = inlined_call_operand.vmem [shape: f32[72,64], index: 1, kind: input, shape index: {}]
  %s2 = inlined_call_operand.vmem [shape: f32[1,64], index: 2, kind: input, shape index: {}]
  %s3 = inlined_call_operand.vmem [shape: f32[576,32], index: 3, kind: input, shape index: {}]
  %s4 = inlined_call_operand.vmem [shape: f32[1,32], index: 4, kind: input, shape index: {}]
  %s5 = inlined_call_operand.vmem [shape: f32[2,16,32], index: 5, kind: output, shape index: {}]
  %s6 = sld [smem:[#allocation0]]
  $region53: #{cct_forward.2} parent=0
    _
  %s8 = ssub.s32 1, %s6
  %s9 = scalar_select 0, %s8, %s6
  loop: start=0, step=1, limit=4
  $region2: #{cct_forward.2} parent=0 // loop_pre_header
    _
  $region3: #{cct_forward.2} parent=0 // loop_header
    %s11 = sphi 0, %s15
    %p12 = scmp.ge.s32.totalorder %s11, 4
    %s21 = sphi 0, %s23
    %s24 = sphi 0, %s21
    %s25 = sphi 0, %s24
    %s41 = sphi 0, %s25
    %s45 = sphi 0, %s45
    %s47 = sphi 0, %s45
    %s48 = sphi 0, %s47
    %s62 = sphi 0, %s48
    %s66 = sphi 0, %s66
    %s68 = sphi 0, %s66
    %s69 = sphi 0, %s68
    %s83 = sphi 0, %s69
    %s87 = sphi 0, %s87
    %s89 = sphi 0, %s87
    %s90 = sphi 0, %s89
    %s104 = sphi 0, %s90
    %s108 = sphi 0, %s108
    %s110 = sphi 0, %s108
    %s111 = sphi 0, %s110
    %s125 = sphi 0, %s111
    %s131 = sphi 0, %s133
    %s134 = sphi 0, %s131
    %s135 = sphi 0, %s134
    %s151 = sphi 0, %s135
  $region4: #{cct_forward.2} parent=0 // loop_header_branch
    %14 = sbr.rel (%p12) target = $region8
  $region5: #{cct_forward.2} parent=0 // loop_body
    %s16 = ssub.s32 %s11, 1
    %s17 = ssub.s32 %s11, 2
    %s18 = sadd.s32 %s11, 1
    %s19 = ssub.s32 %s11, %s18
    %p20 = scmp.eq.s32.totalorder %s19, 0
    %s22 = sadd.s32 %s21, 1
    %s23 = scalar_select %p20, %s21, %s22
    %p26 = pneg %p20
    %p27 = scmp.eq.s32.totalorder %s11, 1
    %p28 = por %p26, %p27
    %p29 = scmp.ne.s32.totalorder %s21, %s24
    %p30 = scmp.eq.s32.totalorder %s11, 0
    %p31 = por %p29, %p30
    %p32 = scmp.ne.s32.totalorder %s21, %s24
    %p33 = scmp.eq.s32.totalorder %s16, 1
    %p34 = por %p32, %p33
    %p35 = scmp.ne.s32.totalorder %s24, %s25
    %p36 = scmp.eq.s32.totalorder %s16, 0
    %p37 = por %p35, %p36
    %p38 = scmp.ne.s32.totalorder %s24, %s25
    %p39 = scmp.eq.s32.totalorder %s17, 1
    %p40 = por %p38, %p39
    %p42 = scmp.ne.s32.totalorder %s25, %s41
    %p43 = scmp.eq.s32.totalorder %s17, 0
    %p44 = por %p42, %p43
    %s46 = sadd.s32 %s45, 1
    %p49 = scmp.eq.s32.totalorder %s11, 1
    %p50 = scmp.ne.s32.totalorder %s45, %s47
    %p51 = scmp.eq.s32.totalorder %s11, 0
    %p52 = por %p50, %p51
    %p53 = scmp.ne.s32.totalorder %s45, %s47
    %p54 = scmp.eq.s32.totalorder %s16, 1
    %p55 = por %p53, %p54
    %p56 = scmp.ne.s32.totalorder %s47, %s48
    %p57 = scmp.eq.s32.totalorder %s16, 0
    %p58 = por %p56, %p57
    %p59 = scmp.ne.s32.totalorder %s47, %s48
    %p60 = scmp.eq.s32.totalorder %s17, 1
    %p61 = por %p59, %p60
    %p63 = scmp.ne.s32.totalorder %s48, %s62
    %p64 = scmp.eq.s32.totalorder %s17, 0
    %p65 = por %p63, %p64
    %s67 = sadd.s32 %s66, 1
    %p70 = scmp.eq.s32.totalorder %s11, 1
    %p71 = scmp.ne.s32.totalorder %s66, %s68
    %p72 = scmp.eq.s32.totalorder %s11, 0
    %p73 = por %p71, %p72
    %p74 = scmp.ne.s32.totalorder %s66, %s68
    %p75 = scmp.eq.s32.totalorder %s16, 1
    %p76 = por %p74, %p75
    %p77 = scmp.ne.s32.totalorder %s68, %s69
    %p78 = scmp.eq.s32.totalorder %s16, 0
    %p79 = por %p77, %p78
    %p80 = scmp.ne.s32.totalorder %s68, %s69
    %p81 = scmp.eq.s32.totalorder %s17, 1
    %p82 = por %p80, %p81
    %p84 = scmp.ne.s32.totalorder %s69, %s83
    %p85 = scmp.eq.s32.totalorder %s17, 0
    %p86 = por %p84, %p85
    %s88 = sadd.s32 %s87, 1
    %p91 = scmp.eq.s32.totalorder %s11, 1
    %p92 = scmp.ne.s32.totalorder %s87, %s89
    %p93 = scmp.eq.s32.totalorder %s11, 0
    %p94 = por %p92, %p93
    %p95 = scmp.ne.s32.totalorder %s87, %s89
    %p96 = scmp.eq.s32.totalorder %s16, 1
    %p97 = por %p95, %p96
    %p98 = scmp.ne.s32.totalorder %s89, %s90
    %p99 = scmp.eq.s32.totalorder %s16, 0
    %p100 = por %p98, %p99
    %p101 = scmp.ne.s32.totalorder %s89, %s90
    %p102 = scmp.eq.s32.totalorder %s17, 1
    %p103 = por %p101, %p102
    %p105 = scmp.ne.s32.totalorder %s90, %s104
    %p106 = scmp.eq.s32.totalorder %s17, 0
    %p107 = por %p105, %p106
    %s109 = sadd.s32 %s108, 1
    %p112 = scmp.eq.s32.totalorder %s11, 1
    %p113 = scmp.ne.s32.totalorder %s108, %s110
    %p114 = scmp.eq.s32.totalorder %s11, 0
    %p115 = por %p113, %p114
    %p116 = scmp.ne.s32.totalorder %s108, %s110
    %p117 = scmp.eq.s32.totalorder %s16, 1
    %p118 = por %p116, %p117
    %p119 = scmp.ne.s32.totalorder %s110, %s111
    %p120 = scmp.eq.s32.totalorder %s16, 0
    %p121 = por %p119, %p120
    %p122 = scmp.ne.s32.totalorder %s110, %s111
    %p123 = scmp.eq.s32.totalorder %s17, 1
    %p124 = por %p122, %p123
    %p126 = scmp.ne.s32.totalorder %s111, %s125
    %p127 = scmp.eq.s32.totalorder %s17, 0
    %p128 = por %p126, %p127
    %s129 = ssub.s32 %s11, %s18
    %p130 = scmp.eq.s32.totalorder %s129, 0
    %s132 = sadd.s32 %s131, 1
    %s133 = scalar_select %p130, %s131, %s132
    %p136 = pneg %p130
    %p137 = scmp.eq.s32.totalorder %s11, 1
    %p138 = por %p136, %p137
    %p139 = scmp.ne.s32.totalorder %s131, %s134
    %p140 = scmp.eq.s32.totalorder %s11, 0
    %p141 = por %p139, %p140
    %p142 = scmp.ne.s32.totalorder %s131, %s134
    %p143 = scmp.eq.s32.totalorder %s16, 1
    %p144 = por %p142, %p143
    %p145 = scmp.ne.s32.totalorder %s134, %s135
    %p146 = scmp.eq.s32.totalorder %s16, 0
    %p147 = por %p145, %p146
    %p148 = scmp.ne.s32.totalorder %s134, %s135
    %p149 = scmp.eq.s32.totalorder %s17, 1
    %p150 = por %p148, %p149
    %p152 = scmp.ne.s32.totalorder %s135, %s151
    %p153 = scmp.eq.s32.totalorder %s17, 0
    %p154 = por %p152, %p153
    %p155 = scmp.le.s32.totalorder 1, %s11
    %p156 = scmp.lt.s32.totalorder %s11, 3
    %p157 = pnand %p155, %p156
    %p158 = pneg %p157
    // Predicated region
    $region9: #{cct_forward.2} parent=5 // pred_check
      _
    $region10: #{cct_forward.2} parent=5 // pred_check_branch
      %160 = sbr.rel (%p157) target = $region12
    $region11: #{cct_forward.2} parent=5 // pred_region
      %s161 = ssub.s32 %s11, 1
      // Predicated region
      $region13: #{cct_forward.2} parent=11 // pred_check
        %p162 = pneg %p58
      $region14: #{cct_forward.2} parent=11 // pred_check_branch
        %164 = sbr.rel (%p162) target = $region16
      $region15: #{cct_forward.2} parent=11 // pred_region
        _
      $region16: #{cct_forward.2} parent=11 // pred_fallthru
        _
      // Predicated region
      $region17: #{cct_forward.2} parent=11 // pred_check
        %p165 = pneg %p79
      $region18: #{cct_forward.2} parent=11 // pred_check_branch
        %167 = sbr.rel (%p165) target = $region20
      $region19: #{cct_forward.2} parent=11 // pred_region
        _
      $region20: #{cct_forward.2} parent=11 // pred_fallthru
        _
      // Predicated region
      $region21: #{cct_forward.2} parent=11 // pred_check
        %p168 = pneg %p100
      $region22: #{cct_forward.2} parent=11 // pred_check_branch
        %170 = sbr.rel (%p168) target = $region24
      $region23: #{cct_forward.2} parent=11 // pred_region
        _
      $region24: #{cct_forward.2} parent=11 // pred_fallthru
        _
      // Predicated region
      $region25: #{cct_forward.2} parent=11 // pred_check
        %p171 = pneg %p121
      $region26: #{cct_forward.2} parent=11 // pred_check_branch
        %173 = sbr.rel (%p171) target = $region28
      $region27: #{cct_forward.2} parent=11 // pred_region
        _
      $region28: #{cct_forward.2} parent=11 // pred_fallthru
        _
    $region12: #{cct_forward.2} parent=5 // pred_fallthru
      _
    %p174 = scmp.lt.s32.totalorder %s11, 2
    // Predicated region
    $region29: #{cct_forward.2} parent=5 // pred_check
      %p175 = pneg %p174
    $region30: #{cct_forward.2} parent=5 // pred_check_branch
      %177 = sbr.rel (%p175) target = $region32
    $region31: #{cct_forward.2} parent=5 // pred_region
      // Predicated region
      $region33: #{cct_forward.2} parent=31 // pred_check
        %p178 = pneg %p31
      $region34: #{cct_forward.2} parent=31 // pred_check_branch
        %180 = sbr.rel (%p178) target = $region36
      $region35: #{cct_forward.2} parent=31 // pred_region
        %p181 = scmp.lt.s32.totalorder %s11, 1
        %s182 = scalar_select %p181, %s11, 1
        %s183 = smul.addr %s182, 32
        %s184 = smul.addr %s183, 8
        %s185 = scalar_lea.vmem %s0, %s184
      $region36: #{cct_forward.2} parent=31 // pred_fallthru
        _
    $region32: #{cct_forward.2} parent=5 // pred_fallthru
      _
    %p186 = scmp.le.s32.totalorder 1, %s11
    %p187 = scmp.lt.s32.totalorder %s11, 3
    %p188 = pnand %p186, %p187
    %p189 = pneg %p188
    // Predicated region
    $region37: #{cct_forward.2} parent=5 // pred_check
      _
    $region38: #{cct_forward.2} parent=5 // pred_check_branch
      %191 = sbr.rel (%p188) target = $region40
    $region39: #{cct_forward.2} parent=5 // pred_region
      %s192 = ssub.s32 %s11, 1
      %p193 = scmp.lt.s32.totalorder %s16, 1
      %s194 = scalar_select %p193, %s16, 1
      %s195 = smul.addr %s194, 32
      %s196 = smul.addr %s195, 8
      %s197 = scalar_lea.vmem %s0, %s196
      %p198 = pneg %p37
      %p199 = pneg %p34
      %p200 = pneg %p58
      %p201 = pneg %p55
      %p202 = pneg %p79
      %p203 = pneg %p76
      %p204 = pneg %p100
      %p205 = pneg %p97
      %p206 = pneg %p121
      %p207 = pneg %p118
      %p208 = pneg %p147
      %p209 = pneg %p144
      %p210 = scmp.lt.s32.totalorder %s16, 1
      %s211 = scalar_select %p210, %s16, 1
      %s212 = smul.addr %s211, 2
      %s213 = smul.addr %s212, 8
      %s214 = scalar_lea.vmem %s5, %s213
      %p215 = scmp.lt.s32.totalorder %s16, 1
      %s216 = scalar_select %p215, %s16, 1
      %s217 = smul.addr %s216, 32
      %s218 = smul.addr %s217, 8
      %s219 = scalar_lea.vmem %s0, %s218
      %p220 = scmp.lt.s32.totalorder %s16, 1
      %s221 = scalar_select %p220, %s16, 1
      %s222 = smul.addr %s221, 2
      %s223 = smul.addr %s222, 8
      %s224 = scalar_lea.vmem %s5, %s223
      %v225 = vld [vmem:[%s219] sm:$0xff]
      %v226 = vld [vmem:[%s219 + $0x8] sm:$0xff]
      %v227 = vld [vmem:[%s219 + $0x10] sm:$0xff]
      %v228 = vld [vmem:[%s219 + $0x18] sm:$0xff]
      %v229 = vld [vmem:[%s219 + $0x20] sm:$0xff]
      %v230 = vld [vmem:[%s219 + $0x28] sm:$0xff]
      %v231 = vld [vmem:[%s219 + $0x30] sm:$0xff]
      %v232 = vld [vmem:[%s219 + $0x38] sm:$0xff]
      %v233 = vld [vmem:[%s219 + $0x40] sm:$0xff]
      %v234 = vld [vmem:[%s219 + $0x48] sm:$0xff]
      %v235 = vld [vmem:[%s219 + $0x50] sm:$0xff]
      %v236 = vld [vmem:[%s219 + $0x58] sm:$0xff]
      %v237 = vld [vmem:[%s219 + $0x60] sm:$0xff]
      %v238 = vld [vmem:[%s219 + $0x68] sm:$0xff]
      %v239 = vld [vmem:[%s219 + $0x70] sm:$0xff]
      %v240 = vld [vmem:[%s219 + $0x78] sm:$0xff]
      %v241 = vld [vmem:[%s219 + $0x80] sm:$0xff]
      %v242 = vld [vmem:[%s219 + $0x88] sm:$0xff]
      %v243 = vld [vmem:[%s219 + $0x90] sm:$0xff]
      %v244 = vld [vmem:[%s219 + $0x98] sm:$0xff]
      %v245 = vld [vmem:[%s219 + $0xa0] sm:$0xff]
      %v246 = vld [vmem:[%s219 + $0xa8] sm:$0xff]
      %v247 = vld [vmem:[%s219 + $0xb0] sm:$0xff]
      %v248 = vld [vmem:[%s219 + $0xb8] sm:$0xff]
      %v249 = vld [vmem:[%s219 + $0xc0] sm:$0xff]
      %v250 = vld [vmem:[%s219 + $0xc8] sm:$0xff]
      %v251 = vld [vmem:[%s219 + $0xd0] sm:$0xff]
      %v252 = vld [vmem:[%s219 + $0xd8] sm:$0xff]
      %v253 = vld [vmem:[%s219 + $0xe0] sm:$0xff]
      %v254 = vld [vmem:[%s219 + $0xe8] sm:$0xff]
      %v255 = vld [vmem:[%s219 + $0xf0] sm:$0xff]
      %v256 = vld [vmem:[%s219 + $0xf8] sm:$0xff]
      %v257 = vld [vmem:[%s1] sm:$0xff]
      %v258 = vld [vmem:[%s1 + $0x8] sm:$0xff]
      %v259 = vld [vmem:[%s1 + $0x10] sm:$0xff]
      %v260 = vld [vmem:[%s1 + $0x18] sm:$0xff]
      %v261 = vld [vmem:[%s1 + $0x20] sm:$0xff]
      %v262 = vld [vmem:[%s1 + $0x28] sm:$0xff]
      %v263 = vld [vmem:[%s1 + $0x30] sm:$0xff]
      %v264 = vld [vmem:[%s1 + $0x38] sm:$0xff]
      %v265 = vld [vmem:[%s1 + $0x40] sm:$0xff]
      %v266 = vld [vmem:[%s2] sm:$0x1]
      %vm300 = vcmask 1040384
      %v301 = vrot.slane 0.0, 7
      %v302 = vsel %vm300, %v301, %v301
      %v303 = vrot.slane %v225, 7
      %v304 = vrot.slane %v226, 7
      %v305 = vsel %vm300, %v303, %v304
      %v306 = vrot.slane %v227, 7
      %v307 = vrot.slane %v228, 7
      %v308 = vsel %vm300, %v306, %v307
      %v309 = vrot.slane %v229, 7
      %v310 = vrot.slane %v230, 7
      %v311 = vsel %vm300, %v309, %v310
      %v312 = vrot.slane %v231, 7
      %v313 = vrot.slane %v232, 7
      %v314 = vsel %vm300, %v312, %v313
      %v315 = vrot.slane %v233, 7
      %v316 = vrot.slane %v234, 7
      %v317 = vsel %vm300, %v315, %v316
      %v318 = vrot.slane %v235, 7
      %v319 = vrot.slane %v236, 7
      %v320 = vsel %vm300, %v318, %v319
      %v321 = vrot.slane %v237, 7
      %v322 = vrot.slane %v238, 7
      %v323 = vsel %vm300, %v321, %v322
      %v324 = vrot.slane %v239, 7
      %v325 = vrot.slane %v240, 7
      %v326 = vsel %vm300, %v324, %v325
      %v327 = vrot.slane %v241, 7
      %v328 = vrot.slane %v242, 7
      %v329 = vsel %vm300, %v327, %v328
      %v330 = vrot.slane %v243, 7
      %v331 = vrot.slane %v244, 7
      %v332 = vsel %vm300, %v330, %v331
      %v333 = vrot.slane %v245, 7
      %v334 = vrot.slane %v246, 7
      %v335 = vsel %vm300, %v333, %v334
      %v336 = vrot.slane %v247, 7
      %v337 = vrot.slane %v248, 7
      %v338 = vsel %vm300, %v336, %v337
      %v339 = vrot.slane %v249, 7
      %v340 = vrot.slane %v250, 7
      %v341 = vsel %vm300, %v339, %v340
      %v342 = vrot.slane %v251, 7
      %v343 = vrot.slane %v252, 7
      %v344 = vsel %vm300, %v342, %v343
      %v345 = vrot.slane %v253, 7
      %v346 = vrot.slane %v254, 7
      %v347 = vsel %vm300, %v345, %v346
      %v348 = vrot.slane %v255, 7
      %v349 = vrot.slane %v256, 7
      %v350 = vsel %vm300, %v348, %v349
      %v400 = vsel %vm300, 0.0, %v301
      %v401 = vsel %vm300, 0.0, %v303
      %v402 = vsel %vm300, 0.0, %v306
      %v403 = vsel %vm300, 0.0, %v309
      %v404 = vsel %vm300, 0.0, %v312
      %v405 = vsel %vm300, 0.0, %v315
      %v406 = vsel %vm300, 0.0, %v318
      %v407 = vsel %vm300, 0.0, %v321
      %v408 = vsel %vm300, 0.0, %v324
      %v409 = vsel %vm300, 0.0, %v327
      %v410 = vsel %vm300, 0.0, %v330
      %v411 = vsel %vm300, 0.0, %v333
      %v412 = vsel %vm300, 0.0, %v336
      %v413 = vsel %vm300, 0.0, %v339
      %v414 = vsel %vm300, 0.0, %v342
      %v415 = vsel %vm300, 0.0, %v345
      %v416 = vsel %vm300, 0.0, %v348
      %v417 = vsel %vm300, %v301, 0.0
      %v418 = vsel %vm300, %v304, 0.0
      %v419 = vsel %vm300, %v307, 0.0
      %v420 = vsel %vm300, %v310, 0.0
      %v421 = vsel %vm300, %v313, 0.0
      %v422 = vsel %vm300, %v316, 0.0
      %v423 = vsel %vm300, %v319, 0.0
      %v424 = vsel %vm300, %v322, 0.0
      %v425 = vsel %vm300, %v325, 0.0
      %v426 = vsel %vm300, %v328, 0.0
      %v427 = vsel %vm300, %v331, 0.0
      %v428 = vsel %vm300, %v334, 0.0
      %v429 = vsel %vm300, %v337, 0.0
      %v430 = vsel %vm300, %v340, 0.0
      %v431 = vsel %vm300, %v343, 0.0
      %v432 = vsel %vm300, %v346, 0.0
      %v433 = vsel %vm300, %v349, 0.0
      %vm466 = vcmask 1046528
      %v467 = vrot.slane %v400, 1
      %v468 = vrot.slane %v302, 1
      %v469 = vsel %vm466, %v467, %v468
      %v470 = vrot.slane %v417, 1
      %v471 = vsel %vm466, %v468, %v470
      %v472 = vrot.slane %v401, 1
      %v473 = vrot.slane %v305, 1
      %v474 = vsel %vm466, %v472, %v473
      %v475 = vrot.slane %v418, 1
      %v476 = vsel %vm466, %v473, %v475
      %v477 = vrot.slane %v402, 1
      %v478 = vrot.slane %v308, 1
      %v479 = vsel %vm466, %v477, %v478
      %v480 = vrot.slane %v419, 1
      %v481 = vsel %vm466, %v478, %v480
      %v482 = vrot.slane %v403, 1
      %v483 = vrot.slane %v311, 1
      %v484 = vsel %vm466, %v482, %v483
      %v485 = vrot.slane %v420, 1
      %v486 = vsel %vm466, %v483, %v485
      %v487 = vrot.slane %v404, 1
      %v488 = vrot.slane %v314, 1
      %v489 = vsel %vm466, %v487, %v488
      %v490 = vrot.slane %v421, 1
      %v491 = vsel %vm466, %v488, %v490
      %v492 = vrot.slane %v405, 1
      %v493 = vrot.slane %v317, 1
      %v494 = vsel %vm466, %v492, %v493
      %v495 = vrot.slane %v422, 1
      %v496 = vsel %vm466, %v493, %v495
      %v497 = vrot.slane %v406, 1
      %v498 = vrot.slane %v320, 1
      %v499 = vsel %vm466, %v497, %v498
      %v500 = vrot.slane %v423, 1
      %v501 = vsel %vm466, %v498, %v500
      %v502 = vrot.slane %v407, 1
      %v503 = vrot.slane %v323, 1
      %v504 = vsel %vm466, %v502, %v503
      %v505 = vrot.slane %v424, 1
      %v506 = vsel %vm466, %v503, %v505
      %v507 = vrot.slane %v408, 1
      %v508 = vrot.slane %v326, 1
      %v509 = vsel %vm466, %v507, %v508
      %v510 = vrot.slane %v425, 1
      %v511 = vsel %vm466, %v508, %v510
      %v512 = vrot.slane %v409, 1
      %v513 = vrot.slane %v329, 1
      %v514 = vsel %vm466, %v512, %v513
      %v515 = vrot.slane %v426, 1
      %v516 = vsel %vm466, %v513, %v515
      %v517 = vrot.slane %v410, 1
      %v518 = vrot.slane %v332, 1
      %v519 = vsel %vm466, %v517, %v518
      %v520 = vrot.slane %v427, 1
      %v521 = vsel %vm466, %v518, %v520
      %v522 = vrot.slane %v411, 1
      %v523 = vrot.slane %v335, 1
      %v524 = vsel %vm466, %v522, %v523
      %v525 = vrot.slane %v428, 1
      %v526 = vsel %vm466, %v523, %v525
      %v527 = vrot.slane %v412, 1
      %v528 = vrot.slane %v338, 1
      %v529 = vsel %vm466, %v527, %v528
      %v530 = vrot.slane %v429, 1
      %v531 = vsel %vm466, %v528, %v530
      %v532 = vrot.slane %v413, 1
      %v533 = vrot.slane %v341, 1
      %v534 = vsel %vm466, %v532, %v533
      %v535 = vrot.slane %v430, 1
      %v536 = vsel %vm466, %v533, %v535
      %v537 = vrot.slane %v414, 1
      %v538 = vrot.slane %v344, 1
      %v539 = vsel %vm466, %v537, %v538
      %v540 = vrot.slane %v431, 1
      %v541 = vsel %vm466, %v538, %v540
      %v542 = vrot.slane %v415, 1
      %v543 = vrot.slane %v347, 1
      %v544 = vsel %vm466, %v542, %v543
      %v545 = vrot.slane %v432, 1
      %v546 = vsel %vm466, %v543, %v545
      %vm547 = vcmask 1045504
      %v548 = vrot.slane %v400, 2
      %v549 = vrot.slane %v302, 2
      %v550 = vsel %vm547, %v548, %v549
      %v551 = vrot.slane %v417, 2
      %v552 = vsel %vm547, %v549, %v551
      %v553 = vrot.slane %v401, 2
      %v554 = vrot.slane %v305, 2
      %v555 = vsel %vm547, %v553, %v554
      %v556 = vrot.slane %v418, 2
      %v557 = vsel %vm547, %v554, %v556
      %v558 = vrot.slane %v402, 2
      %v559 = vrot.slane %v308, 2
      %v560 = vsel %vm547, %v558, %v559
      %v561 = vrot.slane %v419, 2
      %v562 = vsel %vm547, %v559, %v561
      %v563 = vrot.slane %v403, 2
      %v564 = vrot.slane %v311, 2
      %v565 = vsel %vm547, %v563, %v564
      %v566 = vrot.slane %v420, 2
      %v567 = vsel %vm547, %v564, %v566
      %v568 = vrot.slane %v404, 2
      %v569 = vrot.slane %v314, 2
      %v570 = vsel %vm547, %v568, %v569
      %v571 = vrot.slane %v421, 2
      %v572 = vsel %vm547, %v569, %v571
      %v573 = vrot.slane %v405, 2
      %v574 = vrot.slane %v317, 2
      %v575 = vsel %vm547, %v573, %v574
      %v576 = vrot.slane %v422, 2
      %v577 = vsel %vm547, %v574, %v576
      %v578 = vrot.slane %v406, 2
      %v579 = vrot.slane %v320, 2
      %v580 = vsel %vm547, %v578, %v579
      %v581 = vrot.slane %v423, 2
      %v582 = vsel %vm547, %v579, %v581
      %v583 = vrot.slane %v407, 2
      %v584 = vrot.slane %v323, 2
      %v585 = vsel %vm547, %v583, %v584
      %v586 = vrot.slane %v424, 2
      %v587 = vsel %vm547, %v584, %v586
      %v588 = vrot.slane %v408, 2
      %v589 = vrot.slane %v326, 2
      %v590 = vsel %vm547, %v588, %v589
      %v591 = vrot.slane %v425, 2
      %v592 = vsel %vm547, %v589, %v591
      %v593 = vrot.slane %v409, 2
      %v594 = vrot.slane %v329, 2
      %v595 = vsel %vm547, %v593, %v594
      %v596 = vrot.slane %v426, 2
      %v597 = vsel %vm547, %v594, %v596
      %v598 = vrot.slane %v410, 2
      %v599 = vrot.slane %v332, 2
      %v600 = vsel %vm547, %v598, %v599
      %v601 = vrot.slane %v427, 2
      %v602 = vsel %vm547, %v599, %v601
      %v603 = vrot.slane %v411, 2
      %v604 = vrot.slane %v335, 2
      %v605 = vsel %vm547, %v603, %v604
      %v606 = vrot.slane %v428, 2
      %v607 = vsel %vm547, %v604, %v606
      %v608 = vrot.slane %v412, 2
      %v609 = vrot.slane %v338, 2
      %v610 = vsel %vm547, %v608, %v609
      %v611 = vrot.slane %v429, 2
      %v612 = vsel %vm547, %v609, %v611
      %v613 = vrot.slane %v413, 2
      %v614 = vrot.slane %v341, 2
      %v615 = vsel %vm547, %v613, %v614
      %v616 = vrot.slane %v430, 2
      %v617 = vsel %vm547, %v614, %v616
      %v618 = vrot.slane %v414, 2
      %v619 = vrot.slane %v344, 2
      %v620 = vsel %vm547, %v618, %v619
      %v621 = vrot.slane %v431, 2
      %v622 = vsel %vm547, %v619, %v621
      %v623 = vrot.slane %v415, 2
      %v624 = vrot.slane %v347, 2
      %v625 = vsel %vm547, %v623, %v624
      %v626 = vrot.slane %v432, 2
      %v627 = vsel %vm547, %v624, %v626
      %v630 = vrot.slane %v416, 1
      %v631 = vrot.slane %v350, 1
      %v632 = vsel %vm466, %v630, %v631
      %v633 = vrot.slane %v433, 1
      %v634 = vsel %vm466, %v631, %v633
      %v635 = vrot.slane %v416, 2
      %v636 = vrot.slane %v350, 2
      %v637 = vsel %vm547, %v635, %v636
      %v638 = vrot.slane %v433, 2
      %v639 = vsel %vm547, %v636, %v638
      %640 = vrot.lane.b32.xlu0 %v469, 8
      %v641 = vpop.permute.xlu0 %640
      %642 = vrot.lane.b32.xlu0 %v471, 8
      %v643 = vpop.permute.xlu0 %642
      %644 = vrot.lane.b32.xlu0 %v474, 8
      %v645 = vpop.permute.xlu0 %644
      %646 = vrot.lane.b32.xlu0 %v476, 8
      %v647 = vpop.permute.xlu0 %646
      %648 = vrot.lane.b32.xlu0 %v479, 8
      %v649 = vpop.permute.xlu0 %648
      %650 = vrot.lane.b32.xlu0 %v481, 8
      %v651 = vpop.permute.xlu0 %650
      %652 = vrot.lane.b32.xlu0 %v484, 8
      %v653 = vpop.permute.xlu0 %652
      %654 = vrot.lane.b32.xlu0 %v486, 8
      %v655 = vpop.permute.xlu0 %654
      %656 = vrot.lane.b32.xlu0 %v489, 8
      %v657 = vpop.permute.xlu0 %656
      %658 = vrot.lane.b32.xlu0 %v491, 8
      %v659 = vpop.permute.xlu0 %658
      %660 = vrot.lane.b32.xlu0 %v494, 8
      %v661 = vpop.permute.xlu0 %660
      %662 = vrot.lane.b32.xlu0 %v496, 8
      %v663 = vpop.permute.xlu0 %662
      %664 = vrot.lane.b32.xlu0 %v499, 8
      %v665 = vpop.permute.xlu0 %664
      %666 = vrot.lane.b32.xlu0 %v501, 8
      %v667 = vpop.permute.xlu0 %666
      %668 = vrot.lane.b32.xlu0 %v504, 8
      %v669 = vpop.permute.xlu0 %668
      %670 = vrot.lane.b32.xlu0 %v506, 8
      %v671 = vpop.permute.xlu0 %670
      %672 = vrot.lane.b32.xlu0 %v509, 8
      %v673 = vpop.permute.xlu0 %672
      %674 = vrot.lane.b32.xlu0 %v511, 8
      %v675 = vpop.permute.xlu0 %674
      %676 = vrot.lane.b32.xlu0 %v514, 8
      %v677 = vpop.permute.xlu0 %676
      %678 = vrot.lane.b32.xlu0 %v516, 8
      %v679 = vpop.permute.xlu0 %678
      %680 = vrot.lane.b32.xlu0 %v519, 8
      %v681 = vpop.permute.xlu0 %680
      %682 = vrot.lane.b32.xlu0 %v521, 8
      %v683 = vpop.permute.xlu0 %682
      %684 = vrot.lane.b32.xlu0 %v524, 8
      %v685 = vpop.permute.xlu0 %684
      %686 = vrot.lane.b32.xlu0 %v526, 8
      %v687 = vpop.permute.xlu0 %686
      %688 = vrot.lane.b32.xlu0 %v529, 8
      %v689 = vpop.permute.xlu0 %688
      %690 = vrot.lane.b32.xlu0 %v531, 8
      %v691 = vpop.permute.xlu0 %690
      %692 = vrot.lane.b32.xlu0 %v534, 8
      %v693 = vpop.permute.xlu0 %692
      %694 = vrot.lane.b32.xlu0 %v536, 8
      %v695 = vpop.permute.xlu0 %694
      %696 = vrot.lane.b32.xlu0 %v539, 8
      %v697 = vpop.permute.xlu0 %696
      %698 = vrot.lane.b32.xlu0 %v541, 8
      %v699 = vpop.permute.xlu0 %698
      %700 = vrot.lane.b32.xlu0 %v544, 8
      %v701 = vpop.permute.xlu0 %700
      %702 = vrot.lane.b32.xlu0 %v546, 8
      %v703 = vpop.permute.xlu0 %702
      %736 = vrot.lane.b32.xlu0 %v550, 16
      %v737 = vpop.permute.xlu0 %736
      %738 = vrot.lane.b32.xlu0 %v552, 16
      %v739 = vpop.permute.xlu0 %738
      %740 = vrot.lane.b32.xlu0 %v555, 16
      %v741 = vpop.permute.xlu0 %740
      %742 = vrot.lane.b32.xlu0 %v557, 16
      %v743 = vpop.permute.xlu0 %742
      %744 = vrot.lane.b32.xlu0 %v560, 16
      %v745 = vpop.permute.xlu0 %744
      %746 = vrot.lane.b32.xlu0 %v562, 16
      %v747 = vpop.permute.xlu0 %746
      %748 = vrot.lane.b32.xlu0 %v565, 16
      %v749 = vpop.permute.xlu0 %748
      %750 = vrot.lane.b32.xlu0 %v567, 16
      %v751 = vpop.permute.xlu0 %750
      %752 = vrot.lane.b32.xlu0 %v570, 16
      %v753 = vpop.permute.xlu0 %752
      %754 = vrot.lane.b32.xlu0 %v572, 16
      %v755 = vpop.permute.xlu0 %754
      %756 = vrot.lane.b32.xlu0 %v575, 16
      %v757 = vpop.permute.xlu0 %756
      %758 = vrot.lane.b32.xlu0 %v577, 16
      %v759 = vpop.permute.xlu0 %758
      %760 = vrot.lane.b32.xlu0 %v580, 16
      %v761 = vpop.permute.xlu0 %760
      %762 = vrot.lane.b32.xlu0 %v582, 16
      %v763 = vpop.permute.xlu0 %762
      %764 = vrot.lane.b32.xlu0 %v585, 16
      %v765 = vpop.permute.xlu0 %764
      %766 = vrot.lane.b32.xlu0 %v587, 16
      %v767 = vpop.permute.xlu0 %766
      %768 = vrot.lane.b32.xlu0 %v590, 16
      %v769 = vpop.permute.xlu0 %768
      %770 = vrot.lane.b32.xlu0 %v592, 16
      %v771 = vpop.permute.xlu0 %770
      %772 = vrot.lane.b32.xlu0 %v595, 16
      %v773 = vpop.permute.xlu0 %772
      %774 = vrot.lane.b32.xlu0 %v597, 16
      %v775 = vpop.permute.xlu0 %774
      %776 = vrot.lane.b32.xlu0 %v600, 16
      %v777 = vpop.permute.xlu0 %776
      %778 = vrot.lane.b32.xlu0 %v602, 16
      %v779 = vpop.permute.xlu0 %778
      %780 = vrot.lane.b32.xlu0 %v605, 16
      %v781 = vpop.permute.xlu0 %780
      %782 = vrot.lane.b32.xlu0 %v607, 16
      %v783 = vpop.permute.xlu0 %782
      %784 = vrot.lane.b32.xlu0 %v610, 16
      %v785 = vpop.permute.xlu0 %784
      %786 = vrot.lane.b32.xlu0 %v612, 16
      %v787 = vpop.permute.xlu0 %786
      %788 = vrot.lane.b32.xlu0 %v615, 16
      %v789 = vpop.permute.xlu0 %788
      %790 = vrot.lane.b32.xlu0 %v617, 16
      %v791 = vpop.permute.xlu0 %790
      %792 = vrot.lane.b32.xlu0 %v620, 16
      %v793 = vpop.permute.xlu0 %792
      %794 = vrot.lane.b32.xlu0 %v622, 16
      %v795 = vpop.permute.xlu0 %794
      %796 = vrot.lane.b32.xlu0 %v625, 16
      %v797 = vpop.permute.xlu0 %796
      %798 = vrot.lane.b32.xlu0 %v627, 16
      %v799 = vpop.permute.xlu0 %798
      %832 = vrot.lane.b32.xlu0 %v401, 24
      %v833 = vpop.permute.xlu0 %832
      %834 = vrot.lane.b32.xlu0 %v305, 24
      %v835 = vpop.permute.xlu0 %834
      %836 = vrot.lane.b32.xlu0 %v402, 24
      %v837 = vpop.permute.xlu0 %836
      %838 = vrot.lane.b32.xlu0 %v308, 24
      %v839 = vpop.permute.xlu0 %838
      %840 = vrot.lane.b32.xlu0 %v403, 24
      %v841 = vpop.permute.xlu0 %840
      %842 = vrot.lane.b32.xlu0 %v311, 24
      %v843 = vpop.permute.xlu0 %842
      %844 = vrot.lane.b32.xlu0 %v404, 24
      %v845 = vpop.permute.xlu0 %844
      %846 = vrot.lane.b32.xlu0 %v314, 24
      %v847 = vpop.permute.xlu0 %846
      %848 = vrot.lane.b32.xlu0 %v405, 24
      %v849 = vpop.permute.xlu0 %848
      %850 = vrot.lane.b32.xlu0 %v317, 24
      %v851 = vpop.permute.xlu0 %850
      %852 = vrot.lane.b32.xlu0 %v406, 24
      %v853 = vpop.permute.xlu0 %852
      %854 = vrot.lane.b32.xlu0 %v320, 24
      %v855 = vpop.permute.xlu0 %854
      %856 = vrot.lane.b32.xlu0 %v407, 24
      %v857 = vpop.permute.xlu0 %856
      %858 = vrot.lane.b32.xlu0 %v323, 24
      %v859 = vpop.permute.xlu0 %858
      %860 = vrot.lane.b32.xlu0 %v408, 24
      %v861 = vpop.permute.xlu0 %860
      %862 = vrot.lane.b32.xlu0 %v326, 24
      %v863 = vpop.permute.xlu0 %862
      %864 = vrot.lane.b32.xlu0 %v409, 24
      %v865 = vpop.permute.xlu0 %864
      %866 = vrot.lane.b32.xlu0 %v329, 24
      %v867 = vpop.permute.xlu0 %866
      %868 = vrot.lane.b32.xlu0 %v410, 24
      %v869 = vpop.permute.xlu0 %868
      %870 = vrot.lane.b32.xlu0 %v332, 24
      %v871 = vpop.permute.xlu0 %870
      %872 = vrot.lane.b32.xlu0 %v411, 24
      %v873 = vpop.permute.xlu0 %872
      %874 = vrot.lane.b32.xlu0 %v335, 24
      %v875 = vpop.permute.xlu0 %874
      %876 = vrot.lane.b32.xlu0 %v412, 24
      %v877 = vpop.permute.xlu0 %876
      %878 = vrot.lane.b32.xlu0 %v338, 24
      %v879 = vpop.permute.xlu0 %878
      %880 = vrot.lane.b32.xlu0 %v413, 24
      %v881 = vpop.permute.xlu0 %880
      %882 = vrot.lane.b32.xlu0 %v341, 24
      %v883 = vpop.permute.xlu0 %882
      %884 = vrot.lane.b32.xlu0 %v414, 24
      %v885 = vpop.permute.xlu0 %884
      %886 = vrot.lane.b32.xlu0 %v344, 24
      %v887 = vpop.permute.xlu0 %886
      %888 = vrot.lane.b32.xlu0 %v415, 24
      %v889 = vpop.permute.xlu0 %888
      %890 = vrot.lane.b32.xlu0 %v347, 24
      %v891 = vpop.permute.xlu0 %890
      %892 = vrot.lane.b32.xlu0 %v416, 24
      %v893 = vpop.permute.xlu0 %892
      %894 = vrot.lane.b32.xlu0 %v350, 24
      %v895 = vpop.permute.xlu0 %894
      %928 = vrot.lane.b32.xlu0 %v474, 32
      %v929 = vpop.permute.xlu0 %928
      %930 = vrot.lane.b32.xlu0 %v476, 32
      %v931 = vpop.permute.xlu0 %930
      %932 = vrot.lane.b32.xlu0 %v479, 32
      %v933 = vpop.permute.xlu0 %932
      %934 = vrot.lane.b32.xlu0 %v481, 32
      %v935 = vpop.permute.xlu0 %934
      %936 = vrot.lane.b32.xlu0 %v484, 32
      %v937 = vpop.permute.xlu0 %936
      %938 = vrot.lane.b32.xlu0 %v486, 32
      %v939 = vpop.permute.xlu0 %938
      %940 = vrot.lane.b32.xlu0 %v489, 32
      %v941 = vpop.permute.xlu0 %940
      %942 = vrot.lane.b32.xlu0 %v491, 32
      %v943 = vpop.permute.xlu0 %942
      %944 = vrot.lane.b32.xlu0 %v494, 32
      %v945 = vpop.permute.xlu0 %944
      %946 = vrot.lane.b32.xlu0 %v496, 32
      %v947 = vpop.permute.xlu0 %946
      %948 = vrot.lane.b32.xlu0 %v499, 32
      %v949 = vpop.permute.xlu0 %948
      %950 = vrot.lane.b32.xlu0 %v501, 32
      %v951 = vpop.permute.xlu0 %950
      %952 = vrot.lane.b32.xlu0 %v504, 32
      %v953 = vpop.permute.xlu0 %952
      %954 = vrot.lane.b32.xlu0 %v506, 32
      %v955 = vpop.permute.xlu0 %954
      %956 = vrot.lane.b32.xlu0 %v509, 32
      %v957 = vpop.permute.xlu0 %956
      %958 = vrot.lane.b32.xlu0 %v511, 32
      %v959 = vpop.permute.xlu0 %958
      %960 = vrot.lane.b32.xlu0 %v514, 32
      %v961 = vpop.permute.xlu0 %960
      %962 = vrot.lane.b32.xlu0 %v516, 32
      %v963 = vpop.permute.xlu0 %962
      %964 = vrot.lane.b32.xlu0 %v519, 32
      %v965 = vpop.permute.xlu0 %964
      %966 = vrot.lane.b32.xlu0 %v521, 32
      %v967 = vpop.permute.xlu0 %966
      %968 = vrot.lane.b32.xlu0 %v524, 32
      %v969 = vpop.permute.xlu0 %968
      %970 = vrot.lane.b32.xlu0 %v526, 32
      %v971 = vpop.permute.xlu0 %970
      %972 = vrot.lane.b32.xlu0 %v529, 32
      %v973 = vpop.permute.xlu0 %972
      %974 = vrot.lane.b32.xlu0 %v531, 32
      %v975 = vpop.permute.xlu0 %974
      %976 = vrot.lane.b32.xlu0 %v534, 32
      %v977 = vpop.permute.xlu0 %976
      %978 = vrot.lane.b32.xlu0 %v536, 32
      %v979 = vpop.permute.xlu0 %978
      %980 = vrot.lane.b32.xlu0 %v539, 32
      %v981 = vpop.permute.xlu0 %980
      %982 = vrot.lane.b32.xlu0 %v541, 32
      %v983 = vpop.permute.xlu0 %982
      %984 = vrot.lane.b32.xlu0 %v544, 32
      %v985 = vpop.permute.xlu0 %984
      %986 = vrot.lane.b32.xlu0 %v546, 32
      %v987 = vpop.permute.xlu0 %986
      %988 = vrot.lane.b32.xlu0 %v632, 32
      %v989 = vpop.permute.xlu0 %988
      %990 = vrot.lane.b32.xlu0 %v634, 32
      %v991 = vpop.permute.xlu0 %990
      %1024 = vrot.lane.b32.xlu0 %v555, 40
      %v1025 = vpop.permute.xlu0 %1024
      %1026 = vrot.lane.b32.xlu0 %v557, 40
      %v1027 = vpop.permute.xlu0 %1026
      %1028 = vrot.lane.b32.xlu0 %v560, 40
      %v1029 = vpop.permute.xlu0 %1028
      %1030 = vrot.lane.b32.xlu0 %v562, 40
      %v1031 = vpop.permute.xlu0 %1030
      %1032 = vrot.lane.b32.xlu0 %v565, 40
      %v1033 = vpop.permute.xlu0 %1032
      %1034 = vrot.lane.b32.xlu0 %v567, 40
      %v1035 = vpop.permute.xlu0 %1034
      %1036 = vrot.lane.b32.xlu0 %v570, 40
      %v1037 = vpop.permute.xlu0 %1036
      %1038 = vrot.lane.b32.xlu0 %v572, 40
      %v1039 = vpop.permute.xlu0 %1038
      %1040 = vrot.lane.b32.xlu0 %v575, 40
      %v1041 = vpop.permute.xlu0 %1040
      %1042 = vrot.lane.b32.xlu0 %v577, 40
      %v1043 = vpop.permute.xlu0 %1042
      %1044 = vrot.lane.b32.xlu0 %v580, 40
      %v1045 = vpop.permute.xlu0 %1044
      %1046 = vrot.lane.b32.xlu0 %v582, 40
      %v1047 = vpop.permute.xlu0 %1046
      %1048 = vrot.lane.b32.xlu0 %v585, 40
      %v1049 = vpop.permute.xlu0 %1048
      %1050 = vrot.lane.b32.xlu0 %v587, 40
      %v1051 = vpop.permute.xlu0 %1050
      %1052 = vrot.lane.b32.xlu0 %v590, 40
      %v1053 = vpop.permute.xlu0 %1052
      %1054 = vrot.lane.b32.xlu0 %v592, 40
      %v1055 = vpop.permute.xlu0 %1054
      %1056 = vrot.lane.b32.xlu0 %v595, 40
      %v1057 = vpop.permute.xlu0 %1056
      %1058 = vrot.lane.b32.xlu0 %v597, 40
      %v1059 = vpop.permute.xlu0 %1058
      %1060 = vrot.lane.b32.xlu0 %v600, 40
      %v1061 = vpop.permute.xlu0 %1060
      %1062 = vrot.lane.b32.xlu0 %v602, 40
      %v1063 = vpop.permute.xlu0 %1062
      %1064 = vrot.lane.b32.xlu0 %v605, 40
      %v1065 = vpop.permute.xlu0 %1064
      %1066 = vrot.lane.b32.xlu0 %v607, 40
      %v1067 = vpop.permute.xlu0 %1066
      %1068 = vrot.lane.b32.xlu0 %v610, 40
      %v1069 = vpop.permute.xlu0 %1068
      %1070 = vrot.lane.b32.xlu0 %v612, 40
      %v1071 = vpop.permute.xlu0 %1070
      %1072 = vrot.lane.b32.xlu0 %v615, 40
      %v1073 = vpop.permute.xlu0 %1072
      %1074 = vrot.lane.b32.xlu0 %v617, 40
      %v1075 = vpop.permute.xlu0 %1074
      %1076 = vrot.lane.b32.xlu0 %v620, 40
      %v1077 = vpop.permute.xlu0 %1076
      %1078 = vrot.lane.b32.xlu0 %v622, 40
      %v1079 = vpop.permute.xlu0 %1078
      %1080 = vrot.lane.b32.xlu0 %v625, 40
      %v1081 = vpop.permute.xlu0 %1080
      %1082 = vrot.lane.b32.xlu0 %v627, 40
      %v1083 = vpop.permute.xlu0 %1082
      %1084 = vrot.lane.b32.xlu0 %v637, 40
      %v1085 = vpop.permute.xlu0 %1084
      %1086 = vrot.lane.b32.xlu0 %v639, 40
      %v1087 = vpop.permute.xlu0 %1086
      %1120 = vrot.lane.b32.xlu0 %v402, 48
      %v1121 = vpop.permute.xlu0 %1120
      %1122 = vrot.lane.b32.xlu0 %v308, 48
      %v1123 = vpop.permute.xlu0 %1122
      %1124 = vrot.lane.b32.xlu0 %v403, 48
      %v1125 = vpop.permute.xlu0 %1124
      %1126 = vrot.lane.b32.xlu0 %v311, 48
      %v1127 = vpop.permute.xlu0 %1126
      %1128 = vrot.lane.b32.xlu0 %v404, 48
      %v1129 = vpop.permute.xlu0 %1128
      %1130 = vrot.lane.b32.xlu0 %v314, 48
      %v1131 = vpop.permute.xlu0 %1130
      %1132 = vrot.lane.b32.xlu0 %v405, 48
      %v1133 = vpop.permute.xlu0 %1132
      %1134 = vrot.lane.b32.xlu0 %v317, 48
      %v1135 = vpop.permute.xlu0 %1134
      %1136 = vrot.lane.b32.xlu0 %v406, 48
      %v1137 = vpop.permute.xlu0 %1136
      %1138 = vrot.lane.b32.xlu0 %v320, 48
      %v1139 = vpop.permute.xlu0 %1138
      %1140 = vrot.lane.b32.xlu0 %v407, 48
      %v1141 = vpop.permute.xlu0 %1140
      %1142 = vrot.lane.b32.xlu0 %v323, 48
      %v1143 = vpop.permute.xlu0 %1142
      %1144 = vrot.lane.b32.xlu0 %v408, 48
      %v1145 = vpop.permute.xlu0 %1144
      %1146 = vrot.lane.b32.xlu0 %v326, 48
      %v1147 = vpop.permute.xlu0 %1146
      %1148 = vrot.lane.b32.xlu0 %v409, 48
      %v1149 = vpop.permute.xlu0 %1148
      %1150 = vrot.lane.b32.xlu0 %v329, 48
      %v1151 = vpop.permute.xlu0 %1150
      %1152 = vrot.lane.b32.xlu0 %v410, 48
      %v1153 = vpop.permute.xlu0 %1152
      %1154 = vrot.lane.b32.xlu0 %v332, 48
      %v1155 = vpop.permute.xlu0 %1154
      %1156 = vrot.lane.b32.xlu0 %v411, 48
      %v1157 = vpop.permute.xlu0 %1156
      %1158 = vrot.lane.b32.xlu0 %v335, 48
      %v1159 = vpop.permute.xlu0 %1158
      %1160 = vrot.lane.b32.xlu0 %v412, 48
      %v1161 = vpop.permute.xlu0 %1160
      %1162 = vrot.lane.b32.xlu0 %v338, 48
      %v1163 = vpop.permute.xlu0 %1162
      %1164 = vrot.lane.b32.xlu0 %v413, 48
      %v1165 = vpop.permute.xlu0 %1164
      %1166 = vrot.lane.b32.xlu0 %v341, 48
      %v1167 = vpop.permute.xlu0 %1166
      %1168 = vrot.lane.b32.xlu0 %v414, 48
      %v1169 = vpop.permute.xlu0 %1168
      %1170 = vrot.lane.b32.xlu0 %v344, 48
      %v1171 = vpop.permute.xlu0 %1170
      %1172 = vrot.lane.b32.xlu0 %v415, 48
      %v1173 = vpop.permute.xlu0 %1172
      %1174 = vrot.lane.b32.xlu0 %v347, 48
      %v1175 = vpop.permute.xlu0 %1174
      %1176 = vrot.lane.b32.xlu0 %v416, 48
      %v1177 = vpop.permute.xlu0 %1176
      %1178 = vrot.lane.b32.xlu0 %v350, 48
      %v1179 = vpop.permute.xlu0 %1178
      %1180 = vrot.lane.b32.xlu0 %v400, 48
      %v1181 = vpop.permute.xlu0 %1180
      %1182 = vrot.lane.b32.xlu0 %v302, 48
      %v1183 = vpop.permute.xlu0 %1182
      %1216 = vrot.lane.b32.xlu0 %v479, 56
      %v1217 = vpop.permute.xlu0 %1216
      %1218 = vrot.lane.b32.xlu0 %v481, 56
      %v1219 = vpop.permute.xlu0 %1218
      %1220 = vrot.lane.b32.xlu0 %v484, 56
      %v1221 = vpop.permute.xlu0 %1220
      %1222 = vrot.lane.b32.xlu0 %v486, 56
      %v1223 = vpop.permute.xlu0 %1222
      %1224 = vrot.lane.b32.xlu0 %v489, 56
      %v1225 = vpop.permute.xlu0 %1224
      %1226 = vrot.lane.b32.xlu0 %v491, 56
      %v1227 = vpop.permute.xlu0 %1226
      %1228 = vrot.lane.b32.xlu0 %v494, 56
      %v1229 = vpop.permute.xlu0 %1228
      %1230 = vrot.lane.b32.xlu0 %v496, 56
      %v1231 = vpop.permute.xlu0 %1230
      %1232 = vrot.lane.b32.xlu0 %v499, 56
      %v1233 = vpop.permute.xlu0 %1232
      %1234 = vrot.lane.b32.xlu0 %v501, 56
      %v1235 = vpop.permute.xlu0 %1234
      %1236 = vrot.lane.b32.xlu0 %v504, 56
      %v1237 = vpop.permute.xlu0 %1236
      %1238 = vrot.lane.b32.xlu0 %v506, 56
      %v1239 = vpop.permute.xlu0 %1238
      %1240 = vrot.lane.b32.xlu0 %v509, 56
      %v1241 = vpop.permute.xlu0 %1240
      %1242 = vrot.lane.b32.xlu0 %v511, 56
      %v1243 = vpop.permute.xlu0 %1242
      %1244 = vrot.lane.b32.xlu0 %v514, 56
      %v1245 = vpop.permute.xlu0 %1244
      %1246 = vrot.lane.b32.xlu0 %v516, 56
      %v1247 = vpop.permute.xlu0 %1246
      %1248 = vrot.lane.b32.xlu0 %v519, 56
      %v1249 = vpop.permute.xlu0 %1248
      %1250 = vrot.lane.b32.xlu0 %v521, 56
      %v1251 = vpop.permute.xlu0 %1250
      %1252 = vrot.lane.b32.xlu0 %v524, 56
      %v1253 = vpop.permute.xlu0 %1252
      %1254 = vrot.lane.b32.xlu0 %v526, 56
      %v1255 = vpop.permute.xlu0 %1254
      %1256 = vrot.lane.b32.xlu0 %v529, 56
      %v1257 = vpop.permute.xlu0 %1256
      %1258 = vrot.lane.b32.xlu0 %v531, 56
      %v1259 = vpop.permute.xlu0 %1258
      %1260 = vrot.lane.b32.xlu0 %v534, 56
      %v1261 = vpop.permute.xlu0 %1260
      %1262 = vrot.lane.b32.xlu0 %v536, 56
      %v1263 = vpop.permute.xlu0 %1262
      %1264 = vrot.lane.b32.xlu0 %v539, 56
      %v1265 = vpop.permute.xlu0 %1264
      %1266 = vrot.lane.b32.xlu0 %v541, 56
      %v1267 = vpop.permute.xlu0 %1266
      %1268 = vrot.lane.b32.xlu0 %v544, 56
      %v1269 = vpop.permute.xlu0 %1268
      %1270 = vrot.lane.b32.xlu0 %v546, 56
      %v1271 = vpop.permute.xlu0 %1270
      %1272 = vrot.lane.b32.xlu0 %v632, 56
      %v1273 = vpop.permute.xlu0 %1272
      %1274 = vrot.lane.b32.xlu0 %v634, 56
      %v1275 = vpop.permute.xlu0 %1274
      %1276 = vrot.lane.b32.xlu0 %v469, 56
      %v1277 = vpop.permute.xlu0 %1276
      %1278 = vrot.lane.b32.xlu0 %v471, 56
      %v1279 = vpop.permute.xlu0 %1278
      %1312 = vrot.lane.b32.xlu0 %v560, 64
      %v1313 = vpop.permute.xlu0 %1312
      %1314 = vrot.lane.b32.xlu0 %v562, 64
      %v1315 = vpop.permute.xlu0 %1314
      %1316 = vrot.lane.b32.xlu0 %v565, 64
      %v1317 = vpop.permute.xlu0 %1316
      %1318 = vrot.lane.b32.xlu0 %v567, 64
      %v1319 = vpop.permute.xlu0 %1318
      %1320 = vrot.lane.b32.xlu0 %v570, 64
      %v1321 = vpop.permute.xlu0 %1320
      %1322 = vrot.lane.b32.xlu0 %v572, 64
      %v1323 = vpop.permute.xlu0 %1322
      %1324 = vrot.lane.b32.xlu0 %v575, 64
      %v1325 = vpop.permute.xlu0 %1324
      %1326 = vrot.lane.b32.xlu0 %v577, 64
      %v1327 = vpop.permute.xlu0 %1326
      %1328 = vrot.lane.b32.xlu0 %v580, 64
      %v1329 = vpop.permute.xlu0 %1328
      %1330 = vrot.lane.b32.xlu0 %v582, 64
      %v1331 = vpop.permute.xlu0 %1330
      %1332 = vrot.lane.b32.xlu0 %v585, 64
      %v1333 = vpop.permute.xlu0 %1332
      %1334 = vrot.lane.b32.xlu0 %v587, 64
      %v1335 = vpop.permute.xlu0 %1334
      %1336 = vrot.lane.b32.xlu0 %v590, 64
      %v1337 = vpop.permute.xlu0 %1336
      %1338 = vrot.lane.b32.xlu0 %v592, 64
      %v1339 = vpop.permute.xlu0 %1338
      %1340 = vrot.lane.b32.xlu0 %v595, 64
      %v1341 = vpop.permute.xlu0 %1340
      %1342 = vrot.lane.b32.xlu0 %v597, 64
      %v1343 = vpop.permute.xlu0 %1342
      %1344 = vrot.lane.b32.xlu0 %v600, 64
      %v1345 = vpop.permute.xlu0 %1344
      %1346 = vrot.lane.b32.xlu0 %v602, 64
      %v1347 = vpop.permute.xlu0 %1346
      %1348 = vrot.lane.b32.xlu0 %v605, 64
      %v1349 = vpop.permute.xlu0 %1348
      %1350 = vrot.lane.b32.xlu0 %v607, 64
      %v1351 = vpop.permute.xlu0 %1350
      %1352 = vrot.lane.b32.xlu0 %v610, 64
      %v1353 = vpop.permute.xlu0 %1352
      %1354 = vrot.lane.b32.xlu0 %v612, 64
      %v1355 = vpop.permute.xlu0 %1354
      %1356 = vrot.lane.b32.xlu0 %v615, 64
      %v1357 = vpop.permute.xlu0 %1356
      %1358 = vrot.lane.b32.xlu0 %v617, 64
      %v1359 = vpop.permute.xlu0 %1358
      %1360 = vrot.lane.b32.xlu0 %v620, 64
      %v1361 = vpop.permute.xlu0 %1360
      %1362 = vrot.lane.b32.xlu0 %v622, 64
      %v1363 = vpop.permute.xlu0 %1362
      %1364 = vrot.lane.b32.xlu0 %v625, 64
      %v1365 = vpop.permute.xlu0 %1364
      %1366 = vrot.lane.b32.xlu0 %v627, 64
      %v1367 = vpop.permute.xlu0 %1366
      %1368 = vrot.lane.b32.xlu0 %v637, 64
      %v1369 = vpop.permute.xlu0 %1368
      %1370 = vrot.lane.b32.xlu0 %v639, 64
      %v1371 = vpop.permute.xlu0 %1370
      %1372 = vrot.lane.b32.xlu0 %v550, 64
      %v1373 = vpop.permute.xlu0 %1372
      %1374 = vrot.lane.b32.xlu0 %v552, 64
      %v1375 = vpop.permute.xlu0 %1374
      %vm1408 = vcmask 64512
      %v1409 = vsel %vm1408, %v400, %v641
      %v1410 = vsel %vm1408, %v302, %v643
      %v1411 = vsel %vm1408, %v401, %v645
      %v1412 = vsel %vm1408, %v305, %v647
      %v1413 = vsel %vm1408, %v402, %v649
      %v1414 = vsel %vm1408, %v308, %v651
      %v1415 = vsel %vm1408, %v403, %v653
      %v1416 = vsel %vm1408, %v311, %v655
      %v1417 = vsel %vm1408, %v404, %v657
      %v1418 = vsel %vm1408, %v314, %v659
      %v1419 = vsel %vm1408, %v405, %v661
      %v1420 = vsel %vm1408, %v317, %v663
      %v1421 = vsel %vm1408, %v406, %v665
      %v1422 = vsel %vm1408, %v320, %v667
      %v1423 = vsel %vm1408, %v407, %v669
      %v1424 = vsel %vm1408, %v323, %v671
      %v1425 = vsel %vm1408, %v408, %v673
      %v1426 = vsel %vm1408, %v326, %v675
      %v1427 = vsel %vm1408, %v409, %v677
      %v1428 = vsel %vm1408, %v329, %v679
      %v1429 = vsel %vm1408, %v410, %v681
      %v1430 = vsel %vm1408, %v332, %v683
      %v1431 = vsel %vm1408, %v411, %v685
      %v1432 = vsel %vm1408, %v335, %v687
      %v1433 = vsel %vm1408, %v412, %v689
      %v1434 = vsel %vm1408, %v338, %v691
      %v1435 = vsel %vm1408, %v413, %v693
      %v1436 = vsel %vm1408, %v341, %v695
      %v1437 = vsel %vm1408, %v414, %v697
      %v1438 = vsel %vm1408, %v344, %v699
      %v1439 = vsel %vm1408, %v415, %v701
      %v1440 = vsel %vm1408, %v347, %v703
      %vm1441 = vcmask 130048
      %v1442 = vsel %vm1441, %v1409, %v737
      %v1443 = vsel %vm1441, %v1410, %v739
      %v1444 = vsel %vm1441, %v1411, %v741
      %v1445 = vsel %vm1441, %v1412, %v743
      %v1446 = vsel %vm1441, %v1413, %v745
      %v1447 = vsel %vm1441, %v1414, %v747
      %v1448 = vsel %vm1441, %v1415, %v749
      %v1449 = vsel %vm1441, %v1416, %v751
      %v1450 = vsel %vm1441, %v1417, %v753
      %v1451 = vsel %vm1441, %v1418, %v755
      %v1452 = vsel %vm1441, %v1419, %v757
      %v1453 = vsel %vm1441, %v1420, %v759
      %v1454 = vsel %vm1441, %v1421, %v761
      %v1455 = vsel %vm1441, %v1422, %v763
      %v1456 = vsel %vm1441, %v1423, %v765
      %v1457 = vsel %vm1441, %v1424, %v767
      %v1458 = vsel %vm1441, %v1425, %v769
      %v1459 = vsel %vm1441, %v1426, %v771
      %v1460 = vsel %vm1441, %v1427, %v773
      %v1461 = vsel %vm1441, %v1428, %v775
      %v1462 = vsel %vm1441, %v1429, %v777
      %v1463 = vsel %vm1441, %v1430, %v779
      %v1464 = vsel %vm1441, %v1431, %v781
      %v1465 = vsel %vm1441, %v1432, %v783
      %v1466 = vsel %vm1441, %v1433, %v785
      %v1467 = vsel %vm1441, %v1434, %v787
      %v1468 = vsel %vm1441, %v1435, %v789
      %v1469 = vsel %vm1441, %v1436, %v791
      %v1470 = vsel %vm1441, %v1437, %v793
      %v1471 = vsel %vm1441, %v1438, %v795
      %v1472 = vsel %vm1441, %v1439, %v797
      %v1473 = vsel %vm1441, %v1440, %v799
      %vm1474 = vcmask 195584
      %v1475 = vsel %vm1474, %v1442, %v833
      %v1476 = vsel %vm1474, %v1443, %v835
      %v1477 = vsel %vm1474, %v1444, %v837
      %v1478 = vsel %vm1474, %v1445, %v839
      %v1479 = vsel %vm1474, %v1446, %v841
      %v1480 = vsel %vm1474, %v1447, %v843
      %v1481 = vsel %vm1474, %v1448, %v845
      %v1482 = vsel %vm1474, %v1449, %v847
      %v1483 = vsel %vm1474, %v1450, %v849
      %v1484 = vsel %vm1474, %v1451, %v851
      %v1485 = vsel %vm1474, %v1452, %v853
      %v1486 = vsel %vm1474, %v1453, %v855
      %v1487 = vsel %vm1474, %v1454, %v857
      %v1488 = vsel %vm1474, %v1455, %v859
      %v1489 = vsel %vm1474, %v1456, %v861
      %v1490 = vsel %vm1474, %v1457, %v863
      %v1491 = vsel %vm1474, %v1458, %v865
      %v1492 = vsel %vm1474, %v1459, %v867
      %v1493 = vsel %vm1474, %v1460, %v869
      %v1494 = vsel %vm1474, %v1461, %v871
      %v1495 = vsel %vm1474, %v1462, %v873
      %v1496 = vsel %vm1474, %v1463, %v875
      %v1497 = vsel %vm1474, %v1464, %v877
      %v1498 = vsel %vm1474, %v1465, %v879
      %v1499 = vsel %vm1474, %v1466, %v881
      %v1500 = vsel %vm1474, %v1467, %v883
      %v1501 = vsel %vm1474, %v1468, %v885
      %v1502 = vsel %vm1474, %v1469, %v887
      %v1503 = vsel %vm1474, %v1470, %v889
      %v1504 = vsel %vm1474, %v1471, %v891
      %v1505 = vsel %vm1474, %v1472, %v893
      %v1506 = vsel %vm1474, %v1473, %v895
      %vm1507 = vcmask 261120
      %v1508 = vsel %vm1507, %v1475, %v929
      %v1509 = vsel %vm1507, %v1476, %v931
      %v1510 = vsel %vm1507, %v1477, %v933
      %v1511 = vsel %vm1507, %v1478, %v935
      %v1512 = vsel %vm1507, %v1479, %v937
      %v1513 = vsel %vm1507, %v1480, %v939
      %v1514 = vsel %vm1507, %v1481, %v941
      %v1515 = vsel %vm1507, %v1482, %v943
      %v1516 = vsel %vm1507, %v1483, %v945
      %v1517 = vsel %vm1507, %v1484, %v947
      %v1518 = vsel %vm1507, %v1485, %v949
      %v1519 = vsel %vm1507, %v1486, %v951
      %v1520 = vsel %vm1507, %v1487, %v953
      %v1521 = vsel %vm1507, %v1488, %v955
      %v1522 = vsel %vm1507, %v1489, %v957
      %v1523 = vsel %vm1507, %v1490, %v959
      %v1524 = vsel %vm1507, %v1491, %v961
      %v1525 = vsel %vm1507, %v1492, %v963
      %v1526 = vsel %vm1507, %v1493, %v965
      %v1527 = vsel %vm1507, %v1494, %v967
      %v1528 = vsel %vm1507, %v1495, %v969
      %v1529 = vsel %vm1507, %v1496, %v971
      %v1530 = vsel %vm1507, %v1497, %v973
      %v1531 = vsel %vm1507, %v1498, %v975
      %v1532 = vsel %vm1507, %v1499, %v977
      %v1533 = vsel %vm1507, %v1500, %v979
      %v1534 = vsel %vm1507, %v1501, %v981
      %v1535 = vsel %vm1507, %v1502, %v983
      %v1536 = vsel %vm1507, %v1503, %v985
      %v1537 = vsel %vm1507, %v1504, %v987
      %v1538 = vsel %vm1507, %v1505, %v989
      %v1539 = vsel %vm1507, %v1506, %v991
      %vm1540 = vcmask 326656
      %v1541 = vsel %vm1540, %v1508, %v1025
      %v1542 = vsel %vm1540, %v1509, %v1027
      %v1543 = vsel %vm1540, %v1510, %v1029
      %v1544 = vsel %vm1540, %v1511, %v1031
      %v1545 = vsel %vm1540, %v1512, %v1033
      %v1546 = vsel %vm1540, %v1513, %v1035
      %v1547 = vsel %vm1540, %v1514, %v1037
      %v1548 = vsel %vm1540, %v1515, %v1039
      %v1549 = vsel %vm1540, %v1516, %v1041
      %v1550 = vsel %vm1540, %v1517, %v1043
      %v1551 = vsel %vm1540, %v1518, %v1045
      %v1552 = vsel %vm1540, %v1519, %v1047
      %v1553 = vsel %vm1540, %v1520, %v1049
      %v1554 = vsel %vm1540, %v1521, %v1051
      %v1555 = vsel %vm1540, %v1522, %v1053
      %v1556 = vsel %vm1540, %v1523, %v1055
      %v1557 = vsel %vm1540, %v1524, %v1057
      %v1558 = vsel %vm1540, %v1525, %v1059
      %v1559 = vsel %vm1540, %v1526, %v1061
      %v1560 = vsel %vm1540, %v1527, %v1063
      %v1561 = vsel %vm1540, %v1528, %v1065
      %v1562 = vsel %vm1540, %v1529, %v1067
      %v1563 = vsel %vm1540, %v1530, %v1069
      %v1564 = vsel %vm1540, %v1531, %v1071
      %v1565 = vsel %vm1540, %v1532, %v1073
      %v1566 = vsel %vm1540, %v1533, %v1075
      %v1567 = vsel %vm1540, %v1534, %v1077
      %v1568 = vsel %vm1540, %v1535, %v1079
      %v1569 = vsel %vm1540, %v1536, %v1081
      %v1570 = vsel %vm1540, %v1537, %v1083
      %v1571 = vsel %vm1540, %v1538, %v1085
      %v1572 = vsel %vm1540, %v1539, %v1087
      %vm1573 = vcmask 392192
      %v1574 = vsel %vm1573, %v1541, %v1121
      %v1575 = vsel %vm1573, %v1542, %v1123
      %v1576 = vsel %vm1573, %v1543, %v1125
      %v1577 = vsel %vm1573, %v1544, %v1127
      %v1578 = vsel %vm1573, %v1545, %v1129
      %v1579 = vsel %vm1573, %v1546, %v1131
      %v1580 = vsel %vm1573, %v1547, %v1133
      %v1581 = vsel %vm1573, %v1548, %v1135
      %v1582 = vsel %vm1573, %v1549, %v1137
      %v1583 = vsel %vm1573, %v1550, %v1139
      %v1584 = vsel %vm1573, %v1551, %v1141
      %v1585 = vsel %vm1573, %v1552, %v1143
      %v1586 = vsel %vm1573, %v1553, %v1145
      %v1587 = vsel %vm1573, %v1554, %v1147
      %v1588 = vsel %vm1573, %v1555, %v1149
      %v1589 = vsel %vm1573, %v1556, %v1151
      %v1590 = vsel %vm1573, %v1557, %v1153
      %v1591 = vsel %vm1573, %v1558, %v1155
      %v1592 = vsel %vm1573, %v1559, %v1157
      %v1593 = vsel %vm1573, %v1560, %v1159
      %v1594 = vsel %vm1573, %v1561, %v1161
      %v1595 = vsel %vm1573, %v1562, %v1163
      %v1596 = vsel %vm1573, %v1563, %v1165
      %v1597 = vsel %vm1573, %v1564, %v1167
      %v1598 = vsel %vm1573, %v1565, %v1169
      %v1599 = vsel %vm1573, %v1566, %v1171
      %v1600 = vsel %vm1573, %v1567, %v1173
      %v1601 = vsel %vm1573, %v1568, %v1175
      %v1602 = vsel %vm1573, %v1569, %v1177
      %v1603 = vsel %vm1573, %v1570, %v1179
      %v1604 = vsel %vm1573, %v1571, %v1181
      %v1605 = vsel %vm1573, %v1572, %v1183
      %vm1606 = vcmask 457728
      %v1607 = vsel %vm1606, %v1574, %v1217
      %v1608 = vsel %vm1606, %v1575, %v1219
      %v1609 = vsel %vm1606, %v1576, %v1221
      %v1610 = vsel %vm1606, %v1577, %v1223
      %v1611 = vsel %vm1606, %v1578, %v1225
      %v1612 = vsel %vm1606, %v1579, %v1227
      %v1613 = vsel %vm1606, %v1580, %v1229
      %v1614 = vsel %vm1606, %v1581, %v1231
      %v1615 = vsel %vm1606, %v1582, %v1233
      %v1616 = vsel %vm1606, %v1583, %v1235
      %v1617 = vsel %vm1606, %v1584, %v1237
      %v1618 = vsel %vm1606, %v1585, %v1239
      %v1619 = vsel %vm1606, %v1586, %v1241
      %v1620 = vsel %vm1606, %v1587, %v1243
      %v1621 = vsel %vm1606, %v1588, %v1245
      %v1622 = vsel %vm1606, %v1589, %v1247
      %v1623 = vsel %vm1606, %v1590, %v1249
      %v1624 = vsel %vm1606, %v1591, %v1251
      %v1625 = vsel %vm1606, %v1592, %v1253
      %v1626 = vsel %vm1606, %v1593, %v1255
      %v1627 = vsel %vm1606, %v1594, %v1257
      %v1628 = vsel %vm1606, %v1595, %v1259
      %v1629 = vsel %vm1606, %v1596, %v1261
      %v1630 = vsel %vm1606, %v1597, %v1263
      %v1631 = vsel %vm1606, %v1598, %v1265
      %v1632 = vsel %vm1606, %v1599, %v1267
      %v1633 = vsel %vm1606, %v1600, %v1269
      %v1634 = vsel %vm1606, %v1601, %v1271
      %v1635 = vsel %vm1606, %v1602, %v1273
      %v1636 = vsel %vm1606, %v1603, %v1275
      %v1637 = vsel %vm1606, %v1604, %v1277
      %v1638 = vsel %vm1606, %v1605, %v1279
      %vm1639 = vcmask 523264
      %v1640 = vsel %vm1639, %v1607, %v1313
      %v1641 = vsel %vm1639, %v1608, %v1315
      %v1642 = vsel %vm1639, %v1609, %v1317
      %v1643 = vsel %vm1639, %v1610, %v1319
      %v1644 = vsel %vm1639, %v1611, %v1321
      %v1645 = vsel %vm1639, %v1612, %v1323
      %v1646 = vsel %vm1639, %v1613, %v1325
      %v1647 = vsel %vm1639, %v1614, %v1327
      %v1648 = vsel %vm1639, %v1615, %v1329
      %v1649 = vsel %vm1639, %v1616, %v1331
      %v1650 = vsel %vm1639, %v1617, %v1333
      %v1651 = vsel %vm1639, %v1618, %v1335
      %v1652 = vsel %vm1639, %v1619, %v1337
      %v1653 = vsel %vm1639, %v1620, %v1339
      %v1654 = vsel %vm1639, %v1621, %v1341
      %v1655 = vsel %vm1639, %v1622, %v1343
      %v1656 = vsel %vm1639, %v1623, %v1345
      %v1657 = vsel %vm1639, %v1624, %v1347
      %v1658 = vsel %vm1639, %v1625, %v1349
      %v1659 = vsel %vm1639, %v1626, %v1351
      %v1660 = vsel %vm1639, %v1627, %v1353
      %v1661 = vsel %vm1639, %v1628, %v1355
      %v1662 = vsel %vm1639, %v1629, %v1357
      %v1663 = vsel %vm1639, %v1630, %v1359
      %v1664 = vsel %vm1639, %v1631, %v1361
      %v1665 = vsel %vm1639, %v1632, %v1363
      %v1666 = vsel %vm1639, %v1633, %v1365
      %v1667 = vsel %vm1639, %v1634, %v1367
      %v1668 = vsel %vm1639, %v1635, %v1369
      %v1669 = vsel %vm1639, %v1636, %v1371
      %v1670 = vsel %vm1639, %v1637, %v1373
      %v1671 = vsel %vm1639, %v1638, %v1375
      %v1673 = vlaneseq
      %v1674 = vshrl.u32 %v1673, 7
      %v1675 = vsub.s32 0, %v1674
      %v1676 = vrot.slane %v266, %v1675
      %vm1678 = vcmask 588800
      %v1680 = vsel %vm1678, %v1640, 0
      %v1683 = vsel %vm1678, %v1641, 0
      %v1686 = vsel %vm1678, %v1642, 0
      %v1689 = vsel %vm1678, %v1643, 0
      %v1692 = vsel %vm1678, %v1644, 0
      %v1695 = vsel %vm1678, %v1645, 0
      %v1698 = vsel %vm1678, %v1646, 0
      %v1701 = vsel %vm1678, %v1647, 0
      %v1704 = vsel %vm1678, %v1648, 0
      %v1707 = vsel %vm1678, %v1649, 0
      %v1710 = vsel %vm1678, %v1650, 0
      %v1713 = vsel %vm1678, %v1651, 0
      %v1716 = vsel %vm1678, %v1652, 0
      %v1719 = vsel %vm1678, %v1653, 0
      %v1722 = vsel %vm1678, %v1654, 0
      %v1725 = vsel %vm1678, %v1655, 0
      %v1728 = vsel %vm1678, %v1656, 0
      %v1731 = vsel %vm1678, %v1657, 0
      %v1734 = vsel %vm1678, %v1658, 0
      %v1737 = vsel %vm1678, %v1659, 0
      %v1740 = vsel %vm1678, %v1660, 0
      %v1743 = vsel %vm1678, %v1661, 0
      %v1746 = vsel %vm1678, %v1662, 0
      %v1749 = vsel %vm1678, %v1663, 0
      %v1752 = vsel %vm1678, %v1664, 0
      %v1755 = vsel %vm1678, %v1665, 0
      %v1758 = vsel %vm1678, %v1666, 0
      %v1761 = vsel %vm1678, %v1667, 0
      %v1764 = vsel %vm1678, %v1668, 0
      %v1767 = vsel %vm1678, %v1669, 0
      %v1770 = vsel %vm1678, %v1670, 0
      %v1773 = vsel %vm1678, %v1671, 0
      %1775 = vmatprep.subr.mxu0 0.0
      %1776 = vmatpush1.msra.mxu0 %v257
      %1777 = vmatprep.subr.mxu0 0.0
      %1778 = vmatpush1.msra.mxu0 %v258
      %1779 = vmatprep.subr.mxu0 0.0
      %1780 = vmatpush1.msra.mxu0 %v259
      %1781 = vmatprep.subr.mxu0 0.0
      %1782 = vmatpush1.msra.mxu0 %v260
      %1783 = vmatprep.subr.mxu0 0.0
      %1784 = vmatpush1.msra.mxu0 %v261
      %1785 = vmatprep.subr.mxu0 0.0
      %1786 = vmatpush1.msra.mxu0 %v262
      %1787 = vmatprep.subr.mxu0 0.0
      %1788 = vmatpush1.msra.mxu0 %v263
      %1789 = vmatprep.subr.mxu0 0.0
      %1790 = vmatpush1.msra.mxu0 %v264
      %1791 = vmatprep.subr.mxu0 0.0
      %1792 = vmatpush1.msra.mxu0 %v265
      %1793 = vmatprep.subr.mxu0 0.0
      %1794 = vmatpush1.msra.mxu0 0.0
      %1795 = vmatprep.subr.mxu0 0.0
      %1796 = vmatpush1.msra.mxu0 0.0
      %1797 = vmatprep.subr.mxu0 0.0
      %1798 = vmatpush1.msra.mxu0 0.0
      %1799 = vmatprep.subr.mxu0 0.0
      %1800 = vmatpush1.msra.mxu0 0.0
      %1801 = vmatprep.subr.mxu0 0.0
      %1802 = vmatpush1.msra.mxu0 0.0
      %1803 = vmatprep.subr.mxu0 0.0
      %1804 = vmatpush1.msra.mxu0 0.0
      %1805 = vmatprep.subr.mxu0 0.0
      %1806 = vmatpush1.msra.mxu0 0.0
      %1807 = vmatprep.subr.mxu0 0.0
      %1808 = vmatpush1.msra.mxu0 0.0
      %1809 = vmatprep.subr.mxu0 0.0
      %1810 = vmatpush1.msra.mxu0 0.0
      %1811 = vmatprep.subr.mxu0 0.0
      %1812 = vmatpush1.msra.mxu0 0.0
      %1813 = vmatprep.subr.mxu0 0.0
      %1814 = vmatpush1.msra.mxu0 0.0
      %1815 = vmatprep.subr.mxu0 0.0
      %1816 = vmatpush1.msra.mxu0 0.0
      %1817 = vmatprep.subr.mxu0 0.0
      %1818 = vmatpush1.msra.mxu0 0.0
      %1819 = vmatprep.subr.mxu0 0.0
      %1820 = vmatpush1.msra.mxu0 0.0
      %1821 = vmatprep.subr.mxu0 0.0
      %1822 = vmatpush1.msra.mxu0 0.0
      %1823 = vmatprep.subr.mxu0 0.0
      %1824 = vmatpush1.msra.mxu0 0.0
      %1825 = vmatprep.subr.mxu0 0.0
      %1826 = vmatpush1.msra.mxu0 0.0
      %1827 = vmatprep.subr.mxu0 0.0
      %1828 = vmatpush1.msra.mxu0 0.0
      %1829 = vmatprep.subr.mxu0 0.0
      %1830 = vmatpush1.msra.mxu0 0.0
      %1831 = vmatprep.subr.mxu0 0.0
      %1832 = vmatpush1.msra.mxu0 0.0
      %1833 = vmatprep.subr.mxu0 0.0
      %1834 = vmatpush1.msra.mxu0 0.0
      %1835 = vmatprep.subr.mxu0 0.0
      %1836 = vmatpush1.msra.mxu0 0.0
      %1837 = vmatprep.subr.mxu0 0.0
      %1838 = vmatpush1.msra.mxu0 0.0
      %1839 = vmatprep.mubr.f32.mxu0 0.0
      %1840 = vmatmul.mubr.f32.gmra.mrb[0].mxu0 %v1680
      %v1841 = vpop.f32.mrb[0].mxu0
      %v1842 = vadd.f32 %v1676, %v1841
      %v1843 = vpop.f32.mrb[0].mxu0
      %1844 = vmatprep.mubr.f32.mxu0 0.0
      %1845 = vmatmul.mubr.f32.gmra.mrb[0].mxu0 %v1683
      %v1846 = vpop.f32.mrb[0].mxu0
      %v1847 = vadd.f32 %v1676, %v1846
      %v1848 = vpop.f32.mrb[0].mxu0
      %1849 = vmatprep.mubr.f32.mxu0 0.0
      %1850 = vmatmul.mubr.f32.gmra.mrb[0].mxu0 %v1686
      %v1851 = vpop.f32.mrb[0].mxu0
      %v1852 = vadd.f32 %v1676, %v1851
      %v1853 = vpop.f32.mrb[0].mxu0
      %1854 = vmatprep.mubr.f32.mxu0 0.0
      %1855 = vmatmul.mubr.f32.gmra.mrb[0].mxu0 %v1689
      %v1856 = vpop.f32.mrb[0].mxu0
      %v1857 = vadd.f32 %v1676, %v1856
      %v1858 = vpop.f32.mrb[0].mxu0
      %1859 = vmatprep.mubr.f32.mxu0 0.0
      %1860 = vmatmul.mubr.f32.gmra.mrb[0].mxu0 %v1692
      %v1861 = vpop.f32.mrb[0].mxu0
      %v1862 = vadd.f32 %v1676, %v1861
      %v1863 = vpop.f32.mrb[0].mxu0
      %1864 = vmatprep.mubr.f32.mxu0 0.0
      %1865 = vmatmul.mubr.f32.gmra.mrb[0].mxu0 %v1695
      %v1866 = vpop.f32.mrb[0].mxu0
      %v1867 = vadd.f32 %v1676, %v1866
      %v1868 = vpop.f32.mrb[0].mxu0
      %1869 = vmatprep.mubr.f32.mxu0 0.0
      %1870 = vmatmul.mubr.f32.gmra.mrb[0].mxu0 %v1698
      %v1871 = vpop.f32.mrb[0].mxu0
      %v1872 = vadd.f32 %v1676, %v1871
      %v1873 = vpop.f32.mrb[0].mxu0
      %1874 = vmatprep.mubr.f32.mxu0 0.0
      %1875 = vmatmul.mubr.f32.gmra.mrb[0].mxu0 %v1701
      %v1876 = vpop.f32.mrb[0].mxu0
      %v1877 = vadd.f32 %v1676, %v1876
      %v1878 = vpop.f32.mrb[0].mxu0
      %1879 = vmatprep.mubr.f32.mxu0 0.0
      %1880 = vmatmul.mubr.f32.gmra.mrb[0].mxu0 %v1704
      %v1881 = vpop.f32.mrb[0].mxu0
      %v1882 = vadd.f32 %v1676, %v1881
      %v1883 = vpop.f32.mrb[0].mxu0
      %1884 = vmatprep.mubr.f32.mxu0 0.0
      %1885 = vmatmul.mubr.f32.gmra.mrb[0].mxu0 %v1707
      %v1886 = vpop.f32.mrb[0].mxu0
      %v1887 = vadd.f32 %v1676, %v1886
      %v1888 = vpop.f32.mrb[0].mxu0
      %1889 = vmatprep.mubr.f32.mxu0 0.0
      %1890 = vmatmul.mubr.f32.gmra.mrb[0].mxu0 %v1710
      %v1891 = vpop.f32.mrb[0].mxu0
      %v1892 = vadd.f32 %v1676, %v1891
      %v1893 = vpop.f32.mrb[0].mxu0
      %1894 = vmatprep.mubr.f32.mxu0 0.0
      %1895 = vmatmul.mubr.f32.gmra.mrb[0].mxu0 %v1713
      %v1896 = vpop.f32.mrb[0].mxu0
      %v1897 = vadd.f32 %v1676, %v1896
      %v1898 = vpop.f32.mrb[0].mxu0
      %1899 = vmatprep.mubr.f32.mxu0 0.0
      %1900 = vmatmul.mubr.f32.gmra.mrb[0].mxu0 %v1716
      %v1901 = vpop.f32.mrb[0].mxu0
      %v1902 = vadd.f32 %v1676, %v1901
      %v1903 = vpop.f32.mrb[0].mxu0
      %1904 = vmatprep.mubr.f32.mxu0 0.0
      %1905 = vmatmul.mubr.f32.gmra.mrb[0].mxu0 %v1719
      %v1906 = vpop.f32.mrb[0].mxu0
      %v1907 = vadd.f32 %v1676, %v1906
      %v1908 = vpop.f32.mrb[0].mxu0
      %1909 = vmatprep.mubr.f32.mxu0 0.0
      %1910 = vmatmul.mubr.f32.gmra.mrb[0].mxu0 %v1722
      %v1911 = vpop.f32.mrb[0].mxu0
      %v1912 = vadd.f32 %v1676, %v1911
      %v1913 = vpop.f32.mrb[0].mxu0
      %1914 = vmatprep.mubr.f32.mxu0 0.0
      %1915 = vmatmul.mubr.f32.gmra.mrb[0].mxu0 %v1725
      %v1916 = vpop.f32.mrb[0].mxu0
      %v1917 = vadd.f32 %v1676, %v1916
      %v1918 = vpop.f32.mrb[0].mxu0
      %1919 = vmatprep.mubr.f32.mxu0 0.0
      %1920 = vmatmul.mubr.f32.gmra.mrb[0].mxu0 %v1728
      %v1921 = vpop.f32.mrb[0].mxu0
      %v1922 = vadd.f32 %v1676, %v1921
      %v1923 = vpop.f32.mrb[0].mxu0
      %1924 = vmatprep.mubr.f32.mxu0 0.0
      %1925 = vmatmul.mubr.f32.gmra.mrb[0].mxu0 %v1731
      %v1926 = vpop.f32.mrb[0].mxu0
      %v1927 = vadd.f32 %v1676, %v1926
      %v1928 = vpop.f32.mrb[0].mxu0
      %1929 = vmatprep.mubr.f32.mxu0 0.0
      %1930 = vmatmul.mubr.f32.gmra.mrb[0].mxu0 %v1734
      %v1931 = vpop.f32.mrb[0].mxu0
      %v1932 = vadd.f32 %v1676, %v1931
      %v1933 = vpop.f32.mrb[0].mxu0
      %1934 = vmatprep.mubr.f32.mxu0 0.0
      %1935 = vmatmul.mubr.f32.gmra.mrb[0].mxu0 %v1737
      %v1936 = vpop.f32.mrb[0].mxu0
      %v1937 = vadd.f32 %v1676, %v1936
      %v1938 = vpop.f32.mrb[0].mxu0
      %1939 = vmatprep.mubr.f32.mxu0 0.0
      %1940 = vmatmul.mubr.f32.gmra.mrb[0].mxu0 %v1740
      %v1941 = vpop.f32.mrb[0].mxu0
      %v1942 = vadd.f32 %v1676, %v1941
      %v1943 = vpop.f32.mrb[0].mxu0
      %1944 = vmatprep.mubr.f32.mxu0 0.0
      %1945 = vmatmul.mubr.f32.gmra.mrb[0].mxu0 %v1743
      %v1946 = vpop.f32.mrb[0].mxu0
      %v1947 = vadd.f32 %v1676, %v1946
      %v1948 = vpop.f32.mrb[0].mxu0
      %1949 = vmatprep.mubr.f32.mxu0 0.0
      %1950 = vmatmul.mubr.f32.gmra.mrb[0].mxu0 %v1746
      %v1951 = vpop.f32.mrb[0].mxu0
      %v1952 = vadd.f32 %v1676, %v1951
      %v1953 = vpop.f32.mrb[0].mxu0
      %1954 = vmatprep.mubr.f32.mxu0 0.0
      %1955 = vmatmul.mubr.f32.gmra.mrb[0].mxu0 %v1749
      %v1956 = vpop.f32.mrb[0].mxu0
      %v1957 = vadd.f32 %v1676, %v1956
      %v1958 = vpop.f32.mrb[0].mxu0
      %1959 = vmatprep.mubr.f32.mxu0 0.0
      %1960 = vmatmul.mubr.f32.gmra.mrb[0].mxu0 %v1752
      %v1961 = vpop.f32.mrb[0].mxu0
      %v1962 = vadd.f32 %v1676, %v1961
      %v1963 = vpop.f32.mrb[0].mxu0
      %1964 = vmatprep.mubr.f32.mxu0 0.0
      %1965 = vmatmul.mubr.f32.gmra.mrb[0].mxu0 %v1755
      %v1966 = vpop.f32.mrb[0].mxu0
      %v1967 = vadd.f32 %v1676, %v1966
      %v1968 = vpop.f32.mrb[0].mxu0
      %1969 = vmatprep.mubr.f32.mxu0 0.0
      %1970 = vmatmul.mubr.f32.gmra.mrb[0].mxu0 %v1758
      %v1971 = vpop.f32.mrb[0].mxu0
      %v1972 = vadd.f32 %v1676, %v1971
      %v1973 = vpop.f32.mrb[0].mxu0
      %1974 = vmatprep.mubr.f32.mxu0 0.0
      %1975 = vmatmul.mubr.f32.gmra.mrb[0].mxu0 %v1761
      %v1976 = vpop.f32.mrb[0].mxu0
      %v1977 = vadd.f32 %v1676, %v1976
      %v1978 = vpop.f32.mrb[0].mxu0
      %1979 = vmatprep.mubr.f32.mxu0 0.0
      %1980 = vmatmul.mubr.f32.gmra.mrb[0].mxu0 %v1764
      %v1981 = vpop.f32.mrb[0].mxu0
      %v1982 = vadd.f32 %v1676, %v1981
      %v1983 = vpop.f32.mrb[0].mxu0
      %1984 = vmatprep.mubr.f32.mxu0 0.0
      %1985 = vmatmul.mubr.f32.gmra.mrb[0].mxu0 %v1767
      %v1986 = vpop.f32.mrb[0].mxu0
      %v1987 = vadd.f32 %v1676, %v1986
      %v1988 = vpop.f32.mrb[0].mxu0
      %1989 = vmatprep.mubr.f32.mxu0 0.0
      %1990 = vmatmul.mubr.f32.gmra.mrb[0].mxu0 %v1770
      %v1991 = vpop.f32.mrb[0].mxu0
      %v1992 = vadd.f32 %v1676, %v1991
      %v1993 = vpop.f32.mrb[0].mxu0
      %1994 = vmatprep.mubr.f32.mxu0 0.0
      %1995 = vmatmul.mubr.f32.gmra.mrb[0].mxu0 %v1773
      %v1996 = vpop.f32.mrb[0].mxu0
      %v1997 = vadd.f32 %v1676, %v1996
      %v1998 = vpop.f32.mrb[0].mxu0
      %1999 = vdwg.mxu0
      %v2000 = vmax.f32 %v1842, 0.0
      %v2001 = vmax.f32 %v1847, 0.0
      %v2002 = vmax.f32 %v1852, 0.0
      %v2003 = vmax.f32 %v1857, 0.0
      %v2004 = vmax.f32 %v1862, 0.0
      %v2005 = vmax.f32 %v1867, 0.0
      %v2006 = vmax.f32 %v1872, 0.0
      %v2007 = vmax.f32 %v1877, 0.0
      %v2008 = vmax.f32 %v1882, 0.0
      %v2009 = vmax.f32 %v1887, 0.0
      %v2010 = vmax.f32 %v1892, 0.0
      %v2011 = vmax.f32 %v1897, 0.0
      %v2012 = vmax.f32 %v1902, 0.0
      %v2013 = vmax.f32 %v1907, 0.0
      %v2014 = vmax.f32 %v1912, 0.0
      %v2015 = vmax.f32 %v1917, 0.0
      %v2016 = vmax.f32 %v1922, 0.0
      %v2017 = vmax.f32 %v1927, 0.0
      %v2018 = vmax.f32 %v1932, 0.0
      %v2019 = vmax.f32 %v1937, 0.0
      %v2020 = vmax.f32 %v1942, 0.0
      %v2021 = vmax.f32 %v1947, 0.0
      %v2022 = vmax.f32 %v1952, 0.0
      %v2023 = vmax.f32 %v1957, 0.0
      %v2024 = vmax.f32 %v1962, 0.0
      %v2025 = vmax.f32 %v1967, 0.0
      %v2026 = vmax.f32 %v1972, 0.0
      %v2027 = vmax.f32 %v1977, 0.0
      %v2028 = vmax.f32 %v1982, 0.0
      %v2029 = vmax.f32 %v1987, 0.0
      %v2030 = vmax.f32 %v1992, 0.0
      %v2031 = vmax.f32 %v1997, 0.0
      %v2032 = vsel %vm1639, %v2000, -inf
      %v2033 = vsel %vm1639, %v2002, -inf
      %v2034 = vmax.f32 %v2032, %v2033
      %v2035 = vsel %vm1639, %v2001, -inf
      %v2036 = vsel %vm1639, %v2003, -inf
      %v2037 = vmax.f32 %v2035, %v2036
      %v2038 = vsel %vm1639, %v2004, -inf
      %v2039 = vsel %vm1639, %v2006, -inf
      %v2040 = vmax.f32 %v2033, %v2039
      %v2041 = vmax.f32 %v2040, %v2038
      %v2042 = vsel %vm1639, %v2005, -inf
      %v2043 = vsel %vm1639, %v2007, -inf
      %v2044 = vmax.f32 %v2036, %v2043
      %v2045 = vmax.f32 %v2044, %v2042
      %v2046 = vsel %vm1639, %v2008, -inf
      %v2047 = vsel %vm1639, %v2010, -inf
      %v2048 = vmax.f32 %v2039, %v2047
      %v2049 = vmax.f32 %v2048, %v2046
      %v2050 = vsel %vm1639, %v2009, -inf
      %v2051 = vsel %vm1639, %v2011, -inf
      %v2052 = vmax.f32 %v2043, %v2051
      %v2053 = vmax.f32 %v2052, %v2050
      %v2054 = vsel %vm1639, %v2012, -inf
      %v2055 = vsel %vm1639, %v2014, -inf
      %v2056 = vmax.f32 %v2047, %v2055
      %v2057 = vmax.f32 %v2056, %v2054
      %v2058 = vsel %vm1639, %v2013, -inf
      %v2059 = vsel %vm1639, %v2015, -inf
      %v2060 = vmax.f32 %v2051, %v2059
      %v2061 = vmax.f32 %v2060, %v2058
      %v2062 = vsel %vm1639, %v2016, -inf
      %v2063 = vsel %vm1639, %v2018, -inf
      %v2064 = vmax.f32 %v2055, %v2063
      %v2065 = vmax.f32 %v2064, %v2062
      %v2066 = vsel %vm1639, %v2017, -inf
      %v2067 = vsel %vm1639, %v2019, -inf
      %v2068 = vmax.f32 %v2059, %v2067
      %v2069 = vmax.f32 %v2068, %v2066
      %v2070 = vsel %vm1639, %v2020, -inf
      %v2071 = vsel %vm1639, %v2022, -inf
      %v2072 = vmax.f32 %v2063, %v2071
      %v2073 = vmax.f32 %v2072, %v2070
      %v2074 = vsel %vm1639, %v2021, -inf
      %v2075 = vsel %vm1639, %v2023, -inf
      %v2076 = vmax.f32 %v2067, %v2075
      %v2077 = vmax.f32 %v2076, %v2074
      %v2078 = vsel %vm1639, %v2024, -inf
      %v2079 = vsel %vm1639, %v2026, -inf
      %v2080 = vmax.f32 %v2071, %v2079
      %v2081 = vmax.f32 %v2080, %v2078
      %v2082 = vsel %vm1639, %v2025, -inf
      %v2083 = vsel %vm1639, %v2027, -inf
      %v2084 = vmax.f32 %v2075, %v2083
      %v2085 = vmax.f32 %v2084, %v2082
      %v2086 = vsel %vm1639, %v2028, -inf
      %v2087 = vsel %vm1639, %v2030, -inf
      %v2088 = vmax.f32 %v2079, %v2087
      %v2089 = vmax.f32 %v2088, %v2086
      %v2090 = vsel %vm1639, %v2029, -inf
      %v2091 = vsel %vm1639, %v2031, -inf
      %v2092 = vmax.f32 %v2083, %v2091
      %v2093 = vmax.f32 %v2092, %v2090
      %vm2094 = vcmask 517120
      %v2095 = vsel %vm2094, %v2034, -inf
      %v2096 = vrot.slane %v2095, 4
      %v2097 = vmax.f32 %v2095, %v2096
      %v2098 = vrot.slane %v2097, 2
      %v2099 = vmax.f32 %v2097, %v2098
      %v2100 = vrot.slane %v2099, 1
      %v2101 = vmax.f32 %v2099, %v2100
      %v2102 = vsel %vm2094, %v2041, -inf
      %v2103 = vrot.slane %v2102, 4
      %v2104 = vmax.f32 %v2102, %v2103
      %v2105 = vrot.slane %v2104, 2
      %v2106 = vmax.f32 %v2104, %v2105
      %v2107 = vrot.slane %v2106, 1
      %v2108 = vmax.f32 %v2106, %v2107
      %v2109 = vsel %vm2094, %v2049, -inf
      %v2110 = vrot.slane %v2109, 4
      %v2111 = vmax.f32 %v2109, %v2110
      %v2112 = vrot.slane %v2111, 2
      %v2113 = vmax.f32 %v2111, %v2112
      %v2114 = vrot.slane %v2113, 1
      %v2115 = vmax.f32 %v2113, %v2114
      %v2116 = vsel %vm2094, %v2057, -inf
      %v2117 = vrot.slane %v2116, 4
      %v2118 = vmax.f32 %v2116, %v2117
      %v2119 = vrot.slane %v2118, 2
      %v2120 = vmax.f32 %v2118, %v2119
      %v2121 = vrot.slane %v2120, 1
      %v2122 = vmax.f32 %v2120, %v2121
      %v2123 = vsel %vm2094, %v2065, -inf
      %v2124 = vrot.slane %v2123, 4
      %v2125 = vmax.f32 %v2123, %v2124
      %v2126 = vrot.slane %v2125, 2
      %v2127 = vmax.f32 %v2125, %v2126
      %v2128 = vrot.slane %v2127, 1
      %v2129 = vmax.f32 %v2127, %v2128
      %v2130 = vsel %vm2094, %v2073, -inf
      %v2131 = vrot.slane %v2130, 4
      %v2132 = vmax.f32 %v2130, %v2131
      %v2133 = vrot.slane %v2132, 2
      %v2134 = vmax.f32 %v2132, %v2133
      %v2135 = vrot.slane %v2134, 1
      %v2136 = vmax.f32 %v2134, %v2135
      %v2137 = vsel %vm2094, %v2081, -inf
      %v2138 = vrot.slane %v2137, 4
      %v2139 = vmax.f32 %v2137, %v2138
      %v2140 = vrot.slane %v2139, 2
      %v2141 = vmax.f32 %v2139, %v2140
      %v2142 = vrot.slane %v2141, 1
      %v2143 = vmax.f32 %v2141, %v2142
      %v2144 = vsel %vm2094, %v2089, -inf
      %v2145 = vrot.slane %v2144, 4
      %v2146 = vmax.f32 %v2144, %v2145
      %v2147 = vrot.slane %v2146, 2
      %v2148 = vmax.f32 %v2146, %v2147
      %v2149 = vrot.slane %v2148, 1
      %v2150 = vmax.f32 %v2148, %v2149
      %vm2151 = vcmask 519169
      %v2152 = vsel %vm2151, %v2034, -inf
      %v2153 = vrot.slane %v2152, 4
      %v2154 = vmax.f32 %v2152, %v2153
      %v2155 = vrot.slane %v2154, 2
      %v2156 = vmax.f32 %v2154, %v2155
      %v2157 = vrot.slane %v2156, 1
      %v2158 = vmax.f32 %v2156, %v2157
      %v2159 = vsel %vm2151, %v2041, -inf
      %v2160 = vrot.slane %v2159, 4
      %v2161 = vmax.f32 %v2159, %v2160
      %v2162 = vrot.slane %v2161, 2
      %v2163 = vmax.f32 %v2161, %v2162
      %v2164 = vrot.slane %v2163, 1
      %v2165 = vmax.f32 %v2163, %v2164
      %v2166 = vsel %vm2151, %v2049, -inf
      %v2167 = vrot.slane %v2166, 4
      %v2168 = vmax.f32 %v2166, %v2167
      %v2169 = vrot.slane %v2168, 2
      %v2170 = vmax.f32 %v2168, %v2169
      %v2171 = vrot.slane %v2170, 1
      %v2172 = vmax.f32 %v2170, %v2171
      %v2173 = vsel %vm2151, %v2057, -inf
      %v2174 = vrot.slane %v2173, 4
      %v2175 = vmax.f32 %v2173, %v2174
      %v2176 = vrot.slane %v2175, 2
      %v2177 = vmax.f32 %v2175, %v2176
      %v2178 = vrot.slane %v2177, 1
      %v2179 = vmax.f32 %v2177, %v2178
      %v2180 = vsel %vm2151, %v2065, -inf
      %v2181 = vrot.slane %v2180, 4
      %v2182 = vmax.f32 %v2180, %v2181
      %v2183 = vrot.slane %v2182, 2
      %v2184 = vmax.f32 %v2182, %v2183
      %v2185 = vrot.slane %v2184, 1
      %v2186 = vmax.f32 %v2184, %v2185
      %v2187 = vsel %vm2151, %v2073, -inf
      %v2188 = vrot.slane %v2187, 4
      %v2189 = vmax.f32 %v2187, %v2188
      %v2190 = vrot.slane %v2189, 2
      %v2191 = vmax.f32 %v2189, %v2190
      %v2192 = vrot.slane %v2191, 1
      %v2193 = vmax.f32 %v2191, %v2192
      %v2194 = vsel %vm2151, %v2081, -inf
      %v2195 = vrot.slane %v2194, 4
      %v2196 = vmax.f32 %v2194, %v2195
      %v2197 = vrot.slane %v2196, 2
      %v2198 = vmax.f32 %v2196, %v2197
      %v2199 = vrot.slane %v2198, 1
      %v2200 = vmax.f32 %v2198, %v2199
      %v2201 = vsel %vm2151, %v2089, -inf
      %v2202 = vrot.slane %v2201, 4
      %v2203 = vmax.f32 %v2201, %v2202
      %v2204 = vrot.slane %v2203, 2
      %v2205 = vmax.f32 %v2203, %v2204
      %v2206 = vrot.slane %v2205, 1
      %v2207 = vmax.f32 %v2205, %v2206
      %vm2208 = vcmask 521219
      %v2209 = vsel %vm2208, %v2034, -inf
      %v2210 = vrot.slane %v2209, 4
      %v2211 = vmax.f32 %v2209, %v2210
      %v2212 = vrot.slane %v2211, 2
      %v2213 = vmax.f32 %v2211, %v2212
      %v2214 = vrot.slane %v2213, 1
      %v2215 = vmax.f32 %v2213, %v2214
      %v2216 = vsel %vm2208, %v2041, -inf
      %v2217 = vrot.slane %v2216, 4
      %v2218 = vmax.f32 %v2216, %v2217
      %v2219 = vrot.slane %v2218, 2
      %v2220 = vmax.f32 %v2218, %v2219
      %v2221 = vrot.slane %v2220, 1
      %v2222 = vmax.f32 %v2220, %v2221
      %v2223 = vsel %vm2208, %v2049, -inf
      %v2224 = vrot.slane %v2223, 4
      %v2225 = vmax.f32 %v2223, %v2224
      %v2226 = vrot.slane %v2225, 2
      %v2227 = vmax.f32 %v2225, %v2226
      %v2228 = vrot.slane %v2227, 1
      %v2229 = vmax.f32 %v2227, %v2228
      %v2230 = vsel %vm2208, %v2057, -inf
      %v2231 = vrot.slane %v2230, 4
      %v2232 = vmax.f32 %v2230, %v2231
      %v2233 = vrot.slane %v2232, 2
      %v2234 = vmax.f32 %v2232, %v2233
      %v2235 = vrot.slane %v2234, 1
      %v2236 = vmax.f32 %v2234, %v2235
      %v2237 = vsel %vm2208, %v2065, -inf
      %v2238 = vrot.slane %v2237, 4
      %v2239 = vmax.f32 %v2237, %v2238
      %v2240 = vrot.slane %v2239, 2
      %v2241 = vmax.f32 %v2239, %v2240
      %v2242 = vrot.slane %v2241, 1
      %v2243 = vmax.f32 %v2241, %v2242
      %v2244 = vsel %vm2208, %v2073, -inf
      %v2245 = vrot.slane %v2244, 4
      %v2246 = vmax.f32 %v2244, %v2245
      %v2247 = vrot.slane %v2246, 2
      %v2248 = vmax.f32 %v2246, %v2247
      %v2249 = vrot.slane %v2248, 1
      %v2250 = vmax.f32 %v2248, %v2249
      %v2251 = vsel %vm2208, %v2081, -inf
      %v2252 = vrot.slane %v2251, 4
      %v2253 = vmax.f32 %v2251, %v2252
      %v2254 = vrot.slane %v2253, 2
      %v2255 = vmax.f32 %v2253, %v2254
      %v2256 = vrot.slane %v2255, 1
      %v2257 = vmax.f32 %v2255, %v2256
      %v2258 = vsel %vm2208, %v2089, -inf
      %v2259 = vrot.slane %v2258, 4
      %v2260 = vmax.f32 %v2258, %v2259
      %v2261 = vrot.slane %v2260, 2
      %v2262 = vmax.f32 %v2260, %v2261
      %v2263 = vrot.slane %v2262, 1
      %v2264 = vmax.f32 %v2262, %v2263
      %vm2265 = vcmask 523269
      %v2266 = vsel %vm2265, %v2034, -inf
      %v2267 = vrot.slane %v2266, 4
      %v2268 = vmax.f32 %v2266, %v2267
      %v2269 = vrot.slane %v2268, 2
      %v2270 = vmax.f32 %v2268, %v2269
      %v2271 = vrot.slane %v2270, 1
      %v2272 = vmax.f32 %v2270, %v2271
      %v2273 = vsel %vm2265, %v2041, -inf
      %v2274 = vrot.slane %v2273, 4
      %v2275 = vmax.f32 %v2273, %v2274
      %v2276 = vrot.slane %v2275, 2
      %v2277 = vmax.f32 %v2275, %v2276
      %v2278 = vrot.slane %v2277, 1
      %v2279 = vmax.f32 %v2277, %v2278
      %v2280 = vsel %vm2265, %v2049, -inf
      %v2281 = vrot.slane %v2280, 4
      %v2282 = vmax.f32 %v2280, %v2281
      %v2283 = vrot.slane %v2282, 2
      %v2284 = vmax.f32 %v2282, %v2283
      %v2285 = vrot.slane %v2284, 1
      %v2286 = vmax.f32 %v2284, %v2285
      %v2287 = vsel %vm2265, %v2057, -inf
      %v2288 = vrot.slane %v2287, 4
      %v2289 = vmax.f32 %v2287, %v2288
      %v2290 = vrot.slane %v2289, 2
      %v2291 = vmax.f32 %v2289, %v2290
      %v2292 = vrot.slane %v2291, 1
      %v2293 = vmax.f32 %v2291, %v2292
      %v2294 = vsel %vm2265, %v2065, -inf
      %v2295 = vrot.slane %v2294, 4
      %v2296 = vmax.f32 %v2294, %v2295
      %v2297 = vrot.slane %v2296, 2
      %v2298 = vmax.f32 %v2296, %v2297
      %v2299 = vrot.slane %v2298, 1
      %v2300 = vmax.f32 %v2298, %v2299
      %v2301 = vsel %vm2265, %v2073, -inf
      %v2302 = vrot.slane %v2301, 4
      %v2303 = vmax.f32 %v2301, %v2302
      %v2304 = vrot.slane %v2303, 2
      %v2305 = vmax.f32 %v2303, %v2304
      %v2306 = vrot.slane %v2305, 1
      %v2307 = vmax.f32 %v2305, %v2306
      %v2308 = vsel %vm2265, %v2081, -inf
      %v2309 = vrot.slane %v2308, 4
      %v2310 = vmax.f32 %v2308, %v2309
      %v2311 = vrot.slane %v2310, 2
      %v2312 = vmax.f32 %v2310, %v2311
      %v2313 = vrot.slane %v2312, 1
      %v2314 = vmax.f32 %v2312, %v2313
      %v2315 = vsel %vm2265, %v2089, -inf
      %v2316 = vrot.slane %v2315, 4
      %v2317 = vmax.f32 %v2315, %v2316
      %v2318 = vrot.slane %v2317, 2
      %v2319 = vmax.f32 %v2317, %v2318
      %v2320 = vrot.slane %v2319, 1
      %v2321 = vmax.f32 %v2319, %v2320
      %vm2322 = vcmask 523271
      %v2323 = vsel %vm2322, %v2034, -inf
      %v2324 = vsel %vm2094, %v2037, -inf
      %v2325 = vmax.f32 %v2323, %v2324
      %v2326 = vrot.slane %v2325, 4
      %v2327 = vmax.f32 %v2325, %v2326
      %v2328 = vrot.slane %v2327, 2
      %v2329 = vmax.f32 %v2327, %v2328
      %v2330 = vrot.slane %v2329, 1
      %v2331 = vmax.f32 %v2329, %v2330
      %v2332 = vsel %vm2322, %v2041, -inf
      %v2333 = vsel %vm2094, %v2045, -inf
      %v2334 = vmax.f32 %v2332, %v2333
      %v2335 = vrot.slane %v2334, 4
      %v2336 = vmax.f32 %v2334, %v2335
      %v2337 = vrot.slane %v2336, 2
      %v2338 = vmax.f32 %v2336, %v2337
      %v2339 = vrot.slane %v2338, 1
      %v2340 = vmax.f32 %v2338, %v2339
      %v2341 = vsel %vm2322, %v2049, -inf
      %v2342 = vsel %vm2094, %v2053, -inf
      %v2343 = vmax.f32 %v2341, %v2342
      %v2344 = vrot.slane %v2343, 4
      %v2345 = vmax.f32 %v2343, %v2344
      %v2346 = vrot.slane %v2345, 2
      %v2347 = vmax.f32 %v2345, %v2346
      %v2348 = vrot.slane %v2347, 1
      %v2349 = vmax.f32 %v2347, %v2348
      %v2350 = vsel %vm2322, %v2057, -inf
      %v2351 = vsel %vm2094, %v2061, -inf
      %v2352 = vmax.f32 %v2350, %v2351
      %v2353 = vrot.slane %v2352, 4
      %v2354 = vmax.f32 %v2352, %v2353
      %v2355 = vrot.slane %v2354, 2
      %v2356 = vmax.f32 %v2354, %v2355
      %v2357 = vrot.slane %v2356, 1
      %v2358 = vmax.f32 %v2356, %v2357
      %v2359 = vsel %vm2322, %v2065, -inf
      %v2360 = vsel %vm2094, %v2069, -inf
      %v2361 = vmax.f32 %v2359, %v2360
      %v2362 = vrot.slane %v2361, 4
      %v2363 = vmax.f32 %v2361, %v2362
      %v2364 = vrot.slane %v2363, 2
      %v2365 = vmax.f32 %v2363, %v2364
      %v2366 = vrot.slane %v2365, 1
      %v2367 = vmax.f32 %v2365, %v2366
      %v2368 = vsel %vm2322, %v2073, -inf
      %v2369 = vsel %vm2094, %v2077, -inf
      %v2370 = vmax.f32 %v2368, %v2369
      %v2371 = vrot.slane %v2370, 4
      %v2372 = vmax.f32 %v2370, %v2371
      %v2373 = vrot.slane %v2372, 2
      %v2374 = vmax.f32 %v2372, %v2373
      %v2375 = vrot.slane %v2374, 1
      %v2376 = vmax.f32 %v2374, %v2375
      %v2377 = vsel %vm2322, %v2081, -inf
      %v2378 = vsel %vm2094, %v2085, -inf
      %v2379 = vmax.f32 %v2377, %v2378
      %v2380 = vrot.slane %v2379, 4
      %v2381 = vmax.f32 %v2379, %v2380
      %v2382 = vrot.slane %v2381, 2
      %v2383 = vmax.f32 %v2381, %v2382
      %v2384 = vrot.slane %v2383, 1
      %v2385 = vmax.f32 %v2383, %v2384
      %v2386 = vsel %vm2322, %v2089, -inf
      %v2387 = vsel %vm2094, %v2093, -inf
      %v2388 = vmax.f32 %v2386, %v2387
      %v2389 = vrot.slane %v2388, 4
      %v2390 = vmax.f32 %v2388, %v2389
      %v2391 = vrot.slane %v2390, 2
      %v2392 = vmax.f32 %v2390, %v2391
      %v2393 = vrot.slane %v2392, 1
      %v2394 = vmax.f32 %v2392, %v2393
      %v2395 = vsel %vm2151, %v2037, -inf
      %v2396 = vrot.slane %v2395, 4
      %v2397 = vmax.f32 %v2395, %v2396
      %v2398 = vrot.slane %v2397, 2
      %v2399 = vmax.f32 %v2397, %v2398
      %v2400 = vrot.slane %v2399, 1
      %v2401 = vmax.f32 %v2399, %v2400
      %v2402 = vsel %vm2151, %v2045, -inf
      %v2403 = vrot.slane %v2402, 4
      %v2404 = vmax.f32 %v2402, %v2403
      %v2405 = vrot.slane %v2404, 2
      %v2406 = vmax.f32 %v2404, %v2405
      %v2407 = vrot.slane %v2406, 1
      %v2408 = vmax.f32 %v2406, %v2407
      %v2409 = vsel %vm2151, %v2053, -inf
      %v2410 = vrot.slane %v2409, 4
      %v2411 = vmax.f32 %v2409, %v2410
      %v2412 = vrot.slane %v2411, 2
      %v2413 = vmax.f32 %v2411, %v2412
      %v2414 = vrot.slane %v2413, 1
      %v2415 = vmax.f32 %v2413, %v2414
      %v2416 = vsel %vm2151, %v2061, -inf
      %v2417 = vrot.slane %v2416, 4
      %v2418 = vmax.f32 %v2416, %v2417
      %v2419 = vrot.slane %v2418, 2
      %v2420 = vmax.f32 %v2418, %v2419
      %v2421 = vrot.slane %v2420, 1
      %v2422 = vmax.f32 %v2420, %v2421
      %v2423 = vsel %vm2151, %v2069, -inf
      %v2424 = vrot.slane %v2423, 4
      %v2425 = vmax.f32 %v2423, %v2424
      %v2426 = vrot.slane %v2425, 2
      %v2427 = vmax.f32 %v2425, %v2426
      %v2428 = vrot.slane %v2427, 1
      %v2429 = vmax.f32 %v2427, %v2428
      %v2430 = vsel %vm2151, %v2077, -inf
      %v2431 = vrot.slane %v2430, 4
      %v2432 = vmax.f32 %v2430, %v2431
      %v2433 = vrot.slane %v2432, 2
      %v2434 = vmax.f32 %v2432, %v2433
      %v2435 = vrot.slane %v2434, 1
      %v2436 = vmax.f32 %v2434, %v2435
      %v2437 = vsel %vm2151, %v2085, -inf
      %v2438 = vrot.slane %v2437, 4
      %v2439 = vmax.f32 %v2437, %v2438
      %v2440 = vrot.slane %v2439, 2
      %v2441 = vmax.f32 %v2439, %v2440
      %v2442 = vrot.slane %v2441, 1
      %v2443 = vmax.f32 %v2441, %v2442
      %v2444 = vsel %vm2151, %v2093, -inf
      %v2445 = vrot.slane %v2444, 4
      %v2446 = vmax.f32 %v2444, %v2445
      %v2447 = vrot.slane %v2446, 2
      %v2448 = vmax.f32 %v2446, %v2447
      %v2449 = vrot.slane %v2448, 1
      %v2450 = vmax.f32 %v2448, %v2449
      %v2451 = vsel %vm2208, %v2037, -inf
      %v2452 = vrot.slane %v2451, 4
      %v2453 = vmax.f32 %v2451, %v2452
      %v2454 = vrot.slane %v2453, 2
      %v2455 = vmax.f32 %v2453, %v2454
      %v2456 = vrot.slane %v2455, 1
      %v2457 = vmax.f32 %v2455, %v2456
      %v2458 = vsel %vm2208, %v2045, -inf
      %v2459 = vrot.slane %v2458, 4
      %v2460 = vmax.f32 %v2458, %v2459
      %v2461 = vrot.slane %v2460, 2
      %v2462 = vmax.f32 %v2460, %v2461
      %v2463 = vrot.slane %v2462, 1
      %v2464 = vmax.f32 %v2462, %v2463
      %v2465 = vsel %vm2208, %v2053, -inf
      %v2466 = vrot.slane %v2465, 4
      %v2467 = vmax.f32 %v2465, %v2466
      %v2468 = vrot.slane %v2467, 2
      %v2469 = vmax.f32 %v2467, %v2468
      %v2470 = vrot.slane %v2469, 1
      %v2471 = vmax.f32 %v2469, %v2470
      %v2472 = vsel %vm2208, %v2061, -inf
      %v2473 = vrot.slane %v2472, 4
      %v2474 = vmax.f32 %v2472, %v2473
      %v2475 = vrot.slane %v2474, 2
      %v2476 = vmax.f32 %v2474, %v2475
      %v2477 = vrot.slane %v2476, 1
      %v2478 = vmax.f32 %v2476, %v2477
      %v2479 = vsel %vm2208, %v2069, -inf
      %v2480 = vrot.slane %v2479, 4
      %v2481 = vmax.f32 %v2479, %v2480
      %v2482 = vrot.slane %v2481, 2
      %v2483 = vmax.f32 %v2481, %v2482
      %v2484 = vrot.slane %v2483, 1
      %v2485 = vmax.f32 %v2483, %v2484
      %v2486 = vsel %vm2208, %v2077, -inf
      %v2487 = vrot.slane %v2486, 4
      %v2488 = vmax.f32 %v2486, %v2487
      %v2489 = vrot.slane %v2488, 2
      %v2490 = vmax.f32 %v2488, %v2489
      %v2491 = vrot.slane %v2490, 1
      %v2492 = vmax.f32 %v2490, %v2491
      %v2493 = vsel %vm2208, %v2085, -inf
      %v2494 = vrot.slane %v2493, 4
      %v2495 = vmax.f32 %v2493, %v2494
      %v2496 = vrot.slane %v2495, 2
      %v2497 = vmax.f32 %v2495, %v2496
      %v2498 = vrot.slane %v2497, 1
      %v2499 = vmax.f32 %v2497, %v2498
      %v2500 = vsel %vm2208, %v2093, -inf
      %v2501 = vrot.slane %v2500, 4
      %v2502 = vmax.f32 %v2500, %v2501
      %v2503 = vrot.slane %v2502, 2
      %v2504 = vmax.f32 %v2502, %v2503
      %v2505 = vrot.slane %v2504, 1
      %v2506 = vmax.f32 %v2504, %v2505
      %v2507 = vsel %vm2265, %v2037, -inf
      %v2508 = vrot.slane %v2507, 4
      %v2509 = vmax.f32 %v2507, %v2508
      %v2510 = vrot.slane %v2509, 2
      %v2511 = vmax.f32 %v2509, %v2510
      %v2512 = vrot.slane %v2511, 1
      %v2513 = vmax.f32 %v2511, %v2512
      %v2514 = vsel %vm2265, %v2045, -inf
      %v2515 = vrot.slane %v2514, 4
      %v2516 = vmax.f32 %v2514, %v2515
      %v2517 = vrot.slane %v2516, 2
      %v2518 = vmax.f32 %v2516, %v2517
      %v2519 = vrot.slane %v2518, 1
      %v2520 = vmax.f32 %v2518, %v2519
      %v2521 = vsel %vm2265, %v2053, -inf
      %v2522 = vrot.slane %v2521, 4
      %v2523 = vmax.f32 %v2521, %v2522
      %v2524 = vrot.slane %v2523, 2
      %v2525 = vmax.f32 %v2523, %v2524
      %v2526 = vrot.slane %v2525, 1
      %v2527 = vmax.f32 %v2525, %v2526
      %v2528 = vsel %vm2265, %v2061, -inf
      %v2529 = vrot.slane %v2528, 4
      %v2530 = vmax.f32 %v2528, %v2529
      %v2531 = vrot.slane %v2530, 2
      %v2532 = vmax.f32 %v2530, %v2531
      %v2533 = vrot.slane %v2532, 1
      %v2534 = vmax.f32 %v2532, %v2533
      %v2535 = vsel %vm2265, %v2069, -inf
      %v2536 = vrot.slane %v2535, 4
      %v2537 = vmax.f32 %v2535, %v2536
      %v2538 = vrot.slane %v2537, 2
      %v2539 = vmax.f32 %v2537, %v2538
      %v2540 = vrot.slane %v2539, 1
      %v2541 = vmax.f32 %v2539, %v2540
      %v2542 = vsel %vm2265, %v2077, -inf
      %v2543 = vrot.slane %v2542, 4
      %v2544 = vmax.f32 %v2542, %v2543
      %v2545 = vrot.slane %v2544, 2
      %v2546 = vmax.f32 %v2544, %v2545
      %v2547 = vrot.slane %v2546, 1
      %v2548 = vmax.f32 %v2546, %v2547
      %v2549 = vsel %vm2265, %v2085, -inf
      %v2550 = vrot.slane %v2549, 4
      %v2551 = vmax.f32 %v2549, %v2550
      %v2552 = vrot.slane %v2551, 2
      %v2553 = vmax.f32 %v2551, %v2552
      %v2554 = vrot.slane %v2553, 1
      %v2555 = vmax.f32 %v2553, %v2554
      %v2556 = vsel %vm2265, %v2093, -inf
      %v2557 = vrot.slane %v2556, 4
      %v2558 = vmax.f32 %v2556, %v2557
      %v2559 = vrot.slane %v2558, 2
      %v2560 = vmax.f32 %v2558, %v2559
      %v2561 = vrot.slane %v2560, 1
      %v2562 = vmax.f32 %v2560, %v2561
      %v2563 = vsel %vm300, %v2101, %v2158
      %v2564 = vsel %vm300, %v2108, %v2165
      %v2565 = vsel %vm300, %v2115, %v2172
      %v2566 = vsel %vm300, %v2122, %v2179
      %v2567 = vsel %vm300, %v2129, %v2186
      %v2568 = vsel %vm300, %v2136, %v2193
      %v2569 = vsel %vm300, %v2143, %v2200
      %v2570 = vsel %vm300, %v2150, %v2207
      %vm2571 = vcmask 1041408
      %v2572 = vsel %vm2571, %v2563, %v2215
      %v2573 = vsel %vm2571, %v2564, %v2222
      %v2574 = vsel %vm2571, %v2565, %v2229
      %v2575 = vsel %vm2571, %v2566, %v2236
      %v2576 = vsel %vm2571, %v2567, %v2243
      %v2577 = vsel %vm2571, %v2568, %v2250
      %v2578 = vsel %vm2571, %v2569, %v2257
      %v2579 = vsel %vm2571, %v2570, %v2264
      %vm2580 = vcmask 1042432
      %v2581 = vsel %vm2580, %v2572, %v2272
      %v2582 = vsel %vm2580, %v2573, %v2279
      %v2583 = vsel %vm2580, %v2574, %v2286
      %v2584 = vsel %vm2580, %v2575, %v2293
      %v2585 = vsel %vm2580, %v2576, %v2300
      %v2586 = vsel %vm2580, %v2577, %v2307
      %v2587 = vsel %vm2580, %v2578, %v2314
      %v2588 = vsel %vm2580, %v2579, %v2321
      %vm2589 = vcmask 1043456
      %v2590 = vsel %vm2589, %v2581, %v2331
      %v2591 = vsel %vm2589, %v2582, %v2340
      %v2592 = vsel %vm2589, %v2583, %v2349
      %v2593 = vsel %vm2589, %v2584, %v2358
      %v2594 = vsel %vm2589, %v2585, %v2367
      %v2595 = vsel %vm2589, %v2586, %v2376
      %v2596 = vsel %vm2589, %v2587, %v2385
      %v2597 = vsel %vm2589, %v2588, %v2394
      %vm2598 = vcmask 1044480
      %v2599 = vsel %vm2598, %v2590, %v2401
      %v2600 = vsel %vm2598, %v2591, %v2408
      %v2601 = vsel %vm2598, %v2592, %v2415
      %v2602 = vsel %vm2598, %v2593, %v2422
      %v2603 = vsel %vm2598, %v2594, %v2429
      %v2604 = vsel %vm2598, %v2595, %v2436
      %v2605 = vsel %vm2598, %v2596, %v2443
      %v2606 = vsel %vm2598, %v2597, %v2450
      %v2607 = vsel %vm547, %v2599, %v2457
      %v2608 = vsel %vm547, %v2600, %v2464
      %v2609 = vsel %vm547, %v2601, %v2471
      %v2610 = vsel %vm547, %v2602, %v2478
      %v2611 = vsel %vm547, %v2603, %v2485
      %v2612 = vsel %vm547, %v2604, %v2492
      %v2613 = vsel %vm547, %v2605, %v2499
      %v2614 = vsel %vm547, %v2606, %v2506
      %v2615 = vsel %vm466, %v2607, %v2513
      %v2616 = vsel %vm466, %v2608, %v2520
      %v2617 = vsel %vm466, %v2609, %v2527
      %v2618 = vsel %vm466, %v2610, %v2534
      %v2619 = vsel %vm466, %v2611, %v2541
      %v2620 = vsel %vm466, %v2612, %v2548
      %v2621 = vsel %vm466, %v2613, %v2555
      %v2622 = vsel %vm466, %v2614, %v2562
      %v2623 = vld [vmem:[%s3] sm:$0xff]
      %v2624 = vld [vmem:[%s3 + $0x8] sm:$0xff]
      %v2625 = vld [vmem:[%s3 + $0x10] sm:$0xff]
      %v2626 = vld [vmem:[%s3 + $0x18] sm:$0xff]
      %v2627 = vld [vmem:[%s3 + $0x20] sm:$0xff]
      %v2628 = vld [vmem:[%s3 + $0x28] sm:$0xff]
      %v2629 = vld [vmem:[%s3 + $0x30] sm:$0xff]
      %v2630 = vld [vmem:[%s3 + $0x38] sm:$0xff]
      %v2631 = vld [vmem:[%s3 + $0x40] sm:$0xff]
      %v2632 = vld [vmem:[%s3 + $0x48] sm:$0xff]
      %v2633 = vld [vmem:[%s3 + $0x50] sm:$0xff]
      %v2634 = vld [vmem:[%s3 + $0x58] sm:$0xff]
      %v2635 = vld [vmem:[%s3 + $0x60] sm:$0xff]
      %v2636 = vld [vmem:[%s3 + $0x68] sm:$0xff]
      %v2637 = vld [vmem:[%s3 + $0x70] sm:$0xff]
      %v2638 = vld [vmem:[%s3 + $0x78] sm:$0xff]
      %v2639 = vld [vmem:[%s3 + $0x80] sm:$0xff]
      %v2640 = vld [vmem:[%s3 + $0x88] sm:$0xff]
      %v2641 = vld [vmem:[%s3 + $0x90] sm:$0xff]
      %v2642 = vld [vmem:[%s3 + $0x98] sm:$0xff]
      %v2643 = vld [vmem:[%s3 + $0xa0] sm:$0xff]
      %v2644 = vld [vmem:[%s3 + $0xa8] sm:$0xff]
      %v2645 = vld [vmem:[%s3 + $0xb0] sm:$0xff]
      %v2646 = vld [vmem:[%s3 + $0xb8] sm:$0xff]
      %v2647 = vld [vmem:[%s3 + $0xc0] sm:$0xff]
      %v2648 = vld [vmem:[%s3 + $0xc8] sm:$0xff]
      %v2649 = vld [vmem:[%s3 + $0xd0] sm:$0xff]
      %v2650 = vld [vmem:[%s3 + $0xd8] sm:$0xff]
      %v2651 = vld [vmem:[%s3 + $0xe0] sm:$0xff]
      %v2652 = vld [vmem:[%s3 + $0xe8] sm:$0xff]
      %v2653 = vld [vmem:[%s3 + $0xf0] sm:$0xff]
      %v2654 = vld [vmem:[%s3 + $0xf8] sm:$0xff]
      %v2655 = vld [vmem:[%s3 + $0x100] sm:$0xff]
      %v2656 = vld [vmem:[%s3 + $0x108] sm:$0xff]
      %v2657 = vld [vmem:[%s3 + $0x110] sm:$0xff]
      %v2658 = vld [vmem:[%s3 + $0x118] sm:$0xff]
      %v2659 = vld [vmem:[%s3 + $0x120] sm:$0xff]
      %v2660 = vld [vmem:[%s3 + $0x128] sm:$0xff]
      %v2661 = vld [vmem:[%s3 + $0x130] sm:$0xff]
      %v2662 = vld [vmem:[%s3 + $0x138] sm:$0xff]
      %v2663 = vld [vmem:[%s3 + $0x140] sm:$0xff]
      %v2664 = vld [vmem:[%s3 + $0x148] sm:$0xff]
      %v2665 = vld [vmem:[%s3 + $0x150] sm:$0xff]
      %v2666 = vld [vmem:[%s3 + $0x158] sm:$0xff]
      %v2667 = vld [vmem:[%s3 + $0x160] sm:$0xff]
      %v2668 = vld [vmem:[%s3 + $0x168] sm:$0xff]
      %v2669 = vld [vmem:[%s3 + $0x170] sm:$0xff]
      %v2670 = vld [vmem:[%s3 + $0x178] sm:$0xff]
      %v2671 = vld [vmem:[%s3 + $0x180] sm:$0xff]
      %v2672 = vld [vmem:[%s3 + $0x188] sm:$0xff]
      %v2673 = vld [vmem:[%s3 + $0x190] sm:$0xff]
      %v2674 = vld [vmem:[%s3 + $0x198] sm:$0xff]
      %v2675 = vld [vmem:[%s3 + $0x1a0] sm:$0xff]
      %v2676 = vld [vmem:[%s3 + $0x1a8] sm:$0xff]
      %v2677 = vld [vmem:[%s3 + $0x1b0] sm:$0xff]
      %v2678 = vld [vmem:[%s3 + $0x1b8] sm:$0xff]
      %v2679 = vld [vmem:[%s3 + $0x1c0] sm:$0xff]
      %v2680 = vld [vmem:[%s3 + $0x1c8] sm:$0xff]
      %v2681 = vld [vmem:[%s3 + $0x1d0] sm:$0xff]
      %v2682 = vld [vmem:[%s3 + $0x1d8] sm:$0xff]
      %v2683 = vld [vmem:[%s3 + $0x1e0] sm:$0xff]
      %v2684 = vld [vmem:[%s3 + $0x1e8] sm:$0xff]
      %v2685 = vld [vmem:[%s3 + $0x1f0] sm:$0xff]
      %v2686 = vld [vmem:[%s3 + $0x1f8] sm:$0xff]
      %v2687 = vld [vmem:[%s3 + $0x200] sm:$0xff]
      %v2688 = vld [vmem:[%s3 + $0x208] sm:$0xff]
      %v2689 = vld [vmem:[%s3 + $0x210] sm:$0xff]
      %v2690 = vld [vmem:[%s3 + $0x218] sm:$0xff]
      %v2691 = vld [vmem:[%s3 + $0x220] sm:$0xff]
      %v2692 = vld [vmem:[%s3 + $0x228] sm:$0xff]
      %v2693 = vld [vmem:[%s3 + $0x230] sm:$0xff]
      %v2694 = vld [vmem:[%s3 + $0x238] sm:$0xff]
      %v2695 = vld [vmem:[%s4] sm:$0x1]
      %v2704 = vrot.slane %v2615, 7
      %v2705 = vrot.slane %v2616, 7
      %v2706 = vrot.slane %v2617, 7
      %v2707 = vrot.slane %v2618, 7
      %v2708 = vrot.slane %v2619, 7
      %v2709 = vrot.slane %v2620, 7
      %v2710 = vrot.slane %v2621, 7
      %v2711 = vrot.slane %v2622, 7
      %v2720 = vsel %vm300, 0.0, %v2704
      %v2721 = vsel %vm300, 0.0, %v2705
      %v2722 = vsel %vm300, 0.0, %v2706
      %v2723 = vsel %vm300, 0.0, %v2707
      %v2724 = vsel %vm300, 0.0, %v2708
      %v2725 = vsel %vm300, 0.0, %v2709
      %v2726 = vsel %vm300, 0.0, %v2710
      %v2727 = vsel %vm300, 0.0, %v2711
      %v2728 = vsel %vm300, %v2704, 0.0
      %v2729 = vsel %vm300, %v2705, 0.0
      %v2730 = vsel %vm300, %v2706, 0.0
      %v2731 = vsel %vm300, %v2707, 0.0
      %v2732 = vsel %vm300, %v2708, 0.0
      %v2733 = vsel %vm300, %v2709, 0.0
      %v2734 = vsel %vm300, %v2710, 0.0
      %v2735 = vsel %vm300, %v2711, 0.0
      %v2750 = vsel %vm466, %v467, %v470
      %v2751 = vrot.slane %v2720, 1
      %v2752 = vrot.slane %v2728, 1
      %v2753 = vsel %vm466, %v2751, %v2752
      %v2754 = vrot.slane %v2721, 1
      %v2755 = vrot.slane %v2729, 1
      %v2756 = vsel %vm466, %v2754, %v2755
      %v2757 = vrot.slane %v2722, 1
      %v2758 = vrot.slane %v2730, 1
      %v2759 = vsel %vm466, %v2757, %v2758
      %v2760 = vrot.slane %v2723, 1
      %v2761 = vrot.slane %v2731, 1
      %v2762 = vsel %vm466, %v2760, %v2761
      %v2763 = vrot.slane %v2724, 1
      %v2764 = vrot.slane %v2732, 1
      %v2765 = vsel %vm466, %v2763, %v2764
      %v2766 = vrot.slane %v2725, 1
      %v2767 = vrot.slane %v2733, 1
      %v2768 = vsel %vm466, %v2766, %v2767
      %v2769 = vrot.slane %v2726, 1
      %v2770 = vrot.slane %v2734, 1
      %v2771 = vsel %vm466, %v2769, %v2770
      %v2772 = vsel %vm547, %v548, %v551
      %v2773 = vrot.slane %v2720, 2
      %v2774 = vrot.slane %v2728, 2
      %v2775 = vsel %vm547, %v2773, %v2774
      %v2776 = vrot.slane %v2721, 2
      %v2777 = vrot.slane %v2729, 2
      %v2778 = vsel %vm547, %v2776, %v2777
      %v2779 = vrot.slane %v2722, 2
      %v2780 = vrot.slane %v2730, 2
      %v2781 = vsel %vm547, %v2779, %v2780
      %v2782 = vrot.slane %v2723, 2
      %v2783 = vrot.slane %v2731, 2
      %v2784 = vsel %vm547, %v2782, %v2783
      %v2785 = vrot.slane %v2724, 2
      %v2786 = vrot.slane %v2732, 2
      %v2787 = vsel %vm547, %v2785, %v2786
      %v2788 = vrot.slane %v2725, 2
      %v2789 = vrot.slane %v2733, 2
      %v2790 = vsel %vm547, %v2788, %v2789
      %v2791 = vrot.slane %v2726, 2
      %v2792 = vrot.slane %v2734, 2
      %v2793 = vsel %vm547, %v2791, %v2792
      %v2804 = vrot.slane %v2727, 1
      %v2805 = vrot.slane %v2735, 1
      %v2806 = vsel %vm466, %v2804, %v2805
      %v2815 = vrot.slane %v2727, 2
      %v2816 = vrot.slane %v2735, 2
      %v2817 = vsel %vm547, %v2815, %v2816
      %2818 = vrot.lane.b32.xlu0 %v2750, 64
      %v2819 = vpop.permute.xlu0 %2818
      %2820 = vrot.lane.b32.xlu0 %v2753, 64
      %v2821 = vpop.permute.xlu0 %2820
      %2822 = vrot.lane.b32.xlu0 %v2756, 64
      %v2823 = vpop.permute.xlu0 %2822
      %2824 = vrot.lane.b32.xlu0 %v2759, 64
      %v2825 = vpop.permute.xlu0 %2824
      %2826 = vrot.lane.b32.xlu0 %v2762, 64
      %v2827 = vpop.permute.xlu0 %2826
      %2828 = vrot.lane.b32.xlu0 %v2765, 64
      %v2829 = vpop.permute.xlu0 %2828
      %2830 = vrot.lane.b32.xlu0 %v2768, 64
      %v2831 = vpop.permute.xlu0 %2830
      %2832 = vrot.lane.b32.xlu0 %v2771, 64
      %v2833 = vpop.permute.xlu0 %2832
      %2842 = vrot.lane.b32.xlu0 %v2720, 64
      %v2843 = vpop.permute.xlu0 %2842
      %2844 = vrot.lane.b32.xlu0 %v2721, 64
      %v2845 = vpop.permute.xlu0 %2844
      %2846 = vrot.lane.b32.xlu0 %v2722, 64
      %v2847 = vpop.permute.xlu0 %2846
      %2848 = vrot.lane.b32.xlu0 %v2723, 64
      %v2849 = vpop.permute.xlu0 %2848
      %2850 = vrot.lane.b32.xlu0 %v2724, 64
      %v2851 = vpop.permute.xlu0 %2850
      %2852 = vrot.lane.b32.xlu0 %v2725, 64
      %v2853 = vpop.permute.xlu0 %2852
      %2854 = vrot.lane.b32.xlu0 %v2726, 64
      %v2855 = vpop.permute.xlu0 %2854
      %2856 = vrot.lane.b32.xlu0 %v2727, 64
      %v2857 = vpop.permute.xlu0 %2856
      %2866 = vrot.lane.b32.xlu0 %v2775, 64
      %v2867 = vpop.permute.xlu0 %2866
      %2868 = vrot.lane.b32.xlu0 %v2778, 64
      %v2869 = vpop.permute.xlu0 %2868
      %2870 = vrot.lane.b32.xlu0 %v2781, 64
      %v2871 = vpop.permute.xlu0 %2870
      %2872 = vrot.lane.b32.xlu0 %v2784, 64
      %v2873 = vpop.permute.xlu0 %2872
      %2874 = vrot.lane.b32.xlu0 %v2787, 64
      %v2875 = vpop.permute.xlu0 %2874
      %2876 = vrot.lane.b32.xlu0 %v2790, 64
      %v2877 = vpop.permute.xlu0 %2876
      %2878 = vrot.lane.b32.xlu0 %v2793, 64
      %v2879 = vpop.permute.xlu0 %2878
      %2880 = vrot.lane.b32.xlu0 %v2817, 64
      %v2881 = vpop.permute.xlu0 %2880
      %2890 = vrot.lane.b32.xlu0 %v2806, 64
      %v2891 = vpop.permute.xlu0 %2890
      %v2893 = vsel %vm1639, %v400, %v2819
      %v2894 = vsel %vm1639, %v2720, %v2821
      %v2895 = vsel %vm1639, %v2721, %v2823
      %v2896 = vsel %vm1639, %v2722, %v2825
      %v2897 = vsel %vm1639, %v2723, %v2827
      %v2898 = vsel %vm1639, %v2724, %v2829
      %v2899 = vsel %vm1639, %v2725, %v2831
      %v2900 = vsel %vm1639, %v2726, %v2833
      %v2901 = vsel %vm1639, %v2772, %v2843
      %v2902 = vsel %vm1639, %v2775, %v2845
      %v2903 = vsel %vm1639, %v2778, %v2847
      %v2904 = vsel %vm1639, %v2781, %v2849
      %v2905 = vsel %vm1639, %v2784, %v2851
      %v2906 = vsel %vm1639, %v2787, %v2853
      %v2907 = vsel %vm1639, %v2790, %v2855
      %v2908 = vsel %vm1639, %v2793, %v2857
      %v2909 = vsel %vm1639, %v2753, %v2867
      %v2910 = vsel %vm1639, %v2756, %v2869
      %v2911 = vsel %vm1639, %v2759, %v2871
      %v2912 = vsel %vm1639, %v2762, %v2873
      %v2913 = vsel %vm1639, %v2765, %v2875
      %v2914 = vsel %vm1639, %v2768, %v2877
      %v2915 = vsel %vm1639, %v2771, %v2879
      %v2916 = vsel %vm1639, %v2806, %v2881
      %v2917 = vsel %vm1639, %v2727, %v2891
      %v2919 = vlaneseq
      %v2920 = vshrl.u32 %v2919, 7
      %v2921 = vsub.s32 0, %v2920
      %v2922 = vrot.slane %v2695, %v2921
      %v2924 = vsel %vm1639, %v2778, 0
      %v2926 = vsel %vm1639, %v2781, 0
      %v2928 = vsel %vm1639, %v2784, 0
      %v2930 = vsel %vm1639, %v2787, 0
      %v2932 = vsel %vm1639, %v2790, 0
      %v2934 = vsel %vm1639, %v2793, 0
      %v2936 = vsel %vm1639, %v2817, 0
      %v2938 = vsel %vm1639, %v2772, 0
      %2940 = vmatprep.subr.mxu0 0.0
      %2941 = vmatpush1.msra.mxu0 %v2623
      %2942 = vmatprep.subr.mxu0 0.0
      %2943 = vmatpush1.msra.mxu0 %v2624
      %2944 = vmatprep.subr.mxu0 0.0
      %2945 = vmatpush1.msra.mxu0 %v2625
      %2946 = vmatprep.subr.mxu0 0.0
      %2947 = vmatpush1.msra.mxu0 %v2626
      %2948 = vmatprep.subr.mxu0 0.0
      %2949 = vmatpush1.msra.mxu0 %v2627
      %2950 = vmatprep.subr.mxu0 0.0
      %2951 = vmatpush1.msra.mxu0 %v2628
      %2952 = vmatprep.subr.mxu0 0.0
      %2953 = vmatpush1.msra.mxu0 %v2629
      %2954 = vmatprep.subr.mxu0 0.0
      %2955 = vmatpush1.msra.mxu0 %v2630
      %2956 = vmatprep.subr.mxu0 0.0
      %2957 = vmatpush1.msra.mxu0 %v2631
      %2958 = vmatprep.subr.mxu0 0.0
      %2959 = vmatpush1.msra.mxu0 %v2632
      %2960 = vmatprep.subr.mxu0 0.0
      %2961 = vmatpush1.msra.mxu0 %v2633
      %2962 = vmatprep.subr.mxu0 0.0
      %2963 = vmatpush1.msra.mxu0 %v2634
      %2964 = vmatprep.subr.mxu0 0.0
      %2965 = vmatpush1.msra.mxu0 %v2635
      %2966 = vmatprep.subr.mxu0 0.0
      %2967 = vmatpush1.msra.mxu0 %v2636
      %2968 = vmatprep.subr.mxu0 0.0
      %2969 = vmatpush1.msra.mxu0 %v2637
      %2970 = vmatprep.subr.mxu0 0.0
      %2971 = vmatpush1.msra.mxu0 %v2638
      %2972 = vmatprep.subr.mxu0 0.0
      %2973 = vmatpush1.msra.mxu0 %v2639
      %2974 = vmatprep.subr.mxu0 0.0
      %2975 = vmatpush1.msra.mxu0 %v2640
      %2976 = vmatprep.subr.mxu0 0.0
      %2977 = vmatpush1.msra.mxu0 %v2641
      %2978 = vmatprep.subr.mxu0 0.0
      %2979 = vmatpush1.msra.mxu0 %v2642
      %2980 = vmatprep.subr.mxu0 0.0
      %2981 = vmatpush1.msra.mxu0 %v2643
      %2982 = vmatprep.subr.mxu0 0.0
      %2983 = vmatpush1.msra.mxu0 %v2644
      %2984 = vmatprep.subr.mxu0 0.0
      %2985 = vmatpush1.msra.mxu0 %v2645
      %2986 = vmatprep.subr.mxu0 0.0
      %2987 = vmatpush1.msra.mxu0 %v2646
      %2988 = vmatprep.subr.mxu0 0.0
      %2989 = vmatpush1.msra.mxu0 %v2647
      %2990 = vmatprep.subr.mxu0 0.0
      %2991 = vmatpush1.msra.mxu0 %v2648
      %2992 = vmatprep.subr.mxu0 0.0
      %2993 = vmatpush1.msra.mxu0 %v2649
      %2994 = vmatprep.subr.mxu0 0.0
      %2995 = vmatpush1.msra.mxu0 %v2650
      %2996 = vmatprep.subr.mxu0 0.0
      %2997 = vmatpush1.msra.mxu0 %v2651
      %2998 = vmatprep.subr.mxu0 0.0
      %2999 = vmatpush1.msra.mxu0 %v2652
      %3000 = vmatprep.subr.mxu0 0.0
      %3001 = vmatpush1.msra.mxu0 %v2653
      %3002 = vmatprep.subr.mxu0 0.0
      %3003 = vmatpush1.msra.mxu0 %v2654
      %3004 = vmatprep.mubr.f32.mxu0 %v2901
      %3005 = vmatmul.mubr.f32.gmra.mrb[0].mxu0 %v2893
      %v3006 = vpop.f32.mrb[0].mxu0
      %v3007 = vadd.f32 %v2922, %v3006
      %v3008 = vpop.f32.mrb[0].mxu0
      %3009 = vmatprep.mubr.f32.mxu0 %v2902
      %3010 = vmatmul.mubr.f32.gmra.mrb[0].mxu0 %v2894
      %v3011 = vpop.f32.mrb[0].mxu0
      %v3012 = vadd.f32 %v2922, %v3011
      %v3013 = vpop.f32.mrb[0].mxu0
      %3014 = vmatprep.mubr.f32.mxu0 %v2903
      %3015 = vmatmul.mubr.f32.gmra.mrb[0].mxu0 %v2895
      %v3016 = vpop.f32.mrb[0].mxu0
      %v3017 = vadd.f32 %v2922, %v3016
      %v3018 = vpop.f32.mrb[0].mxu0
      %3019 = vmatprep.mubr.f32.mxu0 %v2904
      %3020 = vmatmul.mubr.f32.gmra.mrb[0].mxu0 %v2896
      %v3021 = vpop.f32.mrb[0].mxu0
      %v3022 = vadd.f32 %v2922, %v3021
      %v3023 = vpop.f32.mrb[0].mxu0
      %3024 = vmatprep.mubr.f32.mxu0 %v2905
      %3025 = vmatmul.mubr.f32.gmra.mrb[0].mxu0 %v2897
      %v3026 = vpop.f32.mrb[0].mxu0
      %v3027 = vadd.f32 %v2922, %v3026
      %v3028 = vpop.f32.mrb[0].mxu0
      %3029 = vmatprep.mubr.f32.mxu0 %v2906
      %3030 = vmatmul.mubr.f32.gmra.mrb[0].mxu0 %v2898
      %v3031 = vpop.f32.mrb[0].mxu0
      %v3032 = vadd.f32 %v2922, %v3031
      %v3033 = vpop.f32.mrb[0].mxu0
      %3034 = vmatprep.mubr.f32.mxu0 %v2907
      %3035 = vmatmul.mubr.f32.gmra.mrb[0].mxu0 %v2899
      %v3036 = vpop.f32.mrb[0].mxu0
      %v3037 = vadd.f32 %v2922, %v3036
      %v3038 = vpop.f32.mrb[0].mxu0
      %3039 = vmatprep.mubr.f32.mxu0 %v2908
      %3040 = vmatmul.mubr.f32.gmra.mrb[0].mxu0 %v2900
      %v3041 = vpop.f32.mrb[0].mxu0
      %v3042 = vadd.f32 %v2922, %v3041
      %v3043 = vpop.f32.mrb[0].mxu0
      %3044 = vdwg.mxu0
      %3045 = vmatprep.subr.mxu0 0.0
      %3046 = vmatpush1.msra.mxu0 %v2655
      %3047 = vmatprep.subr.mxu0 0.0
      %3048 = vmatpush1.msra.mxu0 %v2656
      %3049 = vmatprep.subr.mxu0 0.0
      %3050 = vmatpush1.msra.mxu0 %v2657
      %3051 = vmatprep.subr.mxu0 0.0
      %3052 = vmatpush1.msra.mxu0 %v2658
      %3053 = vmatprep.subr.mxu0 0.0
      %3054 = vmatpush1.msra.mxu0 %v2659
      %3055 = vmatprep.subr.mxu0 0.0
      %3056 = vmatpush1.msra.mxu0 %v2660
      %3057 = vmatprep.subr.mxu0 0.0
      %3058 = vmatpush1.msra.mxu0 %v2661
      %3059 = vmatprep.subr.mxu0 0.0
      %3060 = vmatpush1.msra.mxu0 %v2662
      %3061 = vmatprep.subr.mxu0 0.0
      %3062 = vmatpush1.msra.mxu0 %v2663
      %3063 = vmatprep.subr.mxu0 0.0
      %3064 = vmatpush1.msra.mxu0 %v2664
      %3065 = vmatprep.subr.mxu0 0.0
      %3066 = vmatpush1.msra.mxu0 %v2665
      %3067 = vmatprep.subr.mxu0 0.0
      %3068 = vmatpush1.msra.mxu0 %v2666
      %3069 = vmatprep.subr.mxu0 0.0
      %3070 = vmatpush1.msra.mxu0 %v2667
      %3071 = vmatprep.subr.mxu0 0.0
      %3072 = vmatpush1.msra.mxu0 %v2668
      %3073 = vmatprep.subr.mxu0 0.0
      %3074 = vmatpush1.msra.mxu0 %v2669
      %3075 = vmatprep.subr.mxu0 0.0
      %3076 = vmatpush1.msra.mxu0 %v2670
      %3077 = vmatprep.subr.mxu0 0.0
      %3078 = vmatpush1.msra.mxu0 %v2671
      %3079 = vmatprep.subr.mxu0 0.0
      %3080 = vmatpush1.msra.mxu0 %v2672
      %3081 = vmatprep.subr.mxu0 0.0
      %3082 = vmatpush1.msra.mxu0 %v2673
      %3083 = vmatprep.subr.mxu0 0.0
      %3084 = vmatpush1.msra.mxu0 %v2674
      %3085 = vmatprep.subr.mxu0 0.0
      %3086 = vmatpush1.msra.mxu0 %v2675
      %3087 = vmatprep.subr.mxu0 0.0
      %3088 = vmatpush1.msra.mxu0 %v2676
      %3089 = vmatprep.subr.mxu0 0.0
      %3090 = vmatpush1.msra.mxu0 %v2677
      %3091 = vmatprep.subr.mxu0 0.0
      %3092 = vmatpush1.msra.mxu0 %v2678
      %3093 = vmatprep.subr.mxu0 0.0
      %3094 = vmatpush1.msra.mxu0 %v2679
      %3095 = vmatprep.subr.mxu0 0.0
      %3096 = vmatpush1.msra.mxu0 %v2680
      %3097 = vmatprep.subr.mxu0 0.0
      %3098 = vmatpush1.msra.mxu0 %v2681
      %3099 = vmatprep.subr.mxu0 0.0
      %3100 = vmatpush1.msra.mxu0 %v2682
      %3101 = vmatprep.subr.mxu0 0.0
      %3102 = vmatpush1.msra.mxu0 %v2683
      %3103 = vmatprep.subr.mxu0 0.0
      %3104 = vmatpush1.msra.mxu0 %v2684
      %3105 = vmatprep.subr.mxu0 0.0
      %3106 = vmatpush1.msra.mxu0 %v2685
      %3107 = vmatprep.subr.mxu0 0.0
      %3108 = vmatpush1.msra.mxu0 %v2686
      %3109 = vmatprep.mubr.f32.mxu0 %v2895
      %3110 = vmatmul.mubr.f32.gmra.mrb[0].mxu0 %v2909
      %v3111 = vpop.f32.mrb[0].mxu0
      %v3112 = vadd.f32 %v3007, %v3111
      %v3113 = vpop.f32.mrb[0].mxu0
      %3114 = vmatprep.mubr.f32.mxu0 %v2896
      %3115 = vmatmul.mubr.f32.gmra.mrb[0].mxu0 %v2910
      %v3116 = vpop.f32.mrb[0].mxu0
      %v3117 = vadd.f32 %v3012, %v3116
      %v3118 = vpop.f32.mrb[0].mxu0
      %3119 = vmatprep.mubr.f32.mxu0 %v2897
      %3120 = vmatmul.mubr.f32.gmra.mrb[0].mxu0 %v2911
      %v3121 = vpop.f32.mrb[0].mxu0
      %v3122 = vadd.f32 %v3017, %v3121
      %v3123 = vpop.f32.mrb[0].mxu0
      %3124 = vmatprep.mubr.f32.mxu0 %v2898
      %3125 = vmatmul.mubr.f32.gmra.mrb[0].mxu0 %v2912
      %v3126 = vpop.f32.mrb[0].mxu0
      %v3127 = vadd.f32 %v3022, %v3126
      %v3128 = vpop.f32.mrb[0].mxu0
      %3129 = vmatprep.mubr.f32.mxu0 %v2899
      %3130 = vmatmul.mubr.f32.gmra.mrb[0].mxu0 %v2913
      %v3131 = vpop.f32.mrb[0].mxu0
      %v3132 = vadd.f32 %v3027, %v3131
      %v3133 = vpop.f32.mrb[0].mxu0
      %3134 = vmatprep.mubr.f32.mxu0 %v2900
      %3135 = vmatmul.mubr.f32.gmra.mrb[0].mxu0 %v2914
      %v3136 = vpop.f32.mrb[0].mxu0
      %v3137 = vadd.f32 %v3032, %v3136
      %v3138 = vpop.f32.mrb[0].mxu0
      %3139 = vmatprep.mubr.f32.mxu0 %v2917
      %3140 = vmatmul.mubr.f32.gmra.mrb[0].mxu0 %v2915
      %v3141 = vpop.f32.mrb[0].mxu0
      %v3142 = vadd.f32 %v3037, %v3141
      %v3143 = vpop.f32.mrb[0].mxu0
      %3144 = vmatprep.mubr.f32.mxu0 %v2893
      %3145 = vmatmul.mubr.f32.gmra.mrb[0].mxu0 %v2916
      %v3146 = vpop.f32.mrb[0].mxu0
      %v3147 = vadd.f32 %v3042, %v3146
      %v3148 = vpop.f32.mrb[0].mxu0
      %3149 = vdwg.mxu0
      %3150 = vmatprep.subr.mxu0 0.0
      %3151 = vmatpush1.msra.mxu0 %v2687
      %3152 = vmatprep.subr.mxu0 0.0
      %3153 = vmatpush1.msra.mxu0 %v2688
      %3154 = vmatprep.subr.mxu0 0.0
      %3155 = vmatpush1.msra.mxu0 %v2689
      %3156 = vmatprep.subr.mxu0 0.0
      %3157 = vmatpush1.msra.mxu0 %v2690
      %3158 = vmatprep.subr.mxu0 0.0
      %3159 = vmatpush1.msra.mxu0 %v2691
      %3160 = vmatprep.subr.mxu0 0.0
      %3161 = vmatpush1.msra.mxu0 %v2692
      %3162 = vmatprep.subr.mxu0 0.0
      %3163 = vmatpush1.msra.mxu0 %v2693
      %3164 = vmatprep.subr.mxu0 0.0
      %3165 = vmatpush1.msra.mxu0 %v2694
      %3166 = vmatprep.subr.mxu0 0.0
      %3167 = vmatpush1.msra.mxu0 0.0
      %3168 = vmatprep.subr.mxu0 0.0
      %3169 = vmatpush1.msra.mxu0 0.0
      %3170 = vmatprep.subr.mxu0 0.0
      %3171 = vmatpush1.msra.mxu0 0.0
      %3172 = vmatprep.subr.mxu0 0.0
      %3173 = vmatpush1.msra.mxu0 0.0
      %3174 = vmatprep.subr.mxu0 0.0
      %3175 = vmatpush1.msra.mxu0 0.0
      %3176 = vmatprep.subr.mxu0 0.0
      %3177 = vmatpush1.msra.mxu0 0.0
      %3178 = vmatprep.subr.mxu0 0.0
      %3179 = vmatpush1.msra.mxu0 0.0
      %3180 = vmatprep.subr.mxu0 0.0
      %3181 = vmatpush1.msra.mxu0 0.0
      %3182 = vmatprep.subr.mxu0 0.0
      %3183 = vmatpush1.msra.mxu0 0.0
      %3184 = vmatprep.subr.mxu0 0.0
      %3185 = vmatpush1.msra.mxu0 0.0
      %3186 = vmatprep.subr.mxu0 0.0
      %3187 = vmatpush1.msra.mxu0 0.0
      %3188 = vmatprep.subr.mxu0 0.0
      %3189 = vmatpush1.msra.mxu0 0.0
      %3190 = vmatprep.subr.mxu0 0.0
      %3191 = vmatpush1.msra.mxu0 0.0
      %3192 = vmatprep.subr.mxu0 0.0
      %3193 = vmatpush1.msra.mxu0 0.0
      %3194 = vmatprep.subr.mxu0 0.0
      %3195 = vmatpush1.msra.mxu0 0.0
      %3196 = vmatprep.subr.mxu0 0.0
      %3197 = vmatpush1.msra.mxu0 0.0
      %3198 = vmatprep.subr.mxu0 0.0
      %3199 = vmatpush1.msra.mxu0 0.0
      %3200 = vmatprep.subr.mxu0 0.0
      %3201 = vmatpush1.msra.mxu0 0.0
      %3202 = vmatprep.subr.mxu0 0.0
      %3203 = vmatpush1.msra.mxu0 0.0
      %3204 = vmatprep.subr.mxu0 0.0
      %3205 = vmatpush1.msra.mxu0 0.0
      %3206 = vmatprep.subr.mxu0 0.0
      %3207 = vmatpush1.msra.mxu0 0.0
      %3208 = vmatprep.subr.mxu0 0.0
      %3209 = vmatpush1.msra.mxu0 0.0
      %3210 = vmatprep.subr.mxu0 0.0
      %3211 = vmatpush1.msra.mxu0 0.0
      %3212 = vmatprep.subr.mxu0 0.0
      %3213 = vmatpush1.msra.mxu0 0.0
      %3214 = vmatprep.mubr.f32.mxu0 0.0
      %3215 = vmatmul.mubr.f32.gmra.mrb[0].mxu0 %v2924
      %v3216 = vpop.f32.mrb[0].mxu0
      %v3217 = vadd.f32 %v3112, %v3216
      %v3218 = vpop.f32.mrb[0].mxu0
      %3219 = vmatprep.mubr.f32.mxu0 0.0
      %3220 = vmatmul.mubr.f32.gmra.mrb[0].mxu0 %v2926
      %v3221 = vpop.f32.mrb[0].mxu0
      %v3222 = vadd.f32 %v3117, %v3221
      %v3223 = vpop.f32.mrb[0].mxu0
      %3224 = vmatprep.mubr.f32.mxu0 0.0
      %3225 = vmatmul.mubr.f32.gmra.mrb[0].mxu0 %v2928
      %v3226 = vpop.f32.mrb[0].mxu0
      %v3227 = vadd.f32 %v3122, %v3226
      %v3228 = vpop.f32.mrb[0].mxu0
      %3229 = vmatprep.mubr.f32.mxu0 0.0
      %3230 = vmatmul.mubr.f32.gmra.mrb[0].mxu0 %v2930
      %v3231 = vpop.f32.mrb[0].mxu0
      %v3232 = vadd.f32 %v3127, %v3231
      %v3233 = vpop.f32.mrb[0].mxu0
      %3234 = vmatprep.mubr.f32.mxu0 0.0
      %3235 = vmatmul.mubr.f32.gmra.mrb[0].mxu0 %v2932
      %v3236 = vpop.f32.mrb[0].mxu0
      %v3237 = vadd.f32 %v3132, %v3236
      %v3238 = vpop.f32.mrb[0].mxu0
      %3239 = vmatprep.mubr.f32.mxu0 0.0
      %3240 = vmatmul.mubr.f32.gmra.mrb[0].mxu0 %v2934
      %v3241 = vpop.f32.mrb[0].mxu0
      %v3242 = vadd.f32 %v3137, %v3241
      %v3243 = vpop.f32.mrb[0].mxu0
      %3244 = vmatprep.mubr.f32.mxu0 0.0
      %3245 = vmatmul.mubr.f32.gmra.mrb[0].mxu0 %v2936
      %v3246 = vpop.f32.mrb[0].mxu0
      %v3247 = vadd.f32 %v3142, %v3246
      %v3248 = vpop.f32.mrb[0].mxu0
      %3249 = vmatprep.mubr.f32.mxu0 0.0
      %3250 = vmatmul.mubr.f32.gmra.mrb[0].mxu0 %v2938
      %v3251 = vpop.f32.mrb[0].mxu0
      %v3252 = vadd.f32 %v3147, %v3251
      %v3253 = vpop.f32.mrb[0].mxu0
      %3254 = vdwg.mxu0
      %v3255 = vmax.f32 %v3217, 0.0
      %v3256 = vmax.f32 %v3222, 0.0
      %v3257 = vmax.f32 %v3227, 0.0
      %v3258 = vmax.f32 %v3232, 0.0
      %v3259 = vmax.f32 %v3237, 0.0
      %v3260 = vmax.f32 %v3242, 0.0
      %v3261 = vmax.f32 %v3247, 0.0
      %v3262 = vmax.f32 %v3252, 0.0
      %v3263 = vsel %vm1507, %v3255, -inf
      %v3264 = vsel %vm1507, %v3256, -inf
      %v3265 = vmax.f32 %v3263, %v3264
      %v3266 = vsel %vm1507, %v3257, -inf
      %v3267 = vsel %vm1507, %v3258, -inf
      %v3268 = vmax.f32 %v3264, %v3266
      %v3269 = vmax.f32 %v3268, %v3267
      %v3270 = vsel %vm1507, %v3259, -inf
      %v3271 = vsel %vm1507, %v3260, -inf
      %v3272 = vmax.f32 %v3267, %v3270
      %v3273 = vmax.f32 %v3272, %v3271
      %v3274 = vsel %vm1507, %v3261, -inf
      %v3275 = vsel %vm1507, %v3262, -inf
      %v3276 = vmax.f32 %v3271, %v3274
      %v3277 = vmax.f32 %v3276, %v3275
      %vm3278 = vcmask 254976
      %v3279 = vsel %vm3278, %v3265, -inf
      %v3280 = vrot.slane %v3279, 4
      %v3281 = vmax.f32 %v3279, %v3280
      %v3282 = vrot.slane %v3281, 2
      %v3283 = vmax.f32 %v3281, %v3282
      %v3284 = vrot.slane %v3283, 1
      %v3285 = vmax.f32 %v3283, %v3284
      %v3286 = vsel %vm3278, %v3269, -inf
      %v3287 = vrot.slane %v3286, 4
      %v3288 = vmax.f32 %v3286, %v3287
      %v3289 = vrot.slane %v3288, 2
      %v3290 = vmax.f32 %v3288, %v3289
      %v3291 = vrot.slane %v3290, 1
      %v3292 = vmax.f32 %v3290, %v3291
      %v3293 = vsel %vm3278, %v3273, -inf
      %v3294 = vrot.slane %v3293, 4
      %v3295 = vmax.f32 %v3293, %v3294
      %v3296 = vrot.slane %v3295, 2
      %v3297 = vmax.f32 %v3295, %v3296
      %v3298 = vrot.slane %v3297, 1
      %v3299 = vmax.f32 %v3297, %v3298
      %v3300 = vsel %vm3278, %v3277, -inf
      %v3301 = vrot.slane %v3300, 4
      %v3302 = vmax.f32 %v3300, %v3301
      %v3303 = vrot.slane %v3302, 2
      %v3304 = vmax.f32 %v3302, %v3303
      %v3305 = vrot.slane %v3304, 1
      %v3306 = vmax.f32 %v3304, %v3305
      %vm3307 = vcmask 257025
      %v3308 = vsel %vm3307, %v3265, -inf
      %v3309 = vrot.slane %v3308, 4
      %v3310 = vmax.f32 %v3308, %v3309
      %v3311 = vrot.slane %v3310, 2
      %v3312 = vmax.f32 %v3310, %v3311
      %v3313 = vrot.slane %v3312, 1
      %v3314 = vmax.f32 %v3312, %v3313
      %v3315 = vsel %vm3307, %v3269, -inf
      %v3316 = vrot.slane %v3315, 4
      %v3317 = vmax.f32 %v3315, %v3316
      %v3318 = vrot.slane %v3317, 2
      %v3319 = vmax.f32 %v3317, %v3318
      %v3320 = vrot.slane %v3319, 1
      %v3321 = vmax.f32 %v3319, %v3320
      %v3322 = vsel %vm3307, %v3273, -inf
      %v3323 = vrot.slane %v3322, 4
      %v3324 = vmax.f32 %v3322, %v3323
      %v3325 = vrot.slane %v3324, 2
      %v3326 = vmax.f32 %v3324, %v3325
      %v3327 = vrot.slane %v3326, 1
      %v3328 = vmax.f32 %v3326, %v3327
      %v3329 = vsel %vm3307, %v3277, -inf
      %v3330 = vrot.slane %v3329, 4
      %v3331 = vmax.f32 %v3329, %v3330
      %v3332 = vrot.slane %v3331, 2
      %v3333 = vmax.f32 %v3331, %v3332
      %v3334 = vrot.slane %v3333, 1
      %v3335 = vmax.f32 %v3333, %v3334
      %vm3336 = vcmask 259075
      %v3337 = vsel %vm3336, %v3265, -inf
      %v3338 = vrot.slane %v3337, 4
      %v3339 = vmax.f32 %v3337, %v3338
      %v3340 = vrot.slane %v3339, 2
      %v3341 = vmax.f32 %v3339, %v3340
      %v3342 = vrot.slane %v3341, 1
      %v3343 = vmax.f32 %v3341, %v3342
      %v3344 = vsel %vm3336, %v3269, -inf
      %v3345 = vrot.slane %v3344, 4
      %v3346 = vmax.f32 %v3344, %v3345
      %v3347 = vrot.slane %v3346, 2
      %v3348 = vmax.f32 %v3346, %v3347
      %v3349 = vrot.slane %v3348, 1
      %v3350 = vmax.f32 %v3348, %v3349
      %v3351 = vsel %vm3336, %v3273, -inf
      %v3352 = vrot.slane %v3351, 4
      %v3353 = vmax.f32 %v3351, %v3352
      %v3354 = vrot.slane %v3353, 2
      %v3355 = vmax.f32 %v3353, %v3354
      %v3356 = vrot.slane %v3355, 1
      %v3357 = vmax.f32 %v3355, %v3356
      %v3358 = vsel %vm3336, %v3277, -inf
      %v3359 = vrot.slane %v3358, 4
      %v3360 = vmax.f32 %v3358, %v3359
      %v3361 = vrot.slane %v3360, 2
      %v3362 = vmax.f32 %v3360, %v3361
      %v3363 = vrot.slane %v3362, 1
      %v3364 = vmax.f32 %v3362, %v3363
      %vm3365 = vcmask 261125
      %v3366 = vsel %vm3365, %v3265, -inf
      %v3367 = vrot.slane %v3366, 4
      %v3368 = vmax.f32 %v3366, %v3367
      %v3369 = vrot.slane %v3368, 2
      %v3370 = vmax.f32 %v3368, %v3369
      %v3371 = vrot.slane %v3370, 1
      %v3372 = vmax.f32 %v3370, %v3371
      %v3373 = vsel %vm3365, %v3269, -inf
      %v3374 = vrot.slane %v3373, 4
      %v3375 = vmax.f32 %v3373, %v3374
      %v3376 = vrot.slane %v3375, 2
      %v3377 = vmax.f32 %v3375, %v3376
      %v3378 = vrot.slane %v3377, 1
      %v3379 = vmax.f32 %v3377, %v3378
      %v3380 = vsel %vm3365, %v3273, -inf
      %v3381 = vrot.slane %v3380, 4
      %v3382 = vmax.f32 %v3380, %v3381
      %v3383 = vrot.slane %v3382, 2
      %v3384 = vmax.f32 %v3382, %v3383
      %v3385 = vrot.slane %v3384, 1
      %v3386 = vmax.f32 %v3384, %v3385
      %v3387 = vsel %vm3365, %v3277, -inf
      %v3388 = vrot.slane %v3387, 4
      %v3389 = vmax.f32 %v3387, %v3388
      %v3390 = vrot.slane %v3389, 2
      %v3391 = vmax.f32 %v3389, %v3390
      %v3392 = vrot.slane %v3391, 1
      %v3393 = vmax.f32 %v3391, %v3392
      %v3394 = vsel %vm300, %v3285, %v3314
      %v3395 = vsel %vm300, %v3292, %v3321
      %v3396 = vsel %vm300, %v3299, %v3328
      %v3397 = vsel %vm300, %v3306, %v3335
      %v3398 = vsel %vm2571, %v3394, %v3343
      %v3399 = vsel %vm2571, %v3395, %v3350
      %v3400 = vsel %vm2571, %v3396, %v3357
      %v3401 = vsel %vm2571, %v3397, %v3364
      %v3402 = vsel %vm2580, %v3398, %v3372
      %v3403 = vsel %vm2580, %v3399, %v3379
      %v3404 = vsel %vm2580, %v3400, %v3386
      %v3405 = vsel %vm2580, %v3401, %v3393
      %v3407 = vrot.slane %v3403, 4
      %v3410 = vrot.slane %v3405, 4
      %v3412 = vsel %vm2589, %v3402, %v3407
      %v3413 = vsel %vm2589, %v3404, %v3410
      %3414 = vst.msk [vmem:[%s224] sm:$0xff] %vm1507, %v3412
      %3415 = vst.msk [vmem:[%s224 + $0x8] sm:$0xff] %vm1507, %v3413
      %p3416 = scmp.lt.s32.totalorder %s16, 1
      %s3417 = scalar_select %p3416, %s16, 1
      %s3418 = smul.addr %s3417, 2
      %s3419 = smul.addr %s3418, 8
      %s3420 = scalar_lea.vmem %s5, %s3419
      // Predicated region
      $region41: #{cct_forward.2} parent=39 // pred_check
        %p3421 = pneg %p144
      $region42: #{cct_forward.2} parent=39 // pred_check_branch
        %3423 = sbr.rel (%p3421) target = $region44
      $region43: #{cct_forward.2} parent=39 // pred_region
        _
      $region44: #{cct_forward.2} parent=39 // pred_fallthru
        _
    $region40: #{cct_forward.2} parent=5 // pred_fallthru
      _
    %p3424 = scmp.le.s32.totalorder 2, %s11
    // Predicated region
    $region45: #{cct_forward.2} parent=5 // pred_check
      %p3425 = pneg %p3424
    $region46: #{cct_forward.2} parent=5 // pred_check_branch
      %3427 = sbr.rel (%p3425) target = $region48
    $region47: #{cct_forward.2} parent=5 // pred_region
      %s3428 = ssub.s32 %s11, 2
      // Predicated region
      $region49: #{cct_forward.2} parent=47 // pred_check
        %p3429 = pneg %p150
      $region50: #{cct_forward.2} parent=47 // pred_check_branch
        %3431 = sbr.rel (%p3429) target = $region52
      $region51: #{cct_forward.2} parent=47 // pred_region
        %p3432 = scmp.lt.s32.totalorder %s17, 1
        %s3433 = scalar_select %p3432, %s17, 1
        %s3434 = smul.addr %s3433, 2
        %s3435 = smul.addr %s3434, 8
        %s3436 = scalar_lea.vmem %s5, %s3435
      $region52: #{cct_forward.2} parent=47 // pred_fallthru
        _
    $region48: #{cct_forward.2} parent=5 // pred_fallthru
      _
  $region6: #{cct_forward.2} parent=0 // loop_footer
    %s15 = sadd.s32 1, %s11
  $region7: #{cct_forward.2} parent=0 // loop_footer_branch
    %10 = sbr.rel target = $region3
  $region8: #{cct_forward.2} parent=0 // loop_exit
    _

</llo_original>
